<compile_context>
chip_gen: v5e
topology: v5e:2x2
jax: 0.10.0
libtpu: 0.0.40
codegen_flags: <defaults>
</compile_context>

<pallas_src>
import functools

import jax
import jax.numpy as jnp
from jax.experimental import pallas as pl
from jax.experimental.pallas import tpu as pltpu


_VMEM_LIMIT = 48 * 1024 * 1024


def _round_up(x, m):
    return ((x + m - 1) // m) * m


def _pick_tile(n, target):
    """Largest divisor of n that is <= target (>= 1)."""
    t = max(1, min(n, target))
    while n % t:
        t -= 1
    return t


def _cparams(semantics):
    return pltpu.CompilerParams(dimension_semantics=semantics,
                                vmem_limit_bytes=_VMEM_LIMIT)


# ----------------------------------------------------------------------------
# Pallas kernels
# ----------------------------------------------------------------------------

def _subm_conv_kernel(mode, D, H, W, cout, d_tile,
                      x_ref, sf_ref, bf_ref, w_ref, *args):
    """Fused BN+ReLU + 3x3x3 SubMConv (+ residual add / 1x1 identity projection).

    x_ref  : (1, D, H, PADWC) bf16   lanes = (w_pad, cin), pad lanes zero
    sf/bf  : (1, PADWC) f32          BN scale / bias rows, zero on pad lanes
    w_ref  : (9*PADWC, W*cout) bf16  banded weight, kw taps folded into K
    idt_ref: (1, d_tile, H, W*cid) bf16   (mode "add" / "project")
    wi_ref : (W*cid, W*cout) bf16         (mode "project")
    o_ref  : (1, d_tile, H, W*cout)
    act_ref: (D+2, H+2, PADWC) bf16 scratch (zero-padded BN+ReLU activation)
    """
    if mode == "none":
        o_ref, act_ref = args
        idt_ref = wi_ref = None
    elif mode == "add":
        idt_ref, o_ref, act_ref = args
        wi_ref = None
    else:  # "project"
        idt_ref, wi_ref, o_ref, act_ref = args

    t = pl.program_id(1)

    # BN+ReLU and the scratch fill happen once per batch element (t == 0); the
    # x block index is constant over t so its DMA also happens once per batch.
    # The border rows/lanes stay exactly zero (padding=1 semantics).
    @pl.when(t == 0)
    def _fill():
        act_ref[...] = jnp.zeros_like(act_ref)
        a = jnp.maximum(x_ref[0].astype(jnp.float32) * sf_ref[0] + bf_ref[0], 0.0)
        act_ref[1:D + 1, 1:H + 1, :] = a.astype(act_ref.dtype)

    m = d_tile * H
    d0 = pl.multiple_of(t * d_tile, d_tile)

    # 9 shifted (kd, kh) views gathered from VMEM; kw taps live in the lane dim
    # and are handled by the banded weight, so the concat is 128-lane aligned.
    # The whole depth tile is folded into the matmul M dimension.
    pieces = []
    for kd in range(3):
        for kh in range(3):
            blk = act_ref[pl.ds(d0 + kd, d_tile), kh:kh + H, :]
            pieces.append(blk.reshape(m, -1))
    col = jnp.concatenate(pieces, axis=-1)                       # (m, 9*PADWC) bf16
    acc = jnp.dot(col, w_ref[...], preferred_element_type=jnp.float32)

    if mode == "add":
        acc = acc + idt_ref[0].reshape(m, W * cout).astype(jnp.float32)
    elif mode == "project":
        acc = acc + jnp.dot(idt_ref[0].reshape(m, -1), wi_ref[...],
                            preferred_element_type=jnp.float32)

    o_ref[0] = acc.reshape(d_tile, H, W * cout).astype(o_ref.dtype)


def _gemm_bn_relu_kernel(x_ref, sf_ref, bf_ref, w_ref, o_ref):
    """Fused BN+ReLU + dense matmul, shared by the 2x2x2 down / up convs.

    x_ref : (1, d_tile, HW, K) bf16   (K = 8*c0 for down, c1 for up)
    sf/bf : (1, K) f32
    w_ref : (K, N) bf16               dense weight, no structural zeros
    o_ref : (1, d_tile, HW, N)
    """
    _, dt, hw, k = x_ref.shape
    a = jnp.maximum(x_ref[0].astype(jnp.float32) * sf_ref[0] + bf_ref[0], 0.0)
    y = jnp.dot(a.reshape(dt * hw, k).astype(jnp.bfloat16), w_ref[...],
                preferred_element_type=jnp.float32)
    o_ref[0] = y.reshape(dt, hw, -1).astype(o_ref.dtype)


# ----------------------------------------------------------------------------
# Wrapper-side weight / BN restructuring (plain JAX on tiny arrays)
# ----------------------------------------------------------------------------

def _build_subm_weight(w27, W, padwc):
    # (27, cin, cout) -> (9*padwc, W*cout): the kw taps become a banded
    # (Toeplitz-over-W) matrix so the kernel only needs 9 lane-aligned gathers.
    _, cin, cout = w27.shape
    w5 = w27.reshape(3, 3, 3, cin, cout)                       # (kd, kh, kw, ci, co)
    sel = jnp.stack([jnp.eye(W + 2, W, k=-kw, dtype=w27.dtype)
                     for kw in range(3)])                      # (kw, w_pad, w_out)
    blk = jnp.einsum('dhkio,kpw->dhpiwo', w5, sel)             # (3,3,W+2,ci,W,co)
    blk = blk.reshape(9, (W + 2) * cin, W * cout)
    blk = jnp.pad(blk, ((0, 0), (0, padwc - (W + 2) * cin), (0, 0)))
    return blk.reshape(9 * padwc, W * cout).astype(jnp.bfloat16)


def _build_block_diag(w_io, W):
    # (cin, cout) -> (W*cin, W*cout): 1x1 conv as a block-diagonal over w.
    cin, cout = w_io.shape
    eye = jnp.eye(W, dtype=w_io.dtype)
    m = jnp.einsum('io,wv->wivo', w_io, eye)
    return m.reshape(W * cin, W * cout).astype(jnp.bfloat16)


# ----------------------------------------------------------------------------
# pallas_call wrappers
# ----------------------------------------------------------------------------

def subm_conv3(x, bn, w27, identity=None, wi=None):
    """BN -> ReLU -> SubMConv3d(k=3, pad=1) [+ fused identity / 1x1 residual]."""
    B, D, H, W, cin = x.shape
    cout = w27.shape[-1]
    padwc = _round_up((W + 2) * cin, 128)
    d_tile = _pick_tile(D, 4)            # d_tile*H matmul rows; >=2 steps/batch
    nt = D // d_tile

    # Lane-padded bf16 input (no full-volume HBM pad): data at [cin, (W+1)*cin).
    xr = x.reshape(B, D, H, W * cin).astype(jnp.bfloat16)
    xr = jnp.pad(xr, ((0, 0), (0, 0), (0, 0), (cin, padwc - (W + 1) * cin)))

    # Single-row BN scale / bias, zeroed on padding lanes so padding stays 0.
    sf = jnp.zeros((1, padwc), jnp.float32).at[0, cin:(W + 1) * cin].set(
        jnp.tile(bn[0], W))
    bf = jnp.zeros((1, padwc), jnp.float32).at[0, cin:(W + 1) * cin].set(
        jnp.tile(bn[1], W))

    wbig = _build_subm_weight(w27, W, padwc)            # (9*padwc, W*cout) bf16

    in_specs = [
        pl.BlockSpec((1, D, H, padwc), lambda b, t: (b, 0, 0, 0)),
        pl.BlockSpec((1, padwc), lambda b, t: (0, 0)),
        pl.BlockSpec((1, padwc), lambda b, t: (0, 0)),
        pl.BlockSpec((9 * padwc, W * cout), lambda b, t: (0, 0)),
    ]
    args = [xr, sf, bf, wbig]

    if identity is None:
        mode = "none"
    else:
        cid = identity.shape[-1]
        args.append(identity.reshape(B, D, H, W * cid).astype(jnp.bfloat16))
        in_specs.append(pl.BlockSpec((1, d_tile, H, W * cid),
                                     lambda b, t: (b, t, 0, 0)))
        if wi is None:
            mode = "add"          # cin == cout: exact residual add (f32)
        else:
            mode = "project"      # SubMConv3d(k=1) identity branch, fused
            args.append(_build_block_diag(wi, W))
            in_specs.append(pl.BlockSpec((W * cid, W * cout),
                                         lambda b, t: (0, 0)))

    out = pl.pallas_call(
        functools.partial(_subm_conv_kernel, mode, D, H, W, cout, d_tile),
        grid=(B, nt),
        in_specs=in_specs,
        out_specs=pl.BlockSpec((1, d_tile, H, W * cout),
                               lambda b, t: (b, t, 0, 0)),
        out_shape=jax.ShapeDtypeStruct((B, D, H, W * cout), jnp.bfloat16),
        scratch_shapes=[pltpu.VMEM((D + 2, H + 2, padwc), jnp.bfloat16)],
        compiler_params=_cparams(("parallel", "arbitrary")),
    )(*args)
    return out.reshape(B, D, H, W, cout)


def down_conv(x, bn, w8):
    """BN -> ReLU -> SparseConv3d(k=2, s=2): (B,D,H,W,c0) -> (B,D/2,H/2,W/2,c1)."""
    B, D, H, W, c0 = x.shape
    c1 = w8.shape[-1]
    D2, H2, W2 = D // 2, H // 2, W // 2
    d_tile = _pick_tile(D2, 2)
    nt = D2 // d_tile

    # Make the 2x2x2 taps lane-contiguous in the wrapper (one small bf16
    # transpose) so the kernel is a dense (M, 8*c0) @ (8*c0, c1) matmul.
    x2 = x.reshape(B, D2, 2, H2, 2, W2, 2, c0)
    x2 = x2.transpose(0, 1, 3, 5, 2, 4, 6, 7).reshape(B, D2, H2 * W2, 8 * c0)
    x2 = x2.astype(jnp.bfloat16)

    sf = jnp.tile(bn[0], 8).reshape(1, 8 * c0).astype(jnp.float32)
    bf = jnp.tile(bn[1], 8).reshape(1, 8 * c0).astype(jnp.float32)
    wd = w8.reshape(8 * c0, c1).astype(jnp.bfloat16)

    out = pl.pallas_call(
        _gemm_bn_relu_kernel,
        grid=(B, nt),
        in_specs=[pl.BlockSpec((1, d_tile, H2 * W2, 8 * c0),
                               lambda b, t: (b, t, 0, 0)),
                  pl.BlockSpec((1, 8 * c0), lambda b, t: (0, 0)),
                  pl.BlockSpec((1, 8 * c0), lambda b, t: (0, 0)),
                  pl.BlockSpec((8 * c0, c1), lambda b, t: (0, 0))],
        out_specs=pl.BlockSpec((1, d_tile, H2 * W2, c1),
                               lambda b, t: (b, t, 0, 0)),
        out_shape=jax.ShapeDtypeStruct((B, D2, H2 * W2, c1), jnp.bfloat16),
        compiler_params=_cparams(("parallel", "parallel")),
    )(x2, sf, bf, wd)
    return out.reshape(B, D2, H2, W2, c1)


def up_conv(x, bn, w8):
    """BN -> ReLU -> SparseInverseConv3d(k=2): (B,D2,H2,W2,c1) -> (B,2D2,2H2,2W2,c0)."""
    B, D2, H2, W2, c1 = x.shape
    c0 = w8.shape[-1]
    D, H, W = 2 * D2, 2 * H2, 2 * W2
    d_tile = _pick_tile(D2, 2)
    nt = D2 // d_tile

    x2 = x.reshape(B, D2, H2 * W2, c1).astype(jnp.bfloat16)
    sf = bn[0].reshape(1, c1).astype(jnp.float32)
    bf = bn[1].reshape(1, c1).astype(jnp.float32)
    # All 8 fine-voxel taps from one dense (c1, 8*c0) matmul, no structural zeros.
    wu = jnp.transpose(w8, (1, 0, 2)).reshape(c1, 8 * c0).astype(jnp.bfloat16)

    out = pl.pallas_call(
        _gemm_bn_relu_kernel,
        grid=(B, nt),
        in_specs=[pl.BlockSpec((1, d_tile, H2 * W2, c1),
                               lambda b, t: (b, t, 0, 0)),
                  pl.BlockSpec((1, c1), lambda b, t: (0, 0)),
                  pl.BlockSpec((1, c1), lambda b, t: (0, 0)),
                  pl.BlockSpec((c1, 8 * c0), lambda b, t: (0, 0))],
        out_specs=pl.BlockSpec((1, d_tile, H2 * W2, 8 * c0),
                               lambda b, t: (b, t, 0, 0)),
        out_shape=jax.ShapeDtypeStruct((B, D2, H2 * W2, 8 * c0), jnp.bfloat16),
        compiler_params=_cparams(("parallel", "parallel")),
    )(x2, sf, bf, wu)
    out = out.reshape(B, D2, H2, W2, 2, 2, 2, c0)
    out = out.transpose(0, 1, 4, 2, 5, 3, 6, 7).reshape(B, D, H, W, c0)
    return out


# ----------------------------------------------------------------------------
# Deterministic parameter construction (mirrors module __init__ shapes)
# ----------------------------------------------------------------------------

def make_bn_params(key, c, eps=1e-5):
    k1, k2, k3, k4 = jax.random.split(key, 4)
    gamma = jax.random.uniform(k1, (c,), jnp.float32, 0.5, 1.5)
    beta = 0.1 * jax.random.normal(k2, (c,), jnp.float32)
    mean = 0.1 * jax.random.normal(k3, (c,), jnp.float32)
    var = jax.random.uniform(k4, (c,), jnp.float32, 0.5, 1.5)
    scale = gamma / jnp.sqrt(var + eps)
    bias = beta - mean * scale
    return scale, bias


def make_conv_w(key, taps, cin, cout):
    bound = (taps * cin) ** -0.5
    return jax.random.uniform(key, (taps, cin, cout), jnp.float32, -bound, bound)


def make_resblock_params(key, cin, cout):
    ks = jax.random.split(key, 5)
    return {
        'bn1': make_bn_params(ks[0], cin),
        'w1': make_conv_w(ks[1], 27, cin, cout),
        'bn2': make_bn_params(ks[2], cout),
        'w2': make_conv_w(ks[3], 27, cout, cout),
        'w_i': None if cin == cout else make_conv_w(ks[4], 1, cin, cout)[0],
    }


def make_ublock_params(key, dim_list, reps):
    ks = jax.random.split(key, 7)
    p = {'dim_list': list(dim_list)}
    p['blocks'] = [make_resblock_params(jax.random.fold_in(ks[0], i),
                                        dim_list[0], dim_list[0])
                   for i in range(reps)]
    if len(dim_list) > 1:
        c0, c1 = dim_list[0], dim_list[1]
        p['conv_bn'] = make_bn_params(ks[1], c0)
        p['conv_w'] = make_conv_w(ks[2], 8, c0, c1)        # SparseConv3d k=2 s=2
        p['unet'] = make_ublock_params(ks[3], dim_list[1:], reps)
        p['deconv_bn'] = make_bn_params(ks[4], c1)
        p['deconv_w'] = make_conv_w(ks[5], 8, c1, c0)      # SparseInverseConv3d k=2
        p['blocks_tail'] = [make_resblock_params(jax.random.fold_in(ks[6], i),
                                                 c0 * (2 - i), c0)
                            for i in range(reps)]
    return p


# ----------------------------------------------------------------------------
# Forward pass (mirrors ResidualBlock / UBlock.forward)
# ----------------------------------------------------------------------------

def residual_block_forward(p, x):
    h = subm_conv3(x, p['bn1'], p['w1'])                               # conv branch 1
    return subm_conv3(h, p['bn2'], p['w2'], identity=x, wi=p['w_i'])   # conv2 + residual


def ublock_forward(p, x):
    out = x
    for bp in p['blocks']:
        out = residual_block_forward(bp, out)
    if len(p['dim_list']) > 1:
        identity = out
        dec = down_conv(out, p['conv_bn'], p['conv_w'])
        dec = ublock_forward(p['unet'], dec)
        dec = up_conv(dec, p['deconv_bn'], p['deconv_w'])
        out = jnp.concatenate([identity, dec], axis=-1)    # cat along channels
        for bp in p['blocks_tail']:
            out = residual_block_forward(bp, out)
    return out


if __name__ == "__main__":
    key = jax.random.PRNGKey(0)
    kx, kp = jax.random.split(key)

    B, D, H, W = 2, 8, 8, 8
    dim_list = [8, 16]      # UBlock([8, 16], ...): one encoder/decoder level
    repetitions = 2

    x = jax.random.normal(kx, (B, D, H, W, dim_list[0]), jnp.float32)
    params = make_ublock_params(kp, dim_list, repetitions)

    fwd = jax.jit(lambda v: ublock_forward(params, v))
    out = jax.block_until_ready(fwd(x))

    assert out.shape == (B, D, H, W, dim_list[0]), out.shape
    assert bool(jnp.all(jnp.isfinite(out.astype(jnp.float32))))
    print("KERNEL_OK")
</pallas_src>

<mosaic_0001>
module attributes {stable_mosaic.version = 11 : i64} {
  func.func @_subm_conv_kernel(%arg0: i32, %arg1: i32, %arg2: memref<1x8x8x128xbf16, #tpu.memory_space<vmem>>, %arg3: memref<1x128xf32, #tpu.memory_space<vmem>>, %arg4: memref<1x128xf32, #tpu.memory_space<vmem>>, %arg5: memref<1152x64xbf16, #tpu.memory_space<vmem>>, %arg6: memref<1x4x8x64xbf16, #tpu.memory_space<vmem>>, %arg7: memref<10x10x128xbf16, #tpu.memory_space<vmem>>) attributes {dimension_semantics = [#tpu.dimension_semantics<parallel>, #tpu.dimension_semantics<arbitrary>], iteration_bounds = array<i64: 2, 2>, scalar_prefetch = 0 : i64, scratch_operands = 1 : i64, tpu.core_type = #tpu.core_type<tc>, window_params = [{transform_indices = @transform_0, window_bounds = array<i64: 1, 8, 8, 128>}, {pipeline_mode = #tpu.pipeline_mode<synchronous>, transform_indices = @transform_1, window_bounds = array<i64: 1, 128>}, {pipeline_mode = #tpu.pipeline_mode<synchronous>, transform_indices = @transform_2, window_bounds = array<i64: 1, 128>}, {pipeline_mode = #tpu.pipeline_mode<synchronous>, transform_indices = @transform_3, window_bounds = array<i64: 1152, 64>}, {transform_indices = @transform_4, window_bounds = array<i64: 1, 4, 8, 64>}]} {
    %c0_i32 = arith.constant 0 : i32
    %0 = arith.cmpi eq, %arg1, %c0_i32 : i32
    %1 = arith.extui %0 : i1 to i32
    %c0_i32_0 = arith.constant 0 : i32
    %2 = arith.cmpi ne, %1, %c0_i32_0 : i32
    scf.if %2 {
      %cst_29 = arith.constant 0.000000e+00 : bf16
      %49 = vector.broadcast %cst_29 : bf16 to vector<10x10x128xbf16>
      %c0_30 = arith.constant 0 : index
      %c0_31 = arith.constant 0 : index
      %c0_32 = arith.constant 0 : index
      %50 = vector.load %arg7[%c0_30, %c0_31, %c0_32] : memref<10x10x128xbf16, #tpu.memory_space<vmem>>, vector<10x10x128xbf16>
      tpu.vector_store %arg7[%c0_30, %c0_31, %c0_32], %49 {strides = array<i32>} : memref<10x10x128xbf16, #tpu.memory_space<vmem>>, vector<10x10x128xbf16>,
      %c0_33 = arith.constant 0 : index
      %c0_34 = arith.constant 0 : index
      %c0_35 = arith.constant 0 : index
      %c0_36 = arith.constant 0 : index
      %51 = vector.load %arg2[%c0_33, %c0_34, %c0_35, %c0_36] : memref<1x8x8x128xbf16, #tpu.memory_space<vmem>>, vector<1x8x8x128xbf16>
      %52 = vector.shape_cast %51 : vector<1x8x8x128xbf16> to vector<8x8x128xbf16>
      %53 = arith.extf %52 : vector<8x8x128xbf16> to vector<8x8x128xf32>
      %c0_37 = arith.constant 0 : index
      %c0_38 = arith.constant 0 : index
      %54 = vector.load %arg3[%c0_37, %c0_38] : memref<1x128xf32, #tpu.memory_space<vmem>>, vector<1x128xf32>
      %55 = vector.shape_cast %54 : vector<1x128xf32> to vector<128xf32>
      %56 = vector.shape_cast %55 : vector<128xf32> to vector<1x1x128xf32>
      %57 = vector.broadcast %56 : vector<1x1x128xf32> to vector<8x8x128xf32>
      %58 = arith.mulf %53, %57 : vector<8x8x128xf32>
      %c0_39 = arith.constant 0 : index
      %c0_40 = arith.constant 0 : index
      %59 = vector.load %arg4[%c0_39, %c0_40] : memref<1x128xf32, #tpu.memory_space<vmem>>, vector<1x128xf32>
      %60 = vector.shape_cast %59 : vector<1x128xf32> to vector<128xf32>
      %61 = vector.shape_cast %60 : vector<128xf32> to vector<1x1x128xf32>
      %62 = vector.broadcast %61 : vector<1x1x128xf32> to vector<8x8x128xf32>
      %63 = arith.addf %58, %62 : vector<8x8x128xf32>
      %cst_41 = arith.constant 0.000000e+00 : f32
      %64 = vector.broadcast %cst_41 : f32 to vector<8x8x128xf32>
      %65 = arith.maximumf %63, %64 : vector<8x8x128xf32>
      %66 = arith.truncf %65 : vector<8x8x128xf32> to vector<8x8x128xbf16>
      %c1_42 = arith.constant 1 : index
      %c1_43 = arith.constant 1 : index
      %c0_44 = arith.constant 0 : index
      %67 = vector.load %arg7[%c1_42, %c1_43, %c0_44] : memref<10x10x128xbf16, #tpu.memory_space<vmem>>, vector<8x8x128xbf16>
      tpu.vector_store %arg7[%c1_42, %c1_43, %c0_44], %66 {strides = array<i32>} : memref<10x10x128xbf16, #tpu.memory_space<vmem>>, vector<8x8x128xbf16>,
    } else {
    }
    %c4_i32 = arith.constant 4 : i32
    %3 = arith.muli %arg1, %c4_i32 : i32
    %4 = tpu.assume_multiple %3, 4 : i32
    %c0_i32_1 = arith.constant 0 : i32
    %5 = arith.addi %4, %c0_i32_1 : i32
    %6 = arith.index_cast %5 : i32 to index
    %c0 = arith.constant 0 : index
    %c0_2 = arith.constant 0 : index
    %7 = vector.load %arg7[%6, %c0, %c0_2] : memref<10x10x128xbf16, #tpu.memory_space<vmem>>, vector<4x8x128xbf16>
    %8 = vector.shape_cast %7 : vector<4x8x128xbf16> to vector<32x128xbf16>
    %c0_i32_3 = arith.constant 0 : i32
    %9 = arith.addi %4, %c0_i32_3 : i32
    %10 = arith.index_cast %9 : i32 to index
    %c1 = arith.constant 1 : index
    %c0_4 = arith.constant 0 : index
    %11 = vector.load %arg7[%10, %c1, %c0_4] : memref<10x10x128xbf16, #tpu.memory_space<vmem>>, vector<4x8x128xbf16>
    %12 = vector.shape_cast %11 : vector<4x8x128xbf16> to vector<32x128xbf16>
    %c0_i32_5 = arith.constant 0 : i32
    %13 = arith.addi %4, %c0_i32_5 : i32
    %14 = arith.index_cast %13 : i32 to index
    %c2 = arith.constant 2 : index
    %c0_6 = arith.constant 0 : index
    %15 = vector.load %arg7[%14, %c2, %c0_6] : memref<10x10x128xbf16, #tpu.memory_space<vmem>>, vector<4x8x128xbf16>
    %16 = vector.shape_cast %15 : vector<4x8x128xbf16> to vector<32x128xbf16>
    %c1_i32 = arith.constant 1 : i32
    %17 = arith.addi %4, %c1_i32 : i32
    %18 = arith.index_cast %17 : i32 to index
    %c0_7 = arith.constant 0 : index
    %c0_8 = arith.constant 0 : index
    %19 = vector.load %arg7[%18, %c0_7, %c0_8] : memref<10x10x128xbf16, #tpu.memory_space<vmem>>, vector<4x8x128xbf16>
    %20 = vector.shape_cast %19 : vector<4x8x128xbf16> to vector<32x128xbf16>
    %c1_i32_9 = arith.constant 1 : i32
    %21 = arith.addi %4, %c1_i32_9 : i32
    %22 = arith.index_cast %21 : i32 to index
    %c1_10 = arith.constant 1 : index
    %c0_11 = arith.constant 0 : index
    %23 = vector.load %arg7[%22, %c1_10, %c0_11] : memref<10x10x128xbf16, #tpu.memory_space<vmem>>, vector<4x8x128xbf16>
    %24 = vector.shape_cast %23 : vector<4x8x128xbf16> to vector<32x128xbf16>
    %c1_i32_12 = arith.constant 1 : i32
    %25 = arith.addi %4, %c1_i32_12 : i32
    %26 = arith.index_cast %25 : i32 to index
    %c2_13 = arith.constant 2 : index
    %c0_14 = arith.constant 0 : index
    %27 = vector.load %arg7[%26, %c2_13, %c0_14] : memref<10x10x128xbf16, #tpu.memory_space<vmem>>, vector<4x8x128xbf16>
    %28 = vector.shape_cast %27 : vector<4x8x128xbf16> to vector<32x128xbf16>
    %c2_i32 = arith.constant 2 : i32
    %29 = arith.addi %4, %c2_i32 : i32
    %30 = arith.index_cast %29 : i32 to index
    %c0_15 = arith.constant 0 : index
    %c0_16 = arith.constant 0 : index
    %31 = vector.load %arg7[%30, %c0_15, %c0_16] : memref<10x10x128xbf16, #tpu.memory_space<vmem>>, vector<4x8x128xbf16>
    %32 = vector.shape_cast %31 : vector<4x8x128xbf16> to vector<32x128xbf16>
    %c2_i32_17 = arith.constant 2 : i32
    %33 = arith.addi %4, %c2_i32_17 : i32
    %34 = arith.index_cast %33 : i32 to index
    %c1_18 = arith.constant 1 : index
    %c0_19 = arith.constant 0 : index
    %35 = vector.load %arg7[%34, %c1_18, %c0_19] : memref<10x10x128xbf16, #tpu.memory_space<vmem>>, vector<4x8x128xbf16>
    %36 = vector.shape_cast %35 : vector<4x8x128xbf16> to vector<32x128xbf16>
    %c2_i32_20 = arith.constant 2 : i32
    %37 = arith.addi %4, %c2_i32_20 : i32
    %38 = arith.index_cast %37 : i32 to index
    %c2_21 = arith.constant 2 : index
    %c0_22 = arith.constant 0 : index
    %39 = vector.load %arg7[%38, %c2_21, %c0_22] : memref<10x10x128xbf16, #tpu.memory_space<vmem>>, vector<4x8x128xbf16>
    %40 = vector.shape_cast %39 : vector<4x8x128xbf16> to vector<32x128xbf16>
    %41 = tpu.concatenate %8, %12, %16, %20, %24, %28, %32, %36, %40 in 1 : vector<32x128xbf16>, vector<32x128xbf16>, vector<32x128xbf16>, vector<32x128xbf16>, vector<32x128xbf16>, vector<32x128xbf16>, vector<32x128xbf16>, vector<32x128xbf16>, vector<32x128xbf16> -> vector<32x1152xbf16>
    %c0_23 = arith.constant 0 : index
    %c0_24 = arith.constant 0 : index
    %42 = vector.load %arg5[%c0_23, %c0_24] : memref<1152x64xbf16, #tpu.memory_space<vmem>>, vector<1152x64xbf16>
    %cst = arith.constant dense<0.000000e+00> : vector<32x64xf32>
    %43 = tpu.matmul %41, %42, %cst {dimension_numbers = #tpu.dot_dimension_numbers<[1], [0], [0], [1], [0, 0, 1, 1], [], []>} : vector<32x1152xbf16>, vector<1152x64xbf16>, vector<32x64xf32> -> vector<32x64xf32>
    %44 = vector.shape_cast %43 : vector<32x64xf32> to vector<4x8x64xf32>
    %45 = arith.truncf %44 : vector<4x8x64xf32> to vector<4x8x64xbf16>
    %c0_25 = arith.constant 0 : index
    %c0_26 = arith.constant 0 : index
    %c0_27 = arith.constant 0 : index
    %c0_28 = arith.constant 0 : index
    %46 = vector.load %arg6[%c0_25, %c0_26, %c0_27, %c0_28] : memref<1x4x8x64xbf16, #tpu.memory_space<vmem>>, vector<1x4x8x64xbf16>
    %47 = vector.shape_cast %46 : vector<1x4x8x64xbf16> to vector<4x8x64xbf16>
    %48 = vector.shape_cast %45 : vector<4x8x64xbf16> to vector<1x4x8x64xbf16>
    tpu.vector_store %arg6[%c0_25, %c0_26, %c0_27, %c0_28], %48 {strides = array<i32>} : memref<1x4x8x64xbf16, #tpu.memory_space<vmem>>, vector<1x4x8x64xbf16>,
    return
  }
  func.func @transform_0(%arg0: i32, %arg1: i32) -> (i32, i32, i32, i32) {
    %c0_i32 = arith.constant 0 : i32
    %c0_i32_0 = arith.constant 0 : i32
    %c0_i32_1 = arith.constant 0 : i32
    %c0_i32_2 = arith.constant 0 : i32
    return %arg0, %c0_i32, %c0_i32_0, %c0_i32_1 : i32, i32, i32, i32
  }
  func.func @transform_1(%arg0: i32, %arg1: i32) -> (i32, i32) {
    %c0_i32 = arith.constant 0 : i32
    %c0_i32_0 = arith.constant 0 : i32
    %c0_i32_1 = arith.constant 0 : i32
    return %c0_i32, %c0_i32_0 : i32, i32
  }
  func.func @transform_2(%arg0: i32, %arg1: i32) -> (i32, i32) {
    %c0_i32 = arith.constant 0 : i32
    %c0_i32_0 = arith.constant 0 : i32
    %c0_i32_1 = arith.constant 0 : i32
    return %c0_i32, %c0_i32_0 : i32, i32
  }
  func.func @transform_3(%arg0: i32, %arg1: i32) -> (i32, i32) {
    %c0_i32 = arith.constant 0 : i32
    %c0_i32_0 = arith.constant 0 : i32
    %c0_i32_1 = arith.constant 0 : i32
    return %c0_i32, %c0_i32_0 : i32, i32
  }
  func.func @transform_4(%arg0: i32, %arg1: i32) -> (i32, i32, i32, i32) {
    %c0_i32 = arith.constant 0 : i32
    %c0_i32_0 = arith.constant 0 : i32
    %c0_i32_1 = arith.constant 0 : i32
    return %arg0, %arg1, %c0_i32, %c0_i32_0 : i32, i32, i32, i32
  }
}

module attributes {stable_mosaic.version = 11 : i64} {
  func.func @_subm_conv_kernel(%arg0: i32, %arg1: i32, %arg2: memref<1x8x8x128xbf16, #tpu.memory_space<vmem>>, %arg3: memref<1x128xf32, #tpu.memory_space<vmem>>, %arg4: memref<1x128xf32, #tpu.memory_space<vmem>>, %arg5: memref<1152x64xbf16, #tpu.memory_space<vmem>>, %arg6: memref<1x4x8x64xbf16, #tpu.memory_space<vmem>>, %arg7: memref<1x4x8x64xbf16, #tpu.memory_space<vmem>>, %arg8: memref<10x10x128xbf16, #tpu.memory_space<vmem>>) attributes {dimension_semantics = [#tpu.dimension_semantics<parallel>, #tpu.dimension_semantics<arbitrary>], iteration_bounds = array<i64: 2, 2>, scalar_prefetch = 0 : i64, scratch_operands = 1 : i64, tpu.core_type = #tpu.core_type<tc>, window_params = [{transform_indices = @transform_0, window_bounds = array<i64: 1, 8, 8, 128>}, {pipeline_mode = #tpu.pipeline_mode<synchronous>, transform_indices = @transform_1, window_bounds = array<i64: 1, 128>}, {pipeline_mode = #tpu.pipeline_mode<synchronous>, transform_indices = @transform_2, window_bounds = array<i64: 1, 128>}, {pipeline_mode = #tpu.pipeline_mode<synchronous>, transform_indices = @transform_3, window_bounds = array<i64: 1152, 64>}, {transform_indices = @transform_4, window_bounds = array<i64: 1, 4, 8, 64>}, {transform_indices = @transform_5, window_bounds = array<i64: 1, 4, 8, 64>}]} {
    %c0_i32 = arith.constant 0 : i32
    %0 = arith.cmpi eq, %arg1, %c0_i32 : i32
    %1 = arith.extui %0 : i1 to i32
    %c0_i32_0 = arith.constant 0 : i32
    %2 = arith.cmpi ne, %1, %c0_i32_0 : i32
    scf.if %2 {
      %cst_33 = arith.constant 0.000000e+00 : bf16
      %54 = vector.broadcast %cst_33 : bf16 to vector<10x10x128xbf16>
      %c0_34 = arith.constant 0 : index
      %c0_35 = arith.constant 0 : index
      %c0_36 = arith.constant 0 : index
      %55 = vector.load %arg8[%c0_34, %c0_35, %c0_36] : memref<10x10x128xbf16, #tpu.memory_space<vmem>>, vector<10x10x128xbf16>
      tpu.vector_store %arg8[%c0_34, %c0_35, %c0_36], %54 {strides = array<i32>} : memref<10x10x128xbf16, #tpu.memory_space<vmem>>, vector<10x10x128xbf16>,
      %c0_37 = arith.constant 0 : index
      %c0_38 = arith.constant 0 : index
      %c0_39 = arith.constant 0 : index
      %c0_40 = arith.constant 0 : index
      %56 = vector.load %arg2[%c0_37, %c0_38, %c0_39, %c0_40] : memref<1x8x8x128xbf16, #tpu.memory_space<vmem>>, vector<1x8x8x128xbf16>
      %57 = vector.shape_cast %56 : vector<1x8x8x128xbf16> to vector<8x8x128xbf16>
      %58 = arith.extf %57 : vector<8x8x128xbf16> to vector<8x8x128xf32>
      %c0_41 = arith.constant 0 : index
      %c0_42 = arith.constant 0 : index
      %59 = vector.load %arg3[%c0_41, %c0_42] : memref<1x128xf32, #tpu.memory_space<vmem>>, vector<1x128xf32>
      %60 = vector.shape_cast %59 : vector<1x128xf32> to vector<128xf32>
      %61 = vector.shape_cast %60 : vector<128xf32> to vector<1x1x128xf32>
      %62 = vector.broadcast %61 : vector<1x1x128xf32> to vector<8x8x128xf32>
      %63 = arith.mulf %58, %62 : vector<8x8x128xf32>
      %c0_43 = arith.constant 0 : index
      %c0_44 = arith.constant 0 : index
      %64 = vector.load %arg4[%c0_43, %c0_44] : memref<1x128xf32, #tpu.memory_space<vmem>>, vector<1x128xf32>
      %65 = vector.shape_cast %64 : vector<1x128xf32> to vector<128xf32>
      %66 = vector.shape_cast %65 : vector<128xf32> to vector<1x1x128xf32>
      %67 = vector.broadcast %66 : vector<1x1x128xf32> to vector<8x8x128xf32>
      %68 = arith.addf %63, %67 : vector<8x8x128xf32>
      %cst_45 = arith.constant 0.000000e+00 : f32
      %69 = vector.broadcast %cst_45 : f32 to vector<8x8x128xf32>
      %70 = arith.maximumf %68, %69 : vector<8x8x128xf32>
      %71 = arith.truncf %70 : vector<8x8x128xf32> to vector<8x8x128xbf16>
      %c1_46 = arith.constant 1 : index
      %c1_47 = arith.constant 1 : index
      %c0_48 = arith.constant 0 : index
      %72 = vector.load %arg8[%c1_46, %c1_47, %c0_48] : memref<10x10x128xbf16, #tpu.memory_space<vmem>>, vector<8x8x128xbf16>
      tpu.vector_store %arg8[%c1_46, %c1_47, %c0_48], %71 {strides = array<i32>} : memref<10x10x128xbf16, #tpu.memory_space<vmem>>, vector<8x8x128xbf16>,
    } else {
    }
    %c4_i32 = arith.constant 4 : i32
    %3 = arith.muli %arg1, %c4_i32 : i32
    %4 = tpu.assume_multiple %3, 4 : i32
    %c0_i32_1 = arith.constant 0 : i32
    %5 = arith.addi %4, %c0_i32_1 : i32
    %6 = arith.index_cast %5 : i32 to index
    %c0 = arith.constant 0 : index
    %c0_2 = arith.constant 0 : index
    %7 = vector.load %arg8[%6, %c0, %c0_2] : memref<10x10x128xbf16, #tpu.memory_space<vmem>>, vector<4x8x128xbf16>
    %8 = vector.shape_cast %7 : vector<4x8x128xbf16> to vector<32x128xbf16>
    %c0_i32_3 = arith.constant 0 : i32
    %9 = arith.addi %4, %c0_i32_3 : i32
    %10 = arith.index_cast %9 : i32 to index
    %c1 = arith.constant 1 : index
    %c0_4 = arith.constant 0 : index
    %11 = vector.load %arg8[%10, %c1, %c0_4] : memref<10x10x128xbf16, #tpu.memory_space<vmem>>, vector<4x8x128xbf16>
    %12 = vector.shape_cast %11 : vector<4x8x128xbf16> to vector<32x128xbf16>
    %c0_i32_5 = arith.constant 0 : i32
    %13 = arith.addi %4, %c0_i32_5 : i32
    %14 = arith.index_cast %13 : i32 to index
    %c2 = arith.constant 2 : index
    %c0_6 = arith.constant 0 : index
    %15 = vector.load %arg8[%14, %c2, %c0_6] : memref<10x10x128xbf16, #tpu.memory_space<vmem>>, vector<4x8x128xbf16>
    %16 = vector.shape_cast %15 : vector<4x8x128xbf16> to vector<32x128xbf16>
    %c1_i32 = arith.constant 1 : i32
    %17 = arith.addi %4, %c1_i32 : i32
    %18 = arith.index_cast %17 : i32 to index
    %c0_7 = arith.constant 0 : index
    %c0_8 = arith.constant 0 : index
    %19 = vector.load %arg8[%18, %c0_7, %c0_8] : memref<10x10x128xbf16, #tpu.memory_space<vmem>>, vector<4x8x128xbf16>
    %20 = vector.shape_cast %19 : vector<4x8x128xbf16> to vector<32x128xbf16>
    %c1_i32_9 = arith.constant 1 : i32
    %21 = arith.addi %4, %c1_i32_9 : i32
    %22 = arith.index_cast %21 : i32 to index
    %c1_10 = arith.constant 1 : index
    %c0_11 = arith.constant 0 : index
    %23 = vector.load %arg8[%22, %c1_10, %c0_11] : memref<10x10x128xbf16, #tpu.memory_space<vmem>>, vector<4x8x128xbf16>
    %24 = vector.shape_cast %23 : vector<4x8x128xbf16> to vector<32x128xbf16>
    %c1_i32_12 = arith.constant 1 : i32
    %25 = arith.addi %4, %c1_i32_12 : i32
    %26 = arith.index_cast %25 : i32 to index
    %c2_13 = arith.constant 2 : index
    %c0_14 = arith.constant 0 : index
    %27 = vector.load %arg8[%26, %c2_13, %c0_14] : memref<10x10x128xbf16, #tpu.memory_space<vmem>>, vector<4x8x128xbf16>
    %28 = vector.shape_cast %27 : vector<4x8x128xbf16> to vector<32x128xbf16>
    %c2_i32 = arith.constant 2 : i32
    %29 = arith.addi %4, %c2_i32 : i32
    %30 = arith.index_cast %29 : i32 to index
    %c0_15 = arith.constant 0 : index
    %c0_16 = arith.constant 0 : index
    %31 = vector.load %arg8[%30, %c0_15, %c0_16] : memref<10x10x128xbf16, #tpu.memory_space<vmem>>, vector<4x8x128xbf16>
    %32 = vector.shape_cast %31 : vector<4x8x128xbf16> to vector<32x128xbf16>
    %c2_i32_17 = arith.constant 2 : i32
    %33 = arith.addi %4, %c2_i32_17 : i32
    %34 = arith.index_cast %33 : i32 to index
    %c1_18 = arith.constant 1 : index
    %c0_19 = arith.constant 0 : index
    %35 = vector.load %arg8[%34, %c1_18, %c0_19] : memref<10x10x128xbf16, #tpu.memory_space<vmem>>, vector<4x8x128xbf16>
    %36 = vector.shape_cast %35 : vector<4x8x128xbf16> to vector<32x128xbf16>
    %c2_i32_20 = arith.constant 2 : i32
    %37 = arith.addi %4, %c2_i32_20 : i32
    %38 = arith.index_cast %37 : i32 to index
    %c2_21 = arith.constant 2 : index
    %c0_22 = arith.constant 0 : index
    %39 = vector.load %arg8[%38, %c2_21, %c0_22] : memref<10x10x128xbf16, #tpu.memory_space<vmem>>, vector<4x8x128xbf16>
    %40 = vector.shape_cast %39 : vector<4x8x128xbf16> to vector<32x128xbf16>
    %41 = tpu.concatenate %8, %12, %16, %20, %24, %28, %32, %36, %40 in 1 : vector<32x128xbf16>, vector<32x128xbf16>, vector<32x128xbf16>, vector<32x128xbf16>, vector<32x128xbf16>, vector<32x128xbf16>, vector<32x128xbf16>, vector<32x128xbf16>, vector<32x128xbf16> -> vector<32x1152xbf16>
    %c0_23 = arith.constant 0 : index
    %c0_24 = arith.constant 0 : index
    %42 = vector.load %arg5[%c0_23, %c0_24] : memref<1152x64xbf16, #tpu.memory_space<vmem>>, vector<1152x64xbf16>
    %cst = arith.constant dense<0.000000e+00> : vector<32x64xf32>
    %43 = tpu.matmul %41, %42, %cst {dimension_numbers = #tpu.dot_dimension_numbers<[1], [0], [0], [1], [0, 0, 1, 1], [], []>} : vector<32x1152xbf16>, vector<1152x64xbf16>, vector<32x64xf32> -> vector<32x64xf32>
    %c0_25 = arith.constant 0 : index
    %c0_26 = arith.constant 0 : index
    %c0_27 = arith.constant 0 : index
    %c0_28 = arith.constant 0 : index
    %44 = vector.load %arg6[%c0_25, %c0_26, %c0_27, %c0_28] : memref<1x4x8x64xbf16, #tpu.memory_space<vmem>>, vector<1x4x8x64xbf16>
    %45 = vector.shape_cast %44 : vector<1x4x8x64xbf16> to vector<4x8x64xbf16>
    %46 = vector.shape_cast %45 : vector<4x8x64xbf16> to vector<32x64xbf16>
    %47 = arith.extf %46 : vector<32x64xbf16> to vector<32x64xf32>
    %48 = arith.addf %43, %47 : vector<32x64xf32>
    %49 = vector.shape_cast %48 : vector<32x64xf32> to vector<4x8x64xf32>
    %50 = arith.truncf %49 : vector<4x8x64xf32> to vector<4x8x64xbf16>
    %c0_29 = arith.constant 0 : index
    %c0_30 = arith.constant 0 : index
    %c0_31 = arith.constant 0 : index
    %c0_32 = arith.constant 0 : index
    %51 = vector.load %arg7[%c0_29, %c0_30, %c0_31, %c0_32] : memref<1x4x8x64xbf16, #tpu.memory_space<vmem>>, vector<1x4x8x64xbf16>
    %52 = vector.shape_cast %51 : vector<1x4x8x64xbf16> to vector<4x8x64xbf16>
    %53 = vector.shape_cast %50 : vector<4x8x64xbf16> to vector<1x4x8x64xbf16>
    tpu.vector_store %arg7[%c0_29, %c0_30, %c0_31, %c0_32], %53 {strides = array<i32>} : memref<1x4x8x64xbf16, #tpu.memory_space<vmem>>, vector<1x4x8x64xbf16>,
    return
  }
  func.func @transform_0(%arg0: i32, %arg1: i32) -> (i32, i32, i32, i32) {
    %c0_i32 = arith.constant 0 : i32
    %c0_i32_0 = arith.constant 0 : i32
    %c0_i32_1 = arith.constant 0 : i32
    %c0_i32_2 = arith.constant 0 : i32
    return %arg0, %c0_i32, %c0_i32_0, %c0_i32_1 : i32, i32, i32, i32
  }
  func.func @transform_1(%arg0: i32, %arg1: i32) -> (i32, i32) {
    %c0_i32 = arith.constant 0 : i32
    %c0_i32_0 = arith.constant 0 : i32
    %c0_i32_1 = arith.constant 0 : i32
    return %c0_i32, %c0_i32_0 : i32, i32
  }
  func.func @transform_2(%arg0: i32, %arg1: i32) -> (i32, i32) {
    %c0_i32 = arith.constant 0 : i32
    %c0_i32_0 = arith.constant 0 : i32
    %c0_i32_1 = arith.constant 0 : i32
    return %c0_i32, %c0_i32_0 : i32, i32
  }
  func.func @transform_3(%arg0: i32, %arg1: i32) -> (i32, i32) {
    %c0_i32 = arith.constant 0 : i32
    %c0_i32_0 = arith.constant 0 : i32
    %c0_i32_1 = arith.constant 0 : i32
    return %c0_i32, %c0_i32_0 : i32, i32
  }
  func.func @transform_4(%arg0: i32, %arg1: i32) -> (i32, i32, i32, i32) {
    %c0_i32 = arith.constant 0 : i32
    %c0_i32_0 = arith.constant 0 : i32
    %c0_i32_1 = arith.constant 0 : i32
    return %arg0, %arg1, %c0_i32, %c0_i32_0 : i32, i32, i32, i32
  }
  func.func @transform_5(%arg0: i32, %arg1: i32) -> (i32, i32, i32, i32) {
    %c0_i32 = arith.constant 0 : i32
    %c0_i32_0 = arith.constant 0 : i32
    %c0_i32_1 = arith.constant 0 : i32
    return %arg0, %arg1, %c0_i32, %c0_i32_0 : i32, i32, i32, i32
  }
}

module attributes {stable_mosaic.version = 11 : i64} {
  func.func @_gemm_bn_relu_kernel(%arg0: i32, %arg1: i32, %arg2: memref<1x2x16x64xbf16, #tpu.memory_space<vmem>>, %arg3: memref<1x64xf32, #tpu.memory_space<vmem>>, %arg4: memref<1x64xf32, #tpu.memory_space<vmem>>, %arg5: memref<64x16xbf16, #tpu.memory_space<vmem>>, %arg6: memref<1x2x16x16xbf16, #tpu.memory_space<vmem>>) attributes {dimension_semantics = [#tpu.dimension_semantics<parallel>, #tpu.dimension_semantics<parallel>], iteration_bounds = array<i64: 2, 2>, scalar_prefetch = 0 : i64, scratch_operands = 0 : i64, tpu.core_type = #tpu.core_type<tc>, window_params = [{transform_indices = @transform_0, window_bounds = array<i64: 1, 2, 16, 64>}, {pipeline_mode = #tpu.pipeline_mode<synchronous>, transform_indices = @transform_1, window_bounds = array<i64: 1, 64>}, {pipeline_mode = #tpu.pipeline_mode<synchronous>, transform_indices = @transform_2, window_bounds = array<i64: 1, 64>}, {pipeline_mode = #tpu.pipeline_mode<synchronous>, transform_indices = @transform_3, window_bounds = array<i64: 64, 16>}, {transform_indices = @transform_4, window_bounds = array<i64: 1, 2, 16, 16>}]} {
    %c0 = arith.constant 0 : index
    %c0_0 = arith.constant 0 : index
    %c0_1 = arith.constant 0 : index
    %c0_2 = arith.constant 0 : index
    %0 = vector.load %arg2[%c0, %c0_0, %c0_1, %c0_2] : memref<1x2x16x64xbf16, #tpu.memory_space<vmem>>, vector<1x2x16x64xbf16>
    %1 = vector.shape_cast %0 : vector<1x2x16x64xbf16> to vector<2x16x64xbf16>
    %2 = arith.extf %1 : vector<2x16x64xbf16> to vector<2x16x64xf32>
    %c0_3 = arith.constant 0 : index
    %c0_4 = arith.constant 0 : index
    %3 = vector.load %arg3[%c0_3, %c0_4] : memref<1x64xf32, #tpu.memory_space<vmem>>, vector<1x64xf32>
    %4 = vector.shape_cast %3 : vector<1x64xf32> to vector<64xf32>
    %5 = vector.shape_cast %4 : vector<64xf32> to vector<1x1x64xf32>
    %6 = vector.broadcast %5 : vector<1x1x64xf32> to vector<2x16x64xf32>
    %7 = arith.mulf %2, %6 : vector<2x16x64xf32>
    %c0_5 = arith.constant 0 : index
    %c0_6 = arith.constant 0 : index
    %8 = vector.load %arg4[%c0_5, %c0_6] : memref<1x64xf32, #tpu.memory_space<vmem>>, vector<1x64xf32>
    %9 = vector.shape_cast %8 : vector<1x64xf32> to vector<64xf32>
    %10 = vector.shape_cast %9 : vector<64xf32> to vector<1x1x64xf32>
    %11 = vector.broadcast %10 : vector<1x1x64xf32> to vector<2x16x64xf32>
    %12 = arith.addf %7, %11 : vector<2x16x64xf32>
    %cst = arith.constant 0.000000e+00 : f32
    %13 = vector.broadcast %cst : f32 to vector<2x16x64xf32>
    %14 = arith.maximumf %12, %13 : vector<2x16x64xf32>
    %15 = vector.shape_cast %14 : vector<2x16x64xf32> to vector<32x64xf32>
    %16 = arith.truncf %15 : vector<32x64xf32> to vector<32x64xbf16>
    %c0_7 = arith.constant 0 : index
    %c0_8 = arith.constant 0 : index
    %17 = vector.load %arg5[%c0_7, %c0_8] : memref<64x16xbf16, #tpu.memory_space<vmem>>, vector<64x16xbf16>
    %cst_9 = arith.constant dense<0.000000e+00> : vector<32x16xf32>
    %18 = tpu.matmul %16, %17, %cst_9 {dimension_numbers = #tpu.dot_dimension_numbers<[1], [0], [0], [1], [0, 0, 1, 1], [], []>} : vector<32x64xbf16>, vector<64x16xbf16>, vector<32x16xf32> -> vector<32x16xf32>
    %19 = vector.shape_cast %18 : vector<32x16xf32> to vector<2x16x16xf32>
    %20 = arith.truncf %19 : vector<2x16x16xf32> to vector<2x16x16xbf16>
    %c0_10 = arith.constant 0 : index
    %c0_11 = arith.constant 0 : index
    %c0_12 = arith.constant 0 : index
    %c0_13 = arith.constant 0 : index
    %21 = vector.load %arg6[%c0_10, %c0_11, %c0_12, %c0_13] : memref<1x2x16x16xbf16, #tpu.memory_space<vmem>>, vector<1x2x16x16xbf16>
    %22 = vector.shape_cast %21 : vector<1x2x16x16xbf16> to vector<2x16x16xbf16>
    %23 = vector.shape_cast %20 : vector<2x16x16xbf16> to vector<1x2x16x16xbf16>
    tpu.vector_store %arg6[%c0_10, %c0_11, %c0_12, %c0_13], %23 {strides = array<i32>} : memref<1x2x16x16xbf16, #tpu.memory_space<vmem>>, vector<1x2x16x16xbf16>,
    return
  }
  func.func @transform_0(%arg0: i32, %arg1: i32) -> (i32, i32, i32, i32) {
    %c0_i32 = arith.constant 0 : i32
    %c0_i32_0 = arith.constant 0 : i32
    %c0_i32_1 = arith.constant 0 : i32
    return %arg0, %arg1, %c0_i32, %c0_i32_0 : i32, i32, i32, i32
  }
  func.func @transform_1(%arg0: i32, %arg1: i32) -> (i32, i32) {
    %c0_i32 = arith.constant 0 : i32
    %c0_i32_0 = arith.constant 0 : i32
    %c0_i32_1 = arith.constant 0 : i32
    return %c0_i32, %c0_i32_0 : i32, i32
  }
  func.func @transform_2(%arg0: i32, %arg1: i32) -> (i32, i32) {
    %c0_i32 = arith.constant 0 : i32
    %c0_i32_0 = arith.constant 0 : i32
    %c0_i32_1 = arith.constant 0 : i32
    return %c0_i32, %c0_i32_0 : i32, i32
  }
  func.func @transform_3(%arg0: i32, %arg1: i32) -> (i32, i32) {
    %c0_i32 = arith.constant 0 : i32
    %c0_i32_0 = arith.constant 0 : i32
    %c0_i32_1 = arith.constant 0 : i32
    return %c0_i32, %c0_i32_0 : i32, i32
  }
  func.func @transform_4(%arg0: i32, %arg1: i32) -> (i32, i32, i32, i32) {
    %c0_i32 = arith.constant 0 : i32
    %c0_i32_0 = arith.constant 0 : i32
    %c0_i32_1 = arith.constant 0 : i32
    return %arg0, %arg1, %c0_i32, %c0_i32_0 : i32, i32, i32, i32
  }
}

module attributes {stable_mosaic.version = 11 : i64} {
  func.func @_subm_conv_kernel(%arg0: i32, %arg1: i32, %arg2: memref<1x4x4x128xbf16, #tpu.memory_space<vmem>>, %arg3: memref<1x128xf32, #tpu.memory_space<vmem>>, %arg4: memref<1x128xf32, #tpu.memory_space<vmem>>, %arg5: memref<1152x64xbf16, #tpu.memory_space<vmem>>, %arg6: memref<1x4x4x64xbf16, #tpu.memory_space<vmem>>, %arg7: memref<6x6x128xbf16, #tpu.memory_space<vmem>>) attributes {dimension_semantics = [#tpu.dimension_semantics<parallel>, #tpu.dimension_semantics<arbitrary>], iteration_bounds = array<i64: 2, 1>, scalar_prefetch = 0 : i64, scratch_operands = 1 : i64, tpu.core_type = #tpu.core_type<tc>, window_params = [{transform_indices = @transform_0, window_bounds = array<i64: 1, 4, 4, 128>}, {pipeline_mode = #tpu.pipeline_mode<synchronous>, transform_indices = @transform_1, window_bounds = array<i64: 1, 128>}, {pipeline_mode = #tpu.pipeline_mode<synchronous>, transform_indices = @transform_2, window_bounds = array<i64: 1, 128>}, {pipeline_mode = #tpu.pipeline_mode<synchronous>, transform_indices = @transform_3, window_bounds = array<i64: 1152, 64>}, {transform_indices = @transform_4, window_bounds = array<i64: 1, 4, 4, 64>}]} {
    %c0_i32 = arith.constant 0 : i32
    %0 = arith.cmpi eq, %arg1, %c0_i32 : i32
    %1 = arith.extui %0 : i1 to i32
    %c0_i32_0 = arith.constant 0 : i32
    %2 = arith.cmpi ne, %1, %c0_i32_0 : i32
    scf.if %2 {
      %cst_29 = arith.constant 0.000000e+00 : bf16
      %49 = vector.broadcast %cst_29 : bf16 to vector<6x6x128xbf16>
      %c0_30 = arith.constant 0 : index
      %c0_31 = arith.constant 0 : index
      %c0_32 = arith.constant 0 : index
      %50 = vector.load %arg7[%c0_30, %c0_31, %c0_32] : memref<6x6x128xbf16, #tpu.memory_space<vmem>>, vector<6x6x128xbf16>
      tpu.vector_store %arg7[%c0_30, %c0_31, %c0_32], %49 {strides = array<i32>} : memref<6x6x128xbf16, #tpu.memory_space<vmem>>, vector<6x6x128xbf16>,
      %c0_33 = arith.constant 0 : index
      %c0_34 = arith.constant 0 : index
      %c0_35 = arith.constant 0 : index
      %c0_36 = arith.constant 0 : index
      %51 = vector.load %arg2[%c0_33, %c0_34, %c0_35, %c0_36] : memref<1x4x4x128xbf16, #tpu.memory_space<vmem>>, vector<1x4x4x128xbf16>
      %52 = vector.shape_cast %51 : vector<1x4x4x128xbf16> to vector<4x4x128xbf16>
      %53 = arith.extf %52 : vector<4x4x128xbf16> to vector<4x4x128xf32>
      %c0_37 = arith.constant 0 : index
      %c0_38 = arith.constant 0 : index
      %54 = vector.load %arg3[%c0_37, %c0_38] : memref<1x128xf32, #tpu.memory_space<vmem>>, vector<1x128xf32>
      %55 = vector.shape_cast %54 : vector<1x128xf32> to vector<128xf32>
      %56 = vector.shape_cast %55 : vector<128xf32> to vector<1x1x128xf32>
      %57 = vector.broadcast %56 : vector<1x1x128xf32> to vector<4x4x128xf32>
      %58 = arith.mulf %53, %57 : vector<4x4x128xf32>
      %c0_39 = arith.constant 0 : index
      %c0_40 = arith.constant 0 : index
      %59 = vector.load %arg4[%c0_39, %c0_40] : memref<1x128xf32, #tpu.memory_space<vmem>>, vector<1x128xf32>
      %60 = vector.shape_cast %59 : vector<1x128xf32> to vector<128xf32>
      %61 = vector.shape_cast %60 : vector<128xf32> to vector<1x1x128xf32>
      %62 = vector.broadcast %61 : vector<1x1x128xf32> to vector<4x4x128xf32>
      %63 = arith.addf %58, %62 : vector<4x4x128xf32>
      %cst_41 = arith.constant 0.000000e+00 : f32
      %64 = vector.broadcast %cst_41 : f32 to vector<4x4x128xf32>
      %65 = arith.maximumf %63, %64 : vector<4x4x128xf32>
      %66 = arith.truncf %65 : vector<4x4x128xf32> to vector<4x4x128xbf16>
      %c1_42 = arith.constant 1 : index
      %c1_43 = arith.constant 1 : index
      %c0_44 = arith.constant 0 : index
      %67 = vector.load %arg7[%c1_42, %c1_43, %c0_44] : memref<6x6x128xbf16, #tpu.memory_space<vmem>>, vector<4x4x128xbf16>
      tpu.vector_store %arg7[%c1_42, %c1_43, %c0_44], %66 {strides = array<i32>} : memref<6x6x128xbf16, #tpu.memory_space<vmem>>, vector<4x4x128xbf16>,
    } else {
    }
    %c4_i32 = arith.constant 4 : i32
    %3 = arith.muli %arg1, %c4_i32 : i32
    %4 = tpu.assume_multiple %3, 4 : i32
    %c0_i32_1 = arith.constant 0 : i32
    %5 = arith.addi %4, %c0_i32_1 : i32
    %6 = arith.index_cast %5 : i32 to index
    %c0 = arith.constant 0 : index
    %c0_2 = arith.constant 0 : index
    %7 = vector.load %arg7[%6, %c0, %c0_2] : memref<6x6x128xbf16, #tpu.memory_space<vmem>>, vector<4x4x128xbf16>
    %8 = vector.shape_cast %7 : vector<4x4x128xbf16> to vector<16x128xbf16>
    %c0_i32_3 = arith.constant 0 : i32
    %9 = arith.addi %4, %c0_i32_3 : i32
    %10 = arith.index_cast %9 : i32 to index
    %c1 = arith.constant 1 : index
    %c0_4 = arith.constant 0 : index
    %11 = vector.load %arg7[%10, %c1, %c0_4] : memref<6x6x128xbf16, #tpu.memory_space<vmem>>, vector<4x4x128xbf16>
    %12 = vector.shape_cast %11 : vector<4x4x128xbf16> to vector<16x128xbf16>
    %c0_i32_5 = arith.constant 0 : i32
    %13 = arith.addi %4, %c0_i32_5 : i32
    %14 = arith.index_cast %13 : i32 to index
    %c2 = arith.constant 2 : index
    %c0_6 = arith.constant 0 : index
    %15 = vector.load %arg7[%14, %c2, %c0_6] : memref<6x6x128xbf16, #tpu.memory_space<vmem>>, vector<4x4x128xbf16>
    %16 = vector.shape_cast %15 : vector<4x4x128xbf16> to vector<16x128xbf16>
    %c1_i32 = arith.constant 1 : i32
    %17 = arith.addi %4, %c1_i32 : i32
    %18 = arith.index_cast %17 : i32 to index
    %c0_7 = arith.constant 0 : index
    %c0_8 = arith.constant 0 : index
    %19 = vector.load %arg7[%18, %c0_7, %c0_8] : memref<6x6x128xbf16, #tpu.memory_space<vmem>>, vector<4x4x128xbf16>
    %20 = vector.shape_cast %19 : vector<4x4x128xbf16> to vector<16x128xbf16>
    %c1_i32_9 = arith.constant 1 : i32
    %21 = arith.addi %4, %c1_i32_9 : i32
    %22 = arith.index_cast %21 : i32 to index
    %c1_10 = arith.constant 1 : index
    %c0_11 = arith.constant 0 : index
    %23 = vector.load %arg7[%22, %c1_10, %c0_11] : memref<6x6x128xbf16, #tpu.memory_space<vmem>>, vector<4x4x128xbf16>
    %24 = vector.shape_cast %23 : vector<4x4x128xbf16> to vector<16x128xbf16>
    %c1_i32_12 = arith.constant 1 : i32
    %25 = arith.addi %4, %c1_i32_12 : i32
    %26 = arith.index_cast %25 : i32 to index
    %c2_13 = arith.constant 2 : index
    %c0_14 = arith.constant 0 : index
    %27 = vector.load %arg7[%26, %c2_13, %c0_14] : memref<6x6x128xbf16, #tpu.memory_space<vmem>>, vector<4x4x128xbf16>
    %28 = vector.shape_cast %27 : vector<4x4x128xbf16> to vector<16x128xbf16>
    %c2_i32 = arith.constant 2 : i32
    %29 = arith.addi %4, %c2_i32 : i32
    %30 = arith.index_cast %29 : i32 to index
    %c0_15 = arith.constant 0 : index
    %c0_16 = arith.constant 0 : index
    %31 = vector.load %arg7[%30, %c0_15, %c0_16] : memref<6x6x128xbf16, #tpu.memory_space<vmem>>, vector<4x4x128xbf16>
    %32 = vector.shape_cast %31 : vector<4x4x128xbf16> to vector<16x128xbf16>
    %c2_i32_17 = arith.constant 2 : i32
    %33 = arith.addi %4, %c2_i32_17 : i32
    %34 = arith.index_cast %33 : i32 to index
    %c1_18 = arith.constant 1 : index
    %c0_19 = arith.constant 0 : index
    %35 = vector.load %arg7[%34, %c1_18, %c0_19] : memref<6x6x128xbf16, #tpu.memory_space<vmem>>, vector<4x4x128xbf16>
    %36 = vector.shape_cast %35 : vector<4x4x128xbf16> to vector<16x128xbf16>
    %c2_i32_20 = arith.constant 2 : i32
    %37 = arith.addi %4, %c2_i32_20 : i32
    %38 = arith.index_cast %37 : i32 to index
    %c2_21 = arith.constant 2 : index
    %c0_22 = arith.constant 0 : index
    %39 = vector.load %arg7[%38, %c2_21, %c0_22] : memref<6x6x128xbf16, #tpu.memory_space<vmem>>, vector<4x4x128xbf16>
    %40 = vector.shape_cast %39 : vector<4x4x128xbf16> to vector<16x128xbf16>
    %41 = tpu.concatenate %8, %12, %16, %20, %24, %28, %32, %36, %40 in 1 : vector<16x128xbf16>, vector<16x128xbf16>, vector<16x128xbf16>, vector<16x128xbf16>, vector<16x128xbf16>, vector<16x128xbf16>, vector<16x128xbf16>, vector<16x128xbf16>, vector<16x128xbf16> -> vector<16x1152xbf16>
    %c0_23 = arith.constant 0 : index
    %c0_24 = arith.constant 0 : index
    %42 = vector.load %arg5[%c0_23, %c0_24] : memref<1152x64xbf16, #tpu.memory_space<vmem>>, vector<1152x64xbf16>
    %cst = arith.constant dense<0.000000e+00> : vector<16x64xf32>
    %43 = tpu.matmul %41, %42, %cst {dimension_numbers = #tpu.dot_dimension_numbers<[1], [0], [0], [1], [0, 0, 1, 1], [], []>} : vector<16x1152xbf16>, vector<1152x64xbf16>, vector<16x64xf32> -> vector<16x64xf32>
    %44 = vector.shape_cast %43 : vector<16x64xf32> to vector<4x4x64xf32>
    %45 = arith.truncf %44 : vector<4x4x64xf32> to vector<4x4x64xbf16>
    %c0_25 = arith.constant 0 : index
    %c0_26 = arith.constant 0 : index
    %c0_27 = arith.constant 0 : index
    %c0_28 = arith.constant 0 : index
    %46 = vector.load %arg6[%c0_25, %c0_26, %c0_27, %c0_28] : memref<1x4x4x64xbf16, #tpu.memory_space<vmem>>, vector<1x4x4x64xbf16>
    %47 = vector.shape_cast %46 : vector<1x4x4x64xbf16> to vector<4x4x64xbf16>
    %48 = vector.shape_cast %45 : vector<4x4x64xbf16> to vector<1x4x4x64xbf16>
    tpu.vector_store %arg6[%c0_25, %c0_26, %c0_27, %c0_28], %48 {strides = array<i32>} : memref<1x4x4x64xbf16, #tpu.memory_space<vmem>>, vector<1x4x4x64xbf16>,
    return
  }
  func.func @transform_0(%arg0: i32, %arg1: i32) -> (i32, i32, i32, i32) {
    %c0_i32 = arith.constant 0 : i32
    %c0_i32_0 = arith.constant 0 : i32
    %c0_i32_1 = arith.constant 0 : i32
    %c0_i32_2 = arith.constant 0 : i32
    return %arg0, %c0_i32, %c0_i32_0, %c0_i32_1 : i32, i32, i32, i32
  }
  func.func @transform_1(%arg0: i32, %arg1: i32) -> (i32, i32) {
    %c0_i32 = arith.constant 0 : i32
    %c0_i32_0 = arith.constant 0 : i32
    %c0_i32_1 = arith.constant 0 : i32
    return %c0_i32, %c0_i32_0 : i32, i32
  }
  func.func @transform_2(%arg0: i32, %arg1: i32) -> (i32, i32) {
    %c0_i32 = arith.constant 0 : i32
    %c0_i32_0 = arith.constant 0 : i32
    %c0_i32_1 = arith.constant 0 : i32
    return %c0_i32, %c0_i32_0 : i32, i32
  }
  func.func @transform_3(%arg0: i32, %arg1: i32) -> (i32, i32) {
    %c0_i32 = arith.constant 0 : i32
    %c0_i32_0 = arith.constant 0 : i32
    %c0_i32_1 = arith.constant 0 : i32
    return %c0_i32, %c0_i32_0 : i32, i32
  }
  func.func @transform_4(%arg0: i32, %arg1: i32) -> (i32, i32, i32, i32) {
    %c0_i32 = arith.constant 0 : i32
    %c0_i32_0 = arith.constant 0 : i32
    %c0_i32_1 = arith.constant 0 : i32
    return %arg0, %arg1, %c0_i32, %c0_i32_0 : i32, i32, i32, i32
  }
}

module attributes {stable_mosaic.version = 11 : i64} {
  func.func @_subm_conv_kernel(%arg0: i32, %arg1: i32, %arg2: memref<1x4x4x128xbf16, #tpu.memory_space<vmem>>, %arg3: memref<1x128xf32, #tpu.memory_space<vmem>>, %arg4: memref<1x128xf32, #tpu.memory_space<vmem>>, %arg5: memref<1152x64xbf16, #tpu.memory_space<vmem>>, %arg6: memref<1x4x4x64xbf16, #tpu.memory_space<vmem>>, %arg7: memref<1x4x4x64xbf16, #tpu.memory_space<vmem>>, %arg8: memref<6x6x128xbf16, #tpu.memory_space<vmem>>) attributes {dimension_semantics = [#tpu.dimension_semantics<parallel>, #tpu.dimension_semantics<arbitrary>], iteration_bounds = array<i64: 2, 1>, scalar_prefetch = 0 : i64, scratch_operands = 1 : i64, tpu.core_type = #tpu.core_type<tc>, window_params = [{transform_indices = @transform_0, window_bounds = array<i64: 1, 4, 4, 128>}, {pipeline_mode = #tpu.pipeline_mode<synchronous>, transform_indices = @transform_1, window_bounds = array<i64: 1, 128>}, {pipeline_mode = #tpu.pipeline_mode<synchronous>, transform_indices = @transform_2, window_bounds = array<i64: 1, 128>}, {pipeline_mode = #tpu.pipeline_mode<synchronous>, transform_indices = @transform_3, window_bounds = array<i64: 1152, 64>}, {transform_indices = @transform_4, window_bounds = array<i64: 1, 4, 4, 64>}, {transform_indices = @transform_5, window_bounds = array<i64: 1, 4, 4, 64>}]} {
    %c0_i32 = arith.constant 0 : i32
    %0 = arith.cmpi eq, %arg1, %c0_i32 : i32
    %1 = arith.extui %0 : i1 to i32
    %c0_i32_0 = arith.constant 0 : i32
    %2 = arith.cmpi ne, %1, %c0_i32_0 : i32
    scf.if %2 {
      %cst_33 = arith.constant 0.000000e+00 : bf16
      %54 = vector.broadcast %cst_33 : bf16 to vector<6x6x128xbf16>
      %c0_34 = arith.constant 0 : index
      %c0_35 = arith.constant 0 : index
      %c0_36 = arith.constant 0 : index
      %55 = vector.load %arg8[%c0_34, %c0_35, %c0_36] : memref<6x6x128xbf16, #tpu.memory_space<vmem>>, vector<6x6x128xbf16>
      tpu.vector_store %arg8[%c0_34, %c0_35, %c0_36], %54 {strides = array<i32>} : memref<6x6x128xbf16, #tpu.memory_space<vmem>>, vector<6x6x128xbf16>,
      %c0_37 = arith.constant 0 : index
      %c0_38 = arith.constant 0 : index
      %c0_39 = arith.constant 0 : index
      %c0_40 = arith.constant 0 : index
      %56 = vector.load %arg2[%c0_37, %c0_38, %c0_39, %c0_40] : memref<1x4x4x128xbf16, #tpu.memory_space<vmem>>, vector<1x4x4x128xbf16>
      %57 = vector.shape_cast %56 : vector<1x4x4x128xbf16> to vector<4x4x128xbf16>
      %58 = arith.extf %57 : vector<4x4x128xbf16> to vector<4x4x128xf32>
      %c0_41 = arith.constant 0 : index
      %c0_42 = arith.constant 0 : index
      %59 = vector.load %arg3[%c0_41, %c0_42] : memref<1x128xf32, #tpu.memory_space<vmem>>, vector<1x128xf32>
      %60 = vector.shape_cast %59 : vector<1x128xf32> to vector<128xf32>
      %61 = vector.shape_cast %60 : vector<128xf32> to vector<1x1x128xf32>
      %62 = vector.broadcast %61 : vector<1x1x128xf32> to vector<4x4x128xf32>
      %63 = arith.mulf %58, %62 : vector<4x4x128xf32>
      %c0_43 = arith.constant 0 : index
      %c0_44 = arith.constant 0 : index
      %64 = vector.load %arg4[%c0_43, %c0_44] : memref<1x128xf32, #tpu.memory_space<vmem>>, vector<1x128xf32>
      %65 = vector.shape_cast %64 : vector<1x128xf32> to vector<128xf32>
      %66 = vector.shape_cast %65 : vector<128xf32> to vector<1x1x128xf32>
      %67 = vector.broadcast %66 : vector<1x1x128xf32> to vector<4x4x128xf32>
      %68 = arith.addf %63, %67 : vector<4x4x128xf32>
      %cst_45 = arith.constant 0.000000e+00 : f32
      %69 = vector.broadcast %cst_45 : f32 to vector<4x4x128xf32>
      %70 = arith.maximumf %68, %69 : vector<4x4x128xf32>
      %71 = arith.truncf %70 : vector<4x4x128xf32> to vector<4x4x128xbf16>
      %c1_46 = arith.constant 1 : index
      %c1_47 = arith.constant 1 : index
      %c0_48 = arith.constant 0 : index
      %72 = vector.load %arg8[%c1_46, %c1_47, %c0_48] : memref<6x6x128xbf16, #tpu.memory_space<vmem>>, vector<4x4x128xbf16>
      tpu.vector_store %arg8[%c1_46, %c1_47, %c0_48], %71 {strides = array<i32>} : memref<6x6x128xbf16, #tpu.memory_space<vmem>>, vector<4x4x128xbf16>,
    } else {
    }
    %c4_i32 = arith.constant 4 : i32
    %3 = arith.muli %arg1, %c4_i32 : i32
    %4 = tpu.assume_multiple %3, 4 : i32
    %c0_i32_1 = arith.constant 0 : i32
    %5 = arith.addi %4, %c0_i32_1 : i32
    %6 = arith.index_cast %5 : i32 to index
    %c0 = arith.constant 0 : index
    %c0_2 = arith.constant 0 : index
    %7 = vector.load %arg8[%6, %c0, %c0_2] : memref<6x6x128xbf16, #tpu.memory_space<vmem>>, vector<4x4x128xbf16>
    %8 = vector.shape_cast %7 : vector<4x4x128xbf16> to vector<16x128xbf16>
    %c0_i32_3 = arith.constant 0 : i32
    %9 = arith.addi %4, %c0_i32_3 : i32
    %10 = arith.index_cast %9 : i32 to index
    %c1 = arith.constant 1 : index
    %c0_4 = arith.constant 0 : index
    %11 = vector.load %arg8[%10, %c1, %c0_4] : memref<6x6x128xbf16, #tpu.memory_space<vmem>>, vector<4x4x128xbf16>
    %12 = vector.shape_cast %11 : vector<4x4x128xbf16> to vector<16x128xbf16>
    %c0_i32_5 = arith.constant 0 : i32
    %13 = arith.addi %4, %c0_i32_5 : i32
    %14 = arith.index_cast %13 : i32 to index
    %c2 = arith.constant 2 : index
    %c0_6 = arith.constant 0 : index
    %15 = vector.load %arg8[%14, %c2, %c0_6] : memref<6x6x128xbf16, #tpu.memory_space<vmem>>, vector<4x4x128xbf16>
    %16 = vector.shape_cast %15 : vector<4x4x128xbf16> to vector<16x128xbf16>
    %c1_i32 = arith.constant 1 : i32
    %17 = arith.addi %4, %c1_i32 : i32
    %18 = arith.index_cast %17 : i32 to index
    %c0_7 = arith.constant 0 : index
    %c0_8 = arith.constant 0 : index
    %19 = vector.load %arg8[%18, %c0_7, %c0_8] : memref<6x6x128xbf16, #tpu.memory_space<vmem>>, vector<4x4x128xbf16>
    %20 = vector.shape_cast %19 : vector<4x4x128xbf16> to vector<16x128xbf16>
    %c1_i32_9 = arith.constant 1 : i32
    %21 = arith.addi %4, %c1_i32_9 : i32
    %22 = arith.index_cast %21 : i32 to index
    %c1_10 = arith.constant 1 : index
    %c0_11 = arith.constant 0 : index
    %23 = vector.load %arg8[%22, %c1_10, %c0_11] : memref<6x6x128xbf16, #tpu.memory_space<vmem>>, vector<4x4x128xbf16>
    %24 = vector.shape_cast %23 : vector<4x4x128xbf16> to vector<16x128xbf16>
    %c1_i32_12 = arith.constant 1 : i32
    %25 = arith.addi %4, %c1_i32_12 : i32
    %26 = arith.index_cast %25 : i32 to index
    %c2_13 = arith.constant 2 : index
    %c0_14 = arith.constant 0 : index
    %27 = vector.load %arg8[%26, %c2_13, %c0_14] : memref<6x6x128xbf16, #tpu.memory_space<vmem>>, vector<4x4x128xbf16>
    %28 = vector.shape_cast %27 : vector<4x4x128xbf16> to vector<16x128xbf16>
    %c2_i32 = arith.constant 2 : i32
    %29 = arith.addi %4, %c2_i32 : i32
    %30 = arith.index_cast %29 : i32 to index
    %c0_15 = arith.constant 0 : index
    %c0_16 = arith.constant 0 : index
    %31 = vector.load %arg8[%30, %c0_15, %c0_16] : memref<6x6x128xbf16, #tpu.memory_space<vmem>>, vector<4x4x128xbf16>
    %32 = vector.shape_cast %31 : vector<4x4x128xbf16> to vector<16x128xbf16>
    %c2_i32_17 = arith.constant 2 : i32
    %33 = arith.addi %4, %c2_i32_17 : i32
    %34 = arith.index_cast %33 : i32 to index
    %c1_18 = arith.constant 1 : index
    %c0_19 = arith.constant 0 : index
    %35 = vector.load %arg8[%34, %c1_18, %c0_19] : memref<6x6x128xbf16, #tpu.memory_space<vmem>>, vector<4x4x128xbf16>
    %36 = vector.shape_cast %35 : vector<4x4x128xbf16> to vector<16x128xbf16>
    %c2_i32_20 = arith.constant 2 : i32
    %37 = arith.addi %4, %c2_i32_20 : i32
    %38 = arith.index_cast %37 : i32 to index
    %c2_21 = arith.constant 2 : index
    %c0_22 = arith.constant 0 : index
    %39 = vector.load %arg8[%38, %c2_21, %c0_22] : memref<6x6x128xbf16, #tpu.memory_space<vmem>>, vector<4x4x128xbf16>
    %40 = vector.shape_cast %39 : vector<4x4x128xbf16> to vector<16x128xbf16>
    %41 = tpu.concatenate %8, %12, %16, %20, %24, %28, %32, %36, %40 in 1 : vector<16x128xbf16>, vector<16x128xbf16>, vector<16x128xbf16>, vector<16x128xbf16>, vector<16x128xbf16>, vector<16x128xbf16>, vector<16x128xbf16>, vector<16x128xbf16>, vector<16x128xbf16> -> vector<16x1152xbf16>
    %c0_23 = arith.constant 0 : index
    %c0_24 = arith.constant 0 : index
    %42 = vector.load %arg5[%c0_23, %c0_24] : memref<1152x64xbf16, #tpu.memory_space<vmem>>, vector<1152x64xbf16>
    %cst = arith.constant dense<0.000000e+00> : vector<16x64xf32>
    %43 = tpu.matmul %41, %42, %cst {dimension_numbers = #tpu.dot_dimension_numbers<[1], [0], [0], [1], [0, 0, 1, 1], [], []>} : vector<16x1152xbf16>, vector<1152x64xbf16>, vector<16x64xf32> -> vector<16x64xf32>
    %c0_25 = arith.constant 0 : index
    %c0_26 = arith.constant 0 : index
    %c0_27 = arith.constant 0 : index
    %c0_28 = arith.constant 0 : index
    %44 = vector.load %arg6[%c0_25, %c0_26, %c0_27, %c0_28] : memref<1x4x4x64xbf16, #tpu.memory_space<vmem>>, vector<1x4x4x64xbf16>
    %45 = vector.shape_cast %44 : vector<1x4x4x64xbf16> to vector<4x4x64xbf16>
    %46 = vector.shape_cast %45 : vector<4x4x64xbf16> to vector<16x64xbf16>
    %47 = arith.extf %46 : vector<16x64xbf16> to vector<16x64xf32>
    %48 = arith.addf %43, %47 : vector<16x64xf32>
    %49 = vector.shape_cast %48 : vector<16x64xf32> to vector<4x4x64xf32>
    %50 = arith.truncf %49 : vector<4x4x64xf32> to vector<4x4x64xbf16>
    %c0_29 = arith.constant 0 : index
    %c0_30 = arith.constant 0 : index
    %c0_31 = arith.constant 0 : index
    %c0_32 = arith.constant 0 : index
    %51 = vector.load %arg7[%c0_29, %c0_30, %c0_31, %c0_32] : memref<1x4x4x64xbf16, #tpu.memory_space<vmem>>, vector<1x4x4x64xbf16>
    %52 = vector.shape_cast %51 : vector<1x4x4x64xbf16> to vector<4x4x64xbf16>
    %53 = vector.shape_cast %50 : vector<4x4x64xbf16> to vector<1x4x4x64xbf16>
    tpu.vector_store %arg7[%c0_29, %c0_30, %c0_31, %c0_32], %53 {strides = array<i32>} : memref<1x4x4x64xbf16, #tpu.memory_space<vmem>>, vector<1x4x4x64xbf16>,
    return
  }
  func.func @transform_0(%arg0: i32, %arg1: i32) -> (i32, i32, i32, i32) {
    %c0_i32 = arith.constant 0 : i32
    %c0_i32_0 = arith.constant 0 : i32
    %c0_i32_1 = arith.constant 0 : i32
    %c0_i32_2 = arith.constant 0 : i32
    return %arg0, %c0_i32, %c0_i32_0, %c0_i32_1 : i32, i32, i32, i32
  }
  func.func @transform_1(%arg0: i32, %arg1: i32) -> (i32, i32) {
    %c0_i32 = arith.constant 0 : i32
    %c0_i32_0 = arith.constant 0 : i32
    %c0_i32_1 = arith.constant 0 : i32
    return %c0_i32, %c0_i32_0 : i32, i32
  }
  func.func @transform_2(%arg0: i32, %arg1: i32) -> (i32, i32) {
    %c0_i32 = arith.constant 0 : i32
    %c0_i32_0 = arith.constant 0 : i32
    %c0_i32_1 = arith.constant 0 : i32
    return %c0_i32, %c0_i32_0 : i32, i32
  }
  func.func @transform_3(%arg0: i32, %arg1: i32) -> (i32, i32) {
    %c0_i32 = arith.constant 0 : i32
    %c0_i32_0 = arith.constant 0 : i32
    %c0_i32_1 = arith.constant 0 : i32
    return %c0_i32, %c0_i32_0 : i32, i32
  }
  func.func @transform_4(%arg0: i32, %arg1: i32) -> (i32, i32, i32, i32) {
    %c0_i32 = arith.constant 0 : i32
    %c0_i32_0 = arith.constant 0 : i32
    %c0_i32_1 = arith.constant 0 : i32
    return %arg0, %arg1, %c0_i32, %c0_i32_0 : i32, i32, i32, i32
  }
  func.func @transform_5(%arg0: i32, %arg1: i32) -> (i32, i32, i32, i32) {
    %c0_i32 = arith.constant 0 : i32
    %c0_i32_0 = arith.constant 0 : i32
    %c0_i32_1 = arith.constant 0 : i32
    return %arg0, %arg1, %c0_i32, %c0_i32_0 : i32, i32, i32, i32
  }
}

module attributes {stable_mosaic.version = 11 : i64} {
  func.func @_gemm_bn_relu_kernel(%arg0: i32, %arg1: i32, %arg2: memref<1x2x16x16xbf16, #tpu.memory_space<vmem>>, %arg3: memref<1x16xf32, #tpu.memory_space<vmem>>, %arg4: memref<1x16xf32, #tpu.memory_space<vmem>>, %arg5: memref<16x64xbf16, #tpu.memory_space<vmem>>, %arg6: memref<1x2x16x64xbf16, #tpu.memory_space<vmem>>) attributes {dimension_semantics = [#tpu.dimension_semantics<parallel>, #tpu.dimension_semantics<parallel>], iteration_bounds = array<i64: 2, 2>, scalar_prefetch = 0 : i64, scratch_operands = 0 : i64, tpu.core_type = #tpu.core_type<tc>, window_params = [{transform_indices = @transform_0, window_bounds = array<i64: 1, 2, 16, 16>}, {pipeline_mode = #tpu.pipeline_mode<synchronous>, transform_indices = @transform_1, window_bounds = array<i64: 1, 16>}, {pipeline_mode = #tpu.pipeline_mode<synchronous>, transform_indices = @transform_2, window_bounds = array<i64: 1, 16>}, {pipeline_mode = #tpu.pipeline_mode<synchronous>, transform_indices = @transform_3, window_bounds = array<i64: 16, 64>}, {transform_indices = @transform_4, window_bounds = array<i64: 1, 2, 16, 64>}]} {
    %c0 = arith.constant 0 : index
    %c0_0 = arith.constant 0 : index
    %c0_1 = arith.constant 0 : index
    %c0_2 = arith.constant 0 : index
    %0 = vector.load %arg2[%c0, %c0_0, %c0_1, %c0_2] : memref<1x2x16x16xbf16, #tpu.memory_space<vmem>>, vector<1x2x16x16xbf16>
    %1 = vector.shape_cast %0 : vector<1x2x16x16xbf16> to vector<2x16x16xbf16>
    %2 = arith.extf %1 : vector<2x16x16xbf16> to vector<2x16x16xf32>
    %c0_3 = arith.constant 0 : index
    %c0_4 = arith.constant 0 : index
    %3 = vector.load %arg3[%c0_3, %c0_4] : memref<1x16xf32, #tpu.memory_space<vmem>>, vector<1x16xf32>
    %4 = vector.shape_cast %3 : vector<1x16xf32> to vector<16xf32>
    %5 = vector.shape_cast %4 : vector<16xf32> to vector<1x1x16xf32>
    %6 = vector.broadcast %5 : vector<1x1x16xf32> to vector<2x16x16xf32>
    %7 = arith.mulf %2, %6 : vector<2x16x16xf32>
    %c0_5 = arith.constant 0 : index
    %c0_6 = arith.constant 0 : index
    %8 = vector.load %arg4[%c0_5, %c0_6] : memref<1x16xf32, #tpu.memory_space<vmem>>, vector<1x16xf32>
    %9 = vector.shape_cast %8 : vector<1x16xf32> to vector<16xf32>
    %10 = vector.shape_cast %9 : vector<16xf32> to vector<1x1x16xf32>
    %11 = vector.broadcast %10 : vector<1x1x16xf32> to vector<2x16x16xf32>
    %12 = arith.addf %7, %11 : vector<2x16x16xf32>
    %cst = arith.constant 0.000000e+00 : f32
    %13 = vector.broadcast %cst : f32 to vector<2x16x16xf32>
    %14 = arith.maximumf %12, %13 : vector<2x16x16xf32>
    %15 = vector.shape_cast %14 : vector<2x16x16xf32> to vector<32x16xf32>
    %16 = arith.truncf %15 : vector<32x16xf32> to vector<32x16xbf16>
    %c0_7 = arith.constant 0 : index
    %c0_8 = arith.constant 0 : index
    %17 = vector.load %arg5[%c0_7, %c0_8] : memref<16x64xbf16, #tpu.memory_space<vmem>>, vector<16x64xbf16>
    %cst_9 = arith.constant dense<0.000000e+00> : vector<32x64xf32>
    %18 = tpu.matmul %16, %17, %cst_9 {dimension_numbers = #tpu.dot_dimension_numbers<[1], [0], [0], [1], [0, 0, 1, 1], [], []>} : vector<32x16xbf16>, vector<16x64xbf16>, vector<32x64xf32> -> vector<32x64xf32>
    %19 = vector.shape_cast %18 : vector<32x64xf32> to vector<2x16x64xf32>
    %20 = arith.truncf %19 : vector<2x16x64xf32> to vector<2x16x64xbf16>
    %c0_10 = arith.constant 0 : index
    %c0_11 = arith.constant 0 : index
    %c0_12 = arith.constant 0 : index
    %c0_13 = arith.constant 0 : index
    %21 = vector.load %arg6[%c0_10, %c0_11, %c0_12, %c0_13] : memref<1x2x16x64xbf16, #tpu.memory_space<vmem>>, vector<1x2x16x64xbf16>
    %22 = vector.shape_cast %21 : vector<1x2x16x64xbf16> to vector<2x16x64xbf16>
    %23 = vector.shape_cast %20 : vector<2x16x64xbf16> to vector<1x2x16x64xbf16>
    tpu.vector_store %arg6[%c0_10, %c0_11, %c0_12, %c0_13], %23 {strides = array<i32>} : memref<1x2x16x64xbf16, #tpu.memory_space<vmem>>, vector<1x2x16x64xbf16>,
    return
  }
  func.func @transform_0(%arg0: i32, %arg1: i32) -> (i32, i32, i32, i32) {
    %c0_i32 = arith.constant 0 : i32
    %c0_i32_0 = arith.constant 0 : i32
    %c0_i32_1 = arith.constant 0 : i32
    return %arg0, %arg1, %c0_i32, %c0_i32_0 : i32, i32, i32, i32
  }
  func.func @transform_1(%arg0: i32, %arg1: i32) -> (i32, i32) {
    %c0_i32 = arith.constant 0 : i32
    %c0_i32_0 = arith.constant 0 : i32
    %c0_i32_1 = arith.constant 0 : i32
    return %c0_i32, %c0_i32_0 : i32, i32
  }
  func.func @transform_2(%arg0: i32, %arg1: i32) -> (i32, i32) {
    %c0_i32 = arith.constant 0 : i32
    %c0_i32_0 = arith.constant 0 : i32
    %c0_i32_1 = arith.constant 0 : i32
    return %c0_i32, %c0_i32_0 : i32, i32
  }
  func.func @transform_3(%arg0: i32, %arg1: i32) -> (i32, i32) {
    %c0_i32 = arith.constant 0 : i32
    %c0_i32_0 = arith.constant 0 : i32
    %c0_i32_1 = arith.constant 0 : i32
    return %c0_i32, %c0_i32_0 : i32, i32
  }
  func.func @transform_4(%arg0: i32, %arg1: i32) -> (i32, i32, i32, i32) {
    %c0_i32 = arith.constant 0 : i32
    %c0_i32_0 = arith.constant 0 : i32
    %c0_i32_1 = arith.constant 0 : i32
    return %arg0, %arg1, %c0_i32, %c0_i32_0 : i32, i32, i32, i32
  }
}

module attributes {stable_mosaic.version = 11 : i64} {
  func.func @_subm_conv_kernel(%arg0: i32, %arg1: i32, %arg2: memref<1x8x8x256xbf16, #tpu.memory_space<vmem>>, %arg3: memref<1x256xf32, #tpu.memory_space<vmem>>, %arg4: memref<1x256xf32, #tpu.memory_space<vmem>>, %arg5: memref<2304x64xbf16, #tpu.memory_space<vmem>>, %arg6: memref<1x4x8x64xbf16, #tpu.memory_space<vmem>>, %arg7: memref<10x10x256xbf16, #tpu.memory_space<vmem>>) attributes {dimension_semantics = [#tpu.dimension_semantics<parallel>, #tpu.dimension_semantics<arbitrary>], iteration_bounds = array<i64: 2, 2>, scalar_prefetch = 0 : i64, scratch_operands = 1 : i64, tpu.core_type = #tpu.core_type<tc>, window_params = [{transform_indices = @transform_0, window_bounds = array<i64: 1, 8, 8, 256>}, {pipeline_mode = #tpu.pipeline_mode<synchronous>, transform_indices = @transform_1, window_bounds = array<i64: 1, 256>}, {pipeline_mode = #tpu.pipeline_mode<synchronous>, transform_indices = @transform_2, window_bounds = array<i64: 1, 256>}, {pipeline_mode = #tpu.pipeline_mode<synchronous>, transform_indices = @transform_3, window_bounds = array<i64: 2304, 64>}, {transform_indices = @transform_4, window_bounds = array<i64: 1, 4, 8, 64>}]} {
    %c0_i32 = arith.constant 0 : i32
    %0 = arith.cmpi eq, %arg1, %c0_i32 : i32
    %1 = arith.extui %0 : i1 to i32
    %c0_i32_0 = arith.constant 0 : i32
    %2 = arith.cmpi ne, %1, %c0_i32_0 : i32
    scf.if %2 {
      %cst_29 = arith.constant 0.000000e+00 : bf16
      %49 = vector.broadcast %cst_29 : bf16 to vector<10x10x256xbf16>
      %c0_30 = arith.constant 0 : index
      %c0_31 = arith.constant 0 : index
      %c0_32 = arith.constant 0 : index
      %50 = vector.load %arg7[%c0_30, %c0_31, %c0_32] : memref<10x10x256xbf16, #tpu.memory_space<vmem>>, vector<10x10x256xbf16>
      tpu.vector_store %arg7[%c0_30, %c0_31, %c0_32], %49 {strides = array<i32>} : memref<10x10x256xbf16, #tpu.memory_space<vmem>>, vector<10x10x256xbf16>,
      %c0_33 = arith.constant 0 : index
      %c0_34 = arith.constant 0 : index
      %c0_35 = arith.constant 0 : index
      %c0_36 = arith.constant 0 : index
      %51 = vector.load %arg2[%c0_33, %c0_34, %c0_35, %c0_36] : memref<1x8x8x256xbf16, #tpu.memory_space<vmem>>, vector<1x8x8x256xbf16>
      %52 = vector.shape_cast %51 : vector<1x8x8x256xbf16> to vector<8x8x256xbf16>
      %53 = arith.extf %52 : vector<8x8x256xbf16> to vector<8x8x256xf32>
      %c0_37 = arith.constant 0 : index
      %c0_38 = arith.constant 0 : index
      %54 = vector.load %arg3[%c0_37, %c0_38] : memref<1x256xf32, #tpu.memory_space<vmem>>, vector<1x256xf32>
      %55 = vector.shape_cast %54 : vector<1x256xf32> to vector<256xf32>
      %56 = vector.shape_cast %55 : vector<256xf32> to vector<1x1x256xf32>
      %57 = vector.broadcast %56 : vector<1x1x256xf32> to vector<8x8x256xf32>
      %58 = arith.mulf %53, %57 : vector<8x8x256xf32>
      %c0_39 = arith.constant 0 : index
      %c0_40 = arith.constant 0 : index
      %59 = vector.load %arg4[%c0_39, %c0_40] : memref<1x256xf32, #tpu.memory_space<vmem>>, vector<1x256xf32>
      %60 = vector.shape_cast %59 : vector<1x256xf32> to vector<256xf32>
      %61 = vector.shape_cast %60 : vector<256xf32> to vector<1x1x256xf32>
      %62 = vector.broadcast %61 : vector<1x1x256xf32> to vector<8x8x256xf32>
      %63 = arith.addf %58, %62 : vector<8x8x256xf32>
      %cst_41 = arith.constant 0.000000e+00 : f32
      %64 = vector.broadcast %cst_41 : f32 to vector<8x8x256xf32>
      %65 = arith.maximumf %63, %64 : vector<8x8x256xf32>
      %66 = arith.truncf %65 : vector<8x8x256xf32> to vector<8x8x256xbf16>
      %c1_42 = arith.constant 1 : index
      %c1_43 = arith.constant 1 : index
      %c0_44 = arith.constant 0 : index
      %67 = vector.load %arg7[%c1_42, %c1_43, %c0_44] : memref<10x10x256xbf16, #tpu.memory_space<vmem>>, vector<8x8x256xbf16>
      tpu.vector_store %arg7[%c1_42, %c1_43, %c0_44], %66 {strides = array<i32>} : memref<10x10x256xbf16, #tpu.memory_space<vmem>>, vector<8x8x256xbf16>,
    } else {
    }
    %c4_i32 = arith.constant 4 : i32
    %3 = arith.muli %arg1, %c4_i32 : i32
    %4 = tpu.assume_multiple %3, 4 : i32
    %c0_i32_1 = arith.constant 0 : i32
    %5 = arith.addi %4, %c0_i32_1 : i32
    %6 = arith.index_cast %5 : i32 to index
    %c0 = arith.constant 0 : index
    %c0_2 = arith.constant 0 : index
    %7 = vector.load %arg7[%6, %c0, %c0_2] : memref<10x10x256xbf16, #tpu.memory_space<vmem>>, vector<4x8x256xbf16>
    %8 = vector.shape_cast %7 : vector<4x8x256xbf16> to vector<32x256xbf16>
    %c0_i32_3 = arith.constant 0 : i32
    %9 = arith.addi %4, %c0_i32_3 : i32
    %10 = arith.index_cast %9 : i32 to index
    %c1 = arith.constant 1 : index
    %c0_4 = arith.constant 0 : index
    %11 = vector.load %arg7[%10, %c1, %c0_4] : memref<10x10x256xbf16, #tpu.memory_space<vmem>>, vector<4x8x256xbf16>
    %12 = vector.shape_cast %11 : vector<4x8x256xbf16> to vector<32x256xbf16>
    %c0_i32_5 = arith.constant 0 : i32
    %13 = arith.addi %4, %c0_i32_5 : i32
    %14 = arith.index_cast %13 : i32 to index
    %c2 = arith.constant 2 : index
    %c0_6 = arith.constant 0 : index
    %15 = vector.load %arg7[%14, %c2, %c0_6] : memref<10x10x256xbf16, #tpu.memory_space<vmem>>, vector<4x8x256xbf16>
    %16 = vector.shape_cast %15 : vector<4x8x256xbf16> to vector<32x256xbf16>
    %c1_i32 = arith.constant 1 : i32
    %17 = arith.addi %4, %c1_i32 : i32
    %18 = arith.index_cast %17 : i32 to index
    %c0_7 = arith.constant 0 : index
    %c0_8 = arith.constant 0 : index
    %19 = vector.load %arg7[%18, %c0_7, %c0_8] : memref<10x10x256xbf16, #tpu.memory_space<vmem>>, vector<4x8x256xbf16>
    %20 = vector.shape_cast %19 : vector<4x8x256xbf16> to vector<32x256xbf16>
    %c1_i32_9 = arith.constant 1 : i32
    %21 = arith.addi %4, %c1_i32_9 : i32
    %22 = arith.index_cast %21 : i32 to index
    %c1_10 = arith.constant 1 : index
    %c0_11 = arith.constant 0 : index
    %23 = vector.load %arg7[%22, %c1_10, %c0_11] : memref<10x10x256xbf16, #tpu.memory_space<vmem>>, vector<4x8x256xbf16>
    %24 = vector.shape_cast %23 : vector<4x8x256xbf16> to vector<32x256xbf16>
    %c1_i32_12 = arith.constant 1 : i32
    %25 = arith.addi %4, %c1_i32_12 : i32
    %26 = arith.index_cast %25 : i32 to index
    %c2_13 = arith.constant 2 : index
    %c0_14 = arith.constant 0 : index
    %27 = vector.load %arg7[%26, %c2_13, %c0_14] : memref<10x10x256xbf16, #tpu.memory_space<vmem>>, vector<4x8x256xbf16>
    %28 = vector.shape_cast %27 : vector<4x8x256xbf16> to vector<32x256xbf16>
    %c2_i32 = arith.constant 2 : i32
    %29 = arith.addi %4, %c2_i32 : i32
    %30 = arith.index_cast %29 : i32 to index
    %c0_15 = arith.constant 0 : index
    %c0_16 = arith.constant 0 : index
    %31 = vector.load %arg7[%30, %c0_15, %c0_16] : memref<10x10x256xbf16, #tpu.memory_space<vmem>>, vector<4x8x256xbf16>
    %32 = vector.shape_cast %31 : vector<4x8x256xbf16> to vector<32x256xbf16>
    %c2_i32_17 = arith.constant 2 : i32
    %33 = arith.addi %4, %c2_i32_17 : i32
    %34 = arith.index_cast %33 : i32 to index
    %c1_18 = arith.constant 1 : index
    %c0_19 = arith.constant 0 : index
    %35 = vector.load %arg7[%34, %c1_18, %c0_19] : memref<10x10x256xbf16, #tpu.memory_space<vmem>>, vector<4x8x256xbf16>
    %36 = vector.shape_cast %35 : vector<4x8x256xbf16> to vector<32x256xbf16>
    %c2_i32_20 = arith.constant 2 : i32
    %37 = arith.addi %4, %c2_i32_20 : i32
    %38 = arith.index_cast %37 : i32 to index
    %c2_21 = arith.constant 2 : index
    %c0_22 = arith.constant 0 : index
    %39 = vector.load %arg7[%38, %c2_21, %c0_22] : memref<10x10x256xbf16, #tpu.memory_space<vmem>>, vector<4x8x256xbf16>
    %40 = vector.shape_cast %39 : vector<4x8x256xbf16> to vector<32x256xbf16>
    %41 = tpu.concatenate %8, %12, %16, %20, %24, %28, %32, %36, %40 in 1 : vector<32x256xbf16>, vector<32x256xbf16>, vector<32x256xbf16>, vector<32x256xbf16>, vector<32x256xbf16>, vector<32x256xbf16>, vector<32x256xbf16>, vector<32x256xbf16>, vector<32x256xbf16> -> vector<32x2304xbf16>
    %c0_23 = arith.constant 0 : index
    %c0_24 = arith.constant 0 : index
    %42 = vector.load %arg5[%c0_23, %c0_24] : memref<2304x64xbf16, #tpu.memory_space<vmem>>, vector<2304x64xbf16>
    %cst = arith.constant dense<0.000000e+00> : vector<32x64xf32>
    %43 = tpu.matmul %41, %42, %cst {dimension_numbers = #tpu.dot_dimension_numbers<[1], [0], [0], [1], [0, 0, 1, 1], [], []>} : vector<32x2304xbf16>, vector<2304x64xbf16>, vector<32x64xf32> -> vector<32x64xf32>
    %44 = vector.shape_cast %43 : vector<32x64xf32> to vector<4x8x64xf32>
    %45 = arith.truncf %44 : vector<4x8x64xf32> to vector<4x8x64xbf16>
    %c0_25 = arith.constant 0 : index
    %c0_26 = arith.constant 0 : index
    %c0_27 = arith.constant 0 : index
    %c0_28 = arith.constant 0 : index
    %46 = vector.load %arg6[%c0_25, %c0_26, %c0_27, %c0_28] : memref<1x4x8x64xbf16, #tpu.memory_space<vmem>>, vector<1x4x8x64xbf16>
    %47 = vector.shape_cast %46 : vector<1x4x8x64xbf16> to vector<4x8x64xbf16>
    %48 = vector.shape_cast %45 : vector<4x8x64xbf16> to vector<1x4x8x64xbf16>
    tpu.vector_store %arg6[%c0_25, %c0_26, %c0_27, %c0_28], %48 {strides = array<i32>} : memref<1x4x8x64xbf16, #tpu.memory_space<vmem>>, vector<1x4x8x64xbf16>,
    return
  }
  func.func @transform_0(%arg0: i32, %arg1: i32) -> (i32, i32, i32, i32) {
    %c0_i32 = arith.constant 0 : i32
    %c0_i32_0 = arith.constant 0 : i32
    %c0_i32_1 = arith.constant 0 : i32
    %c0_i32_2 = arith.constant 0 : i32
    return %arg0, %c0_i32, %c0_i32_0, %c0_i32_1 : i32, i32, i32, i32
  }
  func.func @transform_1(%arg0: i32, %arg1: i32) -> (i32, i32) {
    %c0_i32 = arith.constant 0 : i32
    %c0_i32_0 = arith.constant 0 : i32
    %c0_i32_1 = arith.constant 0 : i32
    return %c0_i32, %c0_i32_0 : i32, i32
  }
  func.func @transform_2(%arg0: i32, %arg1: i32) -> (i32, i32) {
    %c0_i32 = arith.constant 0 : i32
    %c0_i32_0 = arith.constant 0 : i32
    %c0_i32_1 = arith.constant 0 : i32
    return %c0_i32, %c0_i32_0 : i32, i32
  }
  func.func @transform_3(%arg0: i32, %arg1: i32) -> (i32, i32) {
    %c0_i32 = arith.constant 0 : i32
    %c0_i32_0 = arith.constant 0 : i32
    %c0_i32_1 = arith.constant 0 : i32
    return %c0_i32, %c0_i32_0 : i32, i32
  }
  func.func @transform_4(%arg0: i32, %arg1: i32) -> (i32, i32, i32, i32) {
    %c0_i32 = arith.constant 0 : i32
    %c0_i32_0 = arith.constant 0 : i32
    %c0_i32_1 = arith.constant 0 : i32
    return %arg0, %arg1, %c0_i32, %c0_i32_0 : i32, i32, i32, i32
  }
}

module attributes {stable_mosaic.version = 11 : i64} {
  func.func @_subm_conv_kernel(%arg0: i32, %arg1: i32, %arg2: memref<1x8x8x128xbf16, #tpu.memory_space<vmem>>, %arg3: memref<1x128xf32, #tpu.memory_space<vmem>>, %arg4: memref<1x128xf32, #tpu.memory_space<vmem>>, %arg5: memref<1152x64xbf16, #tpu.memory_space<vmem>>, %arg6: memref<1x4x8x128xbf16, #tpu.memory_space<vmem>>, %arg7: memref<128x64xbf16, #tpu.memory_space<vmem>>, %arg8: memref<1x4x8x64xbf16, #tpu.memory_space<vmem>>, %arg9: memref<10x10x128xbf16, #tpu.memory_space<vmem>>) attributes {dimension_semantics = [#tpu.dimension_semantics<parallel>, #tpu.dimension_semantics<arbitrary>], iteration_bounds = array<i64: 2, 2>, scalar_prefetch = 0 : i64, scratch_operands = 1 : i64, tpu.core_type = #tpu.core_type<tc>, window_params = [{transform_indices = @transform_0, window_bounds = array<i64: 1, 8, 8, 128>}, {pipeline_mode = #tpu.pipeline_mode<synchronous>, transform_indices = @transform_1, window_bounds = array<i64: 1, 128>}, {pipeline_mode = #tpu.pipeline_mode<synchronous>, transform_indices = @transform_2, window_bounds = array<i64: 1, 128>}, {pipeline_mode = #tpu.pipeline_mode<synchronous>, transform_indices = @transform_3, window_bounds = array<i64: 1152, 64>}, {transform_indices = @transform_4, window_bounds = array<i64: 1, 4, 8, 128>}, {pipeline_mode = #tpu.pipeline_mode<synchronous>, transform_indices = @transform_5, window_bounds = array<i64: 128, 64>}, {transform_indices = @transform_6, window_bounds = array<i64: 1, 4, 8, 64>}]} {
    %c0_i32 = arith.constant 0 : i32
    %0 = arith.cmpi eq, %arg1, %c0_i32 : i32
    %1 = arith.extui %0 : i1 to i32
    %c0_i32_0 = arith.constant 0 : i32
    %2 = arith.cmpi ne, %1, %c0_i32_0 : i32
    scf.if %2 {
      %cst_36 = arith.constant 0.000000e+00 : bf16
      %55 = vector.broadcast %cst_36 : bf16 to vector<10x10x128xbf16>
      %c0_37 = arith.constant 0 : index
      %c0_38 = arith.constant 0 : index
      %c0_39 = arith.constant 0 : index
      %56 = vector.load %arg9[%c0_37, %c0_38, %c0_39] : memref<10x10x128xbf16, #tpu.memory_space<vmem>>, vector<10x10x128xbf16>
      tpu.vector_store %arg9[%c0_37, %c0_38, %c0_39], %55 {strides = array<i32>} : memref<10x10x128xbf16, #tpu.memory_space<vmem>>, vector<10x10x128xbf16>,
      %c0_40 = arith.constant 0 : index
      %c0_41 = arith.constant 0 : index
      %c0_42 = arith.constant 0 : index
      %c0_43 = arith.constant 0 : index
      %57 = vector.load %arg2[%c0_40, %c0_41, %c0_42, %c0_43] : memref<1x8x8x128xbf16, #tpu.memory_space<vmem>>, vector<1x8x8x128xbf16>
      %58 = vector.shape_cast %57 : vector<1x8x8x128xbf16> to vector<8x8x128xbf16>
      %59 = arith.extf %58 : vector<8x8x128xbf16> to vector<8x8x128xf32>
      %c0_44 = arith.constant 0 : index
      %c0_45 = arith.constant 0 : index
      %60 = vector.load %arg3[%c0_44, %c0_45] : memref<1x128xf32, #tpu.memory_space<vmem>>, vector<1x128xf32>
      %61 = vector.shape_cast %60 : vector<1x128xf32> to vector<128xf32>
      %62 = vector.shape_cast %61 : vector<128xf32> to vector<1x1x128xf32>
      %63 = vector.broadcast %62 : vector<1x1x128xf32> to vector<8x8x128xf32>
      %64 = arith.mulf %59, %63 : vector<8x8x128xf32>
      %c0_46 = arith.constant 0 : index
      %c0_47 = arith.constant 0 : index
      %65 = vector.load %arg4[%c0_46, %c0_47] : memref<1x128xf32, #tpu.memory_space<vmem>>, vector<1x128xf32>
      %66 = vector.shape_cast %65 : vector<1x128xf32> to vector<128xf32>
      %67 = vector.shape_cast %66 : vector<128xf32> to vector<1x1x128xf32>
      %68 = vector.broadcast %67 : vector<1x1x128xf32> to vector<8x8x128xf32>
      %69 = arith.addf %64, %68 : vector<8x8x128xf32>
      %cst_48 = arith.constant 0.000000e+00 : f32
      %70 = vector.broadcast %cst_48 : f32 to vector<8x8x128xf32>
      %71 = arith.maximumf %69, %70 : vector<8x8x128xf32>
      %72 = arith.truncf %71 : vector<8x8x128xf32> to vector<8x8x128xbf16>
      %c1_49 = arith.constant 1 : index
      %c1_50 = arith.constant 1 : index
      %c0_51 = arith.constant 0 : index
      %73 = vector.load %arg9[%c1_49, %c1_50, %c0_51] : memref<10x10x128xbf16, #tpu.memory_space<vmem>>, vector<8x8x128xbf16>
      tpu.vector_store %arg9[%c1_49, %c1_50, %c0_51], %72 {strides = array<i32>} : memref<10x10x128xbf16, #tpu.memory_space<vmem>>, vector<8x8x128xbf16>,
    } else {
    }
    %c4_i32 = arith.constant 4 : i32
    %3 = arith.muli %arg1, %c4_i32 : i32
    %4 = tpu.assume_multiple %3, 4 : i32
    %c0_i32_1 = arith.constant 0 : i32
    %5 = arith.addi %4, %c0_i32_1 : i32
    %6 = arith.index_cast %5 : i32 to index
    %c0 = arith.constant 0 : index
    %c0_2 = arith.constant 0 : index
    %7 = vector.load %arg9[%6, %c0, %c0_2] : memref<10x10x128xbf16, #tpu.memory_space<vmem>>, vector<4x8x128xbf16>
    %8 = vector.shape_cast %7 : vector<4x8x128xbf16> to vector<32x128xbf16>
    %c0_i32_3 = arith.constant 0 : i32
    %9 = arith.addi %4, %c0_i32_3 : i32
    %10 = arith.index_cast %9 : i32 to index
    %c1 = arith.constant 1 : index
    %c0_4 = arith.constant 0 : index
    %11 = vector.load %arg9[%10, %c1, %c0_4] : memref<10x10x128xbf16, #tpu.memory_space<vmem>>, vector<4x8x128xbf16>
    %12 = vector.shape_cast %11 : vector<4x8x128xbf16> to vector<32x128xbf16>
    %c0_i32_5 = arith.constant 0 : i32
    %13 = arith.addi %4, %c0_i32_5 : i32
    %14 = arith.index_cast %13 : i32 to index
    %c2 = arith.constant 2 : index
    %c0_6 = arith.constant 0 : index
    %15 = vector.load %arg9[%14, %c2, %c0_6] : memref<10x10x128xbf16, #tpu.memory_space<vmem>>, vector<4x8x128xbf16>
    %16 = vector.shape_cast %15 : vector<4x8x128xbf16> to vector<32x128xbf16>
    %c1_i32 = arith.constant 1 : i32
    %17 = arith.addi %4, %c1_i32 : i32
    %18 = arith.index_cast %17 : i32 to index
    %c0_7 = arith.constant 0 : index
    %c0_8 = arith.constant 0 : index
    %19 = vector.load %arg9[%18, %c0_7, %c0_8] : memref<10x10x128xbf16, #tpu.memory_space<vmem>>, vector<4x8x128xbf16>
    %20 = vector.shape_cast %19 : vector<4x8x128xbf16> to vector<32x128xbf16>
    %c1_i32_9 = arith.constant 1 : i32
    %21 = arith.addi %4, %c1_i32_9 : i32
    %22 = arith.index_cast %21 : i32 to index
    %c1_10 = arith.constant 1 : index
    %c0_11 = arith.constant 0 : index
    %23 = vector.load %arg9[%22, %c1_10, %c0_11] : memref<10x10x128xbf16, #tpu.memory_space<vmem>>, vector<4x8x128xbf16>
    %24 = vector.shape_cast %23 : vector<4x8x128xbf16> to vector<32x128xbf16>
    %c1_i32_12 = arith.constant 1 : i32
    %25 = arith.addi %4, %c1_i32_12 : i32
    %26 = arith.index_cast %25 : i32 to index
    %c2_13 = arith.constant 2 : index
    %c0_14 = arith.constant 0 : index
    %27 = vector.load %arg9[%26, %c2_13, %c0_14] : memref<10x10x128xbf16, #tpu.memory_space<vmem>>, vector<4x8x128xbf16>
    %28 = vector.shape_cast %27 : vector<4x8x128xbf16> to vector<32x128xbf16>
    %c2_i32 = arith.constant 2 : i32
    %29 = arith.addi %4, %c2_i32 : i32
    %30 = arith.index_cast %29 : i32 to index
    %c0_15 = arith.constant 0 : index
    %c0_16 = arith.constant 0 : index
    %31 = vector.load %arg9[%30, %c0_15, %c0_16] : memref<10x10x128xbf16, #tpu.memory_space<vmem>>, vector<4x8x128xbf16>
    %32 = vector.shape_cast %31 : vector<4x8x128xbf16> to vector<32x128xbf16>
    %c2_i32_17 = arith.constant 2 : i32
    %33 = arith.addi %4, %c2_i32_17 : i32
    %34 = arith.index_cast %33 : i32 to index
    %c1_18 = arith.constant 1 : index
    %c0_19 = arith.constant 0 : index
    %35 = vector.load %arg9[%34, %c1_18, %c0_19] : memref<10x10x128xbf16, #tpu.memory_space<vmem>>, vector<4x8x128xbf16>
    %36 = vector.shape_cast %35 : vector<4x8x128xbf16> to vector<32x128xbf16>
    %c2_i32_20 = arith.constant 2 : i32
    %37 = arith.addi %4, %c2_i32_20 : i32
    %38 = arith.index_cast %37 : i32 to index
    %c2_21 = arith.constant 2 : index
    %c0_22 = arith.constant 0 : index
    %39 = vector.load %arg9[%38, %c2_21, %c0_22] : memref<10x10x128xbf16, #tpu.memory_space<vmem>>, vector<4x8x128xbf16>
    %40 = vector.shape_cast %39 : vector<4x8x128xbf16> to vector<32x128xbf16>
    %41 = tpu.concatenate %8, %12, %16, %20, %24, %28, %32, %36, %40 in 1 : vector<32x128xbf16>, vector<32x128xbf16>, vector<32x128xbf16>, vector<32x128xbf16>, vector<32x128xbf16>, vector<32x128xbf16>, vector<32x128xbf16>, vector<32x128xbf16>, vector<32x128xbf16> -> vector<32x1152xbf16>
    %c0_23 = arith.constant 0 : index
    %c0_24 = arith.constant 0 : index
    %42 = vector.load %arg5[%c0_23, %c0_24] : memref<1152x64xbf16, #tpu.memory_space<vmem>>, vector<1152x64xbf16>
    %cst = arith.constant dense<0.000000e+00> : vector<32x64xf32>
    %43 = tpu.matmul %41, %42, %cst {dimension_numbers = #tpu.dot_dimension_numbers<[1], [0], [0], [1], [0, 0, 1, 1], [], []>} : vector<32x1152xbf16>, vector<1152x64xbf16>, vector<32x64xf32> -> vector<32x64xf32>
    %c0_25 = arith.constant 0 : index
    %c0_26 = arith.constant 0 : index
    %c0_27 = arith.constant 0 : index
    %c0_28 = arith.constant 0 : index
    %44 = vector.load %arg6[%c0_25, %c0_26, %c0_27, %c0_28] : memref<1x4x8x128xbf16, #tpu.memory_space<vmem>>, vector<1x4x8x128xbf16>
    %45 = vector.shape_cast %44 : vector<1x4x8x128xbf16> to vector<4x8x128xbf16>
    %46 = vector.shape_cast %45 : vector<4x8x128xbf16> to vector<32x128xbf16>
    %c0_29 = arith.constant 0 : index
    %c0_30 = arith.constant 0 : index
    %47 = vector.load %arg7[%c0_29, %c0_30] : memref<128x64xbf16, #tpu.memory_space<vmem>>, vector<128x64xbf16>
    %cst_31 = arith.constant dense<0.000000e+00> : vector<32x64xf32>
    %48 = tpu.matmul %46, %47, %cst_31 {dimension_numbers = #tpu.dot_dimension_numbers<[1], [0], [0], [1], [0, 0, 1, 1], [], []>} : vector<32x128xbf16>, vector<128x64xbf16>, vector<32x64xf32> -> vector<32x64xf32>
    %49 = arith.addf %43, %48 : vector<32x64xf32>
    %50 = vector.shape_cast %49 : vector<32x64xf32> to vector<4x8x64xf32>
    %51 = arith.truncf %50 : vector<4x8x64xf32> to vector<4x8x64xbf16>
    %c0_32 = arith.constant 0 : index
    %c0_33 = arith.constant 0 : index
    %c0_34 = arith.constant 0 : index
    %c0_35 = arith.constant 0 : index
    %52 = vector.load %arg8[%c0_32, %c0_33, %c0_34, %c0_35] : memref<1x4x8x64xbf16, #tpu.memory_space<vmem>>, vector<1x4x8x64xbf16>
    %53 = vector.shape_cast %52 : vector<1x4x8x64xbf16> to vector<4x8x64xbf16>
    %54 = vector.shape_cast %51 : vector<4x8x64xbf16> to vector<1x4x8x64xbf16>
    tpu.vector_store %arg8[%c0_32, %c0_33, %c0_34, %c0_35], %54 {strides = array<i32>} : memref<1x4x8x64xbf16, #tpu.memory_space<vmem>>, vector<1x4x8x64xbf16>,
    return
  }
  func.func @transform_0(%arg0: i32, %arg1: i32) -> (i32, i32, i32, i32) {
    %c0_i32 = arith.constant 0 : i32
    %c0_i32_0 = arith.constant 0 : i32
    %c0_i32_1 = arith.constant 0 : i32
    %c0_i32_2 = arith.constant 0 : i32
    return %arg0, %c0_i32, %c0_i32_0, %c0_i32_1 : i32, i32, i32, i32
  }
  func.func @transform_1(%arg0: i32, %arg1: i32) -> (i32, i32) {
    %c0_i32 = arith.constant 0 : i32
    %c0_i32_0 = arith.constant 0 : i32
    %c0_i32_1 = arith.constant 0 : i32
    return %c0_i32, %c0_i32_0 : i32, i32
  }
  func.func @transform_2(%arg0: i32, %arg1: i32) -> (i32, i32) {
    %c0_i32 = arith.constant 0 : i32
    %c0_i32_0 = arith.constant 0 : i32
    %c0_i32_1 = arith.constant 0 : i32
    return %c0_i32, %c0_i32_0 : i32, i32
  }
  func.func @transform_3(%arg0: i32, %arg1: i32) -> (i32, i32) {
    %c0_i32 = arith.constant 0 : i32
    %c0_i32_0 = arith.constant 0 : i32
    %c0_i32_1 = arith.constant 0 : i32
    return %c0_i32, %c0_i32_0 : i32, i32
  }
  func.func @transform_4(%arg0: i32, %arg1: i32) -> (i32, i32, i32, i32) {
    %c0_i32 = arith.constant 0 : i32
    %c0_i32_0 = arith.constant 0 : i32
    %c0_i32_1 = arith.constant 0 : i32
    return %arg0, %arg1, %c0_i32, %c0_i32_0 : i32, i32, i32, i32
  }
  func.func @transform_5(%arg0: i32, %arg1: i32) -> (i32, i32) {
    %c0_i32 = arith.constant 0 : i32
    %c0_i32_0 = arith.constant 0 : i32
    %c0_i32_1 = arith.constant 0 : i32
    return %c0_i32, %c0_i32_0 : i32, i32
  }
  func.func @transform_6(%arg0: i32, %arg1: i32) -> (i32, i32, i32, i32) {
    %c0_i32 = arith.constant 0 : i32
    %c0_i32_0 = arith.constant 0 : i32
    %c0_i32_1 = arith.constant 0 : i32
    return %arg0, %arg1, %c0_i32, %c0_i32_0 : i32, i32, i32, i32
  }
}

</mosaic_0001>

<llo_original>
// kernel: _lambda_.14
$region0: #{_lambda_.14}
  #allocation0 [shape = 'u32[]', space=smem, size = 0x4, offset = 0x4, fixed_abs, tag = 'smem constant byte address 0x4 - core index']
  #allocation1 [shape = 'u32[72,128]{1,0:T(1,128)}', space=vmem, size = 0x9000, scoped, tag = 'internal scratch']
  #allocation2 [shape = 'bf16[10,10,128]{2,1,0:T(8,128)(2,1)}', space=vmem, size = 0xa000, scoped, tag = 'scratch operand']
  %s0 = inlined_call_operand.vmem [shape: bf16[2,8,8,128], index: 0, kind: input, shape index: {}]
  %s1 = inlined_call_operand.vmem [shape: f32[1,128], index: 1, kind: input, shape index: {}]
  %s2 = inlined_call_operand.vmem [shape: f32[1,128], index: 2, kind: input, shape index: {}]
  %s3 = inlined_call_operand.vmem [shape: bf16[1152,64], index: 3, kind: input, shape index: {}]
  %s4 = inlined_call_operand.vmem [shape: bf16[2,8,8,64], index: 4, kind: output, shape index: {}]
  %s5 = sld [smem:[#allocation0]]
  $region53: #{_lambda_.14} parent=0
    _
  %s7 = ssub.s32 1, %s5
  %s8 = scalar_select 0, %s7, %s5
  loop: start=0, step=1, limit=6
  $region2: #{_lambda_.14} parent=0 // loop_pre_header
    _
  $region3: #{_lambda_.14} parent=0 // loop_header
    %s10 = sphi 0, %s14
    %p11 = scmp.ge.s32.totalorder %s10, 6
    %s17 = sphi 0, %s29
    %s18 = sphi 0, %s25
    %s19 = sphi 0, %s17
    %s20 = sphi 0, %s18
    %s21 = sphi 0, %s19
    %s22 = sphi 0, %s20
    %s32 = sphi 0, %s34
    %s35 = sphi 0, %s32
    %s36 = sphi 0, %s35
    %s52 = sphi 0, %s36
    %s56 = sphi 0, %s56
    %s58 = sphi 0, %s56
    %s59 = sphi 0, %s58
    %s73 = sphi 0, %s59
    %s77 = sphi 0, %s77
    %s79 = sphi 0, %s77
    %s80 = sphi 0, %s79
    %s94 = sphi 0, %s80
    %s98 = sphi 0, %s98
    %s100 = sphi 0, %s98
    %s101 = sphi 0, %s100
    %s115 = sphi 0, %s101
    %s123 = sphi 0, %s125
    %s126 = sphi 0, %s123
    %s127 = sphi 0, %s126
    %s143 = sphi 0, %s127
  $region4: #{_lambda_.14} parent=0 // loop_header_branch
    %13 = sbr.rel (%p11) target = $region8
  $region5: #{_lambda_.14} parent=0 // loop_body
    %s15 = ssub.s32 %s10, 1
    %s16 = ssub.s32 %s10, 2
    %s23 = sadd.s32 1, %s18
    %p24 = scmp.ge.s32.totalorder %s23, 2
    %s25 = scalar_select %p24, 0, %s23
    %s26 = sadd.s32 1, %s17
    %s27 = scalar_select %p24, %s26, %s17
    %p28 = scmp.ge.s32.totalorder %s27, 2
    %s29 = scalar_select %p28, 0, %s27
    %s30 = ssub.s32 %s17, %s29
    %p31 = scmp.eq.s32.totalorder %s30, 0
    %s33 = sadd.s32 %s32, 1
    %s34 = scalar_select %p31, %s32, %s33
    %p37 = pneg %p31
    %p38 = scmp.eq.s32.totalorder %s10, 3
    %p39 = por %p37, %p38
    %p40 = scmp.ne.s32.totalorder %s32, %s35
    %p41 = scmp.eq.s32.totalorder %s10, 0
    %p42 = por %p40, %p41
    %p43 = scmp.ne.s32.totalorder %s32, %s35
    %p44 = scmp.eq.s32.totalorder %s15, 3
    %p45 = por %p43, %p44
    %p46 = scmp.ne.s32.totalorder %s35, %s36
    %p47 = scmp.eq.s32.totalorder %s15, 0
    %p48 = por %p46, %p47
    %p49 = scmp.ne.s32.totalorder %s35, %s36
    %p50 = scmp.eq.s32.totalorder %s16, 3
    %p51 = por %p49, %p50
    %p53 = scmp.ne.s32.totalorder %s36, %s52
    %p54 = scmp.eq.s32.totalorder %s16, 0
    %p55 = por %p53, %p54
    %s57 = sadd.s32 %s56, 1
    %p60 = scmp.eq.s32.totalorder %s10, 3
    %p61 = scmp.ne.s32.totalorder %s56, %s58
    %p62 = scmp.eq.s32.totalorder %s10, 0
    %p63 = por %p61, %p62
    %p64 = scmp.ne.s32.totalorder %s56, %s58
    %p65 = scmp.eq.s32.totalorder %s15, 3
    %p66 = por %p64, %p65
    %p67 = scmp.ne.s32.totalorder %s58, %s59
    %p68 = scmp.eq.s32.totalorder %s15, 0
    %p69 = por %p67, %p68
    %p70 = scmp.ne.s32.totalorder %s58, %s59
    %p71 = scmp.eq.s32.totalorder %s16, 3
    %p72 = por %p70, %p71
    %p74 = scmp.ne.s32.totalorder %s59, %s73
    %p75 = scmp.eq.s32.totalorder %s16, 0
    %p76 = por %p74, %p75
    %s78 = sadd.s32 %s77, 1
    %p81 = scmp.eq.s32.totalorder %s10, 3
    %p82 = scmp.ne.s32.totalorder %s77, %s79
    %p83 = scmp.eq.s32.totalorder %s10, 0
    %p84 = por %p82, %p83
    %p85 = scmp.ne.s32.totalorder %s77, %s79
    %p86 = scmp.eq.s32.totalorder %s15, 3
    %p87 = por %p85, %p86
    %p88 = scmp.ne.s32.totalorder %s79, %s80
    %p89 = scmp.eq.s32.totalorder %s15, 0
    %p90 = por %p88, %p89
    %p91 = scmp.ne.s32.totalorder %s79, %s80
    %p92 = scmp.eq.s32.totalorder %s16, 3
    %p93 = por %p91, %p92
    %p95 = scmp.ne.s32.totalorder %s80, %s94
    %p96 = scmp.eq.s32.totalorder %s16, 0
    %p97 = por %p95, %p96
    %s99 = sadd.s32 %s98, 1
    %p102 = scmp.eq.s32.totalorder %s10, 3
    %p103 = scmp.ne.s32.totalorder %s98, %s100
    %p104 = scmp.eq.s32.totalorder %s10, 0
    %p105 = por %p103, %p104
    %p106 = scmp.ne.s32.totalorder %s98, %s100
    %p107 = scmp.eq.s32.totalorder %s15, 3
    %p108 = por %p106, %p107
    %p109 = scmp.ne.s32.totalorder %s100, %s101
    %p110 = scmp.eq.s32.totalorder %s15, 0
    %p111 = por %p109, %p110
    %p112 = scmp.ne.s32.totalorder %s100, %s101
    %p113 = scmp.eq.s32.totalorder %s16, 3
    %p114 = por %p112, %p113
    %p116 = scmp.ne.s32.totalorder %s101, %s115
    %p117 = scmp.eq.s32.totalorder %s16, 0
    %p118 = por %p116, %p117
    %s119 = ssub.s32 %s17, %s29
    %s120 = ssub.s32 %s18, %s25
    %s121 = sor.u32 %s119, %s120
    %p122 = scmp.eq.s32.totalorder %s121, 0
    %s124 = sadd.s32 %s123, 1
    %s125 = scalar_select %p122, %s123, %s124
    %p128 = pneg %p122
    %p129 = scmp.eq.s32.totalorder %s10, 3
    %p130 = por %p128, %p129
    %p131 = scmp.ne.s32.totalorder %s123, %s126
    %p132 = scmp.eq.s32.totalorder %s10, 0
    %p133 = por %p131, %p132
    %p134 = scmp.ne.s32.totalorder %s123, %s126
    %p135 = scmp.eq.s32.totalorder %s15, 3
    %p136 = por %p134, %p135
    %p137 = scmp.ne.s32.totalorder %s126, %s127
    %p138 = scmp.eq.s32.totalorder %s15, 0
    %p139 = por %p137, %p138
    %p140 = scmp.ne.s32.totalorder %s126, %s127
    %p141 = scmp.eq.s32.totalorder %s16, 3
    %p142 = por %p140, %p141
    %p144 = scmp.ne.s32.totalorder %s127, %s143
    %p145 = scmp.eq.s32.totalorder %s16, 0
    %p146 = por %p144, %p145
    %p147 = scmp.le.s32.totalorder 1, %s10
    %p148 = scmp.lt.s32.totalorder %s10, 5
    %p149 = pnand %p147, %p148
    %p150 = pneg %p149
    // Predicated region
    $region9: #{_lambda_.14} parent=5 // pred_check
      _
    $region10: #{_lambda_.14} parent=5 // pred_check_branch
      %152 = sbr.rel (%p149) target = $region12
    $region11: #{_lambda_.14} parent=5 // pred_region
      %s153 = ssub.s32 %s10, 1
      // Predicated region
      $region13: #{_lambda_.14} parent=11 // pred_check
        %p154 = pneg %p69
      $region14: #{_lambda_.14} parent=11 // pred_check_branch
        %156 = sbr.rel (%p154) target = $region16
      $region15: #{_lambda_.14} parent=11 // pred_region
        _
      $region16: #{_lambda_.14} parent=11 // pred_fallthru
        _
      // Predicated region
      $region17: #{_lambda_.14} parent=11 // pred_check
        %p157 = pneg %p90
      $region18: #{_lambda_.14} parent=11 // pred_check_branch
        %159 = sbr.rel (%p157) target = $region20
      $region19: #{_lambda_.14} parent=11 // pred_region
        _
      $region20: #{_lambda_.14} parent=11 // pred_fallthru
        _
      // Predicated region
      $region21: #{_lambda_.14} parent=11 // pred_check
        %p160 = pneg %p111
      $region22: #{_lambda_.14} parent=11 // pred_check_branch
        %162 = sbr.rel (%p160) target = $region24
      $region23: #{_lambda_.14} parent=11 // pred_region
        _
      $region24: #{_lambda_.14} parent=11 // pred_fallthru
        _
    $region12: #{_lambda_.14} parent=5 // pred_fallthru
      _
    %p163 = scmp.lt.s32.totalorder %s10, 4
    // Predicated region
    $region25: #{_lambda_.14} parent=5 // pred_check
      %p164 = pneg %p163
    $region26: #{_lambda_.14} parent=5 // pred_check_branch
      %166 = sbr.rel (%p164) target = $region28
    $region27: #{_lambda_.14} parent=5 // pred_region
      // Predicated region
      $region29: #{_lambda_.14} parent=27 // pred_check
        %p167 = pneg %p42
      $region30: #{_lambda_.14} parent=27 // pred_check_branch
        %169 = sbr.rel (%p167) target = $region32
      $region31: #{_lambda_.14} parent=27 // pred_region
        %p170 = scmp.lt.s32.totalorder %s17, 1
        %s171 = scalar_select %p170, %s17, 1
        %s172 = smul.addr %s171, 8
        %s173 = smul.addr %s172, 4
        %s174 = scalar_lea.vmem %s0, %s173
      $region32: #{_lambda_.14} parent=27 // pred_fallthru
        _
    $region28: #{_lambda_.14} parent=5 // pred_fallthru
      _
    %p175 = scmp.le.s32.totalorder 1, %s10
    %p176 = scmp.lt.s32.totalorder %s10, 5
    %p177 = pnand %p175, %p176
    %p178 = pneg %p177
    // Predicated region
    $region33: #{_lambda_.14} parent=5 // pred_check
      _
    $region34: #{_lambda_.14} parent=5 // pred_check_branch
      %180 = sbr.rel (%p177) target = $region36
    $region35: #{_lambda_.14} parent=5 // pred_region
      %s181 = ssub.s32 %s10, 1
      %p182 = scmp.lt.s32.totalorder %s19, 1
      %s183 = scalar_select %p182, %s19, 1
      %s184 = smul.addr %s183, 8
      %s185 = smul.addr %s184, 4
      %s186 = scalar_lea.vmem %s0, %s185
      %p187 = pneg %p48
      %p188 = pneg %p45
      %p189 = pneg %p69
      %p190 = pneg %p66
      %p191 = pneg %p90
      %p192 = pneg %p87
      %p193 = pneg %p111
      %p194 = pneg %p108
      %p195 = pneg %p139
      %p196 = pneg %p136
      %s197 = smul.u32 4, %s20
      %p198 = scmp.lt.s32.totalorder %s19, 1
      %s199 = scalar_select %p198, %s19, 1
      %p200 = scmp.lt.s32.totalorder %s197, 7
      %s201 = scalar_select %p200, %s197, 7
      %s202 = smul.addr %s199, 8
      %s203 = sadd.s32 %s201, %s202
      %s204 = smul.addr %s203, 4
      %s205 = scalar_lea.vmem %s4, %s204
      %p206 = scmp.lt.s32.totalorder %s19, 1
      %s207 = scalar_select %p206, %s19, 1
      %s208 = smul.addr %s207, 8
      %s209 = smul.addr %s208, 4
      %s210 = scalar_lea.vmem %s0, %s209
      %s211 = smul.u32 4, %s20
      %p212 = scmp.lt.s32.totalorder %s19, 1
      %s213 = scalar_select %p212, %s19, 1
      %p214 = scmp.lt.s32.totalorder %s211, 7
      %s215 = scalar_select %p214, %s211, 7
      %s216 = smul.addr %s213, 8
      %s217 = sadd.s32 %s215, %s216
      %s218 = smul.addr %s217, 4
      %s219 = scalar_lea.vmem %s4, %s218
      %s220 = smul.u32 4, %s20
      %p222 = scmp.eq.s32.totalorder %s20, 0
      // Predicated region
      $region37: #{_lambda_.14} parent=35 // pred_check
        %p223 = pneg %p222
      $region38: #{_lambda_.14} parent=35 // pred_check_branch
        %225 = sbr.rel (%p223) target = $region40
      $region39: #{_lambda_.14} parent=35 // pred_region
        %226 = vst [vmem:[#allocation2] sm:$0xf] 0
        %227 = vst [vmem:[#allocation2 + $0x4] sm:$0x1] 0
        %228 = vst [vmem:[#allocation2 + $0x8] sm:$0xf] 0
        %229 = vst [vmem:[#allocation2 + $0xc] sm:$0x1] 0
        %230 = vst [vmem:[#allocation2 + $0x10] sm:$0xf] 0
        %231 = vst [vmem:[#allocation2 + $0x14] sm:$0x1] 0
        %232 = vst [vmem:[#allocation2 + $0x18] sm:$0xf] 0
        %233 = vst [vmem:[#allocation2 + $0x1c] sm:$0x1] 0
        %234 = vst [vmem:[#allocation2 + $0x20] sm:$0xf] 0
        %235 = vst [vmem:[#allocation2 + $0x24] sm:$0x1] 0
        %236 = vst [vmem:[#allocation2 + $0x28] sm:$0xf] 0
        %237 = vst [vmem:[#allocation2 + $0x2c] sm:$0x1] 0
        %238 = vst [vmem:[#allocation2 + $0x30] sm:$0xf] 0
        %239 = vst [vmem:[#allocation2 + $0x34] sm:$0x1] 0
        %240 = vst [vmem:[#allocation2 + $0x38] sm:$0xf] 0
        %241 = vst [vmem:[#allocation2 + $0x3c] sm:$0x1] 0
        %242 = vst [vmem:[#allocation2 + $0x40] sm:$0xf] 0
        %243 = vst [vmem:[#allocation2 + $0x44] sm:$0x1] 0
        %244 = vst [vmem:[#allocation2 + $0x48] sm:$0xf] 0
        %245 = vst [vmem:[#allocation2 + $0x4c] sm:$0x1] 0
        %v246 = vld [vmem:[%s210] sm:$0xf]
        %v247 = vld [vmem:[%s210 + $0x4] sm:$0xf]
        %v248 = vld [vmem:[%s210 + $0x8] sm:$0xf]
        %v249 = vld [vmem:[%s210 + $0xc] sm:$0xf]
        %v250 = vld [vmem:[%s210 + $0x10] sm:$0xf]
        %v251 = vld [vmem:[%s210 + $0x14] sm:$0xf]
        %v252 = vld [vmem:[%s210 + $0x18] sm:$0xf]
        %v253 = vld [vmem:[%s210 + $0x1c] sm:$0xf]
        %v254 = vunpack.c.l.bf16 %v246
        %v255 = vunpack.c.l.bf16 %v247
        %v256 = vunpack.c.l.bf16 %v248
        %v257 = vunpack.c.l.bf16 %v249
        %v258 = vunpack.c.l.bf16 %v250
        %v259 = vunpack.c.l.bf16 %v251
        %v260 = vunpack.c.l.bf16 %v252
        %v261 = vunpack.c.l.bf16 %v253
        %v262 = vld [vmem:[%s1] sm:$0x1]
        %v264 = vperm.slane %v262, 0
        %v266 = vmul.f32 %v254, %v264
        %v267 = vmul.f32 %v255, %v264
        %v268 = vmul.f32 %v256, %v264
        %v269 = vmul.f32 %v257, %v264
        %v270 = vmul.f32 %v258, %v264
        %v271 = vmul.f32 %v259, %v264
        %v272 = vmul.f32 %v260, %v264
        %v273 = vmul.f32 %v261, %v264
        %v274 = vld [vmem:[%s2] sm:$0x1]
        %v276 = vperm.slane %v274, 0
        %v278 = vadd.f32 %v266, %v276
        %v279 = vadd.f32 %v267, %v276
        %v280 = vadd.f32 %v268, %v276
        %v281 = vadd.f32 %v269, %v276
        %v282 = vadd.f32 %v270, %v276
        %v283 = vadd.f32 %v271, %v276
        %v284 = vadd.f32 %v272, %v276
        %v285 = vadd.f32 %v273, %v276
        %v286 = vmax.f32 %v278, 0.0
        %v287 = vmax.f32 %v279, 0.0
        %v288 = vmax.f32 %v280, 0.0
        %v289 = vmax.f32 %v281, 0.0
        %v290 = vmax.f32 %v282, 0.0
        %v291 = vmax.f32 %v283, 0.0
        %v292 = vmax.f32 %v284, 0.0
        %v293 = vmax.f32 %v285, 0.0
        %v294 = vpack.c.bf16 %v286, %v286
        %v295 = vpack.c.bf16 %v287, %v287
        %v296 = vpack.c.bf16 %v288, %v288
        %v297 = vpack.c.bf16 %v289, %v289
        %v298 = vpack.c.bf16 %v290, %v290
        %v299 = vpack.c.bf16 %v291, %v291
        %v300 = vpack.c.bf16 %v292, %v292
        %v301 = vpack.c.bf16 %v293, %v293
        %v303 = vshrl.u32 %v294, 16
        %v305 = vrot.slane %v303, 7
        %v306 = vshll.u32 %v294, 16
        %v308 = vor.u32 %v305, %v306
        %v309 = vrot.slane %v305, 4
        %v311 = vshrl.u32 %v295, 16
        %v313 = vrot.slane %v311, 7
        %v314 = vshll.u32 %v295, 16
        %v316 = vor.u32 %v313, %v314
        %v317 = vrot.slane %v313, 4
        %v319 = vshrl.u32 %v296, 16
        %v321 = vrot.slane %v319, 7
        %v322 = vshll.u32 %v296, 16
        %v324 = vor.u32 %v321, %v322
        %v325 = vrot.slane %v321, 4
        %v327 = vshrl.u32 %v297, 16
        %v329 = vrot.slane %v327, 7
        %v330 = vshll.u32 %v297, 16
        %v332 = vor.u32 %v329, %v330
        %v333 = vrot.slane %v329, 4
        %v335 = vshrl.u32 %v298, 16
        %v337 = vrot.slane %v335, 7
        %v338 = vshll.u32 %v298, 16
        %v340 = vor.u32 %v337, %v338
        %v341 = vrot.slane %v337, 4
        %v343 = vshrl.u32 %v299, 16
        %v345 = vrot.slane %v343, 7
        %v346 = vshll.u32 %v299, 16
        %v348 = vor.u32 %v345, %v346
        %v349 = vrot.slane %v345, 4
        %v351 = vshrl.u32 %v300, 16
        %v353 = vrot.slane %v351, 7
        %v354 = vshll.u32 %v300, 16
        %v356 = vor.u32 %v353, %v354
        %v357 = vrot.slane %v353, 4
        %v359 = vshrl.u32 %v301, 16
        %v361 = vrot.slane %v359, 7
        %v362 = vshll.u32 %v301, 16
        %v364 = vor.u32 %v361, %v362
        %v365 = vrot.slane %v361, 4
        %s382 = scalar_lea.vmem [#allocation2], 8
        %vm383 = vcmask 1043456
        %vm384 = vsmask.f32 7938
        %vm385 = vmand %vm383, %vm384
        %v386 = vld [vmem:[%s382] sm:$0xf]
        %v387 = vsel %vm385, %v308, %v386
        %388 = vst [vmem:[%s382] sm:$0xf] %v387
        %vm389 = vcmask 1040384
        %vm390 = vsmask.f32 256
        %vm391 = vmand %vm389, %vm390
        %v392 = vld [vmem:[%s382 + $0x4] sm:$0x1]
        %v393 = vsel %vm391, %v309, %v392
        %394 = vst [vmem:[%s382 + $0x4] sm:$0x1] %v393
        %v395 = vld [vmem:[%s382 + $0x8] sm:$0xf]
        %v396 = vsel %vm385, %v316, %v395
        %397 = vst [vmem:[%s382 + $0x8] sm:$0xf] %v396
        %v398 = vld [vmem:[%s382 + $0xc] sm:$0x1]
        %v399 = vsel %vm391, %v317, %v398
        %400 = vst [vmem:[%s382 + $0xc] sm:$0x1] %v399
        %v401 = vld [vmem:[%s382 + $0x10] sm:$0xf]
        %v402 = vsel %vm385, %v324, %v401
        %403 = vst [vmem:[%s382 + $0x10] sm:$0xf] %v402
        %v404 = vld [vmem:[%s382 + $0x14] sm:$0x1]
        %v405 = vsel %vm391, %v325, %v404
        %406 = vst [vmem:[%s382 + $0x14] sm:$0x1] %v405
        %v407 = vld [vmem:[%s382 + $0x18] sm:$0xf]
        %v408 = vsel %vm385, %v332, %v407
        %409 = vst [vmem:[%s382 + $0x18] sm:$0xf] %v408
        %v410 = vld [vmem:[%s382 + $0x1c] sm:$0x1]
        %v411 = vsel %vm391, %v333, %v410
        %412 = vst [vmem:[%s382 + $0x1c] sm:$0x1] %v411
        %v413 = vld [vmem:[%s382 + $0x20] sm:$0xf]
        %v414 = vsel %vm385, %v340, %v413
        %415 = vst [vmem:[%s382 + $0x20] sm:$0xf] %v414
        %v416 = vld [vmem:[%s382 + $0x24] sm:$0x1]
        %v417 = vsel %vm391, %v341, %v416
        %418 = vst [vmem:[%s382 + $0x24] sm:$0x1] %v417
        %v419 = vld [vmem:[%s382 + $0x28] sm:$0xf]
        %v420 = vsel %vm385, %v348, %v419
        %421 = vst [vmem:[%s382 + $0x28] sm:$0xf] %v420
        %v422 = vld [vmem:[%s382 + $0x2c] sm:$0x1]
        %v423 = vsel %vm391, %v349, %v422
        %424 = vst [vmem:[%s382 + $0x2c] sm:$0x1] %v423
        %v425 = vld [vmem:[%s382 + $0x30] sm:$0xf]
        %v426 = vsel %vm385, %v356, %v425
        %427 = vst [vmem:[%s382 + $0x30] sm:$0xf] %v426
        %v428 = vld [vmem:[%s382 + $0x34] sm:$0x1]
        %v429 = vsel %vm391, %v357, %v428
        %430 = vst [vmem:[%s382 + $0x34] sm:$0x1] %v429
        %v431 = vld [vmem:[%s382 + $0x38] sm:$0xf]
        %v432 = vsel %vm385, %v364, %v431
        %433 = vst [vmem:[%s382 + $0x38] sm:$0xf] %v432
        %v434 = vld [vmem:[%s382 + $0x3c] sm:$0x1]
        %v435 = vsel %vm391, %v365, %v434
        %436 = vst [vmem:[%s382 + $0x3c] sm:$0x1] %v435
      $region40: #{_lambda_.14} parent=35 // pred_fallthru
        _
      %s437 = smul.u32 %s20, 4
      %s438 = smul.u32 %s437, 2
      %s439 = smul.addr %s438, 4
      %s440 = scalar_lea.vmem [#allocation2], %s439
      %v441 = vld [vmem:[%s440] sm:$0xf]
      %v442 = vld [vmem:[%s440 + $0x8] sm:$0xf]
      %v443 = vld [vmem:[%s440 + $0x10] sm:$0xf]
      %v444 = vld [vmem:[%s440 + $0x18] sm:$0xf]
      %v445 = vld [vmem:[%s440 + $0x4] sm:$0x1]
      %v446 = vld [vmem:[%s440 + $0xc] sm:$0x1]
      %v447 = vld [vmem:[%s440 + $0x14] sm:$0x1]
      %v448 = vld [vmem:[%s440 + $0x1c] sm:$0x1]
      %vm449 = vsmask.f32 3328
      %vm450 = vsmask.f32 7440
      %vm451 = vmor %vm449, %vm450
      %v453 = vshrl.u32 %v441, 16
      %v455 = vrot.slane %v453, 4
      %v456 = vshll.u32 %v441, 16
      %v458 = vrot.slane %v456, 5
      %v459 = vor.u32 %v455, %v458
      %v460 = vrot.slane %v459, 4
      %v462 = vshll.u32 %v445, 16
      %v464 = vrot.slane %v462, 5
      %v465 = vsel %vm451, %v460, %v464
      %v467 = vshrl.u32 %v442, 16
      %v469 = vrot.slane %v467, 4
      %v470 = vshll.u32 %v442, 16
      %v472 = vrot.slane %v470, 5
      %v473 = vor.u32 %v469, %v472
      %v474 = vrot.slane %v473, 4
      %v476 = vshll.u32 %v446, 16
      %v478 = vrot.slane %v476, 5
      %v479 = vsel %vm451, %v474, %v478
      %v481 = vshrl.u32 %v443, 16
      %v483 = vrot.slane %v481, 4
      %v484 = vshll.u32 %v443, 16
      %v486 = vrot.slane %v484, 5
      %v487 = vor.u32 %v483, %v486
      %v488 = vrot.slane %v487, 4
      %v490 = vshll.u32 %v447, 16
      %v492 = vrot.slane %v490, 5
      %v493 = vsel %vm451, %v488, %v492
      %v495 = vshrl.u32 %v444, 16
      %v497 = vrot.slane %v495, 4
      %v498 = vshll.u32 %v444, 16
      %v500 = vrot.slane %v498, 5
      %v501 = vor.u32 %v497, %v500
      %v502 = vrot.slane %v501, 4
      %v504 = vshll.u32 %v448, 16
      %v506 = vrot.slane %v504, 5
      %v507 = vsel %vm451, %v502, %v506
      %v508 = vld [vmem:[%s440] sm:$0xe]
      %v509 = vld [vmem:[%s440 + $0x8] sm:$0xe]
      %v510 = vld [vmem:[%s440 + $0x10] sm:$0xe]
      %v511 = vld [vmem:[%s440 + $0x18] sm:$0xe]
      %vm520 = vcmask 1042432
      %vm521 = vcmask 1046532
      %vm522 = vmor %vm520, %vm521
      %v523 = vrot.slane %v508, 5
      %v524 = vrot.slane %v523, 4
      %v525 = vrot.slane %v445, 5
      %v526 = vsel %vm522, %v524, %v525
      %v527 = vrot.slane %v509, 5
      %v528 = vrot.slane %v527, 4
      %v529 = vrot.slane %v446, 5
      %v530 = vsel %vm522, %v528, %v529
      %v531 = vrot.slane %v510, 5
      %v532 = vrot.slane %v531, 4
      %v533 = vrot.slane %v447, 5
      %v534 = vsel %vm522, %v532, %v533
      %v535 = vrot.slane %v511, 5
      %v536 = vrot.slane %v535, 4
      %v537 = vrot.slane %v448, 5
      %v538 = vsel %vm522, %v536, %v537
      %s539 = sadd.s32 %s437, 1
      %s540 = smul.u32 %s539, 2
      %s541 = smul.addr %s540, 4
      %s542 = scalar_lea.vmem [#allocation2], %s541
      %v543 = vld [vmem:[%s542] sm:$0xf]
      %v544 = vld [vmem:[%s542 + $0x8] sm:$0xf]
      %v545 = vld [vmem:[%s542 + $0x10] sm:$0xf]
      %v546 = vld [vmem:[%s542 + $0x18] sm:$0xf]
      %v547 = vld [vmem:[%s542 + $0x4] sm:$0x1]
      %v548 = vld [vmem:[%s542 + $0xc] sm:$0x1]
      %v549 = vld [vmem:[%s542 + $0x14] sm:$0x1]
      %v550 = vld [vmem:[%s542 + $0x1c] sm:$0x1]
      %v552 = vshrl.u32 %v543, 16
      %v554 = vrot.slane %v552, 4
      %v555 = vshll.u32 %v543, 16
      %v557 = vrot.slane %v555, 5
      %v558 = vor.u32 %v554, %v557
      %v559 = vrot.slane %v558, 4
      %v561 = vshll.u32 %v547, 16
      %v563 = vrot.slane %v561, 5
      %v564 = vsel %vm451, %v559, %v563
      %v566 = vshrl.u32 %v544, 16
      %v568 = vrot.slane %v566, 4
      %v569 = vshll.u32 %v544, 16
      %v571 = vrot.slane %v569, 5
      %v572 = vor.u32 %v568, %v571
      %v573 = vrot.slane %v572, 4
      %v575 = vshll.u32 %v548, 16
      %v577 = vrot.slane %v575, 5
      %v578 = vsel %vm451, %v573, %v577
      %v580 = vshrl.u32 %v545, 16
      %v582 = vrot.slane %v580, 4
      %v583 = vshll.u32 %v545, 16
      %v585 = vrot.slane %v583, 5
      %v586 = vor.u32 %v582, %v585
      %v587 = vrot.slane %v586, 4
      %v589 = vshll.u32 %v549, 16
      %v591 = vrot.slane %v589, 5
      %v592 = vsel %vm451, %v587, %v591
      %v594 = vshrl.u32 %v546, 16
      %v596 = vrot.slane %v594, 4
      %v597 = vshll.u32 %v546, 16
      %v599 = vrot.slane %v597, 5
      %v600 = vor.u32 %v596, %v599
      %v601 = vrot.slane %v600, 4
      %v603 = vshll.u32 %v550, 16
      %v605 = vrot.slane %v603, 5
      %v606 = vsel %vm451, %v601, %v605
      %v607 = vld [vmem:[%s542] sm:$0xe]
      %v608 = vld [vmem:[%s542 + $0x8] sm:$0xe]
      %v609 = vld [vmem:[%s542 + $0x10] sm:$0xe]
      %v610 = vld [vmem:[%s542 + $0x18] sm:$0xe]
      %v619 = vrot.slane %v607, 5
      %v620 = vrot.slane %v619, 4
      %v621 = vrot.slane %v547, 5
      %v622 = vsel %vm522, %v620, %v621
      %v623 = vrot.slane %v608, 5
      %v624 = vrot.slane %v623, 4
      %v625 = vrot.slane %v548, 5
      %v626 = vsel %vm522, %v624, %v625
      %v627 = vrot.slane %v609, 5
      %v628 = vrot.slane %v627, 4
      %v629 = vrot.slane %v549, 5
      %v630 = vsel %vm522, %v628, %v629
      %v631 = vrot.slane %v610, 5
      %v632 = vrot.slane %v631, 4
      %v633 = vrot.slane %v550, 5
      %v634 = vsel %vm522, %v632, %v633
      %s635 = sadd.s32 %s437, 2
      %s636 = smul.u32 %s635, 2
      %s637 = smul.addr %s636, 4
      %s638 = scalar_lea.vmem [#allocation2], %s637
      %v639 = vld [vmem:[%s638] sm:$0xf]
      %v640 = vld [vmem:[%s638 + $0x8] sm:$0xf]
      %v641 = vld [vmem:[%s638 + $0x10] sm:$0xf]
      %v642 = vld [vmem:[%s638 + $0x18] sm:$0xf]
      %v643 = vld [vmem:[%s638 + $0x4] sm:$0x1]
      %v644 = vld [vmem:[%s638 + $0xc] sm:$0x1]
      %v645 = vld [vmem:[%s638 + $0x14] sm:$0x1]
      %v646 = vld [vmem:[%s638 + $0x1c] sm:$0x1]
      %v648 = vshrl.u32 %v639, 16
      %v650 = vrot.slane %v648, 4
      %v651 = vshll.u32 %v639, 16
      %v653 = vrot.slane %v651, 5
      %v654 = vor.u32 %v650, %v653
      %v655 = vrot.slane %v654, 4
      %v657 = vshll.u32 %v643, 16
      %v659 = vrot.slane %v657, 5
      %v660 = vsel %vm451, %v655, %v659
      %v662 = vshrl.u32 %v640, 16
      %v664 = vrot.slane %v662, 4
      %v665 = vshll.u32 %v640, 16
      %v667 = vrot.slane %v665, 5
      %v668 = vor.u32 %v664, %v667
      %v669 = vrot.slane %v668, 4
      %v671 = vshll.u32 %v644, 16
      %v673 = vrot.slane %v671, 5
      %v674 = vsel %vm451, %v669, %v673
      %v676 = vshrl.u32 %v641, 16
      %v678 = vrot.slane %v676, 4
      %v679 = vshll.u32 %v641, 16
      %v681 = vrot.slane %v679, 5
      %v682 = vor.u32 %v678, %v681
      %v683 = vrot.slane %v682, 4
      %v685 = vshll.u32 %v645, 16
      %v687 = vrot.slane %v685, 5
      %v688 = vsel %vm451, %v683, %v687
      %v690 = vshrl.u32 %v642, 16
      %v692 = vrot.slane %v690, 4
      %v693 = vshll.u32 %v642, 16
      %v695 = vrot.slane %v693, 5
      %v696 = vor.u32 %v692, %v695
      %v697 = vrot.slane %v696, 4
      %v699 = vshll.u32 %v646, 16
      %v701 = vrot.slane %v699, 5
      %v702 = vsel %vm451, %v697, %v701
      %v703 = vld [vmem:[%s638] sm:$0xe]
      %v704 = vld [vmem:[%s638 + $0x8] sm:$0xe]
      %v705 = vld [vmem:[%s638 + $0x10] sm:$0xe]
      %v706 = vld [vmem:[%s638 + $0x18] sm:$0xe]
      %v715 = vrot.slane %v703, 5
      %v716 = vrot.slane %v715, 4
      %v717 = vrot.slane %v643, 5
      %v718 = vsel %vm522, %v716, %v717
      %v719 = vrot.slane %v704, 5
      %v720 = vrot.slane %v719, 4
      %v721 = vrot.slane %v644, 5
      %v722 = vsel %vm522, %v720, %v721
      %v723 = vrot.slane %v705, 5
      %v724 = vrot.slane %v723, 4
      %v725 = vrot.slane %v645, 5
      %v726 = vsel %vm522, %v724, %v725
      %v727 = vrot.slane %v706, 5
      %v728 = vrot.slane %v727, 4
      %v729 = vrot.slane %v646, 5
      %v730 = vsel %vm522, %v728, %v729
      %v735 = vunpack.c.l.b16 %v441
      %v736 = vunpack.c.l.b16 %v442
      %v737 = vunpack.c.l.b16 %v443
      %v738 = vunpack.c.l.b16 %v444
      %v739 = vpack.c.b16 %v736, %v735
      %v740 = vpack.c.b16 %v738, %v737
      %v743 = vunpack.c.l.b16 %v465
      %v744 = vunpack.c.l.b16 %v479
      %v745 = vunpack.c.l.b16 %v493
      %v746 = vunpack.c.l.b16 %v507
      %v747 = vpack.c.b16 %v744, %v743
      %v748 = vpack.c.b16 %v746, %v745
      %v751 = vunpack.c.l.b16 %v526
      %v752 = vunpack.c.l.b16 %v530
      %v753 = vunpack.c.l.b16 %v534
      %v754 = vunpack.c.l.b16 %v538
      %v755 = vpack.c.b16 %v752, %v751
      %v756 = vpack.c.b16 %v754, %v753
      %v763 = vunpack.c.l.b16 %v543
      %v764 = vunpack.c.l.b16 %v544
      %v765 = vunpack.c.l.b16 %v545
      %v766 = vunpack.c.l.b16 %v546
      %v767 = vpack.c.b16 %v764, %v763
      %v768 = vpack.c.b16 %v766, %v765
      %v771 = vunpack.c.l.b16 %v564
      %v772 = vunpack.c.l.b16 %v578
      %v773 = vunpack.c.l.b16 %v592
      %v774 = vunpack.c.l.b16 %v606
      %v775 = vpack.c.b16 %v772, %v771
      %v776 = vpack.c.b16 %v774, %v773
      %v779 = vunpack.c.l.b16 %v622
      %v780 = vunpack.c.l.b16 %v626
      %v781 = vunpack.c.l.b16 %v630
      %v782 = vunpack.c.l.b16 %v634
      %v783 = vpack.c.b16 %v780, %v779
      %v784 = vpack.c.b16 %v782, %v781
      %v791 = vunpack.c.l.b16 %v639
      %v792 = vunpack.c.l.b16 %v640
      %v793 = vunpack.c.l.b16 %v641
      %v794 = vunpack.c.l.b16 %v642
      %v795 = vpack.c.b16 %v792, %v791
      %v796 = vpack.c.b16 %v794, %v793
      %v799 = vunpack.c.l.b16 %v660
      %v800 = vunpack.c.l.b16 %v674
      %v801 = vunpack.c.l.b16 %v688
      %v802 = vunpack.c.l.b16 %v702
      %v803 = vpack.c.b16 %v800, %v799
      %v804 = vpack.c.b16 %v802, %v801
      %v807 = vunpack.c.l.b16 %v718
      %v808 = vunpack.c.l.b16 %v722
      %v809 = vunpack.c.l.b16 %v726
      %v810 = vunpack.c.l.b16 %v730
      %v811 = vpack.c.b16 %v808, %v807
      %v812 = vpack.c.b16 %v810, %v809
      %v815 = vld [vmem:[%s3] sm:$0xf]
      %v816 = vld [vmem:[%s3 + $0x4] sm:$0xf]
      %v817 = vld [vmem:[%s3 + $0x8] sm:$0xf]
      %v818 = vld [vmem:[%s3 + $0xc] sm:$0xf]
      %v819 = vld [vmem:[%s3 + $0x10] sm:$0xf]
      %v820 = vld [vmem:[%s3 + $0x14] sm:$0xf]
      %v821 = vld [vmem:[%s3 + $0x18] sm:$0xf]
      %v822 = vld [vmem:[%s3 + $0x1c] sm:$0xf]
      %v823 = vld [vmem:[%s3 + $0x20] sm:$0xf]
      %v824 = vld [vmem:[%s3 + $0x24] sm:$0xf]
      %v825 = vld [vmem:[%s3 + $0x28] sm:$0xf]
      %v826 = vld [vmem:[%s3 + $0x2c] sm:$0xf]
      %v827 = vld [vmem:[%s3 + $0x30] sm:$0xf]
      %v828 = vld [vmem:[%s3 + $0x34] sm:$0xf]
      %v829 = vld [vmem:[%s3 + $0x38] sm:$0xf]
      %v830 = vld [vmem:[%s3 + $0x3c] sm:$0xf]
      %v831 = vld [vmem:[%s3 + $0x40] sm:$0xf]
      %v832 = vld [vmem:[%s3 + $0x44] sm:$0xf]
      %v833 = vld [vmem:[%s3 + $0x48] sm:$0xf]
      %v834 = vld [vmem:[%s3 + $0x4c] sm:$0xf]
      %v835 = vld [vmem:[%s3 + $0x50] sm:$0xf]
      %v836 = vld [vmem:[%s3 + $0x54] sm:$0xf]
      %v837 = vld [vmem:[%s3 + $0x58] sm:$0xf]
      %v838 = vld [vmem:[%s3 + $0x5c] sm:$0xf]
      %v839 = vld [vmem:[%s3 + $0x60] sm:$0xf]
      %v840 = vld [vmem:[%s3 + $0x64] sm:$0xf]
      %v841 = vld [vmem:[%s3 + $0x68] sm:$0xf]
      %v842 = vld [vmem:[%s3 + $0x6c] sm:$0xf]
      %v843 = vld [vmem:[%s3 + $0x70] sm:$0xf]
      %v844 = vld [vmem:[%s3 + $0x74] sm:$0xf]
      %v845 = vld [vmem:[%s3 + $0x78] sm:$0xf]
      %v846 = vld [vmem:[%s3 + $0x7c] sm:$0xf]
      %v847 = vld [vmem:[%s3 + $0x80] sm:$0xf]
      %v848 = vld [vmem:[%s3 + $0x84] sm:$0xf]
      %v849 = vld [vmem:[%s3 + $0x88] sm:$0xf]
      %v850 = vld [vmem:[%s3 + $0x8c] sm:$0xf]
      %v851 = vld [vmem:[%s3 + $0x90] sm:$0xf]
      %v852 = vld [vmem:[%s3 + $0x94] sm:$0xf]
      %v853 = vld [vmem:[%s3 + $0x98] sm:$0xf]
      %v854 = vld [vmem:[%s3 + $0x9c] sm:$0xf]
      %v855 = vld [vmem:[%s3 + $0xa0] sm:$0xf]
      %v856 = vld [vmem:[%s3 + $0xa4] sm:$0xf]
      %v857 = vld [vmem:[%s3 + $0xa8] sm:$0xf]
      %v858 = vld [vmem:[%s3 + $0xac] sm:$0xf]
      %v859 = vld [vmem:[%s3 + $0xb0] sm:$0xf]
      %v860 = vld [vmem:[%s3 + $0xb4] sm:$0xf]
      %v861 = vld [vmem:[%s3 + $0xb8] sm:$0xf]
      %v862 = vld [vmem:[%s3 + $0xbc] sm:$0xf]
      %v863 = vld [vmem:[%s3 + $0xc0] sm:$0xf]
      %v864 = vld [vmem:[%s3 + $0xc4] sm:$0xf]
      %v865 = vld [vmem:[%s3 + $0xc8] sm:$0xf]
      %v866 = vld [vmem:[%s3 + $0xcc] sm:$0xf]
      %v867 = vld [vmem:[%s3 + $0xd0] sm:$0xf]
      %v868 = vld [vmem:[%s3 + $0xd4] sm:$0xf]
      %v869 = vld [vmem:[%s3 + $0xd8] sm:$0xf]
      %v870 = vld [vmem:[%s3 + $0xdc] sm:$0xf]
      %v871 = vld [vmem:[%s3 + $0xe0] sm:$0xf]
      %v872 = vld [vmem:[%s3 + $0xe4] sm:$0xf]
      %v873 = vld [vmem:[%s3 + $0xe8] sm:$0xf]
      %v874 = vld [vmem:[%s3 + $0xec] sm:$0xf]
      %v875 = vld [vmem:[%s3 + $0xf0] sm:$0xf]
      %v876 = vld [vmem:[%s3 + $0xf4] sm:$0xf]
      %v877 = vld [vmem:[%s3 + $0xf8] sm:$0xf]
      %v878 = vld [vmem:[%s3 + $0xfc] sm:$0xf]
      %v879 = vld [vmem:[%s3 + $0x100] sm:$0xf]
      %v880 = vld [vmem:[%s3 + $0x104] sm:$0xf]
      %v881 = vld [vmem:[%s3 + $0x108] sm:$0xf]
      %v882 = vld [vmem:[%s3 + $0x10c] sm:$0xf]
      %v883 = vld [vmem:[%s3 + $0x110] sm:$0xf]
      %v884 = vld [vmem:[%s3 + $0x114] sm:$0xf]
      %v885 = vld [vmem:[%s3 + $0x118] sm:$0xf]
      %v886 = vld [vmem:[%s3 + $0x11c] sm:$0xf]
      %v887 = vld [vmem:[%s3 + $0x120] sm:$0xf]
      %v888 = vld [vmem:[%s3 + $0x124] sm:$0xf]
      %v889 = vld [vmem:[%s3 + $0x128] sm:$0xf]
      %v890 = vld [vmem:[%s3 + $0x12c] sm:$0xf]
      %v891 = vld [vmem:[%s3 + $0x130] sm:$0xf]
      %v892 = vld [vmem:[%s3 + $0x134] sm:$0xf]
      %v893 = vld [vmem:[%s3 + $0x138] sm:$0xf]
      %v894 = vld [vmem:[%s3 + $0x13c] sm:$0xf]
      %v895 = vld [vmem:[%s3 + $0x140] sm:$0xf]
      %v896 = vld [vmem:[%s3 + $0x144] sm:$0xf]
      %v897 = vld [vmem:[%s3 + $0x148] sm:$0xf]
      %v898 = vld [vmem:[%s3 + $0x14c] sm:$0xf]
      %v899 = vld [vmem:[%s3 + $0x150] sm:$0xf]
      %v900 = vld [vmem:[%s3 + $0x154] sm:$0xf]
      %v901 = vld [vmem:[%s3 + $0x158] sm:$0xf]
      %v902 = vld [vmem:[%s3 + $0x15c] sm:$0xf]
      %v903 = vld [vmem:[%s3 + $0x160] sm:$0xf]
      %v904 = vld [vmem:[%s3 + $0x164] sm:$0xf]
      %v905 = vld [vmem:[%s3 + $0x168] sm:$0xf]
      %v906 = vld [vmem:[%s3 + $0x16c] sm:$0xf]
      %v907 = vld [vmem:[%s3 + $0x170] sm:$0xf]
      %v908 = vld [vmem:[%s3 + $0x174] sm:$0xf]
      %v909 = vld [vmem:[%s3 + $0x178] sm:$0xf]
      %v910 = vld [vmem:[%s3 + $0x17c] sm:$0xf]
      %v911 = vld [vmem:[%s3 + $0x180] sm:$0xf]
      %v912 = vld [vmem:[%s3 + $0x184] sm:$0xf]
      %v913 = vld [vmem:[%s3 + $0x188] sm:$0xf]
      %v914 = vld [vmem:[%s3 + $0x18c] sm:$0xf]
      %v915 = vld [vmem:[%s3 + $0x190] sm:$0xf]
      %v916 = vld [vmem:[%s3 + $0x194] sm:$0xf]
      %v917 = vld [vmem:[%s3 + $0x198] sm:$0xf]
      %v918 = vld [vmem:[%s3 + $0x19c] sm:$0xf]
      %v919 = vld [vmem:[%s3 + $0x1a0] sm:$0xf]
      %v920 = vld [vmem:[%s3 + $0x1a4] sm:$0xf]
      %v921 = vld [vmem:[%s3 + $0x1a8] sm:$0xf]
      %v922 = vld [vmem:[%s3 + $0x1ac] sm:$0xf]
      %v923 = vld [vmem:[%s3 + $0x1b0] sm:$0xf]
      %v924 = vld [vmem:[%s3 + $0x1b4] sm:$0xf]
      %v925 = vld [vmem:[%s3 + $0x1b8] sm:$0xf]
      %v926 = vld [vmem:[%s3 + $0x1bc] sm:$0xf]
      %v927 = vld [vmem:[%s3 + $0x1c0] sm:$0xf]
      %v928 = vld [vmem:[%s3 + $0x1c4] sm:$0xf]
      %v929 = vld [vmem:[%s3 + $0x1c8] sm:$0xf]
      %v930 = vld [vmem:[%s3 + $0x1cc] sm:$0xf]
      %v931 = vld [vmem:[%s3 + $0x1d0] sm:$0xf]
      %v932 = vld [vmem:[%s3 + $0x1d4] sm:$0xf]
      %v933 = vld [vmem:[%s3 + $0x1d8] sm:$0xf]
      %v934 = vld [vmem:[%s3 + $0x1dc] sm:$0xf]
      %v935 = vld [vmem:[%s3 + $0x1e0] sm:$0xf]
      %v936 = vld [vmem:[%s3 + $0x1e4] sm:$0xf]
      %v937 = vld [vmem:[%s3 + $0x1e8] sm:$0xf]
      %v938 = vld [vmem:[%s3 + $0x1ec] sm:$0xf]
      %v939 = vld [vmem:[%s3 + $0x1f0] sm:$0xf]
      %v940 = vld [vmem:[%s3 + $0x1f4] sm:$0xf]
      %v941 = vld [vmem:[%s3 + $0x1f8] sm:$0xf]
      %v942 = vld [vmem:[%s3 + $0x1fc] sm:$0xf]
      %v943 = vld [vmem:[%s3 + $0x200] sm:$0xf]
      %v944 = vld [vmem:[%s3 + $0x204] sm:$0xf]
      %v945 = vld [vmem:[%s3 + $0x208] sm:$0xf]
      %v946 = vld [vmem:[%s3 + $0x20c] sm:$0xf]
      %v947 = vld [vmem:[%s3 + $0x210] sm:$0xf]
      %v948 = vld [vmem:[%s3 + $0x214] sm:$0xf]
      %v949 = vld [vmem:[%s3 + $0x218] sm:$0xf]
      %v950 = vld [vmem:[%s3 + $0x21c] sm:$0xf]
      %v951 = vld [vmem:[%s3 + $0x220] sm:$0xf]
      %v952 = vld [vmem:[%s3 + $0x224] sm:$0xf]
      %v953 = vld [vmem:[%s3 + $0x228] sm:$0xf]
      %v954 = vld [vmem:[%s3 + $0x22c] sm:$0xf]
      %v955 = vld [vmem:[%s3 + $0x230] sm:$0xf]
      %v956 = vld [vmem:[%s3 + $0x234] sm:$0xf]
      %v957 = vld [vmem:[%s3 + $0x238] sm:$0xf]
      %v958 = vld [vmem:[%s3 + $0x23c] sm:$0xf]
      %v1103 = vunpack.c.l.b16 %v815
      %v1104 = vunpack.c.l.b16 %v816
      %v1105 = vunpack.c.l.b16 %v817
      %v1106 = vunpack.c.l.b16 %v818
      %v1107 = vunpack.c.l.b16 %v819
      %v1108 = vunpack.c.l.b16 %v820
      %v1109 = vunpack.c.l.b16 %v821
      %v1110 = vunpack.c.l.b16 %v822
      %v1111 = vunpack.c.l.b16 %v823
      %v1112 = vunpack.c.l.b16 %v824
      %v1113 = vunpack.c.l.b16 %v825
      %v1114 = vunpack.c.l.b16 %v826
      %v1115 = vunpack.c.l.b16 %v827
      %v1116 = vunpack.c.l.b16 %v828
      %v1117 = vunpack.c.l.b16 %v829
      %v1118 = vunpack.c.l.b16 %v830
      %v1119 = vunpack.c.l.b16 %v831
      %v1120 = vunpack.c.l.b16 %v832
      %v1121 = vunpack.c.l.b16 %v833
      %v1122 = vunpack.c.l.b16 %v834
      %v1123 = vunpack.c.l.b16 %v835
      %v1124 = vunpack.c.l.b16 %v836
      %v1125 = vunpack.c.l.b16 %v837
      %v1126 = vunpack.c.l.b16 %v838
      %v1127 = vunpack.c.l.b16 %v839
      %v1128 = vunpack.c.l.b16 %v840
      %v1129 = vunpack.c.l.b16 %v841
      %v1130 = vunpack.c.l.b16 %v842
      %v1131 = vunpack.c.l.b16 %v843
      %v1132 = vunpack.c.l.b16 %v844
      %v1133 = vunpack.c.l.b16 %v845
      %v1134 = vunpack.c.l.b16 %v846
      %v1135 = vunpack.c.l.b16 %v847
      %v1136 = vunpack.c.l.b16 %v848
      %v1137 = vunpack.c.l.b16 %v849
      %v1138 = vunpack.c.l.b16 %v850
      %v1139 = vunpack.c.l.b16 %v851
      %v1140 = vunpack.c.l.b16 %v852
      %v1141 = vunpack.c.l.b16 %v853
      %v1142 = vunpack.c.l.b16 %v854
      %v1143 = vunpack.c.l.b16 %v855
      %v1144 = vunpack.c.l.b16 %v856
      %v1145 = vunpack.c.l.b16 %v857
      %v1146 = vunpack.c.l.b16 %v858
      %v1147 = vunpack.c.l.b16 %v859
      %v1148 = vunpack.c.l.b16 %v860
      %v1149 = vunpack.c.l.b16 %v861
      %v1150 = vunpack.c.l.b16 %v862
      %v1151 = vunpack.c.l.b16 %v863
      %v1152 = vunpack.c.l.b16 %v864
      %v1153 = vunpack.c.l.b16 %v865
      %v1154 = vunpack.c.l.b16 %v866
      %v1155 = vunpack.c.l.b16 %v867
      %v1156 = vunpack.c.l.b16 %v868
      %v1157 = vunpack.c.l.b16 %v869
      %v1158 = vunpack.c.l.b16 %v870
      %v1159 = vunpack.c.l.b16 %v871
      %v1160 = vunpack.c.l.b16 %v872
      %v1161 = vunpack.c.l.b16 %v873
      %v1162 = vunpack.c.l.b16 %v874
      %v1163 = vunpack.c.l.b16 %v875
      %v1164 = vunpack.c.l.b16 %v876
      %v1165 = vunpack.c.l.b16 %v877
      %v1166 = vunpack.c.l.b16 %v878
      %v1167 = vunpack.c.l.b16 %v879
      %v1168 = vunpack.c.l.b16 %v880
      %v1169 = vunpack.c.l.b16 %v881
      %v1170 = vunpack.c.l.b16 %v882
      %v1171 = vunpack.c.l.b16 %v883
      %v1172 = vunpack.c.l.b16 %v884
      %v1173 = vunpack.c.l.b16 %v885
      %v1174 = vunpack.c.l.b16 %v886
      %v1175 = vunpack.c.l.b16 %v887
      %v1176 = vunpack.c.l.b16 %v888
      %v1177 = vunpack.c.l.b16 %v889
      %v1178 = vunpack.c.l.b16 %v890
      %v1179 = vunpack.c.l.b16 %v891
      %v1180 = vunpack.c.l.b16 %v892
      %v1181 = vunpack.c.l.b16 %v893
      %v1182 = vunpack.c.l.b16 %v894
      %v1183 = vunpack.c.l.b16 %v895
      %v1184 = vunpack.c.l.b16 %v896
      %v1185 = vunpack.c.l.b16 %v897
      %v1186 = vunpack.c.l.b16 %v898
      %v1187 = vunpack.c.l.b16 %v899
      %v1188 = vunpack.c.l.b16 %v900
      %v1189 = vunpack.c.l.b16 %v901
      %v1190 = vunpack.c.l.b16 %v902
      %v1191 = vunpack.c.l.b16 %v903
      %v1192 = vunpack.c.l.b16 %v904
      %v1193 = vunpack.c.l.b16 %v905
      %v1194 = vunpack.c.l.b16 %v906
      %v1195 = vunpack.c.l.b16 %v907
      %v1196 = vunpack.c.l.b16 %v908
      %v1197 = vunpack.c.l.b16 %v909
      %v1198 = vunpack.c.l.b16 %v910
      %v1199 = vunpack.c.l.b16 %v911
      %v1200 = vunpack.c.l.b16 %v912
      %v1201 = vunpack.c.l.b16 %v913
      %v1202 = vunpack.c.l.b16 %v914
      %v1203 = vunpack.c.l.b16 %v915
      %v1204 = vunpack.c.l.b16 %v916
      %v1205 = vunpack.c.l.b16 %v917
      %v1206 = vunpack.c.l.b16 %v918
      %v1207 = vunpack.c.l.b16 %v919
      %v1208 = vunpack.c.l.b16 %v920
      %v1209 = vunpack.c.l.b16 %v921
      %v1210 = vunpack.c.l.b16 %v922
      %v1211 = vunpack.c.l.b16 %v923
      %v1212 = vunpack.c.l.b16 %v924
      %v1213 = vunpack.c.l.b16 %v925
      %v1214 = vunpack.c.l.b16 %v926
      %v1215 = vunpack.c.l.b16 %v927
      %v1216 = vunpack.c.l.b16 %v928
      %v1217 = vunpack.c.l.b16 %v929
      %v1218 = vunpack.c.l.b16 %v930
      %v1219 = vunpack.c.l.b16 %v931
      %v1220 = vunpack.c.l.b16 %v932
      %v1221 = vunpack.c.l.b16 %v933
      %v1222 = vunpack.c.l.b16 %v934
      %v1223 = vunpack.c.l.b16 %v935
      %v1224 = vunpack.c.l.b16 %v936
      %v1225 = vunpack.c.l.b16 %v937
      %v1226 = vunpack.c.l.b16 %v938
      %v1227 = vunpack.c.l.b16 %v939
      %v1228 = vunpack.c.l.b16 %v940
      %v1229 = vunpack.c.l.b16 %v941
      %v1230 = vunpack.c.l.b16 %v942
      %v1231 = vunpack.c.l.b16 %v943
      %v1232 = vunpack.c.l.b16 %v944
      %v1233 = vunpack.c.l.b16 %v945
      %v1234 = vunpack.c.l.b16 %v946
      %v1235 = vunpack.c.l.b16 %v947
      %v1236 = vunpack.c.l.b16 %v948
      %v1237 = vunpack.c.l.b16 %v949
      %v1238 = vunpack.c.l.b16 %v950
      %v1239 = vunpack.c.l.b16 %v951
      %v1240 = vunpack.c.l.b16 %v952
      %v1241 = vunpack.c.l.b16 %v953
      %v1242 = vunpack.c.l.b16 %v954
      %v1243 = vunpack.c.l.b16 %v955
      %v1244 = vunpack.c.l.b16 %v956
      %v1245 = vunpack.c.l.b16 %v957
      %v1246 = vunpack.c.l.b16 %v958
      %v1247 = vpack.c.b16 %v1104, %v1103
      %v1248 = vpack.c.b16 %v1106, %v1105
      %v1249 = vpack.c.b16 %v1108, %v1107
      %v1250 = vpack.c.b16 %v1110, %v1109
      %v1251 = vpack.c.b16 %v1112, %v1111
      %v1252 = vpack.c.b16 %v1114, %v1113
      %v1253 = vpack.c.b16 %v1116, %v1115
      %v1254 = vpack.c.b16 %v1118, %v1117
      %v1255 = vpack.c.b16 %v1120, %v1119
      %v1256 = vpack.c.b16 %v1122, %v1121
      %v1257 = vpack.c.b16 %v1124, %v1123
      %v1258 = vpack.c.b16 %v1126, %v1125
      %v1259 = vpack.c.b16 %v1128, %v1127
      %v1260 = vpack.c.b16 %v1130, %v1129
      %v1261 = vpack.c.b16 %v1132, %v1131
      %v1262 = vpack.c.b16 %v1134, %v1133
      %v1263 = vpack.c.b16 %v1136, %v1135
      %v1264 = vpack.c.b16 %v1138, %v1137
      %v1265 = vpack.c.b16 %v1140, %v1139
      %v1266 = vpack.c.b16 %v1142, %v1141
      %v1267 = vpack.c.b16 %v1144, %v1143
      %v1268 = vpack.c.b16 %v1146, %v1145
      %v1269 = vpack.c.b16 %v1148, %v1147
      %v1270 = vpack.c.b16 %v1150, %v1149
      %v1271 = vpack.c.b16 %v1152, %v1151
      %v1272 = vpack.c.b16 %v1154, %v1153
      %v1273 = vpack.c.b16 %v1156, %v1155
      %v1274 = vpack.c.b16 %v1158, %v1157
      %v1275 = vpack.c.b16 %v1160, %v1159
      %v1276 = vpack.c.b16 %v1162, %v1161
      %v1277 = vpack.c.b16 %v1164, %v1163
      %v1278 = vpack.c.b16 %v1166, %v1165
      %v1279 = vpack.c.b16 %v1168, %v1167
      %v1280 = vpack.c.b16 %v1170, %v1169
      %v1281 = vpack.c.b16 %v1172, %v1171
      %v1282 = vpack.c.b16 %v1174, %v1173
      %v1283 = vpack.c.b16 %v1176, %v1175
      %v1284 = vpack.c.b16 %v1178, %v1177
      %v1285 = vpack.c.b16 %v1180, %v1179
      %v1286 = vpack.c.b16 %v1182, %v1181
      %v1287 = vpack.c.b16 %v1184, %v1183
      %v1288 = vpack.c.b16 %v1186, %v1185
      %v1289 = vpack.c.b16 %v1188, %v1187
      %v1290 = vpack.c.b16 %v1190, %v1189
      %v1291 = vpack.c.b16 %v1192, %v1191
      %v1292 = vpack.c.b16 %v1194, %v1193
      %v1293 = vpack.c.b16 %v1196, %v1195
      %v1294 = vpack.c.b16 %v1198, %v1197
      %v1295 = vpack.c.b16 %v1200, %v1199
      %v1296 = vpack.c.b16 %v1202, %v1201
      %v1297 = vpack.c.b16 %v1204, %v1203
      %v1298 = vpack.c.b16 %v1206, %v1205
      %v1299 = vpack.c.b16 %v1208, %v1207
      %v1300 = vpack.c.b16 %v1210, %v1209
      %v1301 = vpack.c.b16 %v1212, %v1211
      %v1302 = vpack.c.b16 %v1214, %v1213
      %v1303 = vpack.c.b16 %v1216, %v1215
      %v1304 = vpack.c.b16 %v1218, %v1217
      %v1305 = vpack.c.b16 %v1220, %v1219
      %v1306 = vpack.c.b16 %v1222, %v1221
      %v1307 = vpack.c.b16 %v1224, %v1223
      %v1308 = vpack.c.b16 %v1226, %v1225
      %v1309 = vpack.c.b16 %v1228, %v1227
      %v1310 = vpack.c.b16 %v1230, %v1229
      %v1311 = vpack.c.b16 %v1232, %v1231
      %v1312 = vpack.c.b16 %v1234, %v1233
      %v1313 = vpack.c.b16 %v1236, %v1235
      %v1314 = vpack.c.b16 %v1238, %v1237
      %v1315 = vpack.c.b16 %v1240, %v1239
      %v1316 = vpack.c.b16 %v1242, %v1241
      %v1317 = vpack.c.b16 %v1244, %v1243
      %v1318 = vpack.c.b16 %v1246, %v1245
      %1391 = vmatpush.bf16.msra.mxu0 %v1254
      %1392 = vmatpush.bf16.msra.mxu0 %v1253
      %1393 = vmatpush.bf16.msra.mxu0 %v1252
      %1394 = vmatpush.bf16.msra.mxu0 %v1251
      %1395 = vmatpush.bf16.msra.mxu0 %v1250
      %1396 = vmatpush.bf16.msra.mxu0 %v1249
      %1397 = vmatpush.bf16.msra.mxu0 %v1248
      %1398 = vmatpush.bf16.msra.mxu0 %v1247
      %1399 = vmatmul.bf16.gmra.mxu0 %v739
      %v1400 = vpop.f32.mrf.mxu0
      %v1401 = vadd.f32 0.0, %v1400
      %v1402 = vpop.f32.mrf.mxu0
      %v1403 = vadd.f32 0.0, %v1402
      %1404 = vmatmul.bf16.gmra.mxu0 %v740
      %v1405 = vpop.f32.mrf.mxu0
      %v1406 = vadd.f32 0.0, %v1405
      %v1407 = vpop.f32.mrf.mxu0
      %v1408 = vadd.f32 0.0, %v1407
      %1409 = vdwg.mxu0
      %1410 = vmatpush.bf16.msra.mxu0 %v1262
      %1411 = vmatpush.bf16.msra.mxu0 %v1261
      %1412 = vmatpush.bf16.msra.mxu0 %v1260
      %1413 = vmatpush.bf16.msra.mxu0 %v1259
      %1414 = vmatpush.bf16.msra.mxu0 %v1258
      %1415 = vmatpush.bf16.msra.mxu0 %v1257
      %1416 = vmatpush.bf16.msra.mxu0 %v1256
      %1417 = vmatpush.bf16.msra.mxu0 %v1255
      %1418 = vmatmul.bf16.gmra.mxu0 %v747
      %v1419 = vpop.f32.mrf.mxu0
      %v1420 = vadd.f32 %v1401, %v1419
      %v1421 = vpop.f32.mrf.mxu0
      %v1422 = vadd.f32 %v1403, %v1421
      %1423 = vmatmul.bf16.gmra.mxu0 %v748
      %v1424 = vpop.f32.mrf.mxu0
      %v1425 = vadd.f32 %v1406, %v1424
      %v1426 = vpop.f32.mrf.mxu0
      %v1427 = vadd.f32 %v1408, %v1426
      %1428 = vdwg.mxu0
      %1429 = vmatpush.bf16.msra.mxu0 %v1270
      %1430 = vmatpush.bf16.msra.mxu0 %v1269
      %1431 = vmatpush.bf16.msra.mxu0 %v1268
      %1432 = vmatpush.bf16.msra.mxu0 %v1267
      %1433 = vmatpush.bf16.msra.mxu0 %v1266
      %1434 = vmatpush.bf16.msra.mxu0 %v1265
      %1435 = vmatpush.bf16.msra.mxu0 %v1264
      %1436 = vmatpush.bf16.msra.mxu0 %v1263
      %1437 = vmatmul.bf16.gmra.mxu0 %v755
      %v1438 = vpop.f32.mrf.mxu0
      %v1439 = vadd.f32 %v1420, %v1438
      %v1440 = vpop.f32.mrf.mxu0
      %v1441 = vadd.f32 %v1422, %v1440
      %1442 = vmatmul.bf16.gmra.mxu0 %v756
      %v1443 = vpop.f32.mrf.mxu0
      %v1444 = vadd.f32 %v1425, %v1443
      %v1445 = vpop.f32.mrf.mxu0
      %v1446 = vadd.f32 %v1427, %v1445
      %1447 = vdwg.mxu0
      %1448 = vmatpush.bf16.msra.mxu0 %v1278
      %1449 = vmatpush.bf16.msra.mxu0 %v1277
      %1450 = vmatpush.bf16.msra.mxu0 %v1276
      %1451 = vmatpush.bf16.msra.mxu0 %v1275
      %1452 = vmatpush.bf16.msra.mxu0 %v1274
      %1453 = vmatpush.bf16.msra.mxu0 %v1273
      %1454 = vmatpush.bf16.msra.mxu0 %v1272
      %1455 = vmatpush.bf16.msra.mxu0 %v1271
      %1456 = vmatmul.bf16.gmra.mxu0 %v767
      %v1457 = vpop.f32.mrf.mxu0
      %v1458 = vadd.f32 %v1439, %v1457
      %v1459 = vpop.f32.mrf.mxu0
      %v1460 = vadd.f32 %v1441, %v1459
      %1461 = vmatmul.bf16.gmra.mxu0 %v768
      %v1462 = vpop.f32.mrf.mxu0
      %v1463 = vadd.f32 %v1444, %v1462
      %v1464 = vpop.f32.mrf.mxu0
      %v1465 = vadd.f32 %v1446, %v1464
      %1466 = vdwg.mxu0
      %1467 = vmatpush.bf16.msra.mxu0 %v1286
      %1468 = vmatpush.bf16.msra.mxu0 %v1285
      %1469 = vmatpush.bf16.msra.mxu0 %v1284
      %1470 = vmatpush.bf16.msra.mxu0 %v1283
      %1471 = vmatpush.bf16.msra.mxu0 %v1282
      %1472 = vmatpush.bf16.msra.mxu0 %v1281
      %1473 = vmatpush.bf16.msra.mxu0 %v1280
      %1474 = vmatpush.bf16.msra.mxu0 %v1279
      %1475 = vmatmul.bf16.gmra.mxu0 %v775
      %v1476 = vpop.f32.mrf.mxu0
      %v1477 = vadd.f32 %v1458, %v1476
      %v1478 = vpop.f32.mrf.mxu0
      %v1479 = vadd.f32 %v1460, %v1478
      %1480 = vmatmul.bf16.gmra.mxu0 %v776
      %v1481 = vpop.f32.mrf.mxu0
      %v1482 = vadd.f32 %v1463, %v1481
      %v1483 = vpop.f32.mrf.mxu0
      %v1484 = vadd.f32 %v1465, %v1483
      %1485 = vdwg.mxu0
      %1486 = vmatpush.bf16.msra.mxu0 %v1294
      %1487 = vmatpush.bf16.msra.mxu0 %v1293
      %1488 = vmatpush.bf16.msra.mxu0 %v1292
      %1489 = vmatpush.bf16.msra.mxu0 %v1291
      %1490 = vmatpush.bf16.msra.mxu0 %v1290
      %1491 = vmatpush.bf16.msra.mxu0 %v1289
      %1492 = vmatpush.bf16.msra.mxu0 %v1288
      %1493 = vmatpush.bf16.msra.mxu0 %v1287
      %1494 = vmatmul.bf16.gmra.mxu0 %v783
      %v1495 = vpop.f32.mrf.mxu0
      %v1496 = vadd.f32 %v1477, %v1495
      %v1497 = vpop.f32.mrf.mxu0
      %v1498 = vadd.f32 %v1479, %v1497
      %1499 = vmatmul.bf16.gmra.mxu0 %v784
      %v1500 = vpop.f32.mrf.mxu0
      %v1501 = vadd.f32 %v1482, %v1500
      %v1502 = vpop.f32.mrf.mxu0
      %v1503 = vadd.f32 %v1484, %v1502
      %1504 = vdwg.mxu0
      %1505 = vmatpush.bf16.msra.mxu0 %v1302
      %1506 = vmatpush.bf16.msra.mxu0 %v1301
      %1507 = vmatpush.bf16.msra.mxu0 %v1300
      %1508 = vmatpush.bf16.msra.mxu0 %v1299
      %1509 = vmatpush.bf16.msra.mxu0 %v1298
      %1510 = vmatpush.bf16.msra.mxu0 %v1297
      %1511 = vmatpush.bf16.msra.mxu0 %v1296
      %1512 = vmatpush.bf16.msra.mxu0 %v1295
      %1513 = vmatmul.bf16.gmra.mxu0 %v795
      %v1514 = vpop.f32.mrf.mxu0
      %v1515 = vadd.f32 %v1496, %v1514
      %v1516 = vpop.f32.mrf.mxu0
      %v1517 = vadd.f32 %v1498, %v1516
      %1518 = vmatmul.bf16.gmra.mxu0 %v796
      %v1519 = vpop.f32.mrf.mxu0
      %v1520 = vadd.f32 %v1501, %v1519
      %v1521 = vpop.f32.mrf.mxu0
      %v1522 = vadd.f32 %v1503, %v1521
      %1523 = vdwg.mxu0
      %1524 = vmatpush.bf16.msra.mxu0 %v1310
      %1525 = vmatpush.bf16.msra.mxu0 %v1309
      %1526 = vmatpush.bf16.msra.mxu0 %v1308
      %1527 = vmatpush.bf16.msra.mxu0 %v1307
      %1528 = vmatpush.bf16.msra.mxu0 %v1306
      %1529 = vmatpush.bf16.msra.mxu0 %v1305
      %1530 = vmatpush.bf16.msra.mxu0 %v1304
      %1531 = vmatpush.bf16.msra.mxu0 %v1303
      %1532 = vmatmul.bf16.gmra.mxu0 %v803
      %v1533 = vpop.f32.mrf.mxu0
      %v1534 = vadd.f32 %v1515, %v1533
      %v1535 = vpop.f32.mrf.mxu0
      %v1536 = vadd.f32 %v1517, %v1535
      %1537 = vmatmul.bf16.gmra.mxu0 %v804
      %v1538 = vpop.f32.mrf.mxu0
      %v1539 = vadd.f32 %v1520, %v1538
      %v1540 = vpop.f32.mrf.mxu0
      %v1541 = vadd.f32 %v1522, %v1540
      %1542 = vdwg.mxu0
      %1543 = vmatpush.bf16.msra.mxu0 %v1318
      %1544 = vmatpush.bf16.msra.mxu0 %v1317
      %1545 = vmatpush.bf16.msra.mxu0 %v1316
      %1546 = vmatpush.bf16.msra.mxu0 %v1315
      %1547 = vmatpush.bf16.msra.mxu0 %v1314
      %1548 = vmatpush.bf16.msra.mxu0 %v1313
      %1549 = vmatpush.bf16.msra.mxu0 %v1312
      %1550 = vmatpush.bf16.msra.mxu0 %v1311
      %1551 = vmatmul.bf16.gmra.mxu0 %v811
      %v1552 = vpop.f32.mrf.mxu0
      %v1553 = vadd.f32 %v1534, %v1552
      %v1554 = vpop.f32.mrf.mxu0
      %v1555 = vadd.f32 %v1536, %v1554
      %1556 = vmatmul.bf16.gmra.mxu0 %v812
      %v1557 = vpop.f32.mrf.mxu0
      %v1558 = vadd.f32 %v1539, %v1557
      %v1559 = vpop.f32.mrf.mxu0
      %v1560 = vadd.f32 %v1541, %v1559
      %1561 = vdwg.mxu0
      %v1562 = vpack.c.bf16 %v1553, %v1553
      %v1563 = vpack.c.bf16 %v1555, %v1555
      %v1564 = vpack.c.bf16 %v1558, %v1558
      %v1565 = vpack.c.bf16 %v1560, %v1560
      %vm1566 = vcmask 519168
      %1567 = vst.msk [vmem:[%s219] sm:$0xf] %vm1566, %v1562
      %1568 = vst.msk [vmem:[%s219 + $0x4] sm:$0xf] %vm1566, %v1563
      %1569 = vst.msk [vmem:[%s219 + $0x8] sm:$0xf] %vm1566, %v1564
      %1570 = vst.msk [vmem:[%s219 + $0xc] sm:$0xf] %vm1566, %v1565
      %s1571 = smul.u32 4, %s20
      %p1572 = scmp.lt.s32.totalorder %s19, 1
      %s1573 = scalar_select %p1572, %s19, 1
      %p1574 = scmp.lt.s32.totalorder %s1571, 7
      %s1575 = scalar_select %p1574, %s1571, 7
      %s1576 = smul.addr %s1573, 8
      %s1577 = sadd.s32 %s1575, %s1576
      %s1578 = smul.addr %s1577, 4
      %s1579 = scalar_lea.vmem %s4, %s1578
      // Predicated region
      $region41: #{_lambda_.14} parent=35 // pred_check
        %p1580 = pneg %p136
      $region42: #{_lambda_.14} parent=35 // pred_check_branch
        %1582 = sbr.rel (%p1580) target = $region44
      $region43: #{_lambda_.14} parent=35 // pred_region
        %s1583 = smul.u32 4, %s20
      $region44: #{_lambda_.14} parent=35 // pred_fallthru
        _
    $region36: #{_lambda_.14} parent=5 // pred_fallthru
      _
    %p1584 = scmp.le.s32.totalorder 2, %s10
    // Predicated region
    $region45: #{_lambda_.14} parent=5 // pred_check
      %p1585 = pneg %p1584
    $region46: #{_lambda_.14} parent=5 // pred_check_branch
      %1587 = sbr.rel (%p1585) target = $region48
    $region47: #{_lambda_.14} parent=5 // pred_region
      %s1588 = ssub.s32 %s10, 2
      // Predicated region
      $region49: #{_lambda_.14} parent=47 // pred_check
        %p1589 = pneg %p142
      $region50: #{_lambda_.14} parent=47 // pred_check_branch
        %1591 = sbr.rel (%p1589) target = $region52
      $region51: #{_lambda_.14} parent=47 // pred_region
        %s1592 = smul.u32 4, %s22
        %p1593 = scmp.lt.s32.totalorder %s21, 1
        %s1594 = scalar_select %p1593, %s21, 1
        %p1595 = scmp.lt.s32.totalorder %s1592, 7
        %s1596 = scalar_select %p1595, %s1592, 7
        %s1597 = smul.addr %s1594, 8
        %s1598 = sadd.s32 %s1596, %s1597
        %s1599 = smul.addr %s1598, 4
        %s1600 = scalar_lea.vmem %s4, %s1599
      $region52: #{_lambda_.14} parent=47 // pred_fallthru
        _
    $region48: #{_lambda_.14} parent=5 // pred_fallthru
      _
  $region6: #{_lambda_.14} parent=0 // loop_footer
    %s14 = sadd.s32 1, %s10
  $region7: #{_lambda_.14} parent=0 // loop_footer_branch
    %9 = sbr.rel target = $region3
  $region8: #{_lambda_.14} parent=0 // loop_exit
    _

// kernel: _lambda_.15
$region0: #{_lambda_.15}
  #allocation0 [shape = 'u32[]', space=smem, size = 0x4, offset = 0x4, fixed_abs, tag = 'smem constant byte address 0x4 - core index']
  #allocation1 [shape = 'u32[72,128]{1,0:T(1,128)}', space=vmem, size = 0x9000, scoped, tag = 'internal scratch']
  #allocation2 [shape = 'bf16[10,10,128]{2,1,0:T(8,128)(2,1)}', space=vmem, size = 0xa000, scoped, tag = 'scratch operand']
  %s0 = inlined_call_operand.vmem [shape: bf16[2,8,8,128], index: 0, kind: input, shape index: {}]
  %s1 = inlined_call_operand.vmem [shape: f32[1,128], index: 1, kind: input, shape index: {}]
  %s2 = inlined_call_operand.vmem [shape: f32[1,128], index: 2, kind: input, shape index: {}]
  %s3 = inlined_call_operand.vmem [shape: bf16[1152,64], index: 3, kind: input, shape index: {}]
  %s4 = inlined_call_operand.vmem [shape: bf16[2,8,8,64], index: 4, kind: input, shape index: {}]
  %s5 = inlined_call_operand.vmem [shape: bf16[2,8,8,64], index: 5, kind: output, shape index: {}]
  %s6 = sld [smem:[#allocation0]]
  $region57: #{_lambda_.15} parent=0
    _
  %s8 = ssub.s32 1, %s6
  %s9 = scalar_select 0, %s8, %s6
  loop: start=0, step=1, limit=6
  $region2: #{_lambda_.15} parent=0 // loop_pre_header
    _
  $region3: #{_lambda_.15} parent=0 // loop_header
    %s11 = sphi 0, %s15
    %p12 = scmp.ge.s32.totalorder %s11, 6
    %s18 = sphi 0, %s30
    %s19 = sphi 0, %s26
    %s20 = sphi 0, %s18
    %s21 = sphi 0, %s19
    %s22 = sphi 0, %s20
    %s23 = sphi 0, %s21
    %s33 = sphi 0, %s35
    %s36 = sphi 0, %s33
    %s37 = sphi 0, %s36
    %s53 = sphi 0, %s37
    %s57 = sphi 0, %s57
    %s59 = sphi 0, %s57
    %s60 = sphi 0, %s59
    %s74 = sphi 0, %s60
    %s78 = sphi 0, %s78
    %s80 = sphi 0, %s78
    %s81 = sphi 0, %s80
    %s95 = sphi 0, %s81
    %s99 = sphi 0, %s99
    %s101 = sphi 0, %s99
    %s102 = sphi 0, %s101
    %s116 = sphi 0, %s102
    %s124 = sphi 0, %s126
    %s127 = sphi 0, %s124
    %s128 = sphi 0, %s127
    %s144 = sphi 0, %s128
    %s152 = sphi 0, %s154
    %s155 = sphi 0, %s152
    %s156 = sphi 0, %s155
    %s172 = sphi 0, %s156
  $region4: #{_lambda_.15} parent=0 // loop_header_branch
    %14 = sbr.rel (%p12) target = $region8
  $region5: #{_lambda_.15} parent=0 // loop_body
    %s16 = ssub.s32 %s11, 1
    %s17 = ssub.s32 %s11, 2
    %s24 = sadd.s32 1, %s19
    %p25 = scmp.ge.s32.totalorder %s24, 2
    %s26 = scalar_select %p25, 0, %s24
    %s27 = sadd.s32 1, %s18
    %s28 = scalar_select %p25, %s27, %s18
    %p29 = scmp.ge.s32.totalorder %s28, 2
    %s30 = scalar_select %p29, 0, %s28
    %s31 = ssub.s32 %s18, %s30
    %p32 = scmp.eq.s32.totalorder %s31, 0
    %s34 = sadd.s32 %s33, 1
    %s35 = scalar_select %p32, %s33, %s34
    %p38 = pneg %p32
    %p39 = scmp.eq.s32.totalorder %s11, 3
    %p40 = por %p38, %p39
    %p41 = scmp.ne.s32.totalorder %s33, %s36
    %p42 = scmp.eq.s32.totalorder %s11, 0
    %p43 = por %p41, %p42
    %p44 = scmp.ne.s32.totalorder %s33, %s36
    %p45 = scmp.eq.s32.totalorder %s16, 3
    %p46 = por %p44, %p45
    %p47 = scmp.ne.s32.totalorder %s36, %s37
    %p48 = scmp.eq.s32.totalorder %s16, 0
    %p49 = por %p47, %p48
    %p50 = scmp.ne.s32.totalorder %s36, %s37
    %p51 = scmp.eq.s32.totalorder %s17, 3
    %p52 = por %p50, %p51
    %p54 = scmp.ne.s32.totalorder %s37, %s53
    %p55 = scmp.eq.s32.totalorder %s17, 0
    %p56 = por %p54, %p55
    %s58 = sadd.s32 %s57, 1
    %p61 = scmp.eq.s32.totalorder %s11, 3
    %p62 = scmp.ne.s32.totalorder %s57, %s59
    %p63 = scmp.eq.s32.totalorder %s11, 0
    %p64 = por %p62, %p63
    %p65 = scmp.ne.s32.totalorder %s57, %s59
    %p66 = scmp.eq.s32.totalorder %s16, 3
    %p67 = por %p65, %p66
    %p68 = scmp.ne.s32.totalorder %s59, %s60
    %p69 = scmp.eq.s32.totalorder %s16, 0
    %p70 = por %p68, %p69
    %p71 = scmp.ne.s32.totalorder %s59, %s60
    %p72 = scmp.eq.s32.totalorder %s17, 3
    %p73 = por %p71, %p72
    %p75 = scmp.ne.s32.totalorder %s60, %s74
    %p76 = scmp.eq.s32.totalorder %s17, 0
    %p77 = por %p75, %p76
    %s79 = sadd.s32 %s78, 1
    %p82 = scmp.eq.s32.totalorder %s11, 3
    %p83 = scmp.ne.s32.totalorder %s78, %s80
    %p84 = scmp.eq.s32.totalorder %s11, 0
    %p85 = por %p83, %p84
    %p86 = scmp.ne.s32.totalorder %s78, %s80
    %p87 = scmp.eq.s32.totalorder %s16, 3
    %p88 = por %p86, %p87
    %p89 = scmp.ne.s32.totalorder %s80, %s81
    %p90 = scmp.eq.s32.totalorder %s16, 0
    %p91 = por %p89, %p90
    %p92 = scmp.ne.s32.totalorder %s80, %s81
    %p93 = scmp.eq.s32.totalorder %s17, 3
    %p94 = por %p92, %p93
    %p96 = scmp.ne.s32.totalorder %s81, %s95
    %p97 = scmp.eq.s32.totalorder %s17, 0
    %p98 = por %p96, %p97
    %s100 = sadd.s32 %s99, 1
    %p103 = scmp.eq.s32.totalorder %s11, 3
    %p104 = scmp.ne.s32.totalorder %s99, %s101
    %p105 = scmp.eq.s32.totalorder %s11, 0
    %p106 = por %p104, %p105
    %p107 = scmp.ne.s32.totalorder %s99, %s101
    %p108 = scmp.eq.s32.totalorder %s16, 3
    %p109 = por %p107, %p108
    %p110 = scmp.ne.s32.totalorder %s101, %s102
    %p111 = scmp.eq.s32.totalorder %s16, 0
    %p112 = por %p110, %p111
    %p113 = scmp.ne.s32.totalorder %s101, %s102
    %p114 = scmp.eq.s32.totalorder %s17, 3
    %p115 = por %p113, %p114
    %p117 = scmp.ne.s32.totalorder %s102, %s116
    %p118 = scmp.eq.s32.totalorder %s17, 0
    %p119 = por %p117, %p118
    %s120 = ssub.s32 %s18, %s30
    %s121 = ssub.s32 %s19, %s26
    %s122 = sor.u32 %s120, %s121
    %p123 = scmp.eq.s32.totalorder %s122, 0
    %s125 = sadd.s32 %s124, 1
    %s126 = scalar_select %p123, %s124, %s125
    %p129 = pneg %p123
    %p130 = scmp.eq.s32.totalorder %s11, 3
    %p131 = por %p129, %p130
    %p132 = scmp.ne.s32.totalorder %s124, %s127
    %p133 = scmp.eq.s32.totalorder %s11, 0
    %p134 = por %p132, %p133
    %p135 = scmp.ne.s32.totalorder %s124, %s127
    %p136 = scmp.eq.s32.totalorder %s16, 3
    %p137 = por %p135, %p136
    %p138 = scmp.ne.s32.totalorder %s127, %s128
    %p139 = scmp.eq.s32.totalorder %s16, 0
    %p140 = por %p138, %p139
    %p141 = scmp.ne.s32.totalorder %s127, %s128
    %p142 = scmp.eq.s32.totalorder %s17, 3
    %p143 = por %p141, %p142
    %p145 = scmp.ne.s32.totalorder %s128, %s144
    %p146 = scmp.eq.s32.totalorder %s17, 0
    %p147 = por %p145, %p146
    %s148 = ssub.s32 %s18, %s30
    %s149 = ssub.s32 %s19, %s26
    %s150 = sor.u32 %s148, %s149
    %p151 = scmp.eq.s32.totalorder %s150, 0
    %s153 = sadd.s32 %s152, 1
    %s154 = scalar_select %p151, %s152, %s153
    %p157 = pneg %p151
    %p158 = scmp.eq.s32.totalorder %s11, 3
    %p159 = por %p157, %p158
    %p160 = scmp.ne.s32.totalorder %s152, %s155
    %p161 = scmp.eq.s32.totalorder %s11, 0
    %p162 = por %p160, %p161
    %p163 = scmp.ne.s32.totalorder %s152, %s155
    %p164 = scmp.eq.s32.totalorder %s16, 3
    %p165 = por %p163, %p164
    %p166 = scmp.ne.s32.totalorder %s155, %s156
    %p167 = scmp.eq.s32.totalorder %s16, 0
    %p168 = por %p166, %p167
    %p169 = scmp.ne.s32.totalorder %s155, %s156
    %p170 = scmp.eq.s32.totalorder %s17, 3
    %p171 = por %p169, %p170
    %p173 = scmp.ne.s32.totalorder %s156, %s172
    %p174 = scmp.eq.s32.totalorder %s17, 0
    %p175 = por %p173, %p174
    %p176 = scmp.le.s32.totalorder 1, %s11
    %p177 = scmp.lt.s32.totalorder %s11, 5
    %p178 = pnand %p176, %p177
    %p179 = pneg %p178
    // Predicated region
    $region9: #{_lambda_.15} parent=5 // pred_check
      _
    $region10: #{_lambda_.15} parent=5 // pred_check_branch
      %181 = sbr.rel (%p178) target = $region12
    $region11: #{_lambda_.15} parent=5 // pred_region
      %s182 = ssub.s32 %s11, 1
      // Predicated region
      $region13: #{_lambda_.15} parent=11 // pred_check
        %p183 = pneg %p70
      $region14: #{_lambda_.15} parent=11 // pred_check_branch
        %185 = sbr.rel (%p183) target = $region16
      $region15: #{_lambda_.15} parent=11 // pred_region
        _
      $region16: #{_lambda_.15} parent=11 // pred_fallthru
        _
      // Predicated region
      $region17: #{_lambda_.15} parent=11 // pred_check
        %p186 = pneg %p91
      $region18: #{_lambda_.15} parent=11 // pred_check_branch
        %188 = sbr.rel (%p186) target = $region20
      $region19: #{_lambda_.15} parent=11 // pred_region
        _
      $region20: #{_lambda_.15} parent=11 // pred_fallthru
        _
      // Predicated region
      $region21: #{_lambda_.15} parent=11 // pred_check
        %p189 = pneg %p112
      $region22: #{_lambda_.15} parent=11 // pred_check_branch
        %191 = sbr.rel (%p189) target = $region24
      $region23: #{_lambda_.15} parent=11 // pred_region
        _
      $region24: #{_lambda_.15} parent=11 // pred_fallthru
        _
    $region12: #{_lambda_.15} parent=5 // pred_fallthru
      _
    %p192 = scmp.lt.s32.totalorder %s11, 4
    // Predicated region
    $region25: #{_lambda_.15} parent=5 // pred_check
      %p193 = pneg %p192
    $region26: #{_lambda_.15} parent=5 // pred_check_branch
      %195 = sbr.rel (%p193) target = $region28
    $region27: #{_lambda_.15} parent=5 // pred_region
      // Predicated region
      $region29: #{_lambda_.15} parent=27 // pred_check
        %p196 = pneg %p43
      $region30: #{_lambda_.15} parent=27 // pred_check_branch
        %198 = sbr.rel (%p196) target = $region32
      $region31: #{_lambda_.15} parent=27 // pred_region
        %p199 = scmp.lt.s32.totalorder %s18, 1
        %s200 = scalar_select %p199, %s18, 1
        %s201 = smul.addr %s200, 8
        %s202 = smul.addr %s201, 4
        %s203 = scalar_lea.vmem %s0, %s202
      $region32: #{_lambda_.15} parent=27 // pred_fallthru
        _
      // Predicated region
      $region33: #{_lambda_.15} parent=27 // pred_check
        %p204 = pneg %p134
      $region34: #{_lambda_.15} parent=27 // pred_check_branch
        %206 = sbr.rel (%p204) target = $region36
      $region35: #{_lambda_.15} parent=27 // pred_region
        %s207 = smul.u32 4, %s19
        %p208 = scmp.lt.s32.totalorder %s18, 1
        %s209 = scalar_select %p208, %s18, 1
        %p210 = scmp.lt.s32.totalorder %s207, 7
        %s211 = scalar_select %p210, %s207, 7
        %s212 = smul.addr %s209, 8
        %s213 = sadd.s32 %s211, %s212
        %s214 = smul.addr %s213, 4
        %s215 = scalar_lea.vmem %s4, %s214
        %s216 = smul.u32 4, %s19
      $region36: #{_lambda_.15} parent=27 // pred_fallthru
        _
    $region28: #{_lambda_.15} parent=5 // pred_fallthru
      _
    %p217 = scmp.le.s32.totalorder 1, %s11
    %p218 = scmp.lt.s32.totalorder %s11, 5
    %p219 = pnand %p217, %p218
    %p220 = pneg %p219
    // Predicated region
    $region37: #{_lambda_.15} parent=5 // pred_check
      _
    $region38: #{_lambda_.15} parent=5 // pred_check_branch
      %222 = sbr.rel (%p219) target = $region40
    $region39: #{_lambda_.15} parent=5 // pred_region
      %s223 = ssub.s32 %s11, 1
      %p224 = scmp.lt.s32.totalorder %s20, 1
      %s225 = scalar_select %p224, %s20, 1
      %s226 = smul.addr %s225, 8
      %s227 = smul.addr %s226, 4
      %s228 = scalar_lea.vmem %s0, %s227
      %p229 = pneg %p49
      %p230 = pneg %p46
      %p231 = pneg %p70
      %p232 = pneg %p67
      %p233 = pneg %p91
      %p234 = pneg %p88
      %p235 = pneg %p112
      %p236 = pneg %p109
      %s237 = smul.u32 4, %s21
      %p238 = scmp.lt.s32.totalorder %s20, 1
      %s239 = scalar_select %p238, %s20, 1
      %p240 = scmp.lt.s32.totalorder %s237, 7
      %s241 = scalar_select %p240, %s237, 7
      %s242 = smul.addr %s239, 8
      %s243 = sadd.s32 %s241, %s242
      %s244 = smul.addr %s243, 4
      %s245 = scalar_lea.vmem %s4, %s244
      %p246 = pneg %p140
      %p247 = pneg %p137
      %p248 = pneg %p168
      %p249 = pneg %p165
      %s250 = smul.u32 4, %s21
      %p251 = scmp.lt.s32.totalorder %s20, 1
      %s252 = scalar_select %p251, %s20, 1
      %p253 = scmp.lt.s32.totalorder %s250, 7
      %s254 = scalar_select %p253, %s250, 7
      %s255 = smul.addr %s252, 8
      %s256 = sadd.s32 %s254, %s255
      %s257 = smul.addr %s256, 4
      %s258 = scalar_lea.vmem %s5, %s257
      %p259 = scmp.lt.s32.totalorder %s20, 1
      %s260 = scalar_select %p259, %s20, 1
      %s261 = smul.addr %s260, 8
      %s262 = smul.addr %s261, 4
      %s263 = scalar_lea.vmem %s0, %s262
      %s264 = smul.u32 4, %s21
      %p265 = scmp.lt.s32.totalorder %s20, 1
      %s266 = scalar_select %p265, %s20, 1
      %p267 = scmp.lt.s32.totalorder %s264, 7
      %s268 = scalar_select %p267, %s264, 7
      %s269 = smul.addr %s266, 8
      %s270 = sadd.s32 %s268, %s269
      %s271 = smul.addr %s270, 4
      %s272 = scalar_lea.vmem %s4, %s271
      %s273 = smul.u32 4, %s21
      %s274 = smul.u32 4, %s21
      %p275 = scmp.lt.s32.totalorder %s20, 1
      %s276 = scalar_select %p275, %s20, 1
      %p277 = scmp.lt.s32.totalorder %s274, 7
      %s278 = scalar_select %p277, %s274, 7
      %s279 = smul.addr %s276, 8
      %s280 = sadd.s32 %s278, %s279
      %s281 = smul.addr %s280, 4
      %s282 = scalar_lea.vmem %s5, %s281
      %s283 = smul.u32 4, %s21
      %p285 = scmp.eq.s32.totalorder %s21, 0
      // Predicated region
      $region41: #{_lambda_.15} parent=39 // pred_check
        %p286 = pneg %p285
      $region42: #{_lambda_.15} parent=39 // pred_check_branch
        %288 = sbr.rel (%p286) target = $region44
      $region43: #{_lambda_.15} parent=39 // pred_region
        %289 = vst [vmem:[#allocation2] sm:$0xf] 0
        %290 = vst [vmem:[#allocation2 + $0x4] sm:$0x1] 0
        %291 = vst [vmem:[#allocation2 + $0x8] sm:$0xf] 0
        %292 = vst [vmem:[#allocation2 + $0xc] sm:$0x1] 0
        %293 = vst [vmem:[#allocation2 + $0x10] sm:$0xf] 0
        %294 = vst [vmem:[#allocation2 + $0x14] sm:$0x1] 0
        %295 = vst [vmem:[#allocation2 + $0x18] sm:$0xf] 0
        %296 = vst [vmem:[#allocation2 + $0x1c] sm:$0x1] 0
        %297 = vst [vmem:[#allocation2 + $0x20] sm:$0xf] 0
        %298 = vst [vmem:[#allocation2 + $0x24] sm:$0x1] 0
        %299 = vst [vmem:[#allocation2 + $0x28] sm:$0xf] 0
        %300 = vst [vmem:[#allocation2 + $0x2c] sm:$0x1] 0
        %301 = vst [vmem:[#allocation2 + $0x30] sm:$0xf] 0
        %302 = vst [vmem:[#allocation2 + $0x34] sm:$0x1] 0
        %303 = vst [vmem:[#allocation2 + $0x38] sm:$0xf] 0
        %304 = vst [vmem:[#allocation2 + $0x3c] sm:$0x1] 0
        %305 = vst [vmem:[#allocation2 + $0x40] sm:$0xf] 0
        %306 = vst [vmem:[#allocation2 + $0x44] sm:$0x1] 0
        %307 = vst [vmem:[#allocation2 + $0x48] sm:$0xf] 0
        %308 = vst [vmem:[#allocation2 + $0x4c] sm:$0x1] 0
        %v309 = vld [vmem:[%s263] sm:$0xf]
        %v310 = vld [vmem:[%s263 + $0x4] sm:$0xf]
        %v311 = vld [vmem:[%s263 + $0x8] sm:$0xf]
        %v312 = vld [vmem:[%s263 + $0xc] sm:$0xf]
        %v313 = vld [vmem:[%s263 + $0x10] sm:$0xf]
        %v314 = vld [vmem:[%s263 + $0x14] sm:$0xf]
        %v315 = vld [vmem:[%s263 + $0x18] sm:$0xf]
        %v316 = vld [vmem:[%s263 + $0x1c] sm:$0xf]
        %v317 = vunpack.c.l.bf16 %v309
        %v318 = vunpack.c.l.bf16 %v310
        %v319 = vunpack.c.l.bf16 %v311
        %v320 = vunpack.c.l.bf16 %v312
        %v321 = vunpack.c.l.bf16 %v313
        %v322 = vunpack.c.l.bf16 %v314
        %v323 = vunpack.c.l.bf16 %v315
        %v324 = vunpack.c.l.bf16 %v316
        %v325 = vld [vmem:[%s1] sm:$0x1]
        %v327 = vperm.slane %v325, 0
        %v329 = vmul.f32 %v317, %v327
        %v330 = vmul.f32 %v318, %v327
        %v331 = vmul.f32 %v319, %v327
        %v332 = vmul.f32 %v320, %v327
        %v333 = vmul.f32 %v321, %v327
        %v334 = vmul.f32 %v322, %v327
        %v335 = vmul.f32 %v323, %v327
        %v336 = vmul.f32 %v324, %v327
        %v337 = vld [vmem:[%s2] sm:$0x1]
        %v339 = vperm.slane %v337, 0
        %v341 = vadd.f32 %v329, %v339
        %v342 = vadd.f32 %v330, %v339
        %v343 = vadd.f32 %v331, %v339
        %v344 = vadd.f32 %v332, %v339
        %v345 = vadd.f32 %v333, %v339
        %v346 = vadd.f32 %v334, %v339
        %v347 = vadd.f32 %v335, %v339
        %v348 = vadd.f32 %v336, %v339
        %v349 = vmax.f32 %v341, 0.0
        %v350 = vmax.f32 %v342, 0.0
        %v351 = vmax.f32 %v343, 0.0
        %v352 = vmax.f32 %v344, 0.0
        %v353 = vmax.f32 %v345, 0.0
        %v354 = vmax.f32 %v346, 0.0
        %v355 = vmax.f32 %v347, 0.0
        %v356 = vmax.f32 %v348, 0.0
        %v357 = vpack.c.bf16 %v349, %v349
        %v358 = vpack.c.bf16 %v350, %v350
        %v359 = vpack.c.bf16 %v351, %v351
        %v360 = vpack.c.bf16 %v352, %v352
        %v361 = vpack.c.bf16 %v353, %v353
        %v362 = vpack.c.bf16 %v354, %v354
        %v363 = vpack.c.bf16 %v355, %v355
        %v364 = vpack.c.bf16 %v356, %v356
        %v366 = vshrl.u32 %v357, 16
        %v368 = vrot.slane %v366, 7
        %v369 = vshll.u32 %v357, 16
        %v371 = vor.u32 %v368, %v369
        %v372 = vrot.slane %v368, 4
        %v374 = vshrl.u32 %v358, 16
        %v376 = vrot.slane %v374, 7
        %v377 = vshll.u32 %v358, 16
        %v379 = vor.u32 %v376, %v377
        %v380 = vrot.slane %v376, 4
        %v382 = vshrl.u32 %v359, 16
        %v384 = vrot.slane %v382, 7
        %v385 = vshll.u32 %v359, 16
        %v387 = vor.u32 %v384, %v385
        %v388 = vrot.slane %v384, 4
        %v390 = vshrl.u32 %v360, 16
        %v392 = vrot.slane %v390, 7
        %v393 = vshll.u32 %v360, 16
        %v395 = vor.u32 %v392, %v393
        %v396 = vrot.slane %v392, 4
        %v398 = vshrl.u32 %v361, 16
        %v400 = vrot.slane %v398, 7
        %v401 = vshll.u32 %v361, 16
        %v403 = vor.u32 %v400, %v401
        %v404 = vrot.slane %v400, 4
        %v406 = vshrl.u32 %v362, 16
        %v408 = vrot.slane %v406, 7
        %v409 = vshll.u32 %v362, 16
        %v411 = vor.u32 %v408, %v409
        %v412 = vrot.slane %v408, 4
        %v414 = vshrl.u32 %v363, 16
        %v416 = vrot.slane %v414, 7
        %v417 = vshll.u32 %v363, 16
        %v419 = vor.u32 %v416, %v417
        %v420 = vrot.slane %v416, 4
        %v422 = vshrl.u32 %v364, 16
        %v424 = vrot.slane %v422, 7
        %v425 = vshll.u32 %v364, 16
        %v427 = vor.u32 %v424, %v425
        %v428 = vrot.slane %v424, 4
        %s445 = scalar_lea.vmem [#allocation2], 8
        %vm446 = vcmask 1043456
        %vm447 = vsmask.f32 7938
        %vm448 = vmand %vm446, %vm447
        %v449 = vld [vmem:[%s445] sm:$0xf]
        %v450 = vsel %vm448, %v371, %v449
        %451 = vst [vmem:[%s445] sm:$0xf] %v450
        %vm452 = vcmask 1040384
        %vm453 = vsmask.f32 256
        %vm454 = vmand %vm452, %vm453
        %v455 = vld [vmem:[%s445 + $0x4] sm:$0x1]
        %v456 = vsel %vm454, %v372, %v455
        %457 = vst [vmem:[%s445 + $0x4] sm:$0x1] %v456
        %v458 = vld [vmem:[%s445 + $0x8] sm:$0xf]
        %v459 = vsel %vm448, %v379, %v458
        %460 = vst [vmem:[%s445 + $0x8] sm:$0xf] %v459
        %v461 = vld [vmem:[%s445 + $0xc] sm:$0x1]
        %v462 = vsel %vm454, %v380, %v461
        %463 = vst [vmem:[%s445 + $0xc] sm:$0x1] %v462
        %v464 = vld [vmem:[%s445 + $0x10] sm:$0xf]
        %v465 = vsel %vm448, %v387, %v464
        %466 = vst [vmem:[%s445 + $0x10] sm:$0xf] %v465
        %v467 = vld [vmem:[%s445 + $0x14] sm:$0x1]
        %v468 = vsel %vm454, %v388, %v467
        %469 = vst [vmem:[%s445 + $0x14] sm:$0x1] %v468
        %v470 = vld [vmem:[%s445 + $0x18] sm:$0xf]
        %v471 = vsel %vm448, %v395, %v470
        %472 = vst [vmem:[%s445 + $0x18] sm:$0xf] %v471
        %v473 = vld [vmem:[%s445 + $0x1c] sm:$0x1]
        %v474 = vsel %vm454, %v396, %v473
        %475 = vst [vmem:[%s445 + $0x1c] sm:$0x1] %v474
        %v476 = vld [vmem:[%s445 + $0x20] sm:$0xf]
        %v477 = vsel %vm448, %v403, %v476
        %478 = vst [vmem:[%s445 + $0x20] sm:$0xf] %v477
        %v479 = vld [vmem:[%s445 + $0x24] sm:$0x1]
        %v480 = vsel %vm454, %v404, %v479
        %481 = vst [vmem:[%s445 + $0x24] sm:$0x1] %v480
        %v482 = vld [vmem:[%s445 + $0x28] sm:$0xf]
        %v483 = vsel %vm448, %v411, %v482
        %484 = vst [vmem:[%s445 + $0x28] sm:$0xf] %v483
        %v485 = vld [vmem:[%s445 + $0x2c] sm:$0x1]
        %v486 = vsel %vm454, %v412, %v485
        %487 = vst [vmem:[%s445 + $0x2c] sm:$0x1] %v486
        %v488 = vld [vmem:[%s445 + $0x30] sm:$0xf]
        %v489 = vsel %vm448, %v419, %v488
        %490 = vst [vmem:[%s445 + $0x30] sm:$0xf] %v489
        %v491 = vld [vmem:[%s445 + $0x34] sm:$0x1]
        %v492 = vsel %vm454, %v420, %v491
        %493 = vst [vmem:[%s445 + $0x34] sm:$0x1] %v492
        %v494 = vld [vmem:[%s445 + $0x38] sm:$0xf]
        %v495 = vsel %vm448, %v427, %v494
        %496 = vst [vmem:[%s445 + $0x38] sm:$0xf] %v495
        %v497 = vld [vmem:[%s445 + $0x3c] sm:$0x1]
        %v498 = vsel %vm454, %v428, %v497
        %499 = vst [vmem:[%s445 + $0x3c] sm:$0x1] %v498
      $region44: #{_lambda_.15} parent=39 // pred_fallthru
        _
      %s500 = smul.u32 %s21, 4
      %s501 = smul.u32 %s500, 2
      %s502 = smul.addr %s501, 4
      %s503 = scalar_lea.vmem [#allocation2], %s502
      %v504 = vld [vmem:[%s503] sm:$0xf]
      %v505 = vld [vmem:[%s503 + $0x8] sm:$0xf]
      %v506 = vld [vmem:[%s503 + $0x10] sm:$0xf]
      %v507 = vld [vmem:[%s503 + $0x18] sm:$0xf]
      %v508 = vld [vmem:[%s503 + $0x4] sm:$0x1]
      %v509 = vld [vmem:[%s503 + $0xc] sm:$0x1]
      %v510 = vld [vmem:[%s503 + $0x14] sm:$0x1]
      %v511 = vld [vmem:[%s503 + $0x1c] sm:$0x1]
      %vm512 = vsmask.f32 3328
      %vm513 = vsmask.f32 7440
      %vm514 = vmor %vm512, %vm513
      %v516 = vshrl.u32 %v504, 16
      %v518 = vrot.slane %v516, 4
      %v519 = vshll.u32 %v504, 16
      %v521 = vrot.slane %v519, 5
      %v522 = vor.u32 %v518, %v521
      %v523 = vrot.slane %v522, 4
      %v525 = vshll.u32 %v508, 16
      %v527 = vrot.slane %v525, 5
      %v528 = vsel %vm514, %v523, %v527
      %v530 = vshrl.u32 %v505, 16
      %v532 = vrot.slane %v530, 4
      %v533 = vshll.u32 %v505, 16
      %v535 = vrot.slane %v533, 5
      %v536 = vor.u32 %v532, %v535
      %v537 = vrot.slane %v536, 4
      %v539 = vshll.u32 %v509, 16
      %v541 = vrot.slane %v539, 5
      %v542 = vsel %vm514, %v537, %v541
      %v544 = vshrl.u32 %v506, 16
      %v546 = vrot.slane %v544, 4
      %v547 = vshll.u32 %v506, 16
      %v549 = vrot.slane %v547, 5
      %v550 = vor.u32 %v546, %v549
      %v551 = vrot.slane %v550, 4
      %v553 = vshll.u32 %v510, 16
      %v555 = vrot.slane %v553, 5
      %v556 = vsel %vm514, %v551, %v555
      %v558 = vshrl.u32 %v507, 16
      %v560 = vrot.slane %v558, 4
      %v561 = vshll.u32 %v507, 16
      %v563 = vrot.slane %v561, 5
      %v564 = vor.u32 %v560, %v563
      %v565 = vrot.slane %v564, 4
      %v567 = vshll.u32 %v511, 16
      %v569 = vrot.slane %v567, 5
      %v570 = vsel %vm514, %v565, %v569
      %v571 = vld [vmem:[%s503] sm:$0xe]
      %v572 = vld [vmem:[%s503 + $0x8] sm:$0xe]
      %v573 = vld [vmem:[%s503 + $0x10] sm:$0xe]
      %v574 = vld [vmem:[%s503 + $0x18] sm:$0xe]
      %vm583 = vcmask 1042432
      %vm584 = vcmask 1046532
      %vm585 = vmor %vm583, %vm584
      %v586 = vrot.slane %v571, 5
      %v587 = vrot.slane %v586, 4
      %v588 = vrot.slane %v508, 5
      %v589 = vsel %vm585, %v587, %v588
      %v590 = vrot.slane %v572, 5
      %v591 = vrot.slane %v590, 4
      %v592 = vrot.slane %v509, 5
      %v593 = vsel %vm585, %v591, %v592
      %v594 = vrot.slane %v573, 5
      %v595 = vrot.slane %v594, 4
      %v596 = vrot.slane %v510, 5
      %v597 = vsel %vm585, %v595, %v596
      %v598 = vrot.slane %v574, 5
      %v599 = vrot.slane %v598, 4
      %v600 = vrot.slane %v511, 5
      %v601 = vsel %vm585, %v599, %v600
      %s602 = sadd.s32 %s500, 1
      %s603 = smul.u32 %s602, 2
      %s604 = smul.addr %s603, 4
      %s605 = scalar_lea.vmem [#allocation2], %s604
      %v606 = vld [vmem:[%s605] sm:$0xf]
      %v607 = vld [vmem:[%s605 + $0x8] sm:$0xf]
      %v608 = vld [vmem:[%s605 + $0x10] sm:$0xf]
      %v609 = vld [vmem:[%s605 + $0x18] sm:$0xf]
      %v610 = vld [vmem:[%s605 + $0x4] sm:$0x1]
      %v611 = vld [vmem:[%s605 + $0xc] sm:$0x1]
      %v612 = vld [vmem:[%s605 + $0x14] sm:$0x1]
      %v613 = vld [vmem:[%s605 + $0x1c] sm:$0x1]
      %v615 = vshrl.u32 %v606, 16
      %v617 = vrot.slane %v615, 4
      %v618 = vshll.u32 %v606, 16
      %v620 = vrot.slane %v618, 5
      %v621 = vor.u32 %v617, %v620
      %v622 = vrot.slane %v621, 4
      %v624 = vshll.u32 %v610, 16
      %v626 = vrot.slane %v624, 5
      %v627 = vsel %vm514, %v622, %v626
      %v629 = vshrl.u32 %v607, 16
      %v631 = vrot.slane %v629, 4
      %v632 = vshll.u32 %v607, 16
      %v634 = vrot.slane %v632, 5
      %v635 = vor.u32 %v631, %v634
      %v636 = vrot.slane %v635, 4
      %v638 = vshll.u32 %v611, 16
      %v640 = vrot.slane %v638, 5
      %v641 = vsel %vm514, %v636, %v640
      %v643 = vshrl.u32 %v608, 16
      %v645 = vrot.slane %v643, 4
      %v646 = vshll.u32 %v608, 16
      %v648 = vrot.slane %v646, 5
      %v649 = vor.u32 %v645, %v648
      %v650 = vrot.slane %v649, 4
      %v652 = vshll.u32 %v612, 16
      %v654 = vrot.slane %v652, 5
      %v655 = vsel %vm514, %v650, %v654
      %v657 = vshrl.u32 %v609, 16
      %v659 = vrot.slane %v657, 4
      %v660 = vshll.u32 %v609, 16
      %v662 = vrot.slane %v660, 5
      %v663 = vor.u32 %v659, %v662
      %v664 = vrot.slane %v663, 4
      %v666 = vshll.u32 %v613, 16
      %v668 = vrot.slane %v666, 5
      %v669 = vsel %vm514, %v664, %v668
      %v670 = vld [vmem:[%s605] sm:$0xe]
      %v671 = vld [vmem:[%s605 + $0x8] sm:$0xe]
      %v672 = vld [vmem:[%s605 + $0x10] sm:$0xe]
      %v673 = vld [vmem:[%s605 + $0x18] sm:$0xe]
      %v682 = vrot.slane %v670, 5
      %v683 = vrot.slane %v682, 4
      %v684 = vrot.slane %v610, 5
      %v685 = vsel %vm585, %v683, %v684
      %v686 = vrot.slane %v671, 5
      %v687 = vrot.slane %v686, 4
      %v688 = vrot.slane %v611, 5
      %v689 = vsel %vm585, %v687, %v688
      %v690 = vrot.slane %v672, 5
      %v691 = vrot.slane %v690, 4
      %v692 = vrot.slane %v612, 5
      %v693 = vsel %vm585, %v691, %v692
      %v694 = vrot.slane %v673, 5
      %v695 = vrot.slane %v694, 4
      %v696 = vrot.slane %v613, 5
      %v697 = vsel %vm585, %v695, %v696
      %s698 = sadd.s32 %s500, 2
      %s699 = smul.u32 %s698, 2
      %s700 = smul.addr %s699, 4
      %s701 = scalar_lea.vmem [#allocation2], %s700
      %v702 = vld [vmem:[%s701] sm:$0xf]
      %v703 = vld [vmem:[%s701 + $0x8] sm:$0xf]
      %v704 = vld [vmem:[%s701 + $0x10] sm:$0xf]
      %v705 = vld [vmem:[%s701 + $0x18] sm:$0xf]
      %v706 = vld [vmem:[%s701 + $0x4] sm:$0x1]
      %v707 = vld [vmem:[%s701 + $0xc] sm:$0x1]
      %v708 = vld [vmem:[%s701 + $0x14] sm:$0x1]
      %v709 = vld [vmem:[%s701 + $0x1c] sm:$0x1]
      %v711 = vshrl.u32 %v702, 16
      %v713 = vrot.slane %v711, 4
      %v714 = vshll.u32 %v702, 16
      %v716 = vrot.slane %v714, 5
      %v717 = vor.u32 %v713, %v716
      %v718 = vrot.slane %v717, 4
      %v720 = vshll.u32 %v706, 16
      %v722 = vrot.slane %v720, 5
      %v723 = vsel %vm514, %v718, %v722
      %v725 = vshrl.u32 %v703, 16
      %v727 = vrot.slane %v725, 4
      %v728 = vshll.u32 %v703, 16
      %v730 = vrot.slane %v728, 5
      %v731 = vor.u32 %v727, %v730
      %v732 = vrot.slane %v731, 4
      %v734 = vshll.u32 %v707, 16
      %v736 = vrot.slane %v734, 5
      %v737 = vsel %vm514, %v732, %v736
      %v739 = vshrl.u32 %v704, 16
      %v741 = vrot.slane %v739, 4
      %v742 = vshll.u32 %v704, 16
      %v744 = vrot.slane %v742, 5
      %v745 = vor.u32 %v741, %v744
      %v746 = vrot.slane %v745, 4
      %v748 = vshll.u32 %v708, 16
      %v750 = vrot.slane %v748, 5
      %v751 = vsel %vm514, %v746, %v750
      %v753 = vshrl.u32 %v705, 16
      %v755 = vrot.slane %v753, 4
      %v756 = vshll.u32 %v705, 16
      %v758 = vrot.slane %v756, 5
      %v759 = vor.u32 %v755, %v758
      %v760 = vrot.slane %v759, 4
      %v762 = vshll.u32 %v709, 16
      %v764 = vrot.slane %v762, 5
      %v765 = vsel %vm514, %v760, %v764
      %v766 = vld [vmem:[%s701] sm:$0xe]
      %v767 = vld [vmem:[%s701 + $0x8] sm:$0xe]
      %v768 = vld [vmem:[%s701 + $0x10] sm:$0xe]
      %v769 = vld [vmem:[%s701 + $0x18] sm:$0xe]
      %v778 = vrot.slane %v766, 5
      %v779 = vrot.slane %v778, 4
      %v780 = vrot.slane %v706, 5
      %v781 = vsel %vm585, %v779, %v780
      %v782 = vrot.slane %v767, 5
      %v783 = vrot.slane %v782, 4
      %v784 = vrot.slane %v707, 5
      %v785 = vsel %vm585, %v783, %v784
      %v786 = vrot.slane %v768, 5
      %v787 = vrot.slane %v786, 4
      %v788 = vrot.slane %v708, 5
      %v789 = vsel %vm585, %v787, %v788
      %v790 = vrot.slane %v769, 5
      %v791 = vrot.slane %v790, 4
      %v792 = vrot.slane %v709, 5
      %v793 = vsel %vm585, %v791, %v792
      %v798 = vunpack.c.l.b16 %v504
      %v799 = vunpack.c.l.b16 %v505
      %v800 = vunpack.c.l.b16 %v506
      %v801 = vunpack.c.l.b16 %v507
      %v802 = vpack.c.b16 %v799, %v798
      %v803 = vpack.c.b16 %v801, %v800
      %v806 = vunpack.c.l.b16 %v528
      %v807 = vunpack.c.l.b16 %v542
      %v808 = vunpack.c.l.b16 %v556
      %v809 = vunpack.c.l.b16 %v570
      %v810 = vpack.c.b16 %v807, %v806
      %v811 = vpack.c.b16 %v809, %v808
      %v814 = vunpack.c.l.b16 %v589
      %v815 = vunpack.c.l.b16 %v593
      %v816 = vunpack.c.l.b16 %v597
      %v817 = vunpack.c.l.b16 %v601
      %v818 = vpack.c.b16 %v815, %v814
      %v819 = vpack.c.b16 %v817, %v816
      %v826 = vunpack.c.l.b16 %v606
      %v827 = vunpack.c.l.b16 %v607
      %v828 = vunpack.c.l.b16 %v608
      %v829 = vunpack.c.l.b16 %v609
      %v830 = vpack.c.b16 %v827, %v826
      %v831 = vpack.c.b16 %v829, %v828
      %v834 = vunpack.c.l.b16 %v627
      %v835 = vunpack.c.l.b16 %v641
      %v836 = vunpack.c.l.b16 %v655
      %v837 = vunpack.c.l.b16 %v669
      %v838 = vpack.c.b16 %v835, %v834
      %v839 = vpack.c.b16 %v837, %v836
      %v842 = vunpack.c.l.b16 %v685
      %v843 = vunpack.c.l.b16 %v689
      %v844 = vunpack.c.l.b16 %v693
      %v845 = vunpack.c.l.b16 %v697
      %v846 = vpack.c.b16 %v843, %v842
      %v847 = vpack.c.b16 %v845, %v844
      %v854 = vunpack.c.l.b16 %v702
      %v855 = vunpack.c.l.b16 %v703
      %v856 = vunpack.c.l.b16 %v704
      %v857 = vunpack.c.l.b16 %v705
      %v858 = vpack.c.b16 %v855, %v854
      %v859 = vpack.c.b16 %v857, %v856
      %v862 = vunpack.c.l.b16 %v723
      %v863 = vunpack.c.l.b16 %v737
      %v864 = vunpack.c.l.b16 %v751
      %v865 = vunpack.c.l.b16 %v765
      %v866 = vpack.c.b16 %v863, %v862
      %v867 = vpack.c.b16 %v865, %v864
      %v870 = vunpack.c.l.b16 %v781
      %v871 = vunpack.c.l.b16 %v785
      %v872 = vunpack.c.l.b16 %v789
      %v873 = vunpack.c.l.b16 %v793
      %v874 = vpack.c.b16 %v871, %v870
      %v875 = vpack.c.b16 %v873, %v872
      %v878 = vld [vmem:[%s3] sm:$0xf]
      %v879 = vld [vmem:[%s3 + $0x4] sm:$0xf]
      %v880 = vld [vmem:[%s3 + $0x8] sm:$0xf]
      %v881 = vld [vmem:[%s3 + $0xc] sm:$0xf]
      %v882 = vld [vmem:[%s3 + $0x10] sm:$0xf]
      %v883 = vld [vmem:[%s3 + $0x14] sm:$0xf]
      %v884 = vld [vmem:[%s3 + $0x18] sm:$0xf]
      %v885 = vld [vmem:[%s3 + $0x1c] sm:$0xf]
      %v886 = vld [vmem:[%s3 + $0x20] sm:$0xf]
      %v887 = vld [vmem:[%s3 + $0x24] sm:$0xf]
      %v888 = vld [vmem:[%s3 + $0x28] sm:$0xf]
      %v889 = vld [vmem:[%s3 + $0x2c] sm:$0xf]
      %v890 = vld [vmem:[%s3 + $0x30] sm:$0xf]
      %v891 = vld [vmem:[%s3 + $0x34] sm:$0xf]
      %v892 = vld [vmem:[%s3 + $0x38] sm:$0xf]
      %v893 = vld [vmem:[%s3 + $0x3c] sm:$0xf]
      %v894 = vld [vmem:[%s3 + $0x40] sm:$0xf]
      %v895 = vld [vmem:[%s3 + $0x44] sm:$0xf]
      %v896 = vld [vmem:[%s3 + $0x48] sm:$0xf]
      %v897 = vld [vmem:[%s3 + $0x4c] sm:$0xf]
      %v898 = vld [vmem:[%s3 + $0x50] sm:$0xf]
      %v899 = vld [vmem:[%s3 + $0x54] sm:$0xf]
      %v900 = vld [vmem:[%s3 + $0x58] sm:$0xf]
      %v901 = vld [vmem:[%s3 + $0x5c] sm:$0xf]
      %v902 = vld [vmem:[%s3 + $0x60] sm:$0xf]
      %v903 = vld [vmem:[%s3 + $0x64] sm:$0xf]
      %v904 = vld [vmem:[%s3 + $0x68] sm:$0xf]
      %v905 = vld [vmem:[%s3 + $0x6c] sm:$0xf]
      %v906 = vld [vmem:[%s3 + $0x70] sm:$0xf]
      %v907 = vld [vmem:[%s3 + $0x74] sm:$0xf]
      %v908 = vld [vmem:[%s3 + $0x78] sm:$0xf]
      %v909 = vld [vmem:[%s3 + $0x7c] sm:$0xf]
      %v910 = vld [vmem:[%s3 + $0x80] sm:$0xf]
      %v911 = vld [vmem:[%s3 + $0x84] sm:$0xf]
      %v912 = vld [vmem:[%s3 + $0x88] sm:$0xf]
      %v913 = vld [vmem:[%s3 + $0x8c] sm:$0xf]
      %v914 = vld [vmem:[%s3 + $0x90] sm:$0xf]
      %v915 = vld [vmem:[%s3 + $0x94] sm:$0xf]
      %v916 = vld [vmem:[%s3 + $0x98] sm:$0xf]
      %v917 = vld [vmem:[%s3 + $0x9c] sm:$0xf]
      %v918 = vld [vmem:[%s3 + $0xa0] sm:$0xf]
      %v919 = vld [vmem:[%s3 + $0xa4] sm:$0xf]
      %v920 = vld [vmem:[%s3 + $0xa8] sm:$0xf]
      %v921 = vld [vmem:[%s3 + $0xac] sm:$0xf]
      %v922 = vld [vmem:[%s3 + $0xb0] sm:$0xf]
      %v923 = vld [vmem:[%s3 + $0xb4] sm:$0xf]
      %v924 = vld [vmem:[%s3 + $0xb8] sm:$0xf]
      %v925 = vld [vmem:[%s3 + $0xbc] sm:$0xf]
      %v926 = vld [vmem:[%s3 + $0xc0] sm:$0xf]
      %v927 = vld [vmem:[%s3 + $0xc4] sm:$0xf]
      %v928 = vld [vmem:[%s3 + $0xc8] sm:$0xf]
      %v929 = vld [vmem:[%s3 + $0xcc] sm:$0xf]
      %v930 = vld [vmem:[%s3 + $0xd0] sm:$0xf]
      %v931 = vld [vmem:[%s3 + $0xd4] sm:$0xf]
      %v932 = vld [vmem:[%s3 + $0xd8] sm:$0xf]
      %v933 = vld [vmem:[%s3 + $0xdc] sm:$0xf]
      %v934 = vld [vmem:[%s3 + $0xe0] sm:$0xf]
      %v935 = vld [vmem:[%s3 + $0xe4] sm:$0xf]
      %v936 = vld [vmem:[%s3 + $0xe8] sm:$0xf]
      %v937 = vld [vmem:[%s3 + $0xec] sm:$0xf]
      %v938 = vld [vmem:[%s3 + $0xf0] sm:$0xf]
      %v939 = vld [vmem:[%s3 + $0xf4] sm:$0xf]
      %v940 = vld [vmem:[%s3 + $0xf8] sm:$0xf]
      %v941 = vld [vmem:[%s3 + $0xfc] sm:$0xf]
      %v942 = vld [vmem:[%s3 + $0x100] sm:$0xf]
      %v943 = vld [vmem:[%s3 + $0x104] sm:$0xf]
      %v944 = vld [vmem:[%s3 + $0x108] sm:$0xf]
      %v945 = vld [vmem:[%s3 + $0x10c] sm:$0xf]
      %v946 = vld [vmem:[%s3 + $0x110] sm:$0xf]
      %v947 = vld [vmem:[%s3 + $0x114] sm:$0xf]
      %v948 = vld [vmem:[%s3 + $0x118] sm:$0xf]
      %v949 = vld [vmem:[%s3 + $0x11c] sm:$0xf]
      %v950 = vld [vmem:[%s3 + $0x120] sm:$0xf]
      %v951 = vld [vmem:[%s3 + $0x124] sm:$0xf]
      %v952 = vld [vmem:[%s3 + $0x128] sm:$0xf]
      %v953 = vld [vmem:[%s3 + $0x12c] sm:$0xf]
      %v954 = vld [vmem:[%s3 + $0x130] sm:$0xf]
      %v955 = vld [vmem:[%s3 + $0x134] sm:$0xf]
      %v956 = vld [vmem:[%s3 + $0x138] sm:$0xf]
      %v957 = vld [vmem:[%s3 + $0x13c] sm:$0xf]
      %v958 = vld [vmem:[%s3 + $0x140] sm:$0xf]
      %v959 = vld [vmem:[%s3 + $0x144] sm:$0xf]
      %v960 = vld [vmem:[%s3 + $0x148] sm:$0xf]
      %v961 = vld [vmem:[%s3 + $0x14c] sm:$0xf]
      %v962 = vld [vmem:[%s3 + $0x150] sm:$0xf]
      %v963 = vld [vmem:[%s3 + $0x154] sm:$0xf]
      %v964 = vld [vmem:[%s3 + $0x158] sm:$0xf]
      %v965 = vld [vmem:[%s3 + $0x15c] sm:$0xf]
      %v966 = vld [vmem:[%s3 + $0x160] sm:$0xf]
      %v967 = vld [vmem:[%s3 + $0x164] sm:$0xf]
      %v968 = vld [vmem:[%s3 + $0x168] sm:$0xf]
      %v969 = vld [vmem:[%s3 + $0x16c] sm:$0xf]
      %v970 = vld [vmem:[%s3 + $0x170] sm:$0xf]
      %v971 = vld [vmem:[%s3 + $0x174] sm:$0xf]
      %v972 = vld [vmem:[%s3 + $0x178] sm:$0xf]
      %v973 = vld [vmem:[%s3 + $0x17c] sm:$0xf]
      %v974 = vld [vmem:[%s3 + $0x180] sm:$0xf]
      %v975 = vld [vmem:[%s3 + $0x184] sm:$0xf]
      %v976 = vld [vmem:[%s3 + $0x188] sm:$0xf]
      %v977 = vld [vmem:[%s3 + $0x18c] sm:$0xf]
      %v978 = vld [vmem:[%s3 + $0x190] sm:$0xf]
      %v979 = vld [vmem:[%s3 + $0x194] sm:$0xf]
      %v980 = vld [vmem:[%s3 + $0x198] sm:$0xf]
      %v981 = vld [vmem:[%s3 + $0x19c] sm:$0xf]
      %v982 = vld [vmem:[%s3 + $0x1a0] sm:$0xf]
      %v983 = vld [vmem:[%s3 + $0x1a4] sm:$0xf]
      %v984 = vld [vmem:[%s3 + $0x1a8] sm:$0xf]
      %v985 = vld [vmem:[%s3 + $0x1ac] sm:$0xf]
      %v986 = vld [vmem:[%s3 + $0x1b0] sm:$0xf]
      %v987 = vld [vmem:[%s3 + $0x1b4] sm:$0xf]
      %v988 = vld [vmem:[%s3 + $0x1b8] sm:$0xf]
      %v989 = vld [vmem:[%s3 + $0x1bc] sm:$0xf]
      %v990 = vld [vmem:[%s3 + $0x1c0] sm:$0xf]
      %v991 = vld [vmem:[%s3 + $0x1c4] sm:$0xf]
      %v992 = vld [vmem:[%s3 + $0x1c8] sm:$0xf]
      %v993 = vld [vmem:[%s3 + $0x1cc] sm:$0xf]
      %v994 = vld [vmem:[%s3 + $0x1d0] sm:$0xf]
      %v995 = vld [vmem:[%s3 + $0x1d4] sm:$0xf]
      %v996 = vld [vmem:[%s3 + $0x1d8] sm:$0xf]
      %v997 = vld [vmem:[%s3 + $0x1dc] sm:$0xf]
      %v998 = vld [vmem:[%s3 + $0x1e0] sm:$0xf]
      %v999 = vld [vmem:[%s3 + $0x1e4] sm:$0xf]
      %v1000 = vld [vmem:[%s3 + $0x1e8] sm:$0xf]
      %v1001 = vld [vmem:[%s3 + $0x1ec] sm:$0xf]
      %v1002 = vld [vmem:[%s3 + $0x1f0] sm:$0xf]
      %v1003 = vld [vmem:[%s3 + $0x1f4] sm:$0xf]
      %v1004 = vld [vmem:[%s3 + $0x1f8] sm:$0xf]
      %v1005 = vld [vmem:[%s3 + $0x1fc] sm:$0xf]
      %v1006 = vld [vmem:[%s3 + $0x200] sm:$0xf]
      %v1007 = vld [vmem:[%s3 + $0x204] sm:$0xf]
      %v1008 = vld [vmem:[%s3 + $0x208] sm:$0xf]
      %v1009 = vld [vmem:[%s3 + $0x20c] sm:$0xf]
      %v1010 = vld [vmem:[%s3 + $0x210] sm:$0xf]
      %v1011 = vld [vmem:[%s3 + $0x214] sm:$0xf]
      %v1012 = vld [vmem:[%s3 + $0x218] sm:$0xf]
      %v1013 = vld [vmem:[%s3 + $0x21c] sm:$0xf]
      %v1014 = vld [vmem:[%s3 + $0x220] sm:$0xf]
      %v1015 = vld [vmem:[%s3 + $0x224] sm:$0xf]
      %v1016 = vld [vmem:[%s3 + $0x228] sm:$0xf]
      %v1017 = vld [vmem:[%s3 + $0x22c] sm:$0xf]
      %v1018 = vld [vmem:[%s3 + $0x230] sm:$0xf]
      %v1019 = vld [vmem:[%s3 + $0x234] sm:$0xf]
      %v1020 = vld [vmem:[%s3 + $0x238] sm:$0xf]
      %v1021 = vld [vmem:[%s3 + $0x23c] sm:$0xf]
      %v1022 = vld [vmem:[%s272] sm:$0xf]
      %v1023 = vld [vmem:[%s272 + $0x4] sm:$0xf]
      %v1024 = vld [vmem:[%s272 + $0x8] sm:$0xf]
      %v1025 = vld [vmem:[%s272 + $0xc] sm:$0xf]
      %v1026 = vunpack.c.l.bf16 %v1022
      %v1027 = vunpack.c.l.bf16 %v1023
      %v1028 = vunpack.c.l.bf16 %v1024
      %v1029 = vunpack.c.l.bf16 %v1025
      %v1174 = vunpack.c.l.b16 %v878
      %v1175 = vunpack.c.l.b16 %v879
      %v1176 = vunpack.c.l.b16 %v880
      %v1177 = vunpack.c.l.b16 %v881
      %v1178 = vunpack.c.l.b16 %v882
      %v1179 = vunpack.c.l.b16 %v883
      %v1180 = vunpack.c.l.b16 %v884
      %v1181 = vunpack.c.l.b16 %v885
      %v1182 = vunpack.c.l.b16 %v886
      %v1183 = vunpack.c.l.b16 %v887
      %v1184 = vunpack.c.l.b16 %v888
      %v1185 = vunpack.c.l.b16 %v889
      %v1186 = vunpack.c.l.b16 %v890
      %v1187 = vunpack.c.l.b16 %v891
      %v1188 = vunpack.c.l.b16 %v892
      %v1189 = vunpack.c.l.b16 %v893
      %v1190 = vunpack.c.l.b16 %v894
      %v1191 = vunpack.c.l.b16 %v895
      %v1192 = vunpack.c.l.b16 %v896
      %v1193 = vunpack.c.l.b16 %v897
      %v1194 = vunpack.c.l.b16 %v898
      %v1195 = vunpack.c.l.b16 %v899
      %v1196 = vunpack.c.l.b16 %v900
      %v1197 = vunpack.c.l.b16 %v901
      %v1198 = vunpack.c.l.b16 %v902
      %v1199 = vunpack.c.l.b16 %v903
      %v1200 = vunpack.c.l.b16 %v904
      %v1201 = vunpack.c.l.b16 %v905
      %v1202 = vunpack.c.l.b16 %v906
      %v1203 = vunpack.c.l.b16 %v907
      %v1204 = vunpack.c.l.b16 %v908
      %v1205 = vunpack.c.l.b16 %v909
      %v1206 = vunpack.c.l.b16 %v910
      %v1207 = vunpack.c.l.b16 %v911
      %v1208 = vunpack.c.l.b16 %v912
      %v1209 = vunpack.c.l.b16 %v913
      %v1210 = vunpack.c.l.b16 %v914
      %v1211 = vunpack.c.l.b16 %v915
      %v1212 = vunpack.c.l.b16 %v916
      %v1213 = vunpack.c.l.b16 %v917
      %v1214 = vunpack.c.l.b16 %v918
      %v1215 = vunpack.c.l.b16 %v919
      %v1216 = vunpack.c.l.b16 %v920
      %v1217 = vunpack.c.l.b16 %v921
      %v1218 = vunpack.c.l.b16 %v922
      %v1219 = vunpack.c.l.b16 %v923
      %v1220 = vunpack.c.l.b16 %v924
      %v1221 = vunpack.c.l.b16 %v925
      %v1222 = vunpack.c.l.b16 %v926
      %v1223 = vunpack.c.l.b16 %v927
      %v1224 = vunpack.c.l.b16 %v928
      %v1225 = vunpack.c.l.b16 %v929
      %v1226 = vunpack.c.l.b16 %v930
      %v1227 = vunpack.c.l.b16 %v931
      %v1228 = vunpack.c.l.b16 %v932
      %v1229 = vunpack.c.l.b16 %v933
      %v1230 = vunpack.c.l.b16 %v934
      %v1231 = vunpack.c.l.b16 %v935
      %v1232 = vunpack.c.l.b16 %v936
      %v1233 = vunpack.c.l.b16 %v937
      %v1234 = vunpack.c.l.b16 %v938
      %v1235 = vunpack.c.l.b16 %v939
      %v1236 = vunpack.c.l.b16 %v940
      %v1237 = vunpack.c.l.b16 %v941
      %v1238 = vunpack.c.l.b16 %v942
      %v1239 = vunpack.c.l.b16 %v943
      %v1240 = vunpack.c.l.b16 %v944
      %v1241 = vunpack.c.l.b16 %v945
      %v1242 = vunpack.c.l.b16 %v946
      %v1243 = vunpack.c.l.b16 %v947
      %v1244 = vunpack.c.l.b16 %v948
      %v1245 = vunpack.c.l.b16 %v949
      %v1246 = vunpack.c.l.b16 %v950
      %v1247 = vunpack.c.l.b16 %v951
      %v1248 = vunpack.c.l.b16 %v952
      %v1249 = vunpack.c.l.b16 %v953
      %v1250 = vunpack.c.l.b16 %v954
      %v1251 = vunpack.c.l.b16 %v955
      %v1252 = vunpack.c.l.b16 %v956
      %v1253 = vunpack.c.l.b16 %v957
      %v1254 = vunpack.c.l.b16 %v958
      %v1255 = vunpack.c.l.b16 %v959
      %v1256 = vunpack.c.l.b16 %v960
      %v1257 = vunpack.c.l.b16 %v961
      %v1258 = vunpack.c.l.b16 %v962
      %v1259 = vunpack.c.l.b16 %v963
      %v1260 = vunpack.c.l.b16 %v964
      %v1261 = vunpack.c.l.b16 %v965
      %v1262 = vunpack.c.l.b16 %v966
      %v1263 = vunpack.c.l.b16 %v967
      %v1264 = vunpack.c.l.b16 %v968
      %v1265 = vunpack.c.l.b16 %v969
      %v1266 = vunpack.c.l.b16 %v970
      %v1267 = vunpack.c.l.b16 %v971
      %v1268 = vunpack.c.l.b16 %v972
      %v1269 = vunpack.c.l.b16 %v973
      %v1270 = vunpack.c.l.b16 %v974
      %v1271 = vunpack.c.l.b16 %v975
      %v1272 = vunpack.c.l.b16 %v976
      %v1273 = vunpack.c.l.b16 %v977
      %v1274 = vunpack.c.l.b16 %v978
      %v1275 = vunpack.c.l.b16 %v979
      %v1276 = vunpack.c.l.b16 %v980
      %v1277 = vunpack.c.l.b16 %v981
      %v1278 = vunpack.c.l.b16 %v982
      %v1279 = vunpack.c.l.b16 %v983
      %v1280 = vunpack.c.l.b16 %v984
      %v1281 = vunpack.c.l.b16 %v985
      %v1282 = vunpack.c.l.b16 %v986
      %v1283 = vunpack.c.l.b16 %v987
      %v1284 = vunpack.c.l.b16 %v988
      %v1285 = vunpack.c.l.b16 %v989
      %v1286 = vunpack.c.l.b16 %v990
      %v1287 = vunpack.c.l.b16 %v991
      %v1288 = vunpack.c.l.b16 %v992
      %v1289 = vunpack.c.l.b16 %v993
      %v1290 = vunpack.c.l.b16 %v994
      %v1291 = vunpack.c.l.b16 %v995
      %v1292 = vunpack.c.l.b16 %v996
      %v1293 = vunpack.c.l.b16 %v997
      %v1294 = vunpack.c.l.b16 %v998
      %v1295 = vunpack.c.l.b16 %v999
      %v1296 = vunpack.c.l.b16 %v1000
      %v1297 = vunpack.c.l.b16 %v1001
      %v1298 = vunpack.c.l.b16 %v1002
      %v1299 = vunpack.c.l.b16 %v1003
      %v1300 = vunpack.c.l.b16 %v1004
      %v1301 = vunpack.c.l.b16 %v1005
      %v1302 = vunpack.c.l.b16 %v1006
      %v1303 = vunpack.c.l.b16 %v1007
      %v1304 = vunpack.c.l.b16 %v1008
      %v1305 = vunpack.c.l.b16 %v1009
      %v1306 = vunpack.c.l.b16 %v1010
      %v1307 = vunpack.c.l.b16 %v1011
      %v1308 = vunpack.c.l.b16 %v1012
      %v1309 = vunpack.c.l.b16 %v1013
      %v1310 = vunpack.c.l.b16 %v1014
      %v1311 = vunpack.c.l.b16 %v1015
      %v1312 = vunpack.c.l.b16 %v1016
      %v1313 = vunpack.c.l.b16 %v1017
      %v1314 = vunpack.c.l.b16 %v1018
      %v1315 = vunpack.c.l.b16 %v1019
      %v1316 = vunpack.c.l.b16 %v1020
      %v1317 = vunpack.c.l.b16 %v1021
      %v1318 = vpack.c.b16 %v1175, %v1174
      %v1319 = vpack.c.b16 %v1177, %v1176
      %v1320 = vpack.c.b16 %v1179, %v1178
      %v1321 = vpack.c.b16 %v1181, %v1180
      %v1322 = vpack.c.b16 %v1183, %v1182
      %v1323 = vpack.c.b16 %v1185, %v1184
      %v1324 = vpack.c.b16 %v1187, %v1186
      %v1325 = vpack.c.b16 %v1189, %v1188
      %v1326 = vpack.c.b16 %v1191, %v1190
      %v1327 = vpack.c.b16 %v1193, %v1192
      %v1328 = vpack.c.b16 %v1195, %v1194
      %v1329 = vpack.c.b16 %v1197, %v1196
      %v1330 = vpack.c.b16 %v1199, %v1198
      %v1331 = vpack.c.b16 %v1201, %v1200
      %v1332 = vpack.c.b16 %v1203, %v1202
      %v1333 = vpack.c.b16 %v1205, %v1204
      %v1334 = vpack.c.b16 %v1207, %v1206
      %v1335 = vpack.c.b16 %v1209, %v1208
      %v1336 = vpack.c.b16 %v1211, %v1210
      %v1337 = vpack.c.b16 %v1213, %v1212
      %v1338 = vpack.c.b16 %v1215, %v1214
      %v1339 = vpack.c.b16 %v1217, %v1216
      %v1340 = vpack.c.b16 %v1219, %v1218
      %v1341 = vpack.c.b16 %v1221, %v1220
      %v1342 = vpack.c.b16 %v1223, %v1222
      %v1343 = vpack.c.b16 %v1225, %v1224
      %v1344 = vpack.c.b16 %v1227, %v1226
      %v1345 = vpack.c.b16 %v1229, %v1228
      %v1346 = vpack.c.b16 %v1231, %v1230
      %v1347 = vpack.c.b16 %v1233, %v1232
      %v1348 = vpack.c.b16 %v1235, %v1234
      %v1349 = vpack.c.b16 %v1237, %v1236
      %v1350 = vpack.c.b16 %v1239, %v1238
      %v1351 = vpack.c.b16 %v1241, %v1240
      %v1352 = vpack.c.b16 %v1243, %v1242
      %v1353 = vpack.c.b16 %v1245, %v1244
      %v1354 = vpack.c.b16 %v1247, %v1246
      %v1355 = vpack.c.b16 %v1249, %v1248
      %v1356 = vpack.c.b16 %v1251, %v1250
      %v1357 = vpack.c.b16 %v1253, %v1252
      %v1358 = vpack.c.b16 %v1255, %v1254
      %v1359 = vpack.c.b16 %v1257, %v1256
      %v1360 = vpack.c.b16 %v1259, %v1258
      %v1361 = vpack.c.b16 %v1261, %v1260
      %v1362 = vpack.c.b16 %v1263, %v1262
      %v1363 = vpack.c.b16 %v1265, %v1264
      %v1364 = vpack.c.b16 %v1267, %v1266
      %v1365 = vpack.c.b16 %v1269, %v1268
      %v1366 = vpack.c.b16 %v1271, %v1270
      %v1367 = vpack.c.b16 %v1273, %v1272
      %v1368 = vpack.c.b16 %v1275, %v1274
      %v1369 = vpack.c.b16 %v1277, %v1276
      %v1370 = vpack.c.b16 %v1279, %v1278
      %v1371 = vpack.c.b16 %v1281, %v1280
      %v1372 = vpack.c.b16 %v1283, %v1282
      %v1373 = vpack.c.b16 %v1285, %v1284
      %v1374 = vpack.c.b16 %v1287, %v1286
      %v1375 = vpack.c.b16 %v1289, %v1288
      %v1376 = vpack.c.b16 %v1291, %v1290
      %v1377 = vpack.c.b16 %v1293, %v1292
      %v1378 = vpack.c.b16 %v1295, %v1294
      %v1379 = vpack.c.b16 %v1297, %v1296
      %v1380 = vpack.c.b16 %v1299, %v1298
      %v1381 = vpack.c.b16 %v1301, %v1300
      %v1382 = vpack.c.b16 %v1303, %v1302
      %v1383 = vpack.c.b16 %v1305, %v1304
      %v1384 = vpack.c.b16 %v1307, %v1306
      %v1385 = vpack.c.b16 %v1309, %v1308
      %v1386 = vpack.c.b16 %v1311, %v1310
      %v1387 = vpack.c.b16 %v1313, %v1312
      %v1388 = vpack.c.b16 %v1315, %v1314
      %v1389 = vpack.c.b16 %v1317, %v1316
      %1462 = vmatpush.bf16.msra.mxu0 %v1325
      %1463 = vmatpush.bf16.msra.mxu0 %v1324
      %1464 = vmatpush.bf16.msra.mxu0 %v1323
      %1465 = vmatpush.bf16.msra.mxu0 %v1322
      %1466 = vmatpush.bf16.msra.mxu0 %v1321
      %1467 = vmatpush.bf16.msra.mxu0 %v1320
      %1468 = vmatpush.bf16.msra.mxu0 %v1319
      %1469 = vmatpush.bf16.msra.mxu0 %v1318
      %1470 = vmatmul.bf16.gmra.mxu0 %v802
      %v1471 = vpop.f32.mrf.mxu0
      %v1472 = vadd.f32 %v1026, %v1471
      %v1473 = vpop.f32.mrf.mxu0
      %v1474 = vadd.f32 %v1027, %v1473
      %1475 = vmatmul.bf16.gmra.mxu0 %v803
      %v1476 = vpop.f32.mrf.mxu0
      %v1477 = vadd.f32 %v1028, %v1476
      %v1478 = vpop.f32.mrf.mxu0
      %v1479 = vadd.f32 %v1029, %v1478
      %1480 = vdwg.mxu0
      %1481 = vmatpush.bf16.msra.mxu0 %v1333
      %1482 = vmatpush.bf16.msra.mxu0 %v1332
      %1483 = vmatpush.bf16.msra.mxu0 %v1331
      %1484 = vmatpush.bf16.msra.mxu0 %v1330
      %1485 = vmatpush.bf16.msra.mxu0 %v1329
      %1486 = vmatpush.bf16.msra.mxu0 %v1328
      %1487 = vmatpush.bf16.msra.mxu0 %v1327
      %1488 = vmatpush.bf16.msra.mxu0 %v1326
      %1489 = vmatmul.bf16.gmra.mxu0 %v810
      %v1490 = vpop.f32.mrf.mxu0
      %v1491 = vadd.f32 %v1472, %v1490
      %v1492 = vpop.f32.mrf.mxu0
      %v1493 = vadd.f32 %v1474, %v1492
      %1494 = vmatmul.bf16.gmra.mxu0 %v811
      %v1495 = vpop.f32.mrf.mxu0
      %v1496 = vadd.f32 %v1477, %v1495
      %v1497 = vpop.f32.mrf.mxu0
      %v1498 = vadd.f32 %v1479, %v1497
      %1499 = vdwg.mxu0
      %1500 = vmatpush.bf16.msra.mxu0 %v1341
      %1501 = vmatpush.bf16.msra.mxu0 %v1340
      %1502 = vmatpush.bf16.msra.mxu0 %v1339
      %1503 = vmatpush.bf16.msra.mxu0 %v1338
      %1504 = vmatpush.bf16.msra.mxu0 %v1337
      %1505 = vmatpush.bf16.msra.mxu0 %v1336
      %1506 = vmatpush.bf16.msra.mxu0 %v1335
      %1507 = vmatpush.bf16.msra.mxu0 %v1334
      %1508 = vmatmul.bf16.gmra.mxu0 %v818
      %v1509 = vpop.f32.mrf.mxu0
      %v1510 = vadd.f32 %v1491, %v1509
      %v1511 = vpop.f32.mrf.mxu0
      %v1512 = vadd.f32 %v1493, %v1511
      %1513 = vmatmul.bf16.gmra.mxu0 %v819
      %v1514 = vpop.f32.mrf.mxu0
      %v1515 = vadd.f32 %v1496, %v1514
      %v1516 = vpop.f32.mrf.mxu0
      %v1517 = vadd.f32 %v1498, %v1516
      %1518 = vdwg.mxu0
      %1519 = vmatpush.bf16.msra.mxu0 %v1349
      %1520 = vmatpush.bf16.msra.mxu0 %v1348
      %1521 = vmatpush.bf16.msra.mxu0 %v1347
      %1522 = vmatpush.bf16.msra.mxu0 %v1346
      %1523 = vmatpush.bf16.msra.mxu0 %v1345
      %1524 = vmatpush.bf16.msra.mxu0 %v1344
      %1525 = vmatpush.bf16.msra.mxu0 %v1343
      %1526 = vmatpush.bf16.msra.mxu0 %v1342
      %1527 = vmatmul.bf16.gmra.mxu0 %v830
      %v1528 = vpop.f32.mrf.mxu0
      %v1529 = vadd.f32 %v1510, %v1528
      %v1530 = vpop.f32.mrf.mxu0
      %v1531 = vadd.f32 %v1512, %v1530
      %1532 = vmatmul.bf16.gmra.mxu0 %v831
      %v1533 = vpop.f32.mrf.mxu0
      %v1534 = vadd.f32 %v1515, %v1533
      %v1535 = vpop.f32.mrf.mxu0
      %v1536 = vadd.f32 %v1517, %v1535
      %1537 = vdwg.mxu0
      %1538 = vmatpush.bf16.msra.mxu0 %v1357
      %1539 = vmatpush.bf16.msra.mxu0 %v1356
      %1540 = vmatpush.bf16.msra.mxu0 %v1355
      %1541 = vmatpush.bf16.msra.mxu0 %v1354
      %1542 = vmatpush.bf16.msra.mxu0 %v1353
      %1543 = vmatpush.bf16.msra.mxu0 %v1352
      %1544 = vmatpush.bf16.msra.mxu0 %v1351
      %1545 = vmatpush.bf16.msra.mxu0 %v1350
      %1546 = vmatmul.bf16.gmra.mxu0 %v838
      %v1547 = vpop.f32.mrf.mxu0
      %v1548 = vadd.f32 %v1529, %v1547
      %v1549 = vpop.f32.mrf.mxu0
      %v1550 = vadd.f32 %v1531, %v1549
      %1551 = vmatmul.bf16.gmra.mxu0 %v839
      %v1552 = vpop.f32.mrf.mxu0
      %v1553 = vadd.f32 %v1534, %v1552
      %v1554 = vpop.f32.mrf.mxu0
      %v1555 = vadd.f32 %v1536, %v1554
      %1556 = vdwg.mxu0
      %1557 = vmatpush.bf16.msra.mxu0 %v1365
      %1558 = vmatpush.bf16.msra.mxu0 %v1364
      %1559 = vmatpush.bf16.msra.mxu0 %v1363
      %1560 = vmatpush.bf16.msra.mxu0 %v1362
      %1561 = vmatpush.bf16.msra.mxu0 %v1361
      %1562 = vmatpush.bf16.msra.mxu0 %v1360
      %1563 = vmatpush.bf16.msra.mxu0 %v1359
      %1564 = vmatpush.bf16.msra.mxu0 %v1358
      %1565 = vmatmul.bf16.gmra.mxu0 %v846
      %v1566 = vpop.f32.mrf.mxu0
      %v1567 = vadd.f32 %v1548, %v1566
      %v1568 = vpop.f32.mrf.mxu0
      %v1569 = vadd.f32 %v1550, %v1568
      %1570 = vmatmul.bf16.gmra.mxu0 %v847
      %v1571 = vpop.f32.mrf.mxu0
      %v1572 = vadd.f32 %v1553, %v1571
      %v1573 = vpop.f32.mrf.mxu0
      %v1574 = vadd.f32 %v1555, %v1573
      %1575 = vdwg.mxu0
      %1576 = vmatpush.bf16.msra.mxu0 %v1373
      %1577 = vmatpush.bf16.msra.mxu0 %v1372
      %1578 = vmatpush.bf16.msra.mxu0 %v1371
      %1579 = vmatpush.bf16.msra.mxu0 %v1370
      %1580 = vmatpush.bf16.msra.mxu0 %v1369
      %1581 = vmatpush.bf16.msra.mxu0 %v1368
      %1582 = vmatpush.bf16.msra.mxu0 %v1367
      %1583 = vmatpush.bf16.msra.mxu0 %v1366
      %1584 = vmatmul.bf16.gmra.mxu0 %v858
      %v1585 = vpop.f32.mrf.mxu0
      %v1586 = vadd.f32 %v1567, %v1585
      %v1587 = vpop.f32.mrf.mxu0
      %v1588 = vadd.f32 %v1569, %v1587
      %1589 = vmatmul.bf16.gmra.mxu0 %v859
      %v1590 = vpop.f32.mrf.mxu0
      %v1591 = vadd.f32 %v1572, %v1590
      %v1592 = vpop.f32.mrf.mxu0
      %v1593 = vadd.f32 %v1574, %v1592
      %1594 = vdwg.mxu0
      %1595 = vmatpush.bf16.msra.mxu0 %v1381
      %1596 = vmatpush.bf16.msra.mxu0 %v1380
      %1597 = vmatpush.bf16.msra.mxu0 %v1379
      %1598 = vmatpush.bf16.msra.mxu0 %v1378
      %1599 = vmatpush.bf16.msra.mxu0 %v1377
      %1600 = vmatpush.bf16.msra.mxu0 %v1376
      %1601 = vmatpush.bf16.msra.mxu0 %v1375
      %1602 = vmatpush.bf16.msra.mxu0 %v1374
      %1603 = vmatmul.bf16.gmra.mxu0 %v866
      %v1604 = vpop.f32.mrf.mxu0
      %v1605 = vadd.f32 %v1586, %v1604
      %v1606 = vpop.f32.mrf.mxu0
      %v1607 = vadd.f32 %v1588, %v1606
      %1608 = vmatmul.bf16.gmra.mxu0 %v867
      %v1609 = vpop.f32.mrf.mxu0
      %v1610 = vadd.f32 %v1591, %v1609
      %v1611 = vpop.f32.mrf.mxu0
      %v1612 = vadd.f32 %v1593, %v1611
      %1613 = vdwg.mxu0
      %1614 = vmatpush.bf16.msra.mxu0 %v1389
      %1615 = vmatpush.bf16.msra.mxu0 %v1388
      %1616 = vmatpush.bf16.msra.mxu0 %v1387
      %1617 = vmatpush.bf16.msra.mxu0 %v1386
      %1618 = vmatpush.bf16.msra.mxu0 %v1385
      %1619 = vmatpush.bf16.msra.mxu0 %v1384
      %1620 = vmatpush.bf16.msra.mxu0 %v1383
      %1621 = vmatpush.bf16.msra.mxu0 %v1382
      %1622 = vmatmul.bf16.gmra.mxu0 %v874
      %v1623 = vpop.f32.mrf.mxu0
      %v1624 = vadd.f32 %v1605, %v1623
      %v1625 = vpop.f32.mrf.mxu0
      %v1626 = vadd.f32 %v1607, %v1625
      %1627 = vmatmul.bf16.gmra.mxu0 %v875
      %v1628 = vpop.f32.mrf.mxu0
      %v1629 = vadd.f32 %v1610, %v1628
      %v1630 = vpop.f32.mrf.mxu0
      %v1631 = vadd.f32 %v1612, %v1630
      %1632 = vdwg.mxu0
      %v1633 = vpack.c.bf16 %v1624, %v1624
      %v1634 = vpack.c.bf16 %v1626, %v1626
      %v1635 = vpack.c.bf16 %v1629, %v1629
      %v1636 = vpack.c.bf16 %v1631, %v1631
      %vm1637 = vcmask 519168
      %1638 = vst.msk [vmem:[%s282] sm:$0xf] %vm1637, %v1633
      %1639 = vst.msk [vmem:[%s282 + $0x4] sm:$0xf] %vm1637, %v1634
      %1640 = vst.msk [vmem:[%s282 + $0x8] sm:$0xf] %vm1637, %v1635
      %1641 = vst.msk [vmem:[%s282 + $0xc] sm:$0xf] %vm1637, %v1636
      %s1642 = smul.u32 4, %s21
      %p1643 = scmp.lt.s32.totalorder %s20, 1
      %s1644 = scalar_select %p1643, %s20, 1
      %p1645 = scmp.lt.s32.totalorder %s1642, 7
      %s1646 = scalar_select %p1645, %s1642, 7
      %s1647 = smul.addr %s1644, 8
      %s1648 = sadd.s32 %s1646, %s1647
      %s1649 = smul.addr %s1648, 4
      %s1650 = scalar_lea.vmem %s5, %s1649
      // Predicated region
      $region45: #{_lambda_.15} parent=39 // pred_check
        %p1651 = pneg %p165
      $region46: #{_lambda_.15} parent=39 // pred_check_branch
        %1653 = sbr.rel (%p1651) target = $region48
      $region47: #{_lambda_.15} parent=39 // pred_region
        %s1654 = smul.u32 4, %s21
      $region48: #{_lambda_.15} parent=39 // pred_fallthru
        _
    $region40: #{_lambda_.15} parent=5 // pred_fallthru
      _
    %p1655 = scmp.le.s32.totalorder 2, %s11
    // Predicated region
    $region49: #{_lambda_.15} parent=5 // pred_check
      %p1656 = pneg %p1655
    $region50: #{_lambda_.15} parent=5 // pred_check_branch
      %1658 = sbr.rel (%p1656) target = $region52
    $region51: #{_lambda_.15} parent=5 // pred_region
      %s1659 = ssub.s32 %s11, 2
      // Predicated region
      $region53: #{_lambda_.15} parent=51 // pred_check
        %p1660 = pneg %p171
      $region54: #{_lambda_.15} parent=51 // pred_check_branch
        %1662 = sbr.rel (%p1660) target = $region56
      $region55: #{_lambda_.15} parent=51 // pred_region
        %s1663 = smul.u32 4, %s23
        %p1664 = scmp.lt.s32.totalorder %s22, 1
        %s1665 = scalar_select %p1664, %s22, 1
        %p1666 = scmp.lt.s32.totalorder %s1663, 7
        %s1667 = scalar_select %p1666, %s1663, 7
        %s1668 = smul.addr %s1665, 8
        %s1669 = sadd.s32 %s1667, %s1668
        %s1670 = smul.addr %s1669, 4
        %s1671 = scalar_lea.vmem %s5, %s1670
      $region56: #{_lambda_.15} parent=51 // pred_fallthru
        _
    $region52: #{_lambda_.15} parent=5 // pred_fallthru
      _
  $region6: #{_lambda_.15} parent=0 // loop_footer
    %s15 = sadd.s32 1, %s11
  $region7: #{_lambda_.15} parent=0 // loop_footer_branch
    %10 = sbr.rel target = $region3
  $region8: #{_lambda_.15} parent=0 // loop_exit
    _

// kernel: _lambda_.18
$region0: #{_lambda_.18}
  #allocation0 [shape = 'u32[]', space=smem, size = 0x4, offset = 0x4, fixed_abs, tag = 'smem constant byte address 0x4 - core index']
  #allocation1 [shape = 'u32[72,128]{1,0:T(1,128)}', space=vmem, size = 0x9000, scoped, tag = 'internal scratch']
  %s0 = inlined_call_operand.vmem [shape: bf16[2,4,16,64], index: 0, kind: input, shape index: {}]
  %s1 = inlined_call_operand.vmem [shape: f32[1,64], index: 1, kind: input, shape index: {}]
  %s2 = inlined_call_operand.vmem [shape: f32[1,64], index: 2, kind: input, shape index: {}]
  %s3 = inlined_call_operand.vmem [shape: bf16[64,16], index: 3, kind: input, shape index: {}]
  %s4 = inlined_call_operand.vmem [shape: bf16[2,4,16,16], index: 4, kind: output, shape index: {}]
  %s5 = sld [smem:[#allocation0]]
  $region49: #{_lambda_.18} parent=0
    _
  %s7 = ssub.s32 1, %s5
  %s8 = scalar_select 0, %s7, %s5
  loop: start=0, step=1, limit=6
  $region2: #{_lambda_.18} parent=0 // loop_pre_header
    _
  $region3: #{_lambda_.18} parent=0 // loop_header
    %s10 = sphi 0, %s14
    %p11 = scmp.ge.s32.totalorder %s10, 6
    %s17 = sphi 0, %s29
    %s18 = sphi 0, %s25
    %s19 = sphi 0, %s17
    %s20 = sphi 0, %s18
    %s21 = sphi 0, %s19
    %s22 = sphi 0, %s20
    %s34 = sphi 0, %s36
    %s37 = sphi 0, %s34
    %s38 = sphi 0, %s37
    %s54 = sphi 0, %s38
    %s58 = sphi 0, %s58
    %s60 = sphi 0, %s58
    %s61 = sphi 0, %s60
    %s75 = sphi 0, %s61
    %s79 = sphi 0, %s79
    %s81 = sphi 0, %s79
    %s82 = sphi 0, %s81
    %s96 = sphi 0, %s82
    %s100 = sphi 0, %s100
    %s102 = sphi 0, %s100
    %s103 = sphi 0, %s102
    %s117 = sphi 0, %s103
    %s125 = sphi 0, %s127
    %s128 = sphi 0, %s125
    %s129 = sphi 0, %s128
    %s145 = sphi 0, %s129
  $region4: #{_lambda_.18} parent=0 // loop_header_branch
    %13 = sbr.rel (%p11) target = $region8
  $region5: #{_lambda_.18} parent=0 // loop_body
    %s15 = ssub.s32 %s10, 1
    %s16 = ssub.s32 %s10, 2
    %s23 = sadd.s32 1, %s18
    %p24 = scmp.ge.s32.totalorder %s23, 2
    %s25 = scalar_select %p24, 0, %s23
    %s26 = sadd.s32 1, %s17
    %s27 = scalar_select %p24, %s26, %s17
    %p28 = scmp.ge.s32.totalorder %s27, 2
    %s29 = scalar_select %p28, 0, %s27
    %s30 = ssub.s32 %s17, %s29
    %s31 = ssub.s32 %s18, %s25
    %s32 = sor.u32 %s30, %s31
    %p33 = scmp.eq.s32.totalorder %s32, 0
    %s35 = sadd.s32 %s34, 1
    %s36 = scalar_select %p33, %s34, %s35
    %p39 = pneg %p33
    %p40 = scmp.eq.s32.totalorder %s10, 3
    %p41 = por %p39, %p40
    %p42 = scmp.ne.s32.totalorder %s34, %s37
    %p43 = scmp.eq.s32.totalorder %s10, 0
    %p44 = por %p42, %p43
    %p45 = scmp.ne.s32.totalorder %s34, %s37
    %p46 = scmp.eq.s32.totalorder %s15, 3
    %p47 = por %p45, %p46
    %p48 = scmp.ne.s32.totalorder %s37, %s38
    %p49 = scmp.eq.s32.totalorder %s15, 0
    %p50 = por %p48, %p49
    %p51 = scmp.ne.s32.totalorder %s37, %s38
    %p52 = scmp.eq.s32.totalorder %s16, 3
    %p53 = por %p51, %p52
    %p55 = scmp.ne.s32.totalorder %s38, %s54
    %p56 = scmp.eq.s32.totalorder %s16, 0
    %p57 = por %p55, %p56
    %s59 = sadd.s32 %s58, 1
    %p62 = scmp.eq.s32.totalorder %s10, 3
    %p63 = scmp.ne.s32.totalorder %s58, %s60
    %p64 = scmp.eq.s32.totalorder %s10, 0
    %p65 = por %p63, %p64
    %p66 = scmp.ne.s32.totalorder %s58, %s60
    %p67 = scmp.eq.s32.totalorder %s15, 3
    %p68 = por %p66, %p67
    %p69 = scmp.ne.s32.totalorder %s60, %s61
    %p70 = scmp.eq.s32.totalorder %s15, 0
    %p71 = por %p69, %p70
    %p72 = scmp.ne.s32.totalorder %s60, %s61
    %p73 = scmp.eq.s32.totalorder %s16, 3
    %p74 = por %p72, %p73
    %p76 = scmp.ne.s32.totalorder %s61, %s75
    %p77 = scmp.eq.s32.totalorder %s16, 0
    %p78 = por %p76, %p77
    %s80 = sadd.s32 %s79, 1
    %p83 = scmp.eq.s32.totalorder %s10, 3
    %p84 = scmp.ne.s32.totalorder %s79, %s81
    %p85 = scmp.eq.s32.totalorder %s10, 0
    %p86 = por %p84, %p85
    %p87 = scmp.ne.s32.totalorder %s79, %s81
    %p88 = scmp.eq.s32.totalorder %s15, 3
    %p89 = por %p87, %p88
    %p90 = scmp.ne.s32.totalorder %s81, %s82
    %p91 = scmp.eq.s32.totalorder %s15, 0
    %p92 = por %p90, %p91
    %p93 = scmp.ne.s32.totalorder %s81, %s82
    %p94 = scmp.eq.s32.totalorder %s16, 3
    %p95 = por %p93, %p94
    %p97 = scmp.ne.s32.totalorder %s82, %s96
    %p98 = scmp.eq.s32.totalorder %s16, 0
    %p99 = por %p97, %p98
    %s101 = sadd.s32 %s100, 1
    %p104 = scmp.eq.s32.totalorder %s10, 3
    %p105 = scmp.ne.s32.totalorder %s100, %s102
    %p106 = scmp.eq.s32.totalorder %s10, 0
    %p107 = por %p105, %p106
    %p108 = scmp.ne.s32.totalorder %s100, %s102
    %p109 = scmp.eq.s32.totalorder %s15, 3
    %p110 = por %p108, %p109
    %p111 = scmp.ne.s32.totalorder %s102, %s103
    %p112 = scmp.eq.s32.totalorder %s15, 0
    %p113 = por %p111, %p112
    %p114 = scmp.ne.s32.totalorder %s102, %s103
    %p115 = scmp.eq.s32.totalorder %s16, 3
    %p116 = por %p114, %p115
    %p118 = scmp.ne.s32.totalorder %s103, %s117
    %p119 = scmp.eq.s32.totalorder %s16, 0
    %p120 = por %p118, %p119
    %s121 = ssub.s32 %s17, %s29
    %s122 = ssub.s32 %s18, %s25
    %s123 = sor.u32 %s121, %s122
    %p124 = scmp.eq.s32.totalorder %s123, 0
    %s126 = sadd.s32 %s125, 1
    %s127 = scalar_select %p124, %s125, %s126
    %p130 = pneg %p124
    %p131 = scmp.eq.s32.totalorder %s10, 3
    %p132 = por %p130, %p131
    %p133 = scmp.ne.s32.totalorder %s125, %s128
    %p134 = scmp.eq.s32.totalorder %s10, 0
    %p135 = por %p133, %p134
    %p136 = scmp.ne.s32.totalorder %s125, %s128
    %p137 = scmp.eq.s32.totalorder %s15, 3
    %p138 = por %p136, %p137
    %p139 = scmp.ne.s32.totalorder %s128, %s129
    %p140 = scmp.eq.s32.totalorder %s15, 0
    %p141 = por %p139, %p140
    %p142 = scmp.ne.s32.totalorder %s128, %s129
    %p143 = scmp.eq.s32.totalorder %s16, 3
    %p144 = por %p142, %p143
    %p146 = scmp.ne.s32.totalorder %s129, %s145
    %p147 = scmp.eq.s32.totalorder %s16, 0
    %p148 = por %p146, %p147
    %p149 = scmp.le.s32.totalorder 1, %s10
    %p150 = scmp.lt.s32.totalorder %s10, 5
    %p151 = pnand %p149, %p150
    %p152 = pneg %p151
    // Predicated region
    $region9: #{_lambda_.18} parent=5 // pred_check
      _
    $region10: #{_lambda_.18} parent=5 // pred_check_branch
      %154 = sbr.rel (%p151) target = $region12
    $region11: #{_lambda_.18} parent=5 // pred_region
      %s155 = ssub.s32 %s10, 1
      // Predicated region
      $region13: #{_lambda_.18} parent=11 // pred_check
        %p156 = pneg %p71
      $region14: #{_lambda_.18} parent=11 // pred_check_branch
        %158 = sbr.rel (%p156) target = $region16
      $region15: #{_lambda_.18} parent=11 // pred_region
        _
      $region16: #{_lambda_.18} parent=11 // pred_fallthru
        _
      // Predicated region
      $region17: #{_lambda_.18} parent=11 // pred_check
        %p159 = pneg %p92
      $region18: #{_lambda_.18} parent=11 // pred_check_branch
        %161 = sbr.rel (%p159) target = $region20
      $region19: #{_lambda_.18} parent=11 // pred_region
        _
      $region20: #{_lambda_.18} parent=11 // pred_fallthru
        _
      // Predicated region
      $region21: #{_lambda_.18} parent=11 // pred_check
        %p162 = pneg %p113
      $region22: #{_lambda_.18} parent=11 // pred_check_branch
        %164 = sbr.rel (%p162) target = $region24
      $region23: #{_lambda_.18} parent=11 // pred_region
        _
      $region24: #{_lambda_.18} parent=11 // pred_fallthru
        _
    $region12: #{_lambda_.18} parent=5 // pred_fallthru
      _
    %p165 = scmp.lt.s32.totalorder %s10, 4
    // Predicated region
    $region25: #{_lambda_.18} parent=5 // pred_check
      %p166 = pneg %p165
    $region26: #{_lambda_.18} parent=5 // pred_check_branch
      %168 = sbr.rel (%p166) target = $region28
    $region27: #{_lambda_.18} parent=5 // pred_region
      // Predicated region
      $region29: #{_lambda_.18} parent=27 // pred_check
        %p169 = pneg %p44
      $region30: #{_lambda_.18} parent=27 // pred_check_branch
        %171 = sbr.rel (%p169) target = $region32
      $region31: #{_lambda_.18} parent=27 // pred_region
        %s172 = smul.u32 2, %s18
        %p173 = scmp.lt.s32.totalorder %s17, 1
        %s174 = scalar_select %p173, %s17, 1
        %p175 = scmp.lt.s32.totalorder %s172, 3
        %s176 = scalar_select %p175, %s172, 3
        %s177 = smul.addr %s176, 2
        %s178 = smul.addr %s174, 8
        %s179 = sadd.s32 %s177, %s178
        %s180 = smul.addr %s179, 4
        %s181 = scalar_lea.vmem %s0, %s180
        %s182 = smul.u32 2, %s18
      $region32: #{_lambda_.18} parent=27 // pred_fallthru
        _
    $region28: #{_lambda_.18} parent=5 // pred_fallthru
      _
    %p183 = scmp.le.s32.totalorder 1, %s10
    %p184 = scmp.lt.s32.totalorder %s10, 5
    %p185 = pnand %p183, %p184
    %p186 = pneg %p185
    // Predicated region
    $region33: #{_lambda_.18} parent=5 // pred_check
      _
    $region34: #{_lambda_.18} parent=5 // pred_check_branch
      %188 = sbr.rel (%p185) target = $region36
    $region35: #{_lambda_.18} parent=5 // pred_region
      %s189 = ssub.s32 %s10, 1
      %s190 = smul.u32 2, %s20
      %p191 = scmp.lt.s32.totalorder %s19, 1
      %s192 = scalar_select %p191, %s19, 1
      %p193 = scmp.lt.s32.totalorder %s190, 3
      %s194 = scalar_select %p193, %s190, 3
      %s195 = smul.addr %s194, 2
      %s196 = smul.addr %s192, 8
      %s197 = sadd.s32 %s195, %s196
      %s198 = smul.addr %s197, 4
      %s199 = scalar_lea.vmem %s0, %s198
      %p200 = pneg %p50
      %p201 = pneg %p47
      %p202 = pneg %p71
      %p203 = pneg %p68
      %p204 = pneg %p92
      %p205 = pneg %p89
      %p206 = pneg %p113
      %p207 = pneg %p110
      %p208 = pneg %p141
      %p209 = pneg %p138
      %s210 = smul.u32 2, %s20
      %p211 = scmp.lt.s32.totalorder %s19, 1
      %s212 = scalar_select %p211, %s19, 1
      %p213 = scmp.lt.s32.totalorder %s210, 3
      %s214 = scalar_select %p213, %s210, 3
      %s215 = smul.addr %s214, 2
      %s216 = smul.addr %s212, 8
      %s217 = sadd.s32 %s215, %s216
      %s218 = smul.addr %s217, 4
      %s219 = scalar_lea.vmem %s4, %s218
      %s220 = smul.u32 2, %s20
      %p221 = scmp.lt.s32.totalorder %s19, 1
      %s222 = scalar_select %p221, %s19, 1
      %p223 = scmp.lt.s32.totalorder %s220, 3
      %s224 = scalar_select %p223, %s220, 3
      %s225 = smul.addr %s224, 2
      %s226 = smul.addr %s222, 8
      %s227 = sadd.s32 %s225, %s226
      %s228 = smul.addr %s227, 4
      %s229 = scalar_lea.vmem %s0, %s228
      %s230 = smul.u32 2, %s20
      %s231 = smul.u32 2, %s20
      %p232 = scmp.lt.s32.totalorder %s19, 1
      %s233 = scalar_select %p232, %s19, 1
      %p234 = scmp.lt.s32.totalorder %s231, 3
      %s235 = scalar_select %p234, %s231, 3
      %s236 = smul.addr %s235, 2
      %s237 = smul.addr %s233, 8
      %s238 = sadd.s32 %s236, %s237
      %s239 = smul.addr %s238, 4
      %s240 = scalar_lea.vmem %s4, %s239
      %s241 = smul.u32 2, %s20
      %v243 = vld [vmem:[%s229] sm:$0xf]
      %v244 = vld [vmem:[%s229 + $0x4] sm:$0xf]
      %v245 = vld [vmem:[%s229 + $0x8] sm:$0xf]
      %v246 = vld [vmem:[%s229 + $0xc] sm:$0xf]
      %v247 = vunpack.c.l.bf16 %v243
      %v248 = vunpack.c.l.bf16 %v244
      %v249 = vunpack.c.l.bf16 %v245
      %v250 = vunpack.c.l.bf16 %v246
      %v251 = vld [vmem:[%s1] sm:$0x1]
      %v253 = vperm.slane %v251, 0
      %v255 = vmul.f32 %v247, %v253
      %v256 = vmul.f32 %v248, %v253
      %v257 = vmul.f32 %v249, %v253
      %v258 = vmul.f32 %v250, %v253
      %v259 = vld [vmem:[%s2] sm:$0x1]
      %v261 = vperm.slane %v259, 0
      %v263 = vadd.f32 %v255, %v261
      %v264 = vadd.f32 %v256, %v261
      %v265 = vadd.f32 %v257, %v261
      %v266 = vadd.f32 %v258, %v261
      %v267 = vmax.f32 %v263, 0.0
      %v268 = vmax.f32 %v264, 0.0
      %v269 = vmax.f32 %v265, 0.0
      %v270 = vmax.f32 %v266, 0.0
      %v271 = vpack.c.bf16 %v268, %v267
      %v272 = vpack.c.bf16 %v270, %v269
      %v273 = vld [vmem:[%s3] sm:$0xf]
      %v274 = vld [vmem:[%s3 + $0x4] sm:$0xf]
      %v275 = vld [vmem:[%s3 + $0x8] sm:$0xf]
      %v276 = vld [vmem:[%s3 + $0xc] sm:$0xf]
      %v277 = vld [vmem:[%s3 + $0x10] sm:$0xf]
      %v278 = vld [vmem:[%s3 + $0x14] sm:$0xf]
      %v279 = vld [vmem:[%s3 + $0x18] sm:$0xf]
      %v280 = vld [vmem:[%s3 + $0x1c] sm:$0xf]
      %v289 = vunpack.c.l.b16 %v273
      %v290 = vunpack.c.l.b16 %v274
      %v291 = vunpack.c.l.b16 %v275
      %v292 = vunpack.c.l.b16 %v276
      %v293 = vunpack.c.l.b16 %v277
      %v294 = vunpack.c.l.b16 %v278
      %v295 = vunpack.c.l.b16 %v279
      %v296 = vunpack.c.l.b16 %v280
      %v297 = vpack.c.b16 %v290, %v289
      %v298 = vpack.c.b16 %v292, %v291
      %v299 = vpack.c.b16 %v294, %v293
      %v300 = vpack.c.b16 %v296, %v295
      %vm305 = vcmask 523264
      %v307 = vsel %vm305, %v271, 0
      %v310 = vsel %vm305, %v272, 0
      %312 = vmatpush.bf16.msra.mxu0 0
      %313 = vmatpush.bf16.msra.mxu0 0
      %314 = vmatpush.bf16.msra.mxu0 0
      %315 = vmatpush.bf16.msra.mxu0 0
      %316 = vmatpush.bf16.msra.mxu0 %v300
      %317 = vmatpush.bf16.msra.mxu0 %v299
      %318 = vmatpush.bf16.msra.mxu0 %v298
      %319 = vmatpush.bf16.msra.mxu0 %v297
      %320 = vmatmul.bf16.gmra.mxu0 %v307
      %v321 = vpop.f32.mrf.mxu0
      %v322 = vadd.f32 0.0, %v321
      %v323 = vpop.f32.mrf.mxu0
      %v324 = vadd.f32 0.0, %v323
      %325 = vmatmul.bf16.gmra.mxu0 %v310
      %v326 = vpop.f32.mrf.mxu0
      %v327 = vadd.f32 0.0, %v326
      %v328 = vpop.f32.mrf.mxu0
      %v329 = vadd.f32 0.0, %v328
      %330 = vdwg.mxu0
      %v331 = vpack.c.bf16 %v322, %v322
      %v332 = vpack.c.bf16 %v324, %v324
      %v333 = vpack.c.bf16 %v327, %v327
      %v334 = vpack.c.bf16 %v329, %v329
      %vm335 = vcmask 125952
      %336 = vst.msk [vmem:[%s240] sm:$0xf] %vm335, %v331
      %337 = vst.msk [vmem:[%s240 + $0x4] sm:$0xf] %vm335, %v332
      %338 = vst.msk [vmem:[%s240 + $0x8] sm:$0xf] %vm335, %v333
      %339 = vst.msk [vmem:[%s240 + $0xc] sm:$0xf] %vm335, %v334
      %s340 = smul.u32 2, %s20
      %p341 = scmp.lt.s32.totalorder %s19, 1
      %s342 = scalar_select %p341, %s19, 1
      %p343 = scmp.lt.s32.totalorder %s340, 3
      %s344 = scalar_select %p343, %s340, 3
      %s345 = smul.addr %s344, 2
      %s346 = smul.addr %s342, 8
      %s347 = sadd.s32 %s345, %s346
      %s348 = smul.addr %s347, 4
      %s349 = scalar_lea.vmem %s4, %s348
      // Predicated region
      $region37: #{_lambda_.18} parent=35 // pred_check
        %p350 = pneg %p138
      $region38: #{_lambda_.18} parent=35 // pred_check_branch
        %352 = sbr.rel (%p350) target = $region40
      $region39: #{_lambda_.18} parent=35 // pred_region
        %s353 = smul.u32 2, %s20
      $region40: #{_lambda_.18} parent=35 // pred_fallthru
        _
    $region36: #{_lambda_.18} parent=5 // pred_fallthru
      _
    %p354 = scmp.le.s32.totalorder 2, %s10
    // Predicated region
    $region41: #{_lambda_.18} parent=5 // pred_check
      %p355 = pneg %p354
    $region42: #{_lambda_.18} parent=5 // pred_check_branch
      %357 = sbr.rel (%p355) target = $region44
    $region43: #{_lambda_.18} parent=5 // pred_region
      %s358 = ssub.s32 %s10, 2
      // Predicated region
      $region45: #{_lambda_.18} parent=43 // pred_check
        %p359 = pneg %p144
      $region46: #{_lambda_.18} parent=43 // pred_check_branch
        %361 = sbr.rel (%p359) target = $region48
      $region47: #{_lambda_.18} parent=43 // pred_region
        %s362 = smul.u32 2, %s22
        %p363 = scmp.lt.s32.totalorder %s21, 1
        %s364 = scalar_select %p363, %s21, 1
        %p365 = scmp.lt.s32.totalorder %s362, 3
        %s366 = scalar_select %p365, %s362, 3
        %s367 = smul.addr %s366, 2
        %s368 = smul.addr %s364, 8
        %s369 = sadd.s32 %s367, %s368
        %s370 = smul.addr %s369, 4
        %s371 = scalar_lea.vmem %s4, %s370
      $region48: #{_lambda_.18} parent=43 // pred_fallthru
        _
    $region44: #{_lambda_.18} parent=5 // pred_fallthru
      _
  $region6: #{_lambda_.18} parent=0 // loop_footer
    %s14 = sadd.s32 1, %s10
  $region7: #{_lambda_.18} parent=0 // loop_footer_branch
    %9 = sbr.rel target = $region3
  $region8: #{_lambda_.18} parent=0 // loop_exit
    _

// kernel: _lambda_.19
$region0: #{_lambda_.19}
  #allocation0 [shape = 'u32[]', space=smem, size = 0x4, offset = 0x4, fixed_abs, tag = 'smem constant byte address 0x4 - core index']
  #allocation1 [shape = 'u32[72,128]{1,0:T(1,128)}', space=vmem, size = 0x9000, scoped, tag = 'internal scratch']
  #allocation2 [shape = 'bf16[6,6,128]{2,1,0:T(8,128)(2,1)}', space=vmem, size = 0x3000, scoped, tag = 'scratch operand']
  %s0 = inlined_call_operand.vmem [shape: bf16[2,4,4,128], index: 0, kind: input, shape index: {}]
  %s1 = inlined_call_operand.vmem [shape: f32[1,128], index: 1, kind: input, shape index: {}]
  %s2 = inlined_call_operand.vmem [shape: f32[1,128], index: 2, kind: input, shape index: {}]
  %s3 = inlined_call_operand.vmem [shape: bf16[1152,64], index: 3, kind: input, shape index: {}]
  %s4 = inlined_call_operand.vmem [shape: bf16[2,4,4,64], index: 4, kind: output, shape index: {}]
  %s5 = sld [smem:[#allocation0]]
  $region53: #{_lambda_.19} parent=0
    _
  %s7 = ssub.s32 1, %s5
  %s8 = scalar_select 0, %s7, %s5
  loop: start=0, step=1, limit=4
  $region2: #{_lambda_.19} parent=0 // loop_pre_header
    _
  $region3: #{_lambda_.19} parent=0 // loop_header
    %s10 = sphi 0, %s14
    %p11 = scmp.ge.s32.totalorder %s10, 4
    %s17 = sphi 0, %s29
    %s18 = sphi 0, %s25
    %s19 = sphi 0, %s17
    %s20 = sphi 0, %s18
    %s21 = sphi 0, %s19
    %s22 = sphi 0, %s20
    %s32 = sphi 0, %s34
    %s35 = sphi 0, %s32
    %s36 = sphi 0, %s35
    %s52 = sphi 0, %s36
    %s56 = sphi 0, %s56
    %s58 = sphi 0, %s56
    %s59 = sphi 0, %s58
    %s73 = sphi 0, %s59
    %s77 = sphi 0, %s77
    %s79 = sphi 0, %s77
    %s80 = sphi 0, %s79
    %s94 = sphi 0, %s80
    %s98 = sphi 0, %s98
    %s100 = sphi 0, %s98
    %s101 = sphi 0, %s100
    %s115 = sphi 0, %s101
    %s123 = sphi 0, %s125
    %s126 = sphi 0, %s123
    %s127 = sphi 0, %s126
    %s143 = sphi 0, %s127
  $region4: #{_lambda_.19} parent=0 // loop_header_branch
    %13 = sbr.rel (%p11) target = $region8
  $region5: #{_lambda_.19} parent=0 // loop_body
    %s15 = ssub.s32 %s10, 1
    %s16 = ssub.s32 %s10, 2
    %s23 = sadd.s32 1, %s18
    %p24 = scmp.ge.s32.totalorder %s23, 1
    %s25 = scalar_select %p24, 0, %s23
    %s26 = sadd.s32 1, %s17
    %s27 = scalar_select %p24, %s26, %s17
    %p28 = scmp.ge.s32.totalorder %s27, 2
    %s29 = scalar_select %p28, 0, %s27
    %s30 = ssub.s32 %s17, %s29
    %p31 = scmp.eq.s32.totalorder %s30, 0
    %s33 = sadd.s32 %s32, 1
    %s34 = scalar_select %p31, %s32, %s33
    %p37 = pneg %p31
    %p38 = scmp.eq.s32.totalorder %s10, 1
    %p39 = por %p37, %p38
    %p40 = scmp.ne.s32.totalorder %s32, %s35
    %p41 = scmp.eq.s32.totalorder %s10, 0
    %p42 = por %p40, %p41
    %p43 = scmp.ne.s32.totalorder %s32, %s35
    %p44 = scmp.eq.s32.totalorder %s15, 1
    %p45 = por %p43, %p44
    %p46 = scmp.ne.s32.totalorder %s35, %s36
    %p47 = scmp.eq.s32.totalorder %s15, 0
    %p48 = por %p46, %p47
    %p49 = scmp.ne.s32.totalorder %s35, %s36
    %p50 = scmp.eq.s32.totalorder %s16, 1
    %p51 = por %p49, %p50
    %p53 = scmp.ne.s32.totalorder %s36, %s52
    %p54 = scmp.eq.s32.totalorder %s16, 0
    %p55 = por %p53, %p54
    %s57 = sadd.s32 %s56, 1
    %p60 = scmp.eq.s32.totalorder %s10, 1
    %p61 = scmp.ne.s32.totalorder %s56, %s58
    %p62 = scmp.eq.s32.totalorder %s10, 0
    %p63 = por %p61, %p62
    %p64 = scmp.ne.s32.totalorder %s56, %s58
    %p65 = scmp.eq.s32.totalorder %s15, 1
    %p66 = por %p64, %p65
    %p67 = scmp.ne.s32.totalorder %s58, %s59
    %p68 = scmp.eq.s32.totalorder %s15, 0
    %p69 = por %p67, %p68
    %p70 = scmp.ne.s32.totalorder %s58, %s59
    %p71 = scmp.eq.s32.totalorder %s16, 1
    %p72 = por %p70, %p71
    %p74 = scmp.ne.s32.totalorder %s59, %s73
    %p75 = scmp.eq.s32.totalorder %s16, 0
    %p76 = por %p74, %p75
    %s78 = sadd.s32 %s77, 1
    %p81 = scmp.eq.s32.totalorder %s10, 1
    %p82 = scmp.ne.s32.totalorder %s77, %s79
    %p83 = scmp.eq.s32.totalorder %s10, 0
    %p84 = por %p82, %p83
    %p85 = scmp.ne.s32.totalorder %s77, %s79
    %p86 = scmp.eq.s32.totalorder %s15, 1
    %p87 = por %p85, %p86
    %p88 = scmp.ne.s32.totalorder %s79, %s80
    %p89 = scmp.eq.s32.totalorder %s15, 0
    %p90 = por %p88, %p89
    %p91 = scmp.ne.s32.totalorder %s79, %s80
    %p92 = scmp.eq.s32.totalorder %s16, 1
    %p93 = por %p91, %p92
    %p95 = scmp.ne.s32.totalorder %s80, %s94
    %p96 = scmp.eq.s32.totalorder %s16, 0
    %p97 = por %p95, %p96
    %s99 = sadd.s32 %s98, 1
    %p102 = scmp.eq.s32.totalorder %s10, 1
    %p103 = scmp.ne.s32.totalorder %s98, %s100
    %p104 = scmp.eq.s32.totalorder %s10, 0
    %p105 = por %p103, %p104
    %p106 = scmp.ne.s32.totalorder %s98, %s100
    %p107 = scmp.eq.s32.totalorder %s15, 1
    %p108 = por %p106, %p107
    %p109 = scmp.ne.s32.totalorder %s100, %s101
    %p110 = scmp.eq.s32.totalorder %s15, 0
    %p111 = por %p109, %p110
    %p112 = scmp.ne.s32.totalorder %s100, %s101
    %p113 = scmp.eq.s32.totalorder %s16, 1
    %p114 = por %p112, %p113
    %p116 = scmp.ne.s32.totalorder %s101, %s115
    %p117 = scmp.eq.s32.totalorder %s16, 0
    %p118 = por %p116, %p117
    %s119 = ssub.s32 %s17, %s29
    %s120 = ssub.s32 %s18, %s25
    %s121 = sor.u32 %s119, %s120
    %p122 = scmp.eq.s32.totalorder %s121, 0
    %s124 = sadd.s32 %s123, 1
    %s125 = scalar_select %p122, %s123, %s124
    %p128 = pneg %p122
    %p129 = scmp.eq.s32.totalorder %s10, 1
    %p130 = por %p128, %p129
    %p131 = scmp.ne.s32.totalorder %s123, %s126
    %p132 = scmp.eq.s32.totalorder %s10, 0
    %p133 = por %p131, %p132
    %p134 = scmp.ne.s32.totalorder %s123, %s126
    %p135 = scmp.eq.s32.totalorder %s15, 1
    %p136 = por %p134, %p135
    %p137 = scmp.ne.s32.totalorder %s126, %s127
    %p138 = scmp.eq.s32.totalorder %s15, 0
    %p139 = por %p137, %p138
    %p140 = scmp.ne.s32.totalorder %s126, %s127
    %p141 = scmp.eq.s32.totalorder %s16, 1
    %p142 = por %p140, %p141
    %p144 = scmp.ne.s32.totalorder %s127, %s143
    %p145 = scmp.eq.s32.totalorder %s16, 0
    %p146 = por %p144, %p145
    %p147 = scmp.le.s32.totalorder 1, %s10
    %p148 = scmp.lt.s32.totalorder %s10, 3
    %p149 = pnand %p147, %p148
    %p150 = pneg %p149
    // Predicated region
    $region9: #{_lambda_.19} parent=5 // pred_check
      _
    $region10: #{_lambda_.19} parent=5 // pred_check_branch
      %152 = sbr.rel (%p149) target = $region12
    $region11: #{_lambda_.19} parent=5 // pred_region
      %s153 = ssub.s32 %s10, 1
      // Predicated region
      $region13: #{_lambda_.19} parent=11 // pred_check
        %p154 = pneg %p69
      $region14: #{_lambda_.19} parent=11 // pred_check_branch
        %156 = sbr.rel (%p154) target = $region16
      $region15: #{_lambda_.19} parent=11 // pred_region
        _
      $region16: #{_lambda_.19} parent=11 // pred_fallthru
        _
      // Predicated region
      $region17: #{_lambda_.19} parent=11 // pred_check
        %p157 = pneg %p90
      $region18: #{_lambda_.19} parent=11 // pred_check_branch
        %159 = sbr.rel (%p157) target = $region20
      $region19: #{_lambda_.19} parent=11 // pred_region
        _
      $region20: #{_lambda_.19} parent=11 // pred_fallthru
        _
      // Predicated region
      $region21: #{_lambda_.19} parent=11 // pred_check
        %p160 = pneg %p111
      $region22: #{_lambda_.19} parent=11 // pred_check_branch
        %162 = sbr.rel (%p160) target = $region24
      $region23: #{_lambda_.19} parent=11 // pred_region
        _
      $region24: #{_lambda_.19} parent=11 // pred_fallthru
        _
    $region12: #{_lambda_.19} parent=5 // pred_fallthru
      _
    %p163 = scmp.lt.s32.totalorder %s10, 2
    // Predicated region
    $region25: #{_lambda_.19} parent=5 // pred_check
      %p164 = pneg %p163
    $region26: #{_lambda_.19} parent=5 // pred_check_branch
      %166 = sbr.rel (%p164) target = $region28
    $region27: #{_lambda_.19} parent=5 // pred_region
      // Predicated region
      $region29: #{_lambda_.19} parent=27 // pred_check
        %p167 = pneg %p42
      $region30: #{_lambda_.19} parent=27 // pred_check_branch
        %169 = sbr.rel (%p167) target = $region32
      $region31: #{_lambda_.19} parent=27 // pred_region
        %p170 = scmp.lt.s32.totalorder %s17, 1
        %s171 = scalar_select %p170, %s17, 1
        %s172 = smul.addr %s171, 4
        %s173 = smul.addr %s172, 2
        %s174 = scalar_lea.vmem %s0, %s173
      $region32: #{_lambda_.19} parent=27 // pred_fallthru
        _
    $region28: #{_lambda_.19} parent=5 // pred_fallthru
      _
    %p175 = scmp.le.s32.totalorder 1, %s10
    %p176 = scmp.lt.s32.totalorder %s10, 3
    %p177 = pnand %p175, %p176
    %p178 = pneg %p177
    // Predicated region
    $region33: #{_lambda_.19} parent=5 // pred_check
      _
    $region34: #{_lambda_.19} parent=5 // pred_check_branch
      %180 = sbr.rel (%p177) target = $region36
    $region35: #{_lambda_.19} parent=5 // pred_region
      %s181 = ssub.s32 %s10, 1
      %p182 = scmp.lt.s32.totalorder %s19, 1
      %s183 = scalar_select %p182, %s19, 1
      %s184 = smul.addr %s183, 4
      %s185 = smul.addr %s184, 2
      %s186 = scalar_lea.vmem %s0, %s185
      %p187 = pneg %p48
      %p188 = pneg %p45
      %p189 = pneg %p69
      %p190 = pneg %p66
      %p191 = pneg %p90
      %p192 = pneg %p87
      %p193 = pneg %p111
      %p194 = pneg %p108
      %p195 = pneg %p139
      %p196 = pneg %p136
      %s197 = smul.u32 4, %s20
      %p198 = scmp.lt.s32.totalorder %s19, 1
      %s199 = scalar_select %p198, %s19, 1
      %p200 = scmp.lt.s32.totalorder %s197, 3
      %s201 = scalar_select %p200, %s197, 3
      %s202 = smul.addr %s199, 4
      %s203 = sadd.s32 %s201, %s202
      %s204 = smul.addr %s203, 2
      %s205 = scalar_lea.vmem %s4, %s204
      %p206 = scmp.lt.s32.totalorder %s19, 1
      %s207 = scalar_select %p206, %s19, 1
      %s208 = smul.addr %s207, 4
      %s209 = smul.addr %s208, 2
      %s210 = scalar_lea.vmem %s0, %s209
      %s211 = smul.u32 4, %s20
      %p212 = scmp.lt.s32.totalorder %s19, 1
      %s213 = scalar_select %p212, %s19, 1
      %p214 = scmp.lt.s32.totalorder %s211, 3
      %s215 = scalar_select %p214, %s211, 3
      %s216 = smul.addr %s213, 4
      %s217 = sadd.s32 %s215, %s216
      %s218 = smul.addr %s217, 2
      %s219 = scalar_lea.vmem %s4, %s218
      %s220 = smul.u32 4, %s20
      %p222 = scmp.eq.s32.totalorder %s20, 0
      // Predicated region
      $region37: #{_lambda_.19} parent=35 // pred_check
        %p223 = pneg %p222
      $region38: #{_lambda_.19} parent=35 // pred_check_branch
        %225 = sbr.rel (%p223) target = $region40
      $region39: #{_lambda_.19} parent=35 // pred_region
        %226 = vst [vmem:[#allocation2] sm:$0x7] 0
        %227 = vst [vmem:[#allocation2 + $0x4] sm:$0x7] 0
        %228 = vst [vmem:[#allocation2 + $0x8] sm:$0x7] 0
        %229 = vst [vmem:[#allocation2 + $0xc] sm:$0x7] 0
        %230 = vst [vmem:[#allocation2 + $0x10] sm:$0x7] 0
        %231 = vst [vmem:[#allocation2 + $0x14] sm:$0x7] 0
        %v232 = vld [vmem:[%s210] sm:$0x3]
        %v233 = vld [vmem:[%s210 + $0x2] sm:$0x3]
        %v234 = vld [vmem:[%s210 + $0x4] sm:$0x3]
        %v235 = vld [vmem:[%s210 + $0x6] sm:$0x3]
        %v236 = vunpack.c.l.bf16 %v232
        %v237 = vunpack.c.l.bf16 %v233
        %v238 = vunpack.c.l.bf16 %v234
        %v239 = vunpack.c.l.bf16 %v235
        %v240 = vld [vmem:[%s1] sm:$0x1]
        %v242 = vperm.slane %v240, 0
        %v244 = vmul.f32 %v236, %v242
        %v245 = vmul.f32 %v237, %v242
        %v246 = vmul.f32 %v238, %v242
        %v247 = vmul.f32 %v239, %v242
        %v248 = vld [vmem:[%s2] sm:$0x1]
        %v250 = vperm.slane %v248, 0
        %v252 = vadd.f32 %v244, %v250
        %v253 = vadd.f32 %v245, %v250
        %v254 = vadd.f32 %v246, %v250
        %v255 = vadd.f32 %v247, %v250
        %v256 = vmax.f32 %v252, 0.0
        %v257 = vmax.f32 %v253, 0.0
        %v258 = vmax.f32 %v254, 0.0
        %v259 = vmax.f32 %v255, 0.0
        %v260 = vpack.c.bf16 %v256, %v256
        %v261 = vpack.c.bf16 %v257, %v257
        %v262 = vpack.c.bf16 %v258, %v258
        %v263 = vpack.c.bf16 %v259, %v259
        %v265 = vshrl.u32 %v260, 16
        %v267 = vrot.slane %v265, 7
        %v268 = vshll.u32 %v260, 16
        %v270 = vor.u32 %v267, %v268
        %v272 = vshrl.u32 %v261, 16
        %v274 = vrot.slane %v272, 7
        %v275 = vshll.u32 %v261, 16
        %v277 = vor.u32 %v274, %v275
        %v279 = vshrl.u32 %v262, 16
        %v281 = vrot.slane %v279, 7
        %v282 = vshll.u32 %v262, 16
        %v284 = vor.u32 %v281, %v282
        %v286 = vshrl.u32 %v263, 16
        %v288 = vrot.slane %v286, 7
        %v289 = vshll.u32 %v263, 16
        %v291 = vor.u32 %v288, %v289
        %s296 = scalar_lea.vmem [#allocation2], 4
        %vm297 = vcmask 1042432
        %vm298 = vsmask.f32 2306
        %vm299 = vmand %vm297, %vm298
        %v300 = vld [vmem:[%s296] sm:$0x7]
        %v301 = vsel %vm299, %v270, %v300
        %302 = vst [vmem:[%s296] sm:$0x7] %v301
        %v303 = vld [vmem:[%s296 + $0x4] sm:$0x7]
        %v304 = vsel %vm299, %v277, %v303
        %305 = vst [vmem:[%s296 + $0x4] sm:$0x7] %v304
        %v306 = vld [vmem:[%s296 + $0x8] sm:$0x7]
        %v307 = vsel %vm299, %v284, %v306
        %308 = vst [vmem:[%s296 + $0x8] sm:$0x7] %v307
        %v309 = vld [vmem:[%s296 + $0xc] sm:$0x7]
        %v310 = vsel %vm299, %v291, %v309
        %311 = vst [vmem:[%s296 + $0xc] sm:$0x7] %v310
      $region40: #{_lambda_.19} parent=35 // pred_fallthru
        _
      %s312 = smul.u32 %s20, 4
      %s313 = smul.addr %s312, 4
      %s314 = scalar_lea.vmem [#allocation2], %s313
      %v315 = vld [vmem:[%s314] sm:$0x3]
      %v316 = vld [vmem:[%s314 + $0x4] sm:$0x3]
      %v317 = vld [vmem:[%s314 + $0x8] sm:$0x3]
      %v318 = vld [vmem:[%s314 + $0xc] sm:$0x3]
      %v319 = vld [vmem:[%s314] sm:$0x7]
      %v320 = vld [vmem:[%s314 + $0x4] sm:$0x7]
      %v321 = vld [vmem:[%s314 + $0x8] sm:$0x7]
      %v322 = vld [vmem:[%s314 + $0xc] sm:$0x7]
      %v327 = vrot.slane %v319, 2
      %v328 = vrot.slane %v320, 2
      %v329 = vrot.slane %v321, 2
      %v330 = vrot.slane %v322, 2
      %vm331 = vcmask 1041408
      %v334 = vsel %vm331, %v319, %v327
      %vm335 = vcmask 1043458
      %v336 = vsel %vm335, %v319, %v327
      %v338 = vrot.slane %v336, 2
      %v341 = vsel %vm331, %v320, %v328
      %v342 = vsel %vm335, %v320, %v328
      %v344 = vrot.slane %v342, 2
      %v347 = vsel %vm331, %v321, %v329
      %v348 = vsel %vm335, %v321, %v329
      %v350 = vrot.slane %v348, 2
      %v353 = vsel %vm331, %v322, %v330
      %v354 = vsel %vm335, %v322, %v330
      %v356 = vrot.slane %v354, 2
      %vm357 = vsmask.f32 1280
      %vm358 = vsmask.f32 3336
      %vm359 = vmor %vm357, %vm358
      %vm360 = vsmask.f32 5392
      %vm361 = vmor %vm359, %vm360
      %vm362 = vsmask.f32 7448
      %vm363 = vmor %vm361, %vm362
      %v364 = vshrl.u32 %v334, 16
      %v366 = vrot.slane %v364, 6
      %v367 = vshll.u32 %v334, 16
      %v369 = vrot.slane %v367, 7
      %v370 = vor.u32 %v366, %v369
      %v371 = vrot.slane %v370, 2
      %v373 = vshll.u32 %v338, 16
      %v375 = vrot.slane %v373, 7
      %v376 = vsel %vm363, %v371, %v375
      %v377 = vshrl.u32 %v341, 16
      %v379 = vrot.slane %v377, 6
      %v380 = vshll.u32 %v341, 16
      %v382 = vrot.slane %v380, 7
      %v383 = vor.u32 %v379, %v382
      %v384 = vrot.slane %v383, 2
      %v386 = vshll.u32 %v344, 16
      %v388 = vrot.slane %v386, 7
      %v389 = vsel %vm363, %v384, %v388
      %v390 = vshrl.u32 %v347, 16
      %v392 = vrot.slane %v390, 6
      %v393 = vshll.u32 %v347, 16
      %v395 = vrot.slane %v393, 7
      %v396 = vor.u32 %v392, %v395
      %v397 = vrot.slane %v396, 2
      %v399 = vshll.u32 %v350, 16
      %v401 = vrot.slane %v399, 7
      %v402 = vsel %vm363, %v397, %v401
      %v403 = vshrl.u32 %v353, 16
      %v405 = vrot.slane %v403, 6
      %v406 = vshll.u32 %v353, 16
      %v408 = vrot.slane %v406, 7
      %v409 = vor.u32 %v405, %v408
      %v410 = vrot.slane %v409, 2
      %v412 = vshll.u32 %v356, 16
      %v414 = vrot.slane %v412, 7
      %v415 = vsel %vm363, %v410, %v414
      %v416 = vld [vmem:[%s314] sm:$0x6]
      %v417 = vld [vmem:[%s314 + $0x4] sm:$0x6]
      %v418 = vld [vmem:[%s314 + $0x8] sm:$0x6]
      %v419 = vld [vmem:[%s314 + $0xc] sm:$0x6]
      %v424 = vrot.slane %v416, 2
      %v425 = vrot.slane %v417, 2
      %v426 = vrot.slane %v418, 2
      %v427 = vrot.slane %v419, 2
      %v430 = vsel %vm331, %v416, %v424
      %v432 = vsel %vm335, %v416, %v424
      %v434 = vrot.slane %v432, 2
      %v437 = vsel %vm331, %v417, %v425
      %v439 = vsel %vm335, %v417, %v425
      %v441 = vrot.slane %v439, 2
      %v444 = vsel %vm331, %v418, %v426
      %v446 = vsel %vm335, %v418, %v426
      %v448 = vrot.slane %v446, 2
      %v451 = vsel %vm331, %v419, %v427
      %v453 = vsel %vm335, %v419, %v427
      %v455 = vrot.slane %v453, 2
      %vm456 = vcmask 1040384
      %vm457 = vcmask 1042434
      %vm458 = vmor %vm456, %vm457
      %vm459 = vcmask 1044484
      %vm460 = vmor %vm458, %vm459
      %vm461 = vcmask 1046534
      %vm462 = vmor %vm460, %vm461
      %v463 = vrot.slane %v430, 7
      %v464 = vrot.slane %v463, 2
      %v465 = vrot.slane %v434, 7
      %v466 = vsel %vm462, %v464, %v465
      %v467 = vrot.slane %v437, 7
      %v468 = vrot.slane %v467, 2
      %v469 = vrot.slane %v441, 7
      %v470 = vsel %vm462, %v468, %v469
      %v471 = vrot.slane %v444, 7
      %v472 = vrot.slane %v471, 2
      %v473 = vrot.slane %v448, 7
      %v474 = vsel %vm462, %v472, %v473
      %v475 = vrot.slane %v451, 7
      %v476 = vrot.slane %v475, 2
      %v477 = vrot.slane %v455, 7
      %v478 = vsel %vm462, %v476, %v477
      %s479 = sadd.s32 %s312, 1
      %s480 = smul.addr %s479, 4
      %s481 = scalar_lea.vmem [#allocation2], %s480
      %v482 = vld [vmem:[%s481] sm:$0x3]
      %v483 = vld [vmem:[%s481 + $0x4] sm:$0x3]
      %v484 = vld [vmem:[%s481 + $0x8] sm:$0x3]
      %v485 = vld [vmem:[%s481 + $0xc] sm:$0x3]
      %v486 = vld [vmem:[%s481] sm:$0x7]
      %v487 = vld [vmem:[%s481 + $0x4] sm:$0x7]
      %v488 = vld [vmem:[%s481 + $0x8] sm:$0x7]
      %v489 = vld [vmem:[%s481 + $0xc] sm:$0x7]
      %v494 = vrot.slane %v486, 2
      %v495 = vrot.slane %v487, 2
      %v496 = vrot.slane %v488, 2
      %v497 = vrot.slane %v489, 2
      %v500 = vsel %vm331, %v486, %v494
      %v501 = vsel %vm335, %v486, %v494
      %v503 = vrot.slane %v501, 2
      %v506 = vsel %vm331, %v487, %v495
      %v507 = vsel %vm335, %v487, %v495
      %v509 = vrot.slane %v507, 2
      %v512 = vsel %vm331, %v488, %v496
      %v513 = vsel %vm335, %v488, %v496
      %v515 = vrot.slane %v513, 2
      %v518 = vsel %vm331, %v489, %v497
      %v519 = vsel %vm335, %v489, %v497
      %v521 = vrot.slane %v519, 2
      %v522 = vshrl.u32 %v500, 16
      %v524 = vrot.slane %v522, 6
      %v525 = vshll.u32 %v500, 16
      %v527 = vrot.slane %v525, 7
      %v528 = vor.u32 %v524, %v527
      %v529 = vrot.slane %v528, 2
      %v531 = vshll.u32 %v503, 16
      %v533 = vrot.slane %v531, 7
      %v534 = vsel %vm363, %v529, %v533
      %v535 = vshrl.u32 %v506, 16
      %v537 = vrot.slane %v535, 6
      %v538 = vshll.u32 %v506, 16
      %v540 = vrot.slane %v538, 7
      %v541 = vor.u32 %v537, %v540
      %v542 = vrot.slane %v541, 2
      %v544 = vshll.u32 %v509, 16
      %v546 = vrot.slane %v544, 7
      %v547 = vsel %vm363, %v542, %v546
      %v548 = vshrl.u32 %v512, 16
      %v550 = vrot.slane %v548, 6
      %v551 = vshll.u32 %v512, 16
      %v553 = vrot.slane %v551, 7
      %v554 = vor.u32 %v550, %v553
      %v555 = vrot.slane %v554, 2
      %v557 = vshll.u32 %v515, 16
      %v559 = vrot.slane %v557, 7
      %v560 = vsel %vm363, %v555, %v559
      %v561 = vshrl.u32 %v518, 16
      %v563 = vrot.slane %v561, 6
      %v564 = vshll.u32 %v518, 16
      %v566 = vrot.slane %v564, 7
      %v567 = vor.u32 %v563, %v566
      %v568 = vrot.slane %v567, 2
      %v570 = vshll.u32 %v521, 16
      %v572 = vrot.slane %v570, 7
      %v573 = vsel %vm363, %v568, %v572
      %v574 = vld [vmem:[%s481] sm:$0x6]
      %v575 = vld [vmem:[%s481 + $0x4] sm:$0x6]
      %v576 = vld [vmem:[%s481 + $0x8] sm:$0x6]
      %v577 = vld [vmem:[%s481 + $0xc] sm:$0x6]
      %v582 = vrot.slane %v574, 2
      %v583 = vrot.slane %v575, 2
      %v584 = vrot.slane %v576, 2
      %v585 = vrot.slane %v577, 2
      %v588 = vsel %vm331, %v574, %v582
      %v590 = vsel %vm335, %v574, %v582
      %v592 = vrot.slane %v590, 2
      %v595 = vsel %vm331, %v575, %v583
      %v597 = vsel %vm335, %v575, %v583
      %v599 = vrot.slane %v597, 2
      %v602 = vsel %vm331, %v576, %v584
      %v604 = vsel %vm335, %v576, %v584
      %v606 = vrot.slane %v604, 2
      %v609 = vsel %vm331, %v577, %v585
      %v611 = vsel %vm335, %v577, %v585
      %v613 = vrot.slane %v611, 2
      %v614 = vrot.slane %v588, 7
      %v615 = vrot.slane %v614, 2
      %v616 = vrot.slane %v592, 7
      %v617 = vsel %vm462, %v615, %v616
      %v618 = vrot.slane %v595, 7
      %v619 = vrot.slane %v618, 2
      %v620 = vrot.slane %v599, 7
      %v621 = vsel %vm462, %v619, %v620
      %v622 = vrot.slane %v602, 7
      %v623 = vrot.slane %v622, 2
      %v624 = vrot.slane %v606, 7
      %v625 = vsel %vm462, %v623, %v624
      %v626 = vrot.slane %v609, 7
      %v627 = vrot.slane %v626, 2
      %v628 = vrot.slane %v613, 7
      %v629 = vsel %vm462, %v627, %v628
      %s630 = sadd.s32 %s312, 2
      %s631 = smul.addr %s630, 4
      %s632 = scalar_lea.vmem [#allocation2], %s631
      %v633 = vld [vmem:[%s632] sm:$0x3]
      %v634 = vld [vmem:[%s632 + $0x4] sm:$0x3]
      %v635 = vld [vmem:[%s632 + $0x8] sm:$0x3]
      %v636 = vld [vmem:[%s632 + $0xc] sm:$0x3]
      %v637 = vld [vmem:[%s632] sm:$0x7]
      %v638 = vld [vmem:[%s632 + $0x4] sm:$0x7]
      %v639 = vld [vmem:[%s632 + $0x8] sm:$0x7]
      %v640 = vld [vmem:[%s632 + $0xc] sm:$0x7]
      %v645 = vrot.slane %v637, 2
      %v646 = vrot.slane %v638, 2
      %v647 = vrot.slane %v639, 2
      %v648 = vrot.slane %v640, 2
      %v651 = vsel %vm331, %v637, %v645
      %v652 = vsel %vm335, %v637, %v645
      %v654 = vrot.slane %v652, 2
      %v657 = vsel %vm331, %v638, %v646
      %v658 = vsel %vm335, %v638, %v646
      %v660 = vrot.slane %v658, 2
      %v663 = vsel %vm331, %v639, %v647
      %v664 = vsel %vm335, %v639, %v647
      %v666 = vrot.slane %v664, 2
      %v669 = vsel %vm331, %v640, %v648
      %v670 = vsel %vm335, %v640, %v648
      %v672 = vrot.slane %v670, 2
      %v673 = vshrl.u32 %v651, 16
      %v675 = vrot.slane %v673, 6
      %v676 = vshll.u32 %v651, 16
      %v678 = vrot.slane %v676, 7
      %v679 = vor.u32 %v675, %v678
      %v680 = vrot.slane %v679, 2
      %v682 = vshll.u32 %v654, 16
      %v684 = vrot.slane %v682, 7
      %v685 = vsel %vm363, %v680, %v684
      %v686 = vshrl.u32 %v657, 16
      %v688 = vrot.slane %v686, 6
      %v689 = vshll.u32 %v657, 16
      %v691 = vrot.slane %v689, 7
      %v692 = vor.u32 %v688, %v691
      %v693 = vrot.slane %v692, 2
      %v695 = vshll.u32 %v660, 16
      %v697 = vrot.slane %v695, 7
      %v698 = vsel %vm363, %v693, %v697
      %v699 = vshrl.u32 %v663, 16
      %v701 = vrot.slane %v699, 6
      %v702 = vshll.u32 %v663, 16
      %v704 = vrot.slane %v702, 7
      %v705 = vor.u32 %v701, %v704
      %v706 = vrot.slane %v705, 2
      %v708 = vshll.u32 %v666, 16
      %v710 = vrot.slane %v708, 7
      %v711 = vsel %vm363, %v706, %v710
      %v712 = vshrl.u32 %v669, 16
      %v714 = vrot.slane %v712, 6
      %v715 = vshll.u32 %v669, 16
      %v717 = vrot.slane %v715, 7
      %v718 = vor.u32 %v714, %v717
      %v719 = vrot.slane %v718, 2
      %v721 = vshll.u32 %v672, 16
      %v723 = vrot.slane %v721, 7
      %v724 = vsel %vm363, %v719, %v723
      %v725 = vld [vmem:[%s632] sm:$0x6]
      %v726 = vld [vmem:[%s632 + $0x4] sm:$0x6]
      %v727 = vld [vmem:[%s632 + $0x8] sm:$0x6]
      %v728 = vld [vmem:[%s632 + $0xc] sm:$0x6]
      %v733 = vrot.slane %v725, 2
      %v734 = vrot.slane %v726, 2
      %v735 = vrot.slane %v727, 2
      %v736 = vrot.slane %v728, 2
      %v739 = vsel %vm331, %v725, %v733
      %v741 = vsel %vm335, %v725, %v733
      %v743 = vrot.slane %v741, 2
      %v746 = vsel %vm331, %v726, %v734
      %v748 = vsel %vm335, %v726, %v734
      %v750 = vrot.slane %v748, 2
      %v753 = vsel %vm331, %v727, %v735
      %v755 = vsel %vm335, %v727, %v735
      %v757 = vrot.slane %v755, 2
      %v760 = vsel %vm331, %v728, %v736
      %v762 = vsel %vm335, %v728, %v736
      %v764 = vrot.slane %v762, 2
      %v765 = vrot.slane %v739, 7
      %v766 = vrot.slane %v765, 2
      %v767 = vrot.slane %v743, 7
      %v768 = vsel %vm462, %v766, %v767
      %v769 = vrot.slane %v746, 7
      %v770 = vrot.slane %v769, 2
      %v771 = vrot.slane %v750, 7
      %v772 = vsel %vm462, %v770, %v771
      %v773 = vrot.slane %v753, 7
      %v774 = vrot.slane %v773, 2
      %v775 = vrot.slane %v757, 7
      %v776 = vsel %vm462, %v774, %v775
      %v777 = vrot.slane %v760, 7
      %v778 = vrot.slane %v777, 2
      %v779 = vrot.slane %v764, 7
      %v780 = vsel %vm462, %v778, %v779
      %782 = vst [vmem:[#allocation1] ss:$4 sm:$0xff] %v315
      %s784 = scalar_lea.vmem [#allocation1], 1
      %785 = vst [vmem:[%s784] ss:$4 sm:$0xff] %v316
      %s787 = scalar_lea.vmem [#allocation1], 2
      %788 = vst [vmem:[%s787] ss:$4 sm:$0xff] %v317
      %s790 = scalar_lea.vmem [#allocation1], 3
      %791 = vst [vmem:[%s790] ss:$4 sm:$0xff] %v318
      %v792 = vld.sshfl [vmem:[#allocation1] sm:$0xff pattern:$0x73625140]
      %795 = vst [vmem:[#allocation1] ss:$4 sm:$0xff] %v376
      %s797 = scalar_lea.vmem [#allocation1], 1
      %798 = vst [vmem:[%s797] ss:$4 sm:$0xff] %v389
      %s800 = scalar_lea.vmem [#allocation1], 2
      %801 = vst [vmem:[%s800] ss:$4 sm:$0xff] %v402
      %s803 = scalar_lea.vmem [#allocation1], 3
      %804 = vst [vmem:[%s803] ss:$4 sm:$0xff] %v415
      %v805 = vld.sshfl [vmem:[#allocation1] sm:$0xff pattern:$0x73625140]
      %808 = vst [vmem:[#allocation1] ss:$4 sm:$0xff] %v466
      %s810 = scalar_lea.vmem [#allocation1], 1
      %811 = vst [vmem:[%s810] ss:$4 sm:$0xff] %v470
      %s813 = scalar_lea.vmem [#allocation1], 2
      %814 = vst [vmem:[%s813] ss:$4 sm:$0xff] %v474
      %s816 = scalar_lea.vmem [#allocation1], 3
      %817 = vst [vmem:[%s816] ss:$4 sm:$0xff] %v478
      %v818 = vld.sshfl [vmem:[#allocation1] sm:$0xff pattern:$0x73625140]
      %821 = vst [vmem:[#allocation1] ss:$4 sm:$0xff] %v482
      %s823 = scalar_lea.vmem [#allocation1], 1
      %824 = vst [vmem:[%s823] ss:$4 sm:$0xff] %v483
      %s826 = scalar_lea.vmem [#allocation1], 2
      %827 = vst [vmem:[%s826] ss:$4 sm:$0xff] %v484
      %s829 = scalar_lea.vmem [#allocation1], 3
      %830 = vst [vmem:[%s829] ss:$4 sm:$0xff] %v485
      %v831 = vld.sshfl [vmem:[#allocation1] sm:$0xff pattern:$0x73625140]
      %834 = vst [vmem:[#allocation1] ss:$4 sm:$0xff] %v534
      %s836 = scalar_lea.vmem [#allocation1], 1
      %837 = vst [vmem:[%s836] ss:$4 sm:$0xff] %v547
      %s839 = scalar_lea.vmem [#allocation1], 2
      %840 = vst [vmem:[%s839] ss:$4 sm:$0xff] %v560
      %s842 = scalar_lea.vmem [#allocation1], 3
      %843 = vst [vmem:[%s842] ss:$4 sm:$0xff] %v573
      %v844 = vld.sshfl [vmem:[#allocation1] sm:$0xff pattern:$0x73625140]
      %847 = vst [vmem:[#allocation1] ss:$4 sm:$0xff] %v617
      %s849 = scalar_lea.vmem [#allocation1], 1
      %850 = vst [vmem:[%s849] ss:$4 sm:$0xff] %v621
      %s852 = scalar_lea.vmem [#allocation1], 2
      %853 = vst [vmem:[%s852] ss:$4 sm:$0xff] %v625
      %s855 = scalar_lea.vmem [#allocation1], 3
      %856 = vst [vmem:[%s855] ss:$4 sm:$0xff] %v629
      %v857 = vld.sshfl [vmem:[#allocation1] sm:$0xff pattern:$0x73625140]
      %860 = vst [vmem:[#allocation1] ss:$4 sm:$0xff] %v633
      %s862 = scalar_lea.vmem [#allocation1], 1
      %863 = vst [vmem:[%s862] ss:$4 sm:$0xff] %v634
      %s865 = scalar_lea.vmem [#allocation1], 2
      %866 = vst [vmem:[%s865] ss:$4 sm:$0xff] %v635
      %s868 = scalar_lea.vmem [#allocation1], 3
      %869 = vst [vmem:[%s868] ss:$4 sm:$0xff] %v636
      %v870 = vld.sshfl [vmem:[#allocation1] sm:$0xff pattern:$0x73625140]
      %873 = vst [vmem:[#allocation1] ss:$4 sm:$0xff] %v685
      %s875 = scalar_lea.vmem [#allocation1], 1
      %876 = vst [vmem:[%s875] ss:$4 sm:$0xff] %v698
      %s878 = scalar_lea.vmem [#allocation1], 2
      %879 = vst [vmem:[%s878] ss:$4 sm:$0xff] %v711
      %s881 = scalar_lea.vmem [#allocation1], 3
      %882 = vst [vmem:[%s881] ss:$4 sm:$0xff] %v724
      %v883 = vld.sshfl [vmem:[#allocation1] sm:$0xff pattern:$0x73625140]
      %886 = vst [vmem:[#allocation1] ss:$4 sm:$0xff] %v768
      %s888 = scalar_lea.vmem [#allocation1], 1
      %889 = vst [vmem:[%s888] ss:$4 sm:$0xff] %v772
      %s891 = scalar_lea.vmem [#allocation1], 2
      %892 = vst [vmem:[%s891] ss:$4 sm:$0xff] %v776
      %s894 = scalar_lea.vmem [#allocation1], 3
      %895 = vst [vmem:[%s894] ss:$4 sm:$0xff] %v780
      %v896 = vld.sshfl [vmem:[#allocation1] sm:$0xff pattern:$0x73625140]
      %v898 = vld [vmem:[%s3] sm:$0xf]
      %v899 = vld [vmem:[%s3 + $0x4] sm:$0xf]
      %v900 = vld [vmem:[%s3 + $0x8] sm:$0xf]
      %v901 = vld [vmem:[%s3 + $0xc] sm:$0xf]
      %v902 = vld [vmem:[%s3 + $0x10] sm:$0xf]
      %v903 = vld [vmem:[%s3 + $0x14] sm:$0xf]
      %v904 = vld [vmem:[%s3 + $0x18] sm:$0xf]
      %v905 = vld [vmem:[%s3 + $0x1c] sm:$0xf]
      %v906 = vld [vmem:[%s3 + $0x20] sm:$0xf]
      %v907 = vld [vmem:[%s3 + $0x24] sm:$0xf]
      %v908 = vld [vmem:[%s3 + $0x28] sm:$0xf]
      %v909 = vld [vmem:[%s3 + $0x2c] sm:$0xf]
      %v910 = vld [vmem:[%s3 + $0x30] sm:$0xf]
      %v911 = vld [vmem:[%s3 + $0x34] sm:$0xf]
      %v912 = vld [vmem:[%s3 + $0x38] sm:$0xf]
      %v913 = vld [vmem:[%s3 + $0x3c] sm:$0xf]
      %v914 = vld [vmem:[%s3 + $0x40] sm:$0xf]
      %v915 = vld [vmem:[%s3 + $0x44] sm:$0xf]
      %v916 = vld [vmem:[%s3 + $0x48] sm:$0xf]
      %v917 = vld [vmem:[%s3 + $0x4c] sm:$0xf]
      %v918 = vld [vmem:[%s3 + $0x50] sm:$0xf]
      %v919 = vld [vmem:[%s3 + $0x54] sm:$0xf]
      %v920 = vld [vmem:[%s3 + $0x58] sm:$0xf]
      %v921 = vld [vmem:[%s3 + $0x5c] sm:$0xf]
      %v922 = vld [vmem:[%s3 + $0x60] sm:$0xf]
      %v923 = vld [vmem:[%s3 + $0x64] sm:$0xf]
      %v924 = vld [vmem:[%s3 + $0x68] sm:$0xf]
      %v925 = vld [vmem:[%s3 + $0x6c] sm:$0xf]
      %v926 = vld [vmem:[%s3 + $0x70] sm:$0xf]
      %v927 = vld [vmem:[%s3 + $0x74] sm:$0xf]
      %v928 = vld [vmem:[%s3 + $0x78] sm:$0xf]
      %v929 = vld [vmem:[%s3 + $0x7c] sm:$0xf]
      %v930 = vld [vmem:[%s3 + $0x80] sm:$0xf]
      %v931 = vld [vmem:[%s3 + $0x84] sm:$0xf]
      %v932 = vld [vmem:[%s3 + $0x88] sm:$0xf]
      %v933 = vld [vmem:[%s3 + $0x8c] sm:$0xf]
      %v934 = vld [vmem:[%s3 + $0x90] sm:$0xf]
      %v935 = vld [vmem:[%s3 + $0x94] sm:$0xf]
      %v936 = vld [vmem:[%s3 + $0x98] sm:$0xf]
      %v937 = vld [vmem:[%s3 + $0x9c] sm:$0xf]
      %v938 = vld [vmem:[%s3 + $0xa0] sm:$0xf]
      %v939 = vld [vmem:[%s3 + $0xa4] sm:$0xf]
      %v940 = vld [vmem:[%s3 + $0xa8] sm:$0xf]
      %v941 = vld [vmem:[%s3 + $0xac] sm:$0xf]
      %v942 = vld [vmem:[%s3 + $0xb0] sm:$0xf]
      %v943 = vld [vmem:[%s3 + $0xb4] sm:$0xf]
      %v944 = vld [vmem:[%s3 + $0xb8] sm:$0xf]
      %v945 = vld [vmem:[%s3 + $0xbc] sm:$0xf]
      %v946 = vld [vmem:[%s3 + $0xc0] sm:$0xf]
      %v947 = vld [vmem:[%s3 + $0xc4] sm:$0xf]
      %v948 = vld [vmem:[%s3 + $0xc8] sm:$0xf]
      %v949 = vld [vmem:[%s3 + $0xcc] sm:$0xf]
      %v950 = vld [vmem:[%s3 + $0xd0] sm:$0xf]
      %v951 = vld [vmem:[%s3 + $0xd4] sm:$0xf]
      %v952 = vld [vmem:[%s3 + $0xd8] sm:$0xf]
      %v953 = vld [vmem:[%s3 + $0xdc] sm:$0xf]
      %v954 = vld [vmem:[%s3 + $0xe0] sm:$0xf]
      %v955 = vld [vmem:[%s3 + $0xe4] sm:$0xf]
      %v956 = vld [vmem:[%s3 + $0xe8] sm:$0xf]
      %v957 = vld [vmem:[%s3 + $0xec] sm:$0xf]
      %v958 = vld [vmem:[%s3 + $0xf0] sm:$0xf]
      %v959 = vld [vmem:[%s3 + $0xf4] sm:$0xf]
      %v960 = vld [vmem:[%s3 + $0xf8] sm:$0xf]
      %v961 = vld [vmem:[%s3 + $0xfc] sm:$0xf]
      %v962 = vld [vmem:[%s3 + $0x100] sm:$0xf]
      %v963 = vld [vmem:[%s3 + $0x104] sm:$0xf]
      %v964 = vld [vmem:[%s3 + $0x108] sm:$0xf]
      %v965 = vld [vmem:[%s3 + $0x10c] sm:$0xf]
      %v966 = vld [vmem:[%s3 + $0x110] sm:$0xf]
      %v967 = vld [vmem:[%s3 + $0x114] sm:$0xf]
      %v968 = vld [vmem:[%s3 + $0x118] sm:$0xf]
      %v969 = vld [vmem:[%s3 + $0x11c] sm:$0xf]
      %v970 = vld [vmem:[%s3 + $0x120] sm:$0xf]
      %v971 = vld [vmem:[%s3 + $0x124] sm:$0xf]
      %v972 = vld [vmem:[%s3 + $0x128] sm:$0xf]
      %v973 = vld [vmem:[%s3 + $0x12c] sm:$0xf]
      %v974 = vld [vmem:[%s3 + $0x130] sm:$0xf]
      %v975 = vld [vmem:[%s3 + $0x134] sm:$0xf]
      %v976 = vld [vmem:[%s3 + $0x138] sm:$0xf]
      %v977 = vld [vmem:[%s3 + $0x13c] sm:$0xf]
      %v978 = vld [vmem:[%s3 + $0x140] sm:$0xf]
      %v979 = vld [vmem:[%s3 + $0x144] sm:$0xf]
      %v980 = vld [vmem:[%s3 + $0x148] sm:$0xf]
      %v981 = vld [vmem:[%s3 + $0x14c] sm:$0xf]
      %v982 = vld [vmem:[%s3 + $0x150] sm:$0xf]
      %v983 = vld [vmem:[%s3 + $0x154] sm:$0xf]
      %v984 = vld [vmem:[%s3 + $0x158] sm:$0xf]
      %v985 = vld [vmem:[%s3 + $0x15c] sm:$0xf]
      %v986 = vld [vmem:[%s3 + $0x160] sm:$0xf]
      %v987 = vld [vmem:[%s3 + $0x164] sm:$0xf]
      %v988 = vld [vmem:[%s3 + $0x168] sm:$0xf]
      %v989 = vld [vmem:[%s3 + $0x16c] sm:$0xf]
      %v990 = vld [vmem:[%s3 + $0x170] sm:$0xf]
      %v991 = vld [vmem:[%s3 + $0x174] sm:$0xf]
      %v992 = vld [vmem:[%s3 + $0x178] sm:$0xf]
      %v993 = vld [vmem:[%s3 + $0x17c] sm:$0xf]
      %v994 = vld [vmem:[%s3 + $0x180] sm:$0xf]
      %v995 = vld [vmem:[%s3 + $0x184] sm:$0xf]
      %v996 = vld [vmem:[%s3 + $0x188] sm:$0xf]
      %v997 = vld [vmem:[%s3 + $0x18c] sm:$0xf]
      %v998 = vld [vmem:[%s3 + $0x190] sm:$0xf]
      %v999 = vld [vmem:[%s3 + $0x194] sm:$0xf]
      %v1000 = vld [vmem:[%s3 + $0x198] sm:$0xf]
      %v1001 = vld [vmem:[%s3 + $0x19c] sm:$0xf]
      %v1002 = vld [vmem:[%s3 + $0x1a0] sm:$0xf]
      %v1003 = vld [vmem:[%s3 + $0x1a4] sm:$0xf]
      %v1004 = vld [vmem:[%s3 + $0x1a8] sm:$0xf]
      %v1005 = vld [vmem:[%s3 + $0x1ac] sm:$0xf]
      %v1006 = vld [vmem:[%s3 + $0x1b0] sm:$0xf]
      %v1007 = vld [vmem:[%s3 + $0x1b4] sm:$0xf]
      %v1008 = vld [vmem:[%s3 + $0x1b8] sm:$0xf]
      %v1009 = vld [vmem:[%s3 + $0x1bc] sm:$0xf]
      %v1010 = vld [vmem:[%s3 + $0x1c0] sm:$0xf]
      %v1011 = vld [vmem:[%s3 + $0x1c4] sm:$0xf]
      %v1012 = vld [vmem:[%s3 + $0x1c8] sm:$0xf]
      %v1013 = vld [vmem:[%s3 + $0x1cc] sm:$0xf]
      %v1014 = vld [vmem:[%s3 + $0x1d0] sm:$0xf]
      %v1015 = vld [vmem:[%s3 + $0x1d4] sm:$0xf]
      %v1016 = vld [vmem:[%s3 + $0x1d8] sm:$0xf]
      %v1017 = vld [vmem:[%s3 + $0x1dc] sm:$0xf]
      %v1018 = vld [vmem:[%s3 + $0x1e0] sm:$0xf]
      %v1019 = vld [vmem:[%s3 + $0x1e4] sm:$0xf]
      %v1020 = vld [vmem:[%s3 + $0x1e8] sm:$0xf]
      %v1021 = vld [vmem:[%s3 + $0x1ec] sm:$0xf]
      %v1022 = vld [vmem:[%s3 + $0x1f0] sm:$0xf]
      %v1023 = vld [vmem:[%s3 + $0x1f4] sm:$0xf]
      %v1024 = vld [vmem:[%s3 + $0x1f8] sm:$0xf]
      %v1025 = vld [vmem:[%s3 + $0x1fc] sm:$0xf]
      %v1026 = vld [vmem:[%s3 + $0x200] sm:$0xf]
      %v1027 = vld [vmem:[%s3 + $0x204] sm:$0xf]
      %v1028 = vld [vmem:[%s3 + $0x208] sm:$0xf]
      %v1029 = vld [vmem:[%s3 + $0x20c] sm:$0xf]
      %v1030 = vld [vmem:[%s3 + $0x210] sm:$0xf]
      %v1031 = vld [vmem:[%s3 + $0x214] sm:$0xf]
      %v1032 = vld [vmem:[%s3 + $0x218] sm:$0xf]
      %v1033 = vld [vmem:[%s3 + $0x21c] sm:$0xf]
      %v1034 = vld [vmem:[%s3 + $0x220] sm:$0xf]
      %v1035 = vld [vmem:[%s3 + $0x224] sm:$0xf]
      %v1036 = vld [vmem:[%s3 + $0x228] sm:$0xf]
      %v1037 = vld [vmem:[%s3 + $0x22c] sm:$0xf]
      %v1038 = vld [vmem:[%s3 + $0x230] sm:$0xf]
      %v1039 = vld [vmem:[%s3 + $0x234] sm:$0xf]
      %v1040 = vld [vmem:[%s3 + $0x238] sm:$0xf]
      %v1041 = vld [vmem:[%s3 + $0x23c] sm:$0xf]
      %v1186 = vunpack.c.l.b16 %v898
      %v1187 = vunpack.c.l.b16 %v899
      %v1188 = vunpack.c.l.b16 %v900
      %v1189 = vunpack.c.l.b16 %v901
      %v1190 = vunpack.c.l.b16 %v902
      %v1191 = vunpack.c.l.b16 %v903
      %v1192 = vunpack.c.l.b16 %v904
      %v1193 = vunpack.c.l.b16 %v905
      %v1194 = vunpack.c.l.b16 %v906
      %v1195 = vunpack.c.l.b16 %v907
      %v1196 = vunpack.c.l.b16 %v908
      %v1197 = vunpack.c.l.b16 %v909
      %v1198 = vunpack.c.l.b16 %v910
      %v1199 = vunpack.c.l.b16 %v911
      %v1200 = vunpack.c.l.b16 %v912
      %v1201 = vunpack.c.l.b16 %v913
      %v1202 = vunpack.c.l.b16 %v914
      %v1203 = vunpack.c.l.b16 %v915
      %v1204 = vunpack.c.l.b16 %v916
      %v1205 = vunpack.c.l.b16 %v917
      %v1206 = vunpack.c.l.b16 %v918
      %v1207 = vunpack.c.l.b16 %v919
      %v1208 = vunpack.c.l.b16 %v920
      %v1209 = vunpack.c.l.b16 %v921
      %v1210 = vunpack.c.l.b16 %v922
      %v1211 = vunpack.c.l.b16 %v923
      %v1212 = vunpack.c.l.b16 %v924
      %v1213 = vunpack.c.l.b16 %v925
      %v1214 = vunpack.c.l.b16 %v926
      %v1215 = vunpack.c.l.b16 %v927
      %v1216 = vunpack.c.l.b16 %v928
      %v1217 = vunpack.c.l.b16 %v929
      %v1218 = vunpack.c.l.b16 %v930
      %v1219 = vunpack.c.l.b16 %v931
      %v1220 = vunpack.c.l.b16 %v932
      %v1221 = vunpack.c.l.b16 %v933
      %v1222 = vunpack.c.l.b16 %v934
      %v1223 = vunpack.c.l.b16 %v935
      %v1224 = vunpack.c.l.b16 %v936
      %v1225 = vunpack.c.l.b16 %v937
      %v1226 = vunpack.c.l.b16 %v938
      %v1227 = vunpack.c.l.b16 %v939
      %v1228 = vunpack.c.l.b16 %v940
      %v1229 = vunpack.c.l.b16 %v941
      %v1230 = vunpack.c.l.b16 %v942
      %v1231 = vunpack.c.l.b16 %v943
      %v1232 = vunpack.c.l.b16 %v944
      %v1233 = vunpack.c.l.b16 %v945
      %v1234 = vunpack.c.l.b16 %v946
      %v1235 = vunpack.c.l.b16 %v947
      %v1236 = vunpack.c.l.b16 %v948
      %v1237 = vunpack.c.l.b16 %v949
      %v1238 = vunpack.c.l.b16 %v950
      %v1239 = vunpack.c.l.b16 %v951
      %v1240 = vunpack.c.l.b16 %v952
      %v1241 = vunpack.c.l.b16 %v953
      %v1242 = vunpack.c.l.b16 %v954
      %v1243 = vunpack.c.l.b16 %v955
      %v1244 = vunpack.c.l.b16 %v956
      %v1245 = vunpack.c.l.b16 %v957
      %v1246 = vunpack.c.l.b16 %v958
      %v1247 = vunpack.c.l.b16 %v959
      %v1248 = vunpack.c.l.b16 %v960
      %v1249 = vunpack.c.l.b16 %v961
      %v1250 = vunpack.c.l.b16 %v962
      %v1251 = vunpack.c.l.b16 %v963
      %v1252 = vunpack.c.l.b16 %v964
      %v1253 = vunpack.c.l.b16 %v965
      %v1254 = vunpack.c.l.b16 %v966
      %v1255 = vunpack.c.l.b16 %v967
      %v1256 = vunpack.c.l.b16 %v968
      %v1257 = vunpack.c.l.b16 %v969
      %v1258 = vunpack.c.l.b16 %v970
      %v1259 = vunpack.c.l.b16 %v971
      %v1260 = vunpack.c.l.b16 %v972
      %v1261 = vunpack.c.l.b16 %v973
      %v1262 = vunpack.c.l.b16 %v974
      %v1263 = vunpack.c.l.b16 %v975
      %v1264 = vunpack.c.l.b16 %v976
      %v1265 = vunpack.c.l.b16 %v977
      %v1266 = vunpack.c.l.b16 %v978
      %v1267 = vunpack.c.l.b16 %v979
      %v1268 = vunpack.c.l.b16 %v980
      %v1269 = vunpack.c.l.b16 %v981
      %v1270 = vunpack.c.l.b16 %v982
      %v1271 = vunpack.c.l.b16 %v983
      %v1272 = vunpack.c.l.b16 %v984
      %v1273 = vunpack.c.l.b16 %v985
      %v1274 = vunpack.c.l.b16 %v986
      %v1275 = vunpack.c.l.b16 %v987
      %v1276 = vunpack.c.l.b16 %v988
      %v1277 = vunpack.c.l.b16 %v989
      %v1278 = vunpack.c.l.b16 %v990
      %v1279 = vunpack.c.l.b16 %v991
      %v1280 = vunpack.c.l.b16 %v992
      %v1281 = vunpack.c.l.b16 %v993
      %v1282 = vunpack.c.l.b16 %v994
      %v1283 = vunpack.c.l.b16 %v995
      %v1284 = vunpack.c.l.b16 %v996
      %v1285 = vunpack.c.l.b16 %v997
      %v1286 = vunpack.c.l.b16 %v998
      %v1287 = vunpack.c.l.b16 %v999
      %v1288 = vunpack.c.l.b16 %v1000
      %v1289 = vunpack.c.l.b16 %v1001
      %v1290 = vunpack.c.l.b16 %v1002
      %v1291 = vunpack.c.l.b16 %v1003
      %v1292 = vunpack.c.l.b16 %v1004
      %v1293 = vunpack.c.l.b16 %v1005
      %v1294 = vunpack.c.l.b16 %v1006
      %v1295 = vunpack.c.l.b16 %v1007
      %v1296 = vunpack.c.l.b16 %v1008
      %v1297 = vunpack.c.l.b16 %v1009
      %v1298 = vunpack.c.l.b16 %v1010
      %v1299 = vunpack.c.l.b16 %v1011
      %v1300 = vunpack.c.l.b16 %v1012
      %v1301 = vunpack.c.l.b16 %v1013
      %v1302 = vunpack.c.l.b16 %v1014
      %v1303 = vunpack.c.l.b16 %v1015
      %v1304 = vunpack.c.l.b16 %v1016
      %v1305 = vunpack.c.l.b16 %v1017
      %v1306 = vunpack.c.l.b16 %v1018
      %v1307 = vunpack.c.l.b16 %v1019
      %v1308 = vunpack.c.l.b16 %v1020
      %v1309 = vunpack.c.l.b16 %v1021
      %v1310 = vunpack.c.l.b16 %v1022
      %v1311 = vunpack.c.l.b16 %v1023
      %v1312 = vunpack.c.l.b16 %v1024
      %v1313 = vunpack.c.l.b16 %v1025
      %v1314 = vunpack.c.l.b16 %v1026
      %v1315 = vunpack.c.l.b16 %v1027
      %v1316 = vunpack.c.l.b16 %v1028
      %v1317 = vunpack.c.l.b16 %v1029
      %v1318 = vunpack.c.l.b16 %v1030
      %v1319 = vunpack.c.l.b16 %v1031
      %v1320 = vunpack.c.l.b16 %v1032
      %v1321 = vunpack.c.l.b16 %v1033
      %v1322 = vunpack.c.l.b16 %v1034
      %v1323 = vunpack.c.l.b16 %v1035
      %v1324 = vunpack.c.l.b16 %v1036
      %v1325 = vunpack.c.l.b16 %v1037
      %v1326 = vunpack.c.l.b16 %v1038
      %v1327 = vunpack.c.l.b16 %v1039
      %v1328 = vunpack.c.l.b16 %v1040
      %v1329 = vunpack.c.l.b16 %v1041
      %v1330 = vpack.c.b16 %v1187, %v1186
      %v1331 = vpack.c.b16 %v1189, %v1188
      %v1332 = vpack.c.b16 %v1191, %v1190
      %v1333 = vpack.c.b16 %v1193, %v1192
      %v1334 = vpack.c.b16 %v1195, %v1194
      %v1335 = vpack.c.b16 %v1197, %v1196
      %v1336 = vpack.c.b16 %v1199, %v1198
      %v1337 = vpack.c.b16 %v1201, %v1200
      %v1338 = vpack.c.b16 %v1203, %v1202
      %v1339 = vpack.c.b16 %v1205, %v1204
      %v1340 = vpack.c.b16 %v1207, %v1206
      %v1341 = vpack.c.b16 %v1209, %v1208
      %v1342 = vpack.c.b16 %v1211, %v1210
      %v1343 = vpack.c.b16 %v1213, %v1212
      %v1344 = vpack.c.b16 %v1215, %v1214
      %v1345 = vpack.c.b16 %v1217, %v1216
      %v1346 = vpack.c.b16 %v1219, %v1218
      %v1347 = vpack.c.b16 %v1221, %v1220
      %v1348 = vpack.c.b16 %v1223, %v1222
      %v1349 = vpack.c.b16 %v1225, %v1224
      %v1350 = vpack.c.b16 %v1227, %v1226
      %v1351 = vpack.c.b16 %v1229, %v1228
      %v1352 = vpack.c.b16 %v1231, %v1230
      %v1353 = vpack.c.b16 %v1233, %v1232
      %v1354 = vpack.c.b16 %v1235, %v1234
      %v1355 = vpack.c.b16 %v1237, %v1236
      %v1356 = vpack.c.b16 %v1239, %v1238
      %v1357 = vpack.c.b16 %v1241, %v1240
      %v1358 = vpack.c.b16 %v1243, %v1242
      %v1359 = vpack.c.b16 %v1245, %v1244
      %v1360 = vpack.c.b16 %v1247, %v1246
      %v1361 = vpack.c.b16 %v1249, %v1248
      %v1362 = vpack.c.b16 %v1251, %v1250
      %v1363 = vpack.c.b16 %v1253, %v1252
      %v1364 = vpack.c.b16 %v1255, %v1254
      %v1365 = vpack.c.b16 %v1257, %v1256
      %v1366 = vpack.c.b16 %v1259, %v1258
      %v1367 = vpack.c.b16 %v1261, %v1260
      %v1368 = vpack.c.b16 %v1263, %v1262
      %v1369 = vpack.c.b16 %v1265, %v1264
      %v1370 = vpack.c.b16 %v1267, %v1266
      %v1371 = vpack.c.b16 %v1269, %v1268
      %v1372 = vpack.c.b16 %v1271, %v1270
      %v1373 = vpack.c.b16 %v1273, %v1272
      %v1374 = vpack.c.b16 %v1275, %v1274
      %v1375 = vpack.c.b16 %v1277, %v1276
      %v1376 = vpack.c.b16 %v1279, %v1278
      %v1377 = vpack.c.b16 %v1281, %v1280
      %v1378 = vpack.c.b16 %v1283, %v1282
      %v1379 = vpack.c.b16 %v1285, %v1284
      %v1380 = vpack.c.b16 %v1287, %v1286
      %v1381 = vpack.c.b16 %v1289, %v1288
      %v1382 = vpack.c.b16 %v1291, %v1290
      %v1383 = vpack.c.b16 %v1293, %v1292
      %v1384 = vpack.c.b16 %v1295, %v1294
      %v1385 = vpack.c.b16 %v1297, %v1296
      %v1386 = vpack.c.b16 %v1299, %v1298
      %v1387 = vpack.c.b16 %v1301, %v1300
      %v1388 = vpack.c.b16 %v1303, %v1302
      %v1389 = vpack.c.b16 %v1305, %v1304
      %v1390 = vpack.c.b16 %v1307, %v1306
      %v1391 = vpack.c.b16 %v1309, %v1308
      %v1392 = vpack.c.b16 %v1311, %v1310
      %v1393 = vpack.c.b16 %v1313, %v1312
      %v1394 = vpack.c.b16 %v1315, %v1314
      %v1395 = vpack.c.b16 %v1317, %v1316
      %v1396 = vpack.c.b16 %v1319, %v1318
      %v1397 = vpack.c.b16 %v1321, %v1320
      %v1398 = vpack.c.b16 %v1323, %v1322
      %v1399 = vpack.c.b16 %v1325, %v1324
      %v1400 = vpack.c.b16 %v1327, %v1326
      %v1401 = vpack.c.b16 %v1329, %v1328
      %1474 = vmatpush.bf16.msra.mxu0 %v1337
      %1475 = vmatpush.bf16.msra.mxu0 %v1336
      %1476 = vmatpush.bf16.msra.mxu0 %v1335
      %1477 = vmatpush.bf16.msra.mxu0 %v1334
      %1478 = vmatpush.bf16.msra.mxu0 %v1333
      %1479 = vmatpush.bf16.msra.mxu0 %v1332
      %1480 = vmatpush.bf16.msra.mxu0 %v1331
      %1481 = vmatpush.bf16.msra.mxu0 %v1330
      %1482 = vmatmul.bf16.gmra.mxu0 %v792
      %v1483 = vpop.f32.mrf.mxu0
      %v1484 = vadd.f32 0.0, %v1483
      %v1485 = vpop.f32.mrf.mxu0
      %v1486 = vadd.f32 0.0, %v1485
      %1487 = vdwg.mxu0
      %1488 = vmatpush.bf16.msra.mxu0 %v1345
      %1489 = vmatpush.bf16.msra.mxu0 %v1344
      %1490 = vmatpush.bf16.msra.mxu0 %v1343
      %1491 = vmatpush.bf16.msra.mxu0 %v1342
      %1492 = vmatpush.bf16.msra.mxu0 %v1341
      %1493 = vmatpush.bf16.msra.mxu0 %v1340
      %1494 = vmatpush.bf16.msra.mxu0 %v1339
      %1495 = vmatpush.bf16.msra.mxu0 %v1338
      %1496 = vmatmul.bf16.gmra.mxu0 %v805
      %v1497 = vpop.f32.mrf.mxu0
      %v1498 = vadd.f32 %v1484, %v1497
      %v1499 = vpop.f32.mrf.mxu0
      %v1500 = vadd.f32 %v1486, %v1499
      %1501 = vdwg.mxu0
      %1502 = vmatpush.bf16.msra.mxu0 %v1353
      %1503 = vmatpush.bf16.msra.mxu0 %v1352
      %1504 = vmatpush.bf16.msra.mxu0 %v1351
      %1505 = vmatpush.bf16.msra.mxu0 %v1350
      %1506 = vmatpush.bf16.msra.mxu0 %v1349
      %1507 = vmatpush.bf16.msra.mxu0 %v1348
      %1508 = vmatpush.bf16.msra.mxu0 %v1347
      %1509 = vmatpush.bf16.msra.mxu0 %v1346
      %1510 = vmatmul.bf16.gmra.mxu0 %v818
      %v1511 = vpop.f32.mrf.mxu0
      %v1512 = vadd.f32 %v1498, %v1511
      %v1513 = vpop.f32.mrf.mxu0
      %v1514 = vadd.f32 %v1500, %v1513
      %1515 = vdwg.mxu0
      %1516 = vmatpush.bf16.msra.mxu0 %v1361
      %1517 = vmatpush.bf16.msra.mxu0 %v1360
      %1518 = vmatpush.bf16.msra.mxu0 %v1359
      %1519 = vmatpush.bf16.msra.mxu0 %v1358
      %1520 = vmatpush.bf16.msra.mxu0 %v1357
      %1521 = vmatpush.bf16.msra.mxu0 %v1356
      %1522 = vmatpush.bf16.msra.mxu0 %v1355
      %1523 = vmatpush.bf16.msra.mxu0 %v1354
      %1524 = vmatmul.bf16.gmra.mxu0 %v831
      %v1525 = vpop.f32.mrf.mxu0
      %v1526 = vadd.f32 %v1512, %v1525
      %v1527 = vpop.f32.mrf.mxu0
      %v1528 = vadd.f32 %v1514, %v1527
      %1529 = vdwg.mxu0
      %1530 = vmatpush.bf16.msra.mxu0 %v1369
      %1531 = vmatpush.bf16.msra.mxu0 %v1368
      %1532 = vmatpush.bf16.msra.mxu0 %v1367
      %1533 = vmatpush.bf16.msra.mxu0 %v1366
      %1534 = vmatpush.bf16.msra.mxu0 %v1365
      %1535 = vmatpush.bf16.msra.mxu0 %v1364
      %1536 = vmatpush.bf16.msra.mxu0 %v1363
      %1537 = vmatpush.bf16.msra.mxu0 %v1362
      %1538 = vmatmul.bf16.gmra.mxu0 %v844
      %v1539 = vpop.f32.mrf.mxu0
      %v1540 = vadd.f32 %v1526, %v1539
      %v1541 = vpop.f32.mrf.mxu0
      %v1542 = vadd.f32 %v1528, %v1541
      %1543 = vdwg.mxu0
      %1544 = vmatpush.bf16.msra.mxu0 %v1377
      %1545 = vmatpush.bf16.msra.mxu0 %v1376
      %1546 = vmatpush.bf16.msra.mxu0 %v1375
      %1547 = vmatpush.bf16.msra.mxu0 %v1374
      %1548 = vmatpush.bf16.msra.mxu0 %v1373
      %1549 = vmatpush.bf16.msra.mxu0 %v1372
      %1550 = vmatpush.bf16.msra.mxu0 %v1371
      %1551 = vmatpush.bf16.msra.mxu0 %v1370
      %1552 = vmatmul.bf16.gmra.mxu0 %v857
      %v1553 = vpop.f32.mrf.mxu0
      %v1554 = vadd.f32 %v1540, %v1553
      %v1555 = vpop.f32.mrf.mxu0
      %v1556 = vadd.f32 %v1542, %v1555
      %1557 = vdwg.mxu0
      %1558 = vmatpush.bf16.msra.mxu0 %v1385
      %1559 = vmatpush.bf16.msra.mxu0 %v1384
      %1560 = vmatpush.bf16.msra.mxu0 %v1383
      %1561 = vmatpush.bf16.msra.mxu0 %v1382
      %1562 = vmatpush.bf16.msra.mxu0 %v1381
      %1563 = vmatpush.bf16.msra.mxu0 %v1380
      %1564 = vmatpush.bf16.msra.mxu0 %v1379
      %1565 = vmatpush.bf16.msra.mxu0 %v1378
      %1566 = vmatmul.bf16.gmra.mxu0 %v870
      %v1567 = vpop.f32.mrf.mxu0
      %v1568 = vadd.f32 %v1554, %v1567
      %v1569 = vpop.f32.mrf.mxu0
      %v1570 = vadd.f32 %v1556, %v1569
      %1571 = vdwg.mxu0
      %1572 = vmatpush.bf16.msra.mxu0 %v1393
      %1573 = vmatpush.bf16.msra.mxu0 %v1392
      %1574 = vmatpush.bf16.msra.mxu0 %v1391
      %1575 = vmatpush.bf16.msra.mxu0 %v1390
      %1576 = vmatpush.bf16.msra.mxu0 %v1389
      %1577 = vmatpush.bf16.msra.mxu0 %v1388
      %1578 = vmatpush.bf16.msra.mxu0 %v1387
      %1579 = vmatpush.bf16.msra.mxu0 %v1386
      %1580 = vmatmul.bf16.gmra.mxu0 %v883
      %v1581 = vpop.f32.mrf.mxu0
      %v1582 = vadd.f32 %v1568, %v1581
      %v1583 = vpop.f32.mrf.mxu0
      %v1584 = vadd.f32 %v1570, %v1583
      %1585 = vdwg.mxu0
      %1586 = vmatpush.bf16.msra.mxu0 %v1401
      %1587 = vmatpush.bf16.msra.mxu0 %v1400
      %1588 = vmatpush.bf16.msra.mxu0 %v1399
      %1589 = vmatpush.bf16.msra.mxu0 %v1398
      %1590 = vmatpush.bf16.msra.mxu0 %v1397
      %1591 = vmatpush.bf16.msra.mxu0 %v1396
      %1592 = vmatpush.bf16.msra.mxu0 %v1395
      %1593 = vmatpush.bf16.msra.mxu0 %v1394
      %1594 = vmatmul.bf16.gmra.mxu0 %v896
      %v1595 = vpop.f32.mrf.mxu0
      %v1596 = vadd.f32 %v1582, %v1595
      %v1597 = vpop.f32.mrf.mxu0
      %v1598 = vadd.f32 %v1584, %v1597
      %1599 = vdwg.mxu0
      %v1602 = vrot.slane %v1596, 4
      %v1603 = vrot.slane %v1598, 4
      %v1606 = vpack.c.bf16 %v1596, %v1596
      %v1607 = vpack.c.bf16 %v1602, %v1602
      %v1608 = vpack.c.bf16 %v1598, %v1598
      %v1609 = vpack.c.bf16 %v1603, %v1603
      %vm1610 = vcmask 517120
      %1611 = vst.msk [vmem:[%s219] sm:$0x3] %vm1610, %v1606
      %1612 = vst.msk [vmem:[%s219 + $0x2] sm:$0x3] %vm1610, %v1607
      %1613 = vst.msk [vmem:[%s219 + $0x4] sm:$0x3] %vm1610, %v1608
      %1614 = vst.msk [vmem:[%s219 + $0x6] sm:$0x3] %vm1610, %v1609
      %s1615 = smul.u32 4, %s20
      %p1616 = scmp.lt.s32.totalorder %s19, 1
      %s1617 = scalar_select %p1616, %s19, 1
      %p1618 = scmp.lt.s32.totalorder %s1615, 3
      %s1619 = scalar_select %p1618, %s1615, 3
      %s1620 = smul.addr %s1617, 4
      %s1621 = sadd.s32 %s1619, %s1620
      %s1622 = smul.addr %s1621, 2
      %s1623 = scalar_lea.vmem %s4, %s1622
      // Predicated region
      $region41: #{_lambda_.19} parent=35 // pred_check
        %p1624 = pneg %p136
      $region42: #{_lambda_.19} parent=35 // pred_check_branch
        %1626 = sbr.rel (%p1624) target = $region44
      $region43: #{_lambda_.19} parent=35 // pred_region
        %s1627 = smul.u32 4, %s20
      $region44: #{_lambda_.19} parent=35 // pred_fallthru
        _
    $region36: #{_lambda_.19} parent=5 // pred_fallthru
      _
    %p1628 = scmp.le.s32.totalorder 2, %s10
    // Predicated region
    $region45: #{_lambda_.19} parent=5 // pred_check
      %p1629 = pneg %p1628
    $region46: #{_lambda_.19} parent=5 // pred_check_branch
      %1631 = sbr.rel (%p1629) target = $region48
    $region47: #{_lambda_.19} parent=5 // pred_region
      %s1632 = ssub.s32 %s10, 2
      // Predicated region
      $region49: #{_lambda_.19} parent=47 // pred_check
        %p1633 = pneg %p142
      $region50: #{_lambda_.19} parent=47 // pred_check_branch
        %1635 = sbr.rel (%p1633) target = $region52
      $region51: #{_lambda_.19} parent=47 // pred_region
        %s1636 = smul.u32 4, %s22
        %p1637 = scmp.lt.s32.totalorder %s21, 1
        %s1638 = scalar_select %p1637, %s21, 1
        %p1639 = scmp.lt.s32.totalorder %s1636, 3
        %s1640 = scalar_select %p1639, %s1636, 3
        %s1641 = smul.addr %s1638, 4
        %s1642 = sadd.s32 %s1640, %s1641
        %s1643 = smul.addr %s1642, 2
        %s1644 = scalar_lea.vmem %s4, %s1643
      $region52: #{_lambda_.19} parent=47 // pred_fallthru
        _
    $region48: #{_lambda_.19} parent=5 // pred_fallthru
      _
  $region6: #{_lambda_.19} parent=0 // loop_footer
    %s14 = sadd.s32 1, %s10
  $region7: #{_lambda_.19} parent=0 // loop_footer_branch
    %9 = sbr.rel target = $region3
  $region8: #{_lambda_.19} parent=0 // loop_exit
    _

// kernel: _lambda_.23
$region0: #{_lambda_.23}
  #allocation0 [shape = 'u32[]', space=smem, size = 0x4, offset = 0x4, fixed_abs, tag = 'smem constant byte address 0x4 - core index']
  #allocation1 [shape = 'u32[72,128]{1,0:T(1,128)}', space=vmem, size = 0x9000, scoped, tag = 'internal scratch']
  %s0 = inlined_call_operand.vmem [shape: bf16[2,4,16,16], index: 0, kind: input, shape index: {}]
  %s1 = inlined_call_operand.vmem [shape: f32[1,16], index: 1, kind: input, shape index: {}]
  %s2 = inlined_call_operand.vmem [shape: f32[1,16], index: 2, kind: input, shape index: {}]
  %s3 = inlined_call_operand.vmem [shape: bf16[16,64], index: 3, kind: input, shape index: {}]
  %s4 = inlined_call_operand.vmem [shape: bf16[2,4,16,64], index: 4, kind: output, shape index: {}]
  %s5 = sld [smem:[#allocation0]]
  $region49: #{_lambda_.23} parent=0
    _
  %s7 = ssub.s32 1, %s5
  %s8 = scalar_select 0, %s7, %s5
  loop: start=0, step=1, limit=6
  $region2: #{_lambda_.23} parent=0 // loop_pre_header
    _
  $region3: #{_lambda_.23} parent=0 // loop_header
    %s10 = sphi 0, %s14
    %p11 = scmp.ge.s32.totalorder %s10, 6
    %s17 = sphi 0, %s29
    %s18 = sphi 0, %s25
    %s19 = sphi 0, %s17
    %s20 = sphi 0, %s18
    %s21 = sphi 0, %s19
    %s22 = sphi 0, %s20
    %s34 = sphi 0, %s36
    %s37 = sphi 0, %s34
    %s38 = sphi 0, %s37
    %s54 = sphi 0, %s38
    %s58 = sphi 0, %s58
    %s60 = sphi 0, %s58
    %s61 = sphi 0, %s60
    %s75 = sphi 0, %s61
    %s79 = sphi 0, %s79
    %s81 = sphi 0, %s79
    %s82 = sphi 0, %s81
    %s96 = sphi 0, %s82
    %s100 = sphi 0, %s100
    %s102 = sphi 0, %s100
    %s103 = sphi 0, %s102
    %s117 = sphi 0, %s103
    %s125 = sphi 0, %s127
    %s128 = sphi 0, %s125
    %s129 = sphi 0, %s128
    %s145 = sphi 0, %s129
  $region4: #{_lambda_.23} parent=0 // loop_header_branch
    %13 = sbr.rel (%p11) target = $region8
  $region5: #{_lambda_.23} parent=0 // loop_body
    %s15 = ssub.s32 %s10, 1
    %s16 = ssub.s32 %s10, 2
    %s23 = sadd.s32 1, %s18
    %p24 = scmp.ge.s32.totalorder %s23, 2
    %s25 = scalar_select %p24, 0, %s23
    %s26 = sadd.s32 1, %s17
    %s27 = scalar_select %p24, %s26, %s17
    %p28 = scmp.ge.s32.totalorder %s27, 2
    %s29 = scalar_select %p28, 0, %s27
    %s30 = ssub.s32 %s17, %s29
    %s31 = ssub.s32 %s18, %s25
    %s32 = sor.u32 %s30, %s31
    %p33 = scmp.eq.s32.totalorder %s32, 0
    %s35 = sadd.s32 %s34, 1
    %s36 = scalar_select %p33, %s34, %s35
    %p39 = pneg %p33
    %p40 = scmp.eq.s32.totalorder %s10, 3
    %p41 = por %p39, %p40
    %p42 = scmp.ne.s32.totalorder %s34, %s37
    %p43 = scmp.eq.s32.totalorder %s10, 0
    %p44 = por %p42, %p43
    %p45 = scmp.ne.s32.totalorder %s34, %s37
    %p46 = scmp.eq.s32.totalorder %s15, 3
    %p47 = por %p45, %p46
    %p48 = scmp.ne.s32.totalorder %s37, %s38
    %p49 = scmp.eq.s32.totalorder %s15, 0
    %p50 = por %p48, %p49
    %p51 = scmp.ne.s32.totalorder %s37, %s38
    %p52 = scmp.eq.s32.totalorder %s16, 3
    %p53 = por %p51, %p52
    %p55 = scmp.ne.s32.totalorder %s38, %s54
    %p56 = scmp.eq.s32.totalorder %s16, 0
    %p57 = por %p55, %p56
    %s59 = sadd.s32 %s58, 1
    %p62 = scmp.eq.s32.totalorder %s10, 3
    %p63 = scmp.ne.s32.totalorder %s58, %s60
    %p64 = scmp.eq.s32.totalorder %s10, 0
    %p65 = por %p63, %p64
    %p66 = scmp.ne.s32.totalorder %s58, %s60
    %p67 = scmp.eq.s32.totalorder %s15, 3
    %p68 = por %p66, %p67
    %p69 = scmp.ne.s32.totalorder %s60, %s61
    %p70 = scmp.eq.s32.totalorder %s15, 0
    %p71 = por %p69, %p70
    %p72 = scmp.ne.s32.totalorder %s60, %s61
    %p73 = scmp.eq.s32.totalorder %s16, 3
    %p74 = por %p72, %p73
    %p76 = scmp.ne.s32.totalorder %s61, %s75
    %p77 = scmp.eq.s32.totalorder %s16, 0
    %p78 = por %p76, %p77
    %s80 = sadd.s32 %s79, 1
    %p83 = scmp.eq.s32.totalorder %s10, 3
    %p84 = scmp.ne.s32.totalorder %s79, %s81
    %p85 = scmp.eq.s32.totalorder %s10, 0
    %p86 = por %p84, %p85
    %p87 = scmp.ne.s32.totalorder %s79, %s81
    %p88 = scmp.eq.s32.totalorder %s15, 3
    %p89 = por %p87, %p88
    %p90 = scmp.ne.s32.totalorder %s81, %s82
    %p91 = scmp.eq.s32.totalorder %s15, 0
    %p92 = por %p90, %p91
    %p93 = scmp.ne.s32.totalorder %s81, %s82
    %p94 = scmp.eq.s32.totalorder %s16, 3
    %p95 = por %p93, %p94
    %p97 = scmp.ne.s32.totalorder %s82, %s96
    %p98 = scmp.eq.s32.totalorder %s16, 0
    %p99 = por %p97, %p98
    %s101 = sadd.s32 %s100, 1
    %p104 = scmp.eq.s32.totalorder %s10, 3
    %p105 = scmp.ne.s32.totalorder %s100, %s102
    %p106 = scmp.eq.s32.totalorder %s10, 0
    %p107 = por %p105, %p106
    %p108 = scmp.ne.s32.totalorder %s100, %s102
    %p109 = scmp.eq.s32.totalorder %s15, 3
    %p110 = por %p108, %p109
    %p111 = scmp.ne.s32.totalorder %s102, %s103
    %p112 = scmp.eq.s32.totalorder %s15, 0
    %p113 = por %p111, %p112
    %p114 = scmp.ne.s32.totalorder %s102, %s103
    %p115 = scmp.eq.s32.totalorder %s16, 3
    %p116 = por %p114, %p115
    %p118 = scmp.ne.s32.totalorder %s103, %s117
    %p119 = scmp.eq.s32.totalorder %s16, 0
    %p120 = por %p118, %p119
    %s121 = ssub.s32 %s17, %s29
    %s122 = ssub.s32 %s18, %s25
    %s123 = sor.u32 %s121, %s122
    %p124 = scmp.eq.s32.totalorder %s123, 0
    %s126 = sadd.s32 %s125, 1
    %s127 = scalar_select %p124, %s125, %s126
    %p130 = pneg %p124
    %p131 = scmp.eq.s32.totalorder %s10, 3
    %p132 = por %p130, %p131
    %p133 = scmp.ne.s32.totalorder %s125, %s128
    %p134 = scmp.eq.s32.totalorder %s10, 0
    %p135 = por %p133, %p134
    %p136 = scmp.ne.s32.totalorder %s125, %s128
    %p137 = scmp.eq.s32.totalorder %s15, 3
    %p138 = por %p136, %p137
    %p139 = scmp.ne.s32.totalorder %s128, %s129
    %p140 = scmp.eq.s32.totalorder %s15, 0
    %p141 = por %p139, %p140
    %p142 = scmp.ne.s32.totalorder %s128, %s129
    %p143 = scmp.eq.s32.totalorder %s16, 3
    %p144 = por %p142, %p143
    %p146 = scmp.ne.s32.totalorder %s129, %s145
    %p147 = scmp.eq.s32.totalorder %s16, 0
    %p148 = por %p146, %p147
    %p149 = scmp.le.s32.totalorder 1, %s10
    %p150 = scmp.lt.s32.totalorder %s10, 5
    %p151 = pnand %p149, %p150
    %p152 = pneg %p151
    // Predicated region
    $region9: #{_lambda_.23} parent=5 // pred_check
      _
    $region10: #{_lambda_.23} parent=5 // pred_check_branch
      %154 = sbr.rel (%p151) target = $region12
    $region11: #{_lambda_.23} parent=5 // pred_region
      %s155 = ssub.s32 %s10, 1
      // Predicated region
      $region13: #{_lambda_.23} parent=11 // pred_check
        %p156 = pneg %p71
      $region14: #{_lambda_.23} parent=11 // pred_check_branch
        %158 = sbr.rel (%p156) target = $region16
      $region15: #{_lambda_.23} parent=11 // pred_region
        _
      $region16: #{_lambda_.23} parent=11 // pred_fallthru
        _
      // Predicated region
      $region17: #{_lambda_.23} parent=11 // pred_check
        %p159 = pneg %p92
      $region18: #{_lambda_.23} parent=11 // pred_check_branch
        %161 = sbr.rel (%p159) target = $region20
      $region19: #{_lambda_.23} parent=11 // pred_region
        _
      $region20: #{_lambda_.23} parent=11 // pred_fallthru
        _
      // Predicated region
      $region21: #{_lambda_.23} parent=11 // pred_check
        %p162 = pneg %p113
      $region22: #{_lambda_.23} parent=11 // pred_check_branch
        %164 = sbr.rel (%p162) target = $region24
      $region23: #{_lambda_.23} parent=11 // pred_region
        _
      $region24: #{_lambda_.23} parent=11 // pred_fallthru
        _
    $region12: #{_lambda_.23} parent=5 // pred_fallthru
      _
    %p165 = scmp.lt.s32.totalorder %s10, 4
    // Predicated region
    $region25: #{_lambda_.23} parent=5 // pred_check
      %p166 = pneg %p165
    $region26: #{_lambda_.23} parent=5 // pred_check_branch
      %168 = sbr.rel (%p166) target = $region28
    $region27: #{_lambda_.23} parent=5 // pred_region
      // Predicated region
      $region29: #{_lambda_.23} parent=27 // pred_check
        %p169 = pneg %p44
      $region30: #{_lambda_.23} parent=27 // pred_check_branch
        %171 = sbr.rel (%p169) target = $region32
      $region31: #{_lambda_.23} parent=27 // pred_region
        %s172 = smul.u32 2, %s18
        %p173 = scmp.lt.s32.totalorder %s17, 1
        %s174 = scalar_select %p173, %s17, 1
        %p175 = scmp.lt.s32.totalorder %s172, 3
        %s176 = scalar_select %p175, %s172, 3
        %s177 = smul.addr %s176, 2
        %s178 = smul.addr %s174, 8
        %s179 = sadd.s32 %s177, %s178
        %s180 = smul.addr %s179, 4
        %s181 = scalar_lea.vmem %s0, %s180
        %s182 = smul.u32 2, %s18
      $region32: #{_lambda_.23} parent=27 // pred_fallthru
        _
    $region28: #{_lambda_.23} parent=5 // pred_fallthru
      _
    %p183 = scmp.le.s32.totalorder 1, %s10
    %p184 = scmp.lt.s32.totalorder %s10, 5
    %p185 = pnand %p183, %p184
    %p186 = pneg %p185
    // Predicated region
    $region33: #{_lambda_.23} parent=5 // pred_check
      _
    $region34: #{_lambda_.23} parent=5 // pred_check_branch
      %188 = sbr.rel (%p185) target = $region36
    $region35: #{_lambda_.23} parent=5 // pred_region
      %s189 = ssub.s32 %s10, 1
      %s190 = smul.u32 2, %s20
      %p191 = scmp.lt.s32.totalorder %s19, 1
      %s192 = scalar_select %p191, %s19, 1
      %p193 = scmp.lt.s32.totalorder %s190, 3
      %s194 = scalar_select %p193, %s190, 3
      %s195 = smul.addr %s194, 2
      %s196 = smul.addr %s192, 8
      %s197 = sadd.s32 %s195, %s196
      %s198 = smul.addr %s197, 4
      %s199 = scalar_lea.vmem %s0, %s198
      %p200 = pneg %p50
      %p201 = pneg %p47
      %p202 = pneg %p71
      %p203 = pneg %p68
      %p204 = pneg %p92
      %p205 = pneg %p89
      %p206 = pneg %p113
      %p207 = pneg %p110
      %p208 = pneg %p141
      %p209 = pneg %p138
      %s210 = smul.u32 2, %s20
      %p211 = scmp.lt.s32.totalorder %s19, 1
      %s212 = scalar_select %p211, %s19, 1
      %p213 = scmp.lt.s32.totalorder %s210, 3
      %s214 = scalar_select %p213, %s210, 3
      %s215 = smul.addr %s214, 2
      %s216 = smul.addr %s212, 8
      %s217 = sadd.s32 %s215, %s216
      %s218 = smul.addr %s217, 4
      %s219 = scalar_lea.vmem %s4, %s218
      %s220 = smul.u32 2, %s20
      %p221 = scmp.lt.s32.totalorder %s19, 1
      %s222 = scalar_select %p221, %s19, 1
      %p223 = scmp.lt.s32.totalorder %s220, 3
      %s224 = scalar_select %p223, %s220, 3
      %s225 = smul.addr %s224, 2
      %s226 = smul.addr %s222, 8
      %s227 = sadd.s32 %s225, %s226
      %s228 = smul.addr %s227, 4
      %s229 = scalar_lea.vmem %s0, %s228
      %s230 = smul.u32 2, %s20
      %s231 = smul.u32 2, %s20
      %p232 = scmp.lt.s32.totalorder %s19, 1
      %s233 = scalar_select %p232, %s19, 1
      %p234 = scmp.lt.s32.totalorder %s231, 3
      %s235 = scalar_select %p234, %s231, 3
      %s236 = smul.addr %s235, 2
      %s237 = smul.addr %s233, 8
      %s238 = sadd.s32 %s236, %s237
      %s239 = smul.addr %s238, 4
      %s240 = scalar_lea.vmem %s4, %s239
      %s241 = smul.u32 2, %s20
      %v243 = vld [vmem:[%s229] sm:$0xf]
      %v244 = vld [vmem:[%s229 + $0x4] sm:$0xf]
      %v245 = vld [vmem:[%s229 + $0x8] sm:$0xf]
      %v246 = vld [vmem:[%s229 + $0xc] sm:$0xf]
      %v247 = vunpack.c.l.bf16 %v243
      %v248 = vunpack.c.l.bf16 %v244
      %v249 = vunpack.c.l.bf16 %v245
      %v250 = vunpack.c.l.bf16 %v246
      %v251 = vld [vmem:[%s1] sm:$0x1]
      %v253 = vperm.slane %v251, 0
      %v255 = vmul.f32 %v247, %v253
      %v256 = vmul.f32 %v248, %v253
      %v257 = vmul.f32 %v249, %v253
      %v258 = vmul.f32 %v250, %v253
      %v259 = vld [vmem:[%s2] sm:$0x1]
      %v261 = vperm.slane %v259, 0
      %v263 = vadd.f32 %v255, %v261
      %v264 = vadd.f32 %v256, %v261
      %v265 = vadd.f32 %v257, %v261
      %v266 = vadd.f32 %v258, %v261
      %v267 = vmax.f32 %v263, 0.0
      %v268 = vmax.f32 %v264, 0.0
      %v269 = vmax.f32 %v265, 0.0
      %v270 = vmax.f32 %v266, 0.0
      %v271 = vpack.c.bf16 %v268, %v267
      %v272 = vpack.c.bf16 %v270, %v269
      %v273 = vld [vmem:[%s3] sm:$0xf]
      %v274 = vld [vmem:[%s3 + $0x4] sm:$0xf]
      %v277 = vunpack.c.l.b16 %v273
      %v278 = vunpack.c.l.b16 %v274
      %v279 = vpack.c.b16 %v278, %v277
      %vm281 = vcmask 130048
      %v283 = vsel %vm281, %v271, 0
      %v286 = vsel %vm281, %v272, 0
      %288 = vmatpush.bf16.msra.mxu0 0
      %289 = vmatpush.bf16.msra.mxu0 0
      %290 = vmatpush.bf16.msra.mxu0 0
      %291 = vmatpush.bf16.msra.mxu0 0
      %292 = vmatpush.bf16.msra.mxu0 0
      %293 = vmatpush.bf16.msra.mxu0 0
      %294 = vmatpush.bf16.msra.mxu0 0
      %295 = vmatpush.bf16.msra.mxu0 %v279
      %296 = vmatmul.bf16.gmra.mxu0 %v283
      %v297 = vpop.f32.mrf.mxu0
      %v298 = vadd.f32 0.0, %v297
      %v299 = vpop.f32.mrf.mxu0
      %v300 = vadd.f32 0.0, %v299
      %301 = vmatmul.bf16.gmra.mxu0 %v286
      %v302 = vpop.f32.mrf.mxu0
      %v303 = vadd.f32 0.0, %v302
      %v304 = vpop.f32.mrf.mxu0
      %v305 = vadd.f32 0.0, %v304
      %306 = vdwg.mxu0
      %v307 = vpack.c.bf16 %v298, %v298
      %v308 = vpack.c.bf16 %v300, %v300
      %v309 = vpack.c.bf16 %v303, %v303
      %v310 = vpack.c.bf16 %v305, %v305
      %vm311 = vcmask 519168
      %312 = vst.msk [vmem:[%s240] sm:$0xf] %vm311, %v307
      %313 = vst.msk [vmem:[%s240 + $0x4] sm:$0xf] %vm311, %v308
      %314 = vst.msk [vmem:[%s240 + $0x8] sm:$0xf] %vm311, %v309
      %315 = vst.msk [vmem:[%s240 + $0xc] sm:$0xf] %vm311, %v310
      %s316 = smul.u32 2, %s20
      %p317 = scmp.lt.s32.totalorder %s19, 1
      %s318 = scalar_select %p317, %s19, 1
      %p319 = scmp.lt.s32.totalorder %s316, 3
      %s320 = scalar_select %p319, %s316, 3
      %s321 = smul.addr %s320, 2
      %s322 = smul.addr %s318, 8
      %s323 = sadd.s32 %s321, %s322
      %s324 = smul.addr %s323, 4
      %s325 = scalar_lea.vmem %s4, %s324
      // Predicated region
      $region37: #{_lambda_.23} parent=35 // pred_check
        %p326 = pneg %p138
      $region38: #{_lambda_.23} parent=35 // pred_check_branch
        %328 = sbr.rel (%p326) target = $region40
      $region39: #{_lambda_.23} parent=35 // pred_region
        %s329 = smul.u32 2, %s20
      $region40: #{_lambda_.23} parent=35 // pred_fallthru
        _
    $region36: #{_lambda_.23} parent=5 // pred_fallthru
      _
    %p330 = scmp.le.s32.totalorder 2, %s10
    // Predicated region
    $region41: #{_lambda_.23} parent=5 // pred_check
      %p331 = pneg %p330
    $region42: #{_lambda_.23} parent=5 // pred_check_branch
      %333 = sbr.rel (%p331) target = $region44
    $region43: #{_lambda_.23} parent=5 // pred_region
      %s334 = ssub.s32 %s10, 2
      // Predicated region
      $region45: #{_lambda_.23} parent=43 // pred_check
        %p335 = pneg %p144
      $region46: #{_lambda_.23} parent=43 // pred_check_branch
        %337 = sbr.rel (%p335) target = $region48
      $region47: #{_lambda_.23} parent=43 // pred_region
        %s338 = smul.u32 2, %s22
        %p339 = scmp.lt.s32.totalorder %s21, 1
        %s340 = scalar_select %p339, %s21, 1
        %p341 = scmp.lt.s32.totalorder %s338, 3
        %s342 = scalar_select %p341, %s338, 3
        %s343 = smul.addr %s342, 2
        %s344 = smul.addr %s340, 8
        %s345 = sadd.s32 %s343, %s344
        %s346 = smul.addr %s345, 4
        %s347 = scalar_lea.vmem %s4, %s346
      $region48: #{_lambda_.23} parent=43 // pred_fallthru
        _
    $region44: #{_lambda_.23} parent=5 // pred_fallthru
      _
  $region6: #{_lambda_.23} parent=0 // loop_footer
    %s14 = sadd.s32 1, %s10
  $region7: #{_lambda_.23} parent=0 // loop_footer_branch
    %9 = sbr.rel target = $region3
  $region8: #{_lambda_.23} parent=0 // loop_exit
    _

// kernel: _lambda_.20
$region0: #{_lambda_.20}
  #allocation0 [shape = 'u32[]', space=smem, size = 0x4, offset = 0x4, fixed_abs, tag = 'smem constant byte address 0x4 - core index']
  #allocation1 [shape = 'u32[72,128]{1,0:T(1,128)}', space=vmem, size = 0x9000, scoped, tag = 'internal scratch']
  #allocation2 [shape = 'bf16[6,6,128]{2,1,0:T(8,128)(2,1)}', space=vmem, size = 0x3000, scoped, tag = 'scratch operand']
  %s0 = inlined_call_operand.vmem [shape: bf16[2,4,4,128], index: 0, kind: input, shape index: {}]
  %s1 = inlined_call_operand.vmem [shape: f32[1,128], index: 1, kind: input, shape index: {}]
  %s2 = inlined_call_operand.vmem [shape: f32[1,128], index: 2, kind: input, shape index: {}]
  %s3 = inlined_call_operand.vmem [shape: bf16[1152,64], index: 3, kind: input, shape index: {}]
  %s4 = inlined_call_operand.vmem [shape: bf16[2,4,4,64], index: 4, kind: input, shape index: {}]
  %s5 = inlined_call_operand.vmem [shape: bf16[2,4,4,64], index: 5, kind: output, shape index: {}]
  %s6 = sld [smem:[#allocation0]]
  $region57: #{_lambda_.20} parent=0
    _
  %s8 = ssub.s32 1, %s6
  %s9 = scalar_select 0, %s8, %s6
  loop: start=0, step=1, limit=4
  $region2: #{_lambda_.20} parent=0 // loop_pre_header
    _
  $region3: #{_lambda_.20} parent=0 // loop_header
    %s11 = sphi 0, %s15
    %p12 = scmp.ge.s32.totalorder %s11, 4
    %s18 = sphi 0, %s30
    %s19 = sphi 0, %s26
    %s20 = sphi 0, %s18
    %s21 = sphi 0, %s19
    %s22 = sphi 0, %s20
    %s23 = sphi 0, %s21
    %s33 = sphi 0, %s35
    %s36 = sphi 0, %s33
    %s37 = sphi 0, %s36
    %s53 = sphi 0, %s37
    %s57 = sphi 0, %s57
    %s59 = sphi 0, %s57
    %s60 = sphi 0, %s59
    %s74 = sphi 0, %s60
    %s78 = sphi 0, %s78
    %s80 = sphi 0, %s78
    %s81 = sphi 0, %s80
    %s95 = sphi 0, %s81
    %s99 = sphi 0, %s99
    %s101 = sphi 0, %s99
    %s102 = sphi 0, %s101
    %s116 = sphi 0, %s102
    %s124 = sphi 0, %s126
    %s127 = sphi 0, %s124
    %s128 = sphi 0, %s127
    %s144 = sphi 0, %s128
    %s152 = sphi 0, %s154
    %s155 = sphi 0, %s152
    %s156 = sphi 0, %s155
    %s172 = sphi 0, %s156
  $region4: #{_lambda_.20} parent=0 // loop_header_branch
    %14 = sbr.rel (%p12) target = $region8
  $region5: #{_lambda_.20} parent=0 // loop_body
    %s16 = ssub.s32 %s11, 1
    %s17 = ssub.s32 %s11, 2
    %s24 = sadd.s32 1, %s19
    %p25 = scmp.ge.s32.totalorder %s24, 1
    %s26 = scalar_select %p25, 0, %s24
    %s27 = sadd.s32 1, %s18
    %s28 = scalar_select %p25, %s27, %s18
    %p29 = scmp.ge.s32.totalorder %s28, 2
    %s30 = scalar_select %p29, 0, %s28
    %s31 = ssub.s32 %s18, %s30
    %p32 = scmp.eq.s32.totalorder %s31, 0
    %s34 = sadd.s32 %s33, 1
    %s35 = scalar_select %p32, %s33, %s34
    %p38 = pneg %p32
    %p39 = scmp.eq.s32.totalorder %s11, 1
    %p40 = por %p38, %p39
    %p41 = scmp.ne.s32.totalorder %s33, %s36
    %p42 = scmp.eq.s32.totalorder %s11, 0
    %p43 = por %p41, %p42
    %p44 = scmp.ne.s32.totalorder %s33, %s36
    %p45 = scmp.eq.s32.totalorder %s16, 1
    %p46 = por %p44, %p45
    %p47 = scmp.ne.s32.totalorder %s36, %s37
    %p48 = scmp.eq.s32.totalorder %s16, 0
    %p49 = por %p47, %p48
    %p50 = scmp.ne.s32.totalorder %s36, %s37
    %p51 = scmp.eq.s32.totalorder %s17, 1
    %p52 = por %p50, %p51
    %p54 = scmp.ne.s32.totalorder %s37, %s53
    %p55 = scmp.eq.s32.totalorder %s17, 0
    %p56 = por %p54, %p55
    %s58 = sadd.s32 %s57, 1
    %p61 = scmp.eq.s32.totalorder %s11, 1
    %p62 = scmp.ne.s32.totalorder %s57, %s59
    %p63 = scmp.eq.s32.totalorder %s11, 0
    %p64 = por %p62, %p63
    %p65 = scmp.ne.s32.totalorder %s57, %s59
    %p66 = scmp.eq.s32.totalorder %s16, 1
    %p67 = por %p65, %p66
    %p68 = scmp.ne.s32.totalorder %s59, %s60
    %p69 = scmp.eq.s32.totalorder %s16, 0
    %p70 = por %p68, %p69
    %p71 = scmp.ne.s32.totalorder %s59, %s60
    %p72 = scmp.eq.s32.totalorder %s17, 1
    %p73 = por %p71, %p72
    %p75 = scmp.ne.s32.totalorder %s60, %s74
    %p76 = scmp.eq.s32.totalorder %s17, 0
    %p77 = por %p75, %p76
    %s79 = sadd.s32 %s78, 1
    %p82 = scmp.eq.s32.totalorder %s11, 1
    %p83 = scmp.ne.s32.totalorder %s78, %s80
    %p84 = scmp.eq.s32.totalorder %s11, 0
    %p85 = por %p83, %p84
    %p86 = scmp.ne.s32.totalorder %s78, %s80
    %p87 = scmp.eq.s32.totalorder %s16, 1
    %p88 = por %p86, %p87
    %p89 = scmp.ne.s32.totalorder %s80, %s81
    %p90 = scmp.eq.s32.totalorder %s16, 0
    %p91 = por %p89, %p90
    %p92 = scmp.ne.s32.totalorder %s80, %s81
    %p93 = scmp.eq.s32.totalorder %s17, 1
    %p94 = por %p92, %p93
    %p96 = scmp.ne.s32.totalorder %s81, %s95
    %p97 = scmp.eq.s32.totalorder %s17, 0
    %p98 = por %p96, %p97
    %s100 = sadd.s32 %s99, 1
    %p103 = scmp.eq.s32.totalorder %s11, 1
    %p104 = scmp.ne.s32.totalorder %s99, %s101
    %p105 = scmp.eq.s32.totalorder %s11, 0
    %p106 = por %p104, %p105
    %p107 = scmp.ne.s32.totalorder %s99, %s101
    %p108 = scmp.eq.s32.totalorder %s16, 1
    %p109 = por %p107, %p108
    %p110 = scmp.ne.s32.totalorder %s101, %s102
    %p111 = scmp.eq.s32.totalorder %s16, 0
    %p112 = por %p110, %p111
    %p113 = scmp.ne.s32.totalorder %s101, %s102
    %p114 = scmp.eq.s32.totalorder %s17, 1
    %p115 = por %p113, %p114
    %p117 = scmp.ne.s32.totalorder %s102, %s116
    %p118 = scmp.eq.s32.totalorder %s17, 0
    %p119 = por %p117, %p118
    %s120 = ssub.s32 %s18, %s30
    %s121 = ssub.s32 %s19, %s26
    %s122 = sor.u32 %s120, %s121
    %p123 = scmp.eq.s32.totalorder %s122, 0
    %s125 = sadd.s32 %s124, 1
    %s126 = scalar_select %p123, %s124, %s125
    %p129 = pneg %p123
    %p130 = scmp.eq.s32.totalorder %s11, 1
    %p131 = por %p129, %p130
    %p132 = scmp.ne.s32.totalorder %s124, %s127
    %p133 = scmp.eq.s32.totalorder %s11, 0
    %p134 = por %p132, %p133
    %p135 = scmp.ne.s32.totalorder %s124, %s127
    %p136 = scmp.eq.s32.totalorder %s16, 1
    %p137 = por %p135, %p136
    %p138 = scmp.ne.s32.totalorder %s127, %s128
    %p139 = scmp.eq.s32.totalorder %s16, 0
    %p140 = por %p138, %p139
    %p141 = scmp.ne.s32.totalorder %s127, %s128
    %p142 = scmp.eq.s32.totalorder %s17, 1
    %p143 = por %p141, %p142
    %p145 = scmp.ne.s32.totalorder %s128, %s144
    %p146 = scmp.eq.s32.totalorder %s17, 0
    %p147 = por %p145, %p146
    %s148 = ssub.s32 %s18, %s30
    %s149 = ssub.s32 %s19, %s26
    %s150 = sor.u32 %s148, %s149
    %p151 = scmp.eq.s32.totalorder %s150, 0
    %s153 = sadd.s32 %s152, 1
    %s154 = scalar_select %p151, %s152, %s153
    %p157 = pneg %p151
    %p158 = scmp.eq.s32.totalorder %s11, 1
    %p159 = por %p157, %p158
    %p160 = scmp.ne.s32.totalorder %s152, %s155
    %p161 = scmp.eq.s32.totalorder %s11, 0
    %p162 = por %p160, %p161
    %p163 = scmp.ne.s32.totalorder %s152, %s155
    %p164 = scmp.eq.s32.totalorder %s16, 1
    %p165 = por %p163, %p164
    %p166 = scmp.ne.s32.totalorder %s155, %s156
    %p167 = scmp.eq.s32.totalorder %s16, 0
    %p168 = por %p166, %p167
    %p169 = scmp.ne.s32.totalorder %s155, %s156
    %p170 = scmp.eq.s32.totalorder %s17, 1
    %p171 = por %p169, %p170
    %p173 = scmp.ne.s32.totalorder %s156, %s172
    %p174 = scmp.eq.s32.totalorder %s17, 0
    %p175 = por %p173, %p174
    %p176 = scmp.le.s32.totalorder 1, %s11
    %p177 = scmp.lt.s32.totalorder %s11, 3
    %p178 = pnand %p176, %p177
    %p179 = pneg %p178
    // Predicated region
    $region9: #{_lambda_.20} parent=5 // pred_check
      _
    $region10: #{_lambda_.20} parent=5 // pred_check_branch
      %181 = sbr.rel (%p178) target = $region12
    $region11: #{_lambda_.20} parent=5 // pred_region
      %s182 = ssub.s32 %s11, 1
      // Predicated region
      $region13: #{_lambda_.20} parent=11 // pred_check
        %p183 = pneg %p70
      $region14: #{_lambda_.20} parent=11 // pred_check_branch
        %185 = sbr.rel (%p183) target = $region16
      $region15: #{_lambda_.20} parent=11 // pred_region
        _
      $region16: #{_lambda_.20} parent=11 // pred_fallthru
        _
      // Predicated region
      $region17: #{_lambda_.20} parent=11 // pred_check
        %p186 = pneg %p91
      $region18: #{_lambda_.20} parent=11 // pred_check_branch
        %188 = sbr.rel (%p186) target = $region20
      $region19: #{_lambda_.20} parent=11 // pred_region
        _
      $region20: #{_lambda_.20} parent=11 // pred_fallthru
        _
      // Predicated region
      $region21: #{_lambda_.20} parent=11 // pred_check
        %p189 = pneg %p112
      $region22: #{_lambda_.20} parent=11 // pred_check_branch
        %191 = sbr.rel (%p189) target = $region24
      $region23: #{_lambda_.20} parent=11 // pred_region
        _
      $region24: #{_lambda_.20} parent=11 // pred_fallthru
        _
    $region12: #{_lambda_.20} parent=5 // pred_fallthru
      _
    %p192 = scmp.lt.s32.totalorder %s11, 2
    // Predicated region
    $region25: #{_lambda_.20} parent=5 // pred_check
      %p193 = pneg %p192
    $region26: #{_lambda_.20} parent=5 // pred_check_branch
      %195 = sbr.rel (%p193) target = $region28
    $region27: #{_lambda_.20} parent=5 // pred_region
      // Predicated region
      $region29: #{_lambda_.20} parent=27 // pred_check
        %p196 = pneg %p43
      $region30: #{_lambda_.20} parent=27 // pred_check_branch
        %198 = sbr.rel (%p196) target = $region32
      $region31: #{_lambda_.20} parent=27 // pred_region
        %p199 = scmp.lt.s32.totalorder %s18, 1
        %s200 = scalar_select %p199, %s18, 1
        %s201 = smul.addr %s200, 4
        %s202 = smul.addr %s201, 2
        %s203 = scalar_lea.vmem %s0, %s202
      $region32: #{_lambda_.20} parent=27 // pred_fallthru
        _
      // Predicated region
      $region33: #{_lambda_.20} parent=27 // pred_check
        %p204 = pneg %p134
      $region34: #{_lambda_.20} parent=27 // pred_check_branch
        %206 = sbr.rel (%p204) target = $region36
      $region35: #{_lambda_.20} parent=27 // pred_region
        %s207 = smul.u32 4, %s19
        %p208 = scmp.lt.s32.totalorder %s18, 1
        %s209 = scalar_select %p208, %s18, 1
        %p210 = scmp.lt.s32.totalorder %s207, 3
        %s211 = scalar_select %p210, %s207, 3
        %s212 = smul.addr %s209, 4
        %s213 = sadd.s32 %s211, %s212
        %s214 = smul.addr %s213, 2
        %s215 = scalar_lea.vmem %s4, %s214
        %s216 = smul.u32 4, %s19
      $region36: #{_lambda_.20} parent=27 // pred_fallthru
        _
    $region28: #{_lambda_.20} parent=5 // pred_fallthru
      _
    %p217 = scmp.le.s32.totalorder 1, %s11
    %p218 = scmp.lt.s32.totalorder %s11, 3
    %p219 = pnand %p217, %p218
    %p220 = pneg %p219
    // Predicated region
    $region37: #{_lambda_.20} parent=5 // pred_check
      _
    $region38: #{_lambda_.20} parent=5 // pred_check_branch
      %222 = sbr.rel (%p219) target = $region40
    $region39: #{_lambda_.20} parent=5 // pred_region
      %s223 = ssub.s32 %s11, 1
      %p224 = scmp.lt.s32.totalorder %s20, 1
      %s225 = scalar_select %p224, %s20, 1
      %s226 = smul.addr %s225, 4
      %s227 = smul.addr %s226, 2
      %s228 = scalar_lea.vmem %s0, %s227
      %p229 = pneg %p49
      %p230 = pneg %p46
      %p231 = pneg %p70
      %p232 = pneg %p67
      %p233 = pneg %p91
      %p234 = pneg %p88
      %p235 = pneg %p112
      %p236 = pneg %p109
      %s237 = smul.u32 4, %s21
      %p238 = scmp.lt.s32.totalorder %s20, 1
      %s239 = scalar_select %p238, %s20, 1
      %p240 = scmp.lt.s32.totalorder %s237, 3
      %s241 = scalar_select %p240, %s237, 3
      %s242 = smul.addr %s239, 4
      %s243 = sadd.s32 %s241, %s242
      %s244 = smul.addr %s243, 2
      %s245 = scalar_lea.vmem %s4, %s244
      %p246 = pneg %p140
      %p247 = pneg %p137
      %p248 = pneg %p168
      %p249 = pneg %p165
      %s250 = smul.u32 4, %s21
      %p251 = scmp.lt.s32.totalorder %s20, 1
      %s252 = scalar_select %p251, %s20, 1
      %p253 = scmp.lt.s32.totalorder %s250, 3
      %s254 = scalar_select %p253, %s250, 3
      %s255 = smul.addr %s252, 4
      %s256 = sadd.s32 %s254, %s255
      %s257 = smul.addr %s256, 2
      %s258 = scalar_lea.vmem %s5, %s257
      %p259 = scmp.lt.s32.totalorder %s20, 1
      %s260 = scalar_select %p259, %s20, 1
      %s261 = smul.addr %s260, 4
      %s262 = smul.addr %s261, 2
      %s263 = scalar_lea.vmem %s0, %s262
      %s264 = smul.u32 4, %s21
      %p265 = scmp.lt.s32.totalorder %s20, 1
      %s266 = scalar_select %p265, %s20, 1
      %p267 = scmp.lt.s32.totalorder %s264, 3
      %s268 = scalar_select %p267, %s264, 3
      %s269 = smul.addr %s266, 4
      %s270 = sadd.s32 %s268, %s269
      %s271 = smul.addr %s270, 2
      %s272 = scalar_lea.vmem %s4, %s271
      %s273 = smul.u32 4, %s21
      %s274 = smul.u32 4, %s21
      %p275 = scmp.lt.s32.totalorder %s20, 1
      %s276 = scalar_select %p275, %s20, 1
      %p277 = scmp.lt.s32.totalorder %s274, 3
      %s278 = scalar_select %p277, %s274, 3
      %s279 = smul.addr %s276, 4
      %s280 = sadd.s32 %s278, %s279
      %s281 = smul.addr %s280, 2
      %s282 = scalar_lea.vmem %s5, %s281
      %s283 = smul.u32 4, %s21
      %p285 = scmp.eq.s32.totalorder %s21, 0
      // Predicated region
      $region41: #{_lambda_.20} parent=39 // pred_check
        %p286 = pneg %p285
      $region42: #{_lambda_.20} parent=39 // pred_check_branch
        %288 = sbr.rel (%p286) target = $region44
      $region43: #{_lambda_.20} parent=39 // pred_region
        %289 = vst [vmem:[#allocation2] sm:$0x7] 0
        %290 = vst [vmem:[#allocation2 + $0x4] sm:$0x7] 0
        %291 = vst [vmem:[#allocation2 + $0x8] sm:$0x7] 0
        %292 = vst [vmem:[#allocation2 + $0xc] sm:$0x7] 0
        %293 = vst [vmem:[#allocation2 + $0x10] sm:$0x7] 0
        %294 = vst [vmem:[#allocation2 + $0x14] sm:$0x7] 0
        %v295 = vld [vmem:[%s263] sm:$0x3]
        %v296 = vld [vmem:[%s263 + $0x2] sm:$0x3]
        %v297 = vld [vmem:[%s263 + $0x4] sm:$0x3]
        %v298 = vld [vmem:[%s263 + $0x6] sm:$0x3]
        %v299 = vunpack.c.l.bf16 %v295
        %v300 = vunpack.c.l.bf16 %v296
        %v301 = vunpack.c.l.bf16 %v297
        %v302 = vunpack.c.l.bf16 %v298
        %v303 = vld [vmem:[%s1] sm:$0x1]
        %v305 = vperm.slane %v303, 0
        %v307 = vmul.f32 %v299, %v305
        %v308 = vmul.f32 %v300, %v305
        %v309 = vmul.f32 %v301, %v305
        %v310 = vmul.f32 %v302, %v305
        %v311 = vld [vmem:[%s2] sm:$0x1]
        %v313 = vperm.slane %v311, 0
        %v315 = vadd.f32 %v307, %v313
        %v316 = vadd.f32 %v308, %v313
        %v317 = vadd.f32 %v309, %v313
        %v318 = vadd.f32 %v310, %v313
        %v319 = vmax.f32 %v315, 0.0
        %v320 = vmax.f32 %v316, 0.0
        %v321 = vmax.f32 %v317, 0.0
        %v322 = vmax.f32 %v318, 0.0
        %v323 = vpack.c.bf16 %v319, %v319
        %v324 = vpack.c.bf16 %v320, %v320
        %v325 = vpack.c.bf16 %v321, %v321
        %v326 = vpack.c.bf16 %v322, %v322
        %v328 = vshrl.u32 %v323, 16
        %v330 = vrot.slane %v328, 7
        %v331 = vshll.u32 %v323, 16
        %v333 = vor.u32 %v330, %v331
        %v335 = vshrl.u32 %v324, 16
        %v337 = vrot.slane %v335, 7
        %v338 = vshll.u32 %v324, 16
        %v340 = vor.u32 %v337, %v338
        %v342 = vshrl.u32 %v325, 16
        %v344 = vrot.slane %v342, 7
        %v345 = vshll.u32 %v325, 16
        %v347 = vor.u32 %v344, %v345
        %v349 = vshrl.u32 %v326, 16
        %v351 = vrot.slane %v349, 7
        %v352 = vshll.u32 %v326, 16
        %v354 = vor.u32 %v351, %v352
        %s359 = scalar_lea.vmem [#allocation2], 4
        %vm360 = vcmask 1042432
        %vm361 = vsmask.f32 2306
        %vm362 = vmand %vm360, %vm361
        %v363 = vld [vmem:[%s359] sm:$0x7]
        %v364 = vsel %vm362, %v333, %v363
        %365 = vst [vmem:[%s359] sm:$0x7] %v364
        %v366 = vld [vmem:[%s359 + $0x4] sm:$0x7]
        %v367 = vsel %vm362, %v340, %v366
        %368 = vst [vmem:[%s359 + $0x4] sm:$0x7] %v367
        %v369 = vld [vmem:[%s359 + $0x8] sm:$0x7]
        %v370 = vsel %vm362, %v347, %v369
        %371 = vst [vmem:[%s359 + $0x8] sm:$0x7] %v370
        %v372 = vld [vmem:[%s359 + $0xc] sm:$0x7]
        %v373 = vsel %vm362, %v354, %v372
        %374 = vst [vmem:[%s359 + $0xc] sm:$0x7] %v373
      $region44: #{_lambda_.20} parent=39 // pred_fallthru
        _
      %s375 = smul.u32 %s21, 4
      %s376 = smul.addr %s375, 4
      %s377 = scalar_lea.vmem [#allocation2], %s376
      %v378 = vld [vmem:[%s377] sm:$0x3]
      %v379 = vld [vmem:[%s377 + $0x4] sm:$0x3]
      %v380 = vld [vmem:[%s377 + $0x8] sm:$0x3]
      %v381 = vld [vmem:[%s377 + $0xc] sm:$0x3]
      %v382 = vld [vmem:[%s377] sm:$0x7]
      %v383 = vld [vmem:[%s377 + $0x4] sm:$0x7]
      %v384 = vld [vmem:[%s377 + $0x8] sm:$0x7]
      %v385 = vld [vmem:[%s377 + $0xc] sm:$0x7]
      %v390 = vrot.slane %v382, 2
      %v391 = vrot.slane %v383, 2
      %v392 = vrot.slane %v384, 2
      %v393 = vrot.slane %v385, 2
      %vm394 = vcmask 1041408
      %v397 = vsel %vm394, %v382, %v390
      %vm398 = vcmask 1043458
      %v399 = vsel %vm398, %v382, %v390
      %v401 = vrot.slane %v399, 2
      %v404 = vsel %vm394, %v383, %v391
      %v405 = vsel %vm398, %v383, %v391
      %v407 = vrot.slane %v405, 2
      %v410 = vsel %vm394, %v384, %v392
      %v411 = vsel %vm398, %v384, %v392
      %v413 = vrot.slane %v411, 2
      %v416 = vsel %vm394, %v385, %v393
      %v417 = vsel %vm398, %v385, %v393
      %v419 = vrot.slane %v417, 2
      %vm420 = vsmask.f32 1280
      %vm421 = vsmask.f32 3336
      %vm422 = vmor %vm420, %vm421
      %vm423 = vsmask.f32 5392
      %vm424 = vmor %vm422, %vm423
      %vm425 = vsmask.f32 7448
      %vm426 = vmor %vm424, %vm425
      %v427 = vshrl.u32 %v397, 16
      %v429 = vrot.slane %v427, 6
      %v430 = vshll.u32 %v397, 16
      %v432 = vrot.slane %v430, 7
      %v433 = vor.u32 %v429, %v432
      %v434 = vrot.slane %v433, 2
      %v436 = vshll.u32 %v401, 16
      %v438 = vrot.slane %v436, 7
      %v439 = vsel %vm426, %v434, %v438
      %v440 = vshrl.u32 %v404, 16
      %v442 = vrot.slane %v440, 6
      %v443 = vshll.u32 %v404, 16
      %v445 = vrot.slane %v443, 7
      %v446 = vor.u32 %v442, %v445
      %v447 = vrot.slane %v446, 2
      %v449 = vshll.u32 %v407, 16
      %v451 = vrot.slane %v449, 7
      %v452 = vsel %vm426, %v447, %v451
      %v453 = vshrl.u32 %v410, 16
      %v455 = vrot.slane %v453, 6
      %v456 = vshll.u32 %v410, 16
      %v458 = vrot.slane %v456, 7
      %v459 = vor.u32 %v455, %v458
      %v460 = vrot.slane %v459, 2
      %v462 = vshll.u32 %v413, 16
      %v464 = vrot.slane %v462, 7
      %v465 = vsel %vm426, %v460, %v464
      %v466 = vshrl.u32 %v416, 16
      %v468 = vrot.slane %v466, 6
      %v469 = vshll.u32 %v416, 16
      %v471 = vrot.slane %v469, 7
      %v472 = vor.u32 %v468, %v471
      %v473 = vrot.slane %v472, 2
      %v475 = vshll.u32 %v419, 16
      %v477 = vrot.slane %v475, 7
      %v478 = vsel %vm426, %v473, %v477
      %v479 = vld [vmem:[%s377] sm:$0x6]
      %v480 = vld [vmem:[%s377 + $0x4] sm:$0x6]
      %v481 = vld [vmem:[%s377 + $0x8] sm:$0x6]
      %v482 = vld [vmem:[%s377 + $0xc] sm:$0x6]
      %v487 = vrot.slane %v479, 2
      %v488 = vrot.slane %v480, 2
      %v489 = vrot.slane %v481, 2
      %v490 = vrot.slane %v482, 2
      %v493 = vsel %vm394, %v479, %v487
      %v495 = vsel %vm398, %v479, %v487
      %v497 = vrot.slane %v495, 2
      %v500 = vsel %vm394, %v480, %v488
      %v502 = vsel %vm398, %v480, %v488
      %v504 = vrot.slane %v502, 2
      %v507 = vsel %vm394, %v481, %v489
      %v509 = vsel %vm398, %v481, %v489
      %v511 = vrot.slane %v509, 2
      %v514 = vsel %vm394, %v482, %v490
      %v516 = vsel %vm398, %v482, %v490
      %v518 = vrot.slane %v516, 2
      %vm519 = vcmask 1040384
      %vm520 = vcmask 1042434
      %vm521 = vmor %vm519, %vm520
      %vm522 = vcmask 1044484
      %vm523 = vmor %vm521, %vm522
      %vm524 = vcmask 1046534
      %vm525 = vmor %vm523, %vm524
      %v526 = vrot.slane %v493, 7
      %v527 = vrot.slane %v526, 2
      %v528 = vrot.slane %v497, 7
      %v529 = vsel %vm525, %v527, %v528
      %v530 = vrot.slane %v500, 7
      %v531 = vrot.slane %v530, 2
      %v532 = vrot.slane %v504, 7
      %v533 = vsel %vm525, %v531, %v532
      %v534 = vrot.slane %v507, 7
      %v535 = vrot.slane %v534, 2
      %v536 = vrot.slane %v511, 7
      %v537 = vsel %vm525, %v535, %v536
      %v538 = vrot.slane %v514, 7
      %v539 = vrot.slane %v538, 2
      %v540 = vrot.slane %v518, 7
      %v541 = vsel %vm525, %v539, %v540
      %s542 = sadd.s32 %s375, 1
      %s543 = smul.addr %s542, 4
      %s544 = scalar_lea.vmem [#allocation2], %s543
      %v545 = vld [vmem:[%s544] sm:$0x3]
      %v546 = vld [vmem:[%s544 + $0x4] sm:$0x3]
      %v547 = vld [vmem:[%s544 + $0x8] sm:$0x3]
      %v548 = vld [vmem:[%s544 + $0xc] sm:$0x3]
      %v549 = vld [vmem:[%s544] sm:$0x7]
      %v550 = vld [vmem:[%s544 + $0x4] sm:$0x7]
      %v551 = vld [vmem:[%s544 + $0x8] sm:$0x7]
      %v552 = vld [vmem:[%s544 + $0xc] sm:$0x7]
      %v557 = vrot.slane %v549, 2
      %v558 = vrot.slane %v550, 2
      %v559 = vrot.slane %v551, 2
      %v560 = vrot.slane %v552, 2
      %v563 = vsel %vm394, %v549, %v557
      %v564 = vsel %vm398, %v549, %v557
      %v566 = vrot.slane %v564, 2
      %v569 = vsel %vm394, %v550, %v558
      %v570 = vsel %vm398, %v550, %v558
      %v572 = vrot.slane %v570, 2
      %v575 = vsel %vm394, %v551, %v559
      %v576 = vsel %vm398, %v551, %v559
      %v578 = vrot.slane %v576, 2
      %v581 = vsel %vm394, %v552, %v560
      %v582 = vsel %vm398, %v552, %v560
      %v584 = vrot.slane %v582, 2
      %v585 = vshrl.u32 %v563, 16
      %v587 = vrot.slane %v585, 6
      %v588 = vshll.u32 %v563, 16
      %v590 = vrot.slane %v588, 7
      %v591 = vor.u32 %v587, %v590
      %v592 = vrot.slane %v591, 2
      %v594 = vshll.u32 %v566, 16
      %v596 = vrot.slane %v594, 7
      %v597 = vsel %vm426, %v592, %v596
      %v598 = vshrl.u32 %v569, 16
      %v600 = vrot.slane %v598, 6
      %v601 = vshll.u32 %v569, 16
      %v603 = vrot.slane %v601, 7
      %v604 = vor.u32 %v600, %v603
      %v605 = vrot.slane %v604, 2
      %v607 = vshll.u32 %v572, 16
      %v609 = vrot.slane %v607, 7
      %v610 = vsel %vm426, %v605, %v609
      %v611 = vshrl.u32 %v575, 16
      %v613 = vrot.slane %v611, 6
      %v614 = vshll.u32 %v575, 16
      %v616 = vrot.slane %v614, 7
      %v617 = vor.u32 %v613, %v616
      %v618 = vrot.slane %v617, 2
      %v620 = vshll.u32 %v578, 16
      %v622 = vrot.slane %v620, 7
      %v623 = vsel %vm426, %v618, %v622
      %v624 = vshrl.u32 %v581, 16
      %v626 = vrot.slane %v624, 6
      %v627 = vshll.u32 %v581, 16
      %v629 = vrot.slane %v627, 7
      %v630 = vor.u32 %v626, %v629
      %v631 = vrot.slane %v630, 2
      %v633 = vshll.u32 %v584, 16
      %v635 = vrot.slane %v633, 7
      %v636 = vsel %vm426, %v631, %v635
      %v637 = vld [vmem:[%s544] sm:$0x6]
      %v638 = vld [vmem:[%s544 + $0x4] sm:$0x6]
      %v639 = vld [vmem:[%s544 + $0x8] sm:$0x6]
      %v640 = vld [vmem:[%s544 + $0xc] sm:$0x6]
      %v645 = vrot.slane %v637, 2
      %v646 = vrot.slane %v638, 2
      %v647 = vrot.slane %v639, 2
      %v648 = vrot.slane %v640, 2
      %v651 = vsel %vm394, %v637, %v645
      %v653 = vsel %vm398, %v637, %v645
      %v655 = vrot.slane %v653, 2
      %v658 = vsel %vm394, %v638, %v646
      %v660 = vsel %vm398, %v638, %v646
      %v662 = vrot.slane %v660, 2
      %v665 = vsel %vm394, %v639, %v647
      %v667 = vsel %vm398, %v639, %v647
      %v669 = vrot.slane %v667, 2
      %v672 = vsel %vm394, %v640, %v648
      %v674 = vsel %vm398, %v640, %v648
      %v676 = vrot.slane %v674, 2
      %v677 = vrot.slane %v651, 7
      %v678 = vrot.slane %v677, 2
      %v679 = vrot.slane %v655, 7
      %v680 = vsel %vm525, %v678, %v679
      %v681 = vrot.slane %v658, 7
      %v682 = vrot.slane %v681, 2
      %v683 = vrot.slane %v662, 7
      %v684 = vsel %vm525, %v682, %v683
      %v685 = vrot.slane %v665, 7
      %v686 = vrot.slane %v685, 2
      %v687 = vrot.slane %v669, 7
      %v688 = vsel %vm525, %v686, %v687
      %v689 = vrot.slane %v672, 7
      %v690 = vrot.slane %v689, 2
      %v691 = vrot.slane %v676, 7
      %v692 = vsel %vm525, %v690, %v691
      %s693 = sadd.s32 %s375, 2
      %s694 = smul.addr %s693, 4
      %s695 = scalar_lea.vmem [#allocation2], %s694
      %v696 = vld [vmem:[%s695] sm:$0x3]
      %v697 = vld [vmem:[%s695 + $0x4] sm:$0x3]
      %v698 = vld [vmem:[%s695 + $0x8] sm:$0x3]
      %v699 = vld [vmem:[%s695 + $0xc] sm:$0x3]
      %v700 = vld [vmem:[%s695] sm:$0x7]
      %v701 = vld [vmem:[%s695 + $0x4] sm:$0x7]
      %v702 = vld [vmem:[%s695 + $0x8] sm:$0x7]
      %v703 = vld [vmem:[%s695 + $0xc] sm:$0x7]
      %v708 = vrot.slane %v700, 2
      %v709 = vrot.slane %v701, 2
      %v710 = vrot.slane %v702, 2
      %v711 = vrot.slane %v703, 2
      %v714 = vsel %vm394, %v700, %v708
      %v715 = vsel %vm398, %v700, %v708
      %v717 = vrot.slane %v715, 2
      %v720 = vsel %vm394, %v701, %v709
      %v721 = vsel %vm398, %v701, %v709
      %v723 = vrot.slane %v721, 2
      %v726 = vsel %vm394, %v702, %v710
      %v727 = vsel %vm398, %v702, %v710
      %v729 = vrot.slane %v727, 2
      %v732 = vsel %vm394, %v703, %v711
      %v733 = vsel %vm398, %v703, %v711
      %v735 = vrot.slane %v733, 2
      %v736 = vshrl.u32 %v714, 16
      %v738 = vrot.slane %v736, 6
      %v739 = vshll.u32 %v714, 16
      %v741 = vrot.slane %v739, 7
      %v742 = vor.u32 %v738, %v741
      %v743 = vrot.slane %v742, 2
      %v745 = vshll.u32 %v717, 16
      %v747 = vrot.slane %v745, 7
      %v748 = vsel %vm426, %v743, %v747
      %v749 = vshrl.u32 %v720, 16
      %v751 = vrot.slane %v749, 6
      %v752 = vshll.u32 %v720, 16
      %v754 = vrot.slane %v752, 7
      %v755 = vor.u32 %v751, %v754
      %v756 = vrot.slane %v755, 2
      %v758 = vshll.u32 %v723, 16
      %v760 = vrot.slane %v758, 7
      %v761 = vsel %vm426, %v756, %v760
      %v762 = vshrl.u32 %v726, 16
      %v764 = vrot.slane %v762, 6
      %v765 = vshll.u32 %v726, 16
      %v767 = vrot.slane %v765, 7
      %v768 = vor.u32 %v764, %v767
      %v769 = vrot.slane %v768, 2
      %v771 = vshll.u32 %v729, 16
      %v773 = vrot.slane %v771, 7
      %v774 = vsel %vm426, %v769, %v773
      %v775 = vshrl.u32 %v732, 16
      %v777 = vrot.slane %v775, 6
      %v778 = vshll.u32 %v732, 16
      %v780 = vrot.slane %v778, 7
      %v781 = vor.u32 %v777, %v780
      %v782 = vrot.slane %v781, 2
      %v784 = vshll.u32 %v735, 16
      %v786 = vrot.slane %v784, 7
      %v787 = vsel %vm426, %v782, %v786
      %v788 = vld [vmem:[%s695] sm:$0x6]
      %v789 = vld [vmem:[%s695 + $0x4] sm:$0x6]
      %v790 = vld [vmem:[%s695 + $0x8] sm:$0x6]
      %v791 = vld [vmem:[%s695 + $0xc] sm:$0x6]
      %v796 = vrot.slane %v788, 2
      %v797 = vrot.slane %v789, 2
      %v798 = vrot.slane %v790, 2
      %v799 = vrot.slane %v791, 2
      %v802 = vsel %vm394, %v788, %v796
      %v804 = vsel %vm398, %v788, %v796
      %v806 = vrot.slane %v804, 2
      %v809 = vsel %vm394, %v789, %v797
      %v811 = vsel %vm398, %v789, %v797
      %v813 = vrot.slane %v811, 2
      %v816 = vsel %vm394, %v790, %v798
      %v818 = vsel %vm398, %v790, %v798
      %v820 = vrot.slane %v818, 2
      %v823 = vsel %vm394, %v791, %v799
      %v825 = vsel %vm398, %v791, %v799
      %v827 = vrot.slane %v825, 2
      %v828 = vrot.slane %v802, 7
      %v829 = vrot.slane %v828, 2
      %v830 = vrot.slane %v806, 7
      %v831 = vsel %vm525, %v829, %v830
      %v832 = vrot.slane %v809, 7
      %v833 = vrot.slane %v832, 2
      %v834 = vrot.slane %v813, 7
      %v835 = vsel %vm525, %v833, %v834
      %v836 = vrot.slane %v816, 7
      %v837 = vrot.slane %v836, 2
      %v838 = vrot.slane %v820, 7
      %v839 = vsel %vm525, %v837, %v838
      %v840 = vrot.slane %v823, 7
      %v841 = vrot.slane %v840, 2
      %v842 = vrot.slane %v827, 7
      %v843 = vsel %vm525, %v841, %v842
      %845 = vst [vmem:[#allocation1] ss:$4 sm:$0xff] %v378
      %s847 = scalar_lea.vmem [#allocation1], 1
      %848 = vst [vmem:[%s847] ss:$4 sm:$0xff] %v379
      %s850 = scalar_lea.vmem [#allocation1], 2
      %851 = vst [vmem:[%s850] ss:$4 sm:$0xff] %v380
      %s853 = scalar_lea.vmem [#allocation1], 3
      %854 = vst [vmem:[%s853] ss:$4 sm:$0xff] %v381
      %v855 = vld.sshfl [vmem:[#allocation1] sm:$0xff pattern:$0x73625140]
      %858 = vst [vmem:[#allocation1] ss:$4 sm:$0xff] %v439
      %s860 = scalar_lea.vmem [#allocation1], 1
      %861 = vst [vmem:[%s860] ss:$4 sm:$0xff] %v452
      %s863 = scalar_lea.vmem [#allocation1], 2
      %864 = vst [vmem:[%s863] ss:$4 sm:$0xff] %v465
      %s866 = scalar_lea.vmem [#allocation1], 3
      %867 = vst [vmem:[%s866] ss:$4 sm:$0xff] %v478
      %v868 = vld.sshfl [vmem:[#allocation1] sm:$0xff pattern:$0x73625140]
      %871 = vst [vmem:[#allocation1] ss:$4 sm:$0xff] %v529
      %s873 = scalar_lea.vmem [#allocation1], 1
      %874 = vst [vmem:[%s873] ss:$4 sm:$0xff] %v533
      %s876 = scalar_lea.vmem [#allocation1], 2
      %877 = vst [vmem:[%s876] ss:$4 sm:$0xff] %v537
      %s879 = scalar_lea.vmem [#allocation1], 3
      %880 = vst [vmem:[%s879] ss:$4 sm:$0xff] %v541
      %v881 = vld.sshfl [vmem:[#allocation1] sm:$0xff pattern:$0x73625140]
      %884 = vst [vmem:[#allocation1] ss:$4 sm:$0xff] %v545
      %s886 = scalar_lea.vmem [#allocation1], 1
      %887 = vst [vmem:[%s886] ss:$4 sm:$0xff] %v546
      %s889 = scalar_lea.vmem [#allocation1], 2
      %890 = vst [vmem:[%s889] ss:$4 sm:$0xff] %v547
      %s892 = scalar_lea.vmem [#allocation1], 3
      %893 = vst [vmem:[%s892] ss:$4 sm:$0xff] %v548
      %v894 = vld.sshfl [vmem:[#allocation1] sm:$0xff pattern:$0x73625140]
      %897 = vst [vmem:[#allocation1] ss:$4 sm:$0xff] %v597
      %s899 = scalar_lea.vmem [#allocation1], 1
      %900 = vst [vmem:[%s899] ss:$4 sm:$0xff] %v610
      %s902 = scalar_lea.vmem [#allocation1], 2
      %903 = vst [vmem:[%s902] ss:$4 sm:$0xff] %v623
      %s905 = scalar_lea.vmem [#allocation1], 3
      %906 = vst [vmem:[%s905] ss:$4 sm:$0xff] %v636
      %v907 = vld.sshfl [vmem:[#allocation1] sm:$0xff pattern:$0x73625140]
      %910 = vst [vmem:[#allocation1] ss:$4 sm:$0xff] %v680
      %s912 = scalar_lea.vmem [#allocation1], 1
      %913 = vst [vmem:[%s912] ss:$4 sm:$0xff] %v684
      %s915 = scalar_lea.vmem [#allocation1], 2
      %916 = vst [vmem:[%s915] ss:$4 sm:$0xff] %v688
      %s918 = scalar_lea.vmem [#allocation1], 3
      %919 = vst [vmem:[%s918] ss:$4 sm:$0xff] %v692
      %v920 = vld.sshfl [vmem:[#allocation1] sm:$0xff pattern:$0x73625140]
      %923 = vst [vmem:[#allocation1] ss:$4 sm:$0xff] %v696
      %s925 = scalar_lea.vmem [#allocation1], 1
      %926 = vst [vmem:[%s925] ss:$4 sm:$0xff] %v697
      %s928 = scalar_lea.vmem [#allocation1], 2
      %929 = vst [vmem:[%s928] ss:$4 sm:$0xff] %v698
      %s931 = scalar_lea.vmem [#allocation1], 3
      %932 = vst [vmem:[%s931] ss:$4 sm:$0xff] %v699
      %v933 = vld.sshfl [vmem:[#allocation1] sm:$0xff pattern:$0x73625140]
      %936 = vst [vmem:[#allocation1] ss:$4 sm:$0xff] %v748
      %s938 = scalar_lea.vmem [#allocation1], 1
      %939 = vst [vmem:[%s938] ss:$4 sm:$0xff] %v761
      %s941 = scalar_lea.vmem [#allocation1], 2
      %942 = vst [vmem:[%s941] ss:$4 sm:$0xff] %v774
      %s944 = scalar_lea.vmem [#allocation1], 3
      %945 = vst [vmem:[%s944] ss:$4 sm:$0xff] %v787
      %v946 = vld.sshfl [vmem:[#allocation1] sm:$0xff pattern:$0x73625140]
      %949 = vst [vmem:[#allocation1] ss:$4 sm:$0xff] %v831
      %s951 = scalar_lea.vmem [#allocation1], 1
      %952 = vst [vmem:[%s951] ss:$4 sm:$0xff] %v835
      %s954 = scalar_lea.vmem [#allocation1], 2
      %955 = vst [vmem:[%s954] ss:$4 sm:$0xff] %v839
      %s957 = scalar_lea.vmem [#allocation1], 3
      %958 = vst [vmem:[%s957] ss:$4 sm:$0xff] %v843
      %v959 = vld.sshfl [vmem:[#allocation1] sm:$0xff pattern:$0x73625140]
      %v961 = vld [vmem:[%s3] sm:$0xf]
      %v962 = vld [vmem:[%s3 + $0x4] sm:$0xf]
      %v963 = vld [vmem:[%s3 + $0x8] sm:$0xf]
      %v964 = vld [vmem:[%s3 + $0xc] sm:$0xf]
      %v965 = vld [vmem:[%s3 + $0x10] sm:$0xf]
      %v966 = vld [vmem:[%s3 + $0x14] sm:$0xf]
      %v967 = vld [vmem:[%s3 + $0x18] sm:$0xf]
      %v968 = vld [vmem:[%s3 + $0x1c] sm:$0xf]
      %v969 = vld [vmem:[%s3 + $0x20] sm:$0xf]
      %v970 = vld [vmem:[%s3 + $0x24] sm:$0xf]
      %v971 = vld [vmem:[%s3 + $0x28] sm:$0xf]
      %v972 = vld [vmem:[%s3 + $0x2c] sm:$0xf]
      %v973 = vld [vmem:[%s3 + $0x30] sm:$0xf]
      %v974 = vld [vmem:[%s3 + $0x34] sm:$0xf]
      %v975 = vld [vmem:[%s3 + $0x38] sm:$0xf]
      %v976 = vld [vmem:[%s3 + $0x3c] sm:$0xf]
      %v977 = vld [vmem:[%s3 + $0x40] sm:$0xf]
      %v978 = vld [vmem:[%s3 + $0x44] sm:$0xf]
      %v979 = vld [vmem:[%s3 + $0x48] sm:$0xf]
      %v980 = vld [vmem:[%s3 + $0x4c] sm:$0xf]
      %v981 = vld [vmem:[%s3 + $0x50] sm:$0xf]
      %v982 = vld [vmem:[%s3 + $0x54] sm:$0xf]
      %v983 = vld [vmem:[%s3 + $0x58] sm:$0xf]
      %v984 = vld [vmem:[%s3 + $0x5c] sm:$0xf]
      %v985 = vld [vmem:[%s3 + $0x60] sm:$0xf]
      %v986 = vld [vmem:[%s3 + $0x64] sm:$0xf]
      %v987 = vld [vmem:[%s3 + $0x68] sm:$0xf]
      %v988 = vld [vmem:[%s3 + $0x6c] sm:$0xf]
      %v989 = vld [vmem:[%s3 + $0x70] sm:$0xf]
      %v990 = vld [vmem:[%s3 + $0x74] sm:$0xf]
      %v991 = vld [vmem:[%s3 + $0x78] sm:$0xf]
      %v992 = vld [vmem:[%s3 + $0x7c] sm:$0xf]
      %v993 = vld [vmem:[%s3 + $0x80] sm:$0xf]
      %v994 = vld [vmem:[%s3 + $0x84] sm:$0xf]
      %v995 = vld [vmem:[%s3 + $0x88] sm:$0xf]
      %v996 = vld [vmem:[%s3 + $0x8c] sm:$0xf]
      %v997 = vld [vmem:[%s3 + $0x90] sm:$0xf]
      %v998 = vld [vmem:[%s3 + $0x94] sm:$0xf]
      %v999 = vld [vmem:[%s3 + $0x98] sm:$0xf]
      %v1000 = vld [vmem:[%s3 + $0x9c] sm:$0xf]
      %v1001 = vld [vmem:[%s3 + $0xa0] sm:$0xf]
      %v1002 = vld [vmem:[%s3 + $0xa4] sm:$0xf]
      %v1003 = vld [vmem:[%s3 + $0xa8] sm:$0xf]
      %v1004 = vld [vmem:[%s3 + $0xac] sm:$0xf]
      %v1005 = vld [vmem:[%s3 + $0xb0] sm:$0xf]
      %v1006 = vld [vmem:[%s3 + $0xb4] sm:$0xf]
      %v1007 = vld [vmem:[%s3 + $0xb8] sm:$0xf]
      %v1008 = vld [vmem:[%s3 + $0xbc] sm:$0xf]
      %v1009 = vld [vmem:[%s3 + $0xc0] sm:$0xf]
      %v1010 = vld [vmem:[%s3 + $0xc4] sm:$0xf]
      %v1011 = vld [vmem:[%s3 + $0xc8] sm:$0xf]
      %v1012 = vld [vmem:[%s3 + $0xcc] sm:$0xf]
      %v1013 = vld [vmem:[%s3 + $0xd0] sm:$0xf]
      %v1014 = vld [vmem:[%s3 + $0xd4] sm:$0xf]
      %v1015 = vld [vmem:[%s3 + $0xd8] sm:$0xf]
      %v1016 = vld [vmem:[%s3 + $0xdc] sm:$0xf]
      %v1017 = vld [vmem:[%s3 + $0xe0] sm:$0xf]
      %v1018 = vld [vmem:[%s3 + $0xe4] sm:$0xf]
      %v1019 = vld [vmem:[%s3 + $0xe8] sm:$0xf]
      %v1020 = vld [vmem:[%s3 + $0xec] sm:$0xf]
      %v1021 = vld [vmem:[%s3 + $0xf0] sm:$0xf]
      %v1022 = vld [vmem:[%s3 + $0xf4] sm:$0xf]
      %v1023 = vld [vmem:[%s3 + $0xf8] sm:$0xf]
      %v1024 = vld [vmem:[%s3 + $0xfc] sm:$0xf]
      %v1025 = vld [vmem:[%s3 + $0x100] sm:$0xf]
      %v1026 = vld [vmem:[%s3 + $0x104] sm:$0xf]
      %v1027 = vld [vmem:[%s3 + $0x108] sm:$0xf]
      %v1028 = vld [vmem:[%s3 + $0x10c] sm:$0xf]
      %v1029 = vld [vmem:[%s3 + $0x110] sm:$0xf]
      %v1030 = vld [vmem:[%s3 + $0x114] sm:$0xf]
      %v1031 = vld [vmem:[%s3 + $0x118] sm:$0xf]
      %v1032 = vld [vmem:[%s3 + $0x11c] sm:$0xf]
      %v1033 = vld [vmem:[%s3 + $0x120] sm:$0xf]
      %v1034 = vld [vmem:[%s3 + $0x124] sm:$0xf]
      %v1035 = vld [vmem:[%s3 + $0x128] sm:$0xf]
      %v1036 = vld [vmem:[%s3 + $0x12c] sm:$0xf]
      %v1037 = vld [vmem:[%s3 + $0x130] sm:$0xf]
      %v1038 = vld [vmem:[%s3 + $0x134] sm:$0xf]
      %v1039 = vld [vmem:[%s3 + $0x138] sm:$0xf]
      %v1040 = vld [vmem:[%s3 + $0x13c] sm:$0xf]
      %v1041 = vld [vmem:[%s3 + $0x140] sm:$0xf]
      %v1042 = vld [vmem:[%s3 + $0x144] sm:$0xf]
      %v1043 = vld [vmem:[%s3 + $0x148] sm:$0xf]
      %v1044 = vld [vmem:[%s3 + $0x14c] sm:$0xf]
      %v1045 = vld [vmem:[%s3 + $0x150] sm:$0xf]
      %v1046 = vld [vmem:[%s3 + $0x154] sm:$0xf]
      %v1047 = vld [vmem:[%s3 + $0x158] sm:$0xf]
      %v1048 = vld [vmem:[%s3 + $0x15c] sm:$0xf]
      %v1049 = vld [vmem:[%s3 + $0x160] sm:$0xf]
      %v1050 = vld [vmem:[%s3 + $0x164] sm:$0xf]
      %v1051 = vld [vmem:[%s3 + $0x168] sm:$0xf]
      %v1052 = vld [vmem:[%s3 + $0x16c] sm:$0xf]
      %v1053 = vld [vmem:[%s3 + $0x170] sm:$0xf]
      %v1054 = vld [vmem:[%s3 + $0x174] sm:$0xf]
      %v1055 = vld [vmem:[%s3 + $0x178] sm:$0xf]
      %v1056 = vld [vmem:[%s3 + $0x17c] sm:$0xf]
      %v1057 = vld [vmem:[%s3 + $0x180] sm:$0xf]
      %v1058 = vld [vmem:[%s3 + $0x184] sm:$0xf]
      %v1059 = vld [vmem:[%s3 + $0x188] sm:$0xf]
      %v1060 = vld [vmem:[%s3 + $0x18c] sm:$0xf]
      %v1061 = vld [vmem:[%s3 + $0x190] sm:$0xf]
      %v1062 = vld [vmem:[%s3 + $0x194] sm:$0xf]
      %v1063 = vld [vmem:[%s3 + $0x198] sm:$0xf]
      %v1064 = vld [vmem:[%s3 + $0x19c] sm:$0xf]
      %v1065 = vld [vmem:[%s3 + $0x1a0] sm:$0xf]
      %v1066 = vld [vmem:[%s3 + $0x1a4] sm:$0xf]
      %v1067 = vld [vmem:[%s3 + $0x1a8] sm:$0xf]
      %v1068 = vld [vmem:[%s3 + $0x1ac] sm:$0xf]
      %v1069 = vld [vmem:[%s3 + $0x1b0] sm:$0xf]
      %v1070 = vld [vmem:[%s3 + $0x1b4] sm:$0xf]
      %v1071 = vld [vmem:[%s3 + $0x1b8] sm:$0xf]
      %v1072 = vld [vmem:[%s3 + $0x1bc] sm:$0xf]
      %v1073 = vld [vmem:[%s3 + $0x1c0] sm:$0xf]
      %v1074 = vld [vmem:[%s3 + $0x1c4] sm:$0xf]
      %v1075 = vld [vmem:[%s3 + $0x1c8] sm:$0xf]
      %v1076 = vld [vmem:[%s3 + $0x1cc] sm:$0xf]
      %v1077 = vld [vmem:[%s3 + $0x1d0] sm:$0xf]
      %v1078 = vld [vmem:[%s3 + $0x1d4] sm:$0xf]
      %v1079 = vld [vmem:[%s3 + $0x1d8] sm:$0xf]
      %v1080 = vld [vmem:[%s3 + $0x1dc] sm:$0xf]
      %v1081 = vld [vmem:[%s3 + $0x1e0] sm:$0xf]
      %v1082 = vld [vmem:[%s3 + $0x1e4] sm:$0xf]
      %v1083 = vld [vmem:[%s3 + $0x1e8] sm:$0xf]
      %v1084 = vld [vmem:[%s3 + $0x1ec] sm:$0xf]
      %v1085 = vld [vmem:[%s3 + $0x1f0] sm:$0xf]
      %v1086 = vld [vmem:[%s3 + $0x1f4] sm:$0xf]
      %v1087 = vld [vmem:[%s3 + $0x1f8] sm:$0xf]
      %v1088 = vld [vmem:[%s3 + $0x1fc] sm:$0xf]
      %v1089 = vld [vmem:[%s3 + $0x200] sm:$0xf]
      %v1090 = vld [vmem:[%s3 + $0x204] sm:$0xf]
      %v1091 = vld [vmem:[%s3 + $0x208] sm:$0xf]
      %v1092 = vld [vmem:[%s3 + $0x20c] sm:$0xf]
      %v1093 = vld [vmem:[%s3 + $0x210] sm:$0xf]
      %v1094 = vld [vmem:[%s3 + $0x214] sm:$0xf]
      %v1095 = vld [vmem:[%s3 + $0x218] sm:$0xf]
      %v1096 = vld [vmem:[%s3 + $0x21c] sm:$0xf]
      %v1097 = vld [vmem:[%s3 + $0x220] sm:$0xf]
      %v1098 = vld [vmem:[%s3 + $0x224] sm:$0xf]
      %v1099 = vld [vmem:[%s3 + $0x228] sm:$0xf]
      %v1100 = vld [vmem:[%s3 + $0x22c] sm:$0xf]
      %v1101 = vld [vmem:[%s3 + $0x230] sm:$0xf]
      %v1102 = vld [vmem:[%s3 + $0x234] sm:$0xf]
      %v1103 = vld [vmem:[%s3 + $0x238] sm:$0xf]
      %v1104 = vld [vmem:[%s3 + $0x23c] sm:$0xf]
      %v1105 = vld [vmem:[%s272] sm:$0x3]
      %v1106 = vld [vmem:[%s272 + $0x2] sm:$0x3]
      %v1107 = vld [vmem:[%s272 + $0x4] sm:$0x3]
      %v1108 = vld [vmem:[%s272 + $0x6] sm:$0x3]
      %v1109 = vunpack.c.l.bf16 %v1105
      %v1110 = vunpack.c.l.bf16 %v1106
      %v1111 = vunpack.c.l.bf16 %v1107
      %v1112 = vunpack.c.l.bf16 %v1108
      %v1257 = vunpack.c.l.b16 %v961
      %v1258 = vunpack.c.l.b16 %v962
      %v1259 = vunpack.c.l.b16 %v963
      %v1260 = vunpack.c.l.b16 %v964
      %v1261 = vunpack.c.l.b16 %v965
      %v1262 = vunpack.c.l.b16 %v966
      %v1263 = vunpack.c.l.b16 %v967
      %v1264 = vunpack.c.l.b16 %v968
      %v1265 = vunpack.c.l.b16 %v969
      %v1266 = vunpack.c.l.b16 %v970
      %v1267 = vunpack.c.l.b16 %v971
      %v1268 = vunpack.c.l.b16 %v972
      %v1269 = vunpack.c.l.b16 %v973
      %v1270 = vunpack.c.l.b16 %v974
      %v1271 = vunpack.c.l.b16 %v975
      %v1272 = vunpack.c.l.b16 %v976
      %v1273 = vunpack.c.l.b16 %v977
      %v1274 = vunpack.c.l.b16 %v978
      %v1275 = vunpack.c.l.b16 %v979
      %v1276 = vunpack.c.l.b16 %v980
      %v1277 = vunpack.c.l.b16 %v981
      %v1278 = vunpack.c.l.b16 %v982
      %v1279 = vunpack.c.l.b16 %v983
      %v1280 = vunpack.c.l.b16 %v984
      %v1281 = vunpack.c.l.b16 %v985
      %v1282 = vunpack.c.l.b16 %v986
      %v1283 = vunpack.c.l.b16 %v987
      %v1284 = vunpack.c.l.b16 %v988
      %v1285 = vunpack.c.l.b16 %v989
      %v1286 = vunpack.c.l.b16 %v990
      %v1287 = vunpack.c.l.b16 %v991
      %v1288 = vunpack.c.l.b16 %v992
      %v1289 = vunpack.c.l.b16 %v993
      %v1290 = vunpack.c.l.b16 %v994
      %v1291 = vunpack.c.l.b16 %v995
      %v1292 = vunpack.c.l.b16 %v996
      %v1293 = vunpack.c.l.b16 %v997
      %v1294 = vunpack.c.l.b16 %v998
      %v1295 = vunpack.c.l.b16 %v999
      %v1296 = vunpack.c.l.b16 %v1000
      %v1297 = vunpack.c.l.b16 %v1001
      %v1298 = vunpack.c.l.b16 %v1002
      %v1299 = vunpack.c.l.b16 %v1003
      %v1300 = vunpack.c.l.b16 %v1004
      %v1301 = vunpack.c.l.b16 %v1005
      %v1302 = vunpack.c.l.b16 %v1006
      %v1303 = vunpack.c.l.b16 %v1007
      %v1304 = vunpack.c.l.b16 %v1008
      %v1305 = vunpack.c.l.b16 %v1009
      %v1306 = vunpack.c.l.b16 %v1010
      %v1307 = vunpack.c.l.b16 %v1011
      %v1308 = vunpack.c.l.b16 %v1012
      %v1309 = vunpack.c.l.b16 %v1013
      %v1310 = vunpack.c.l.b16 %v1014
      %v1311 = vunpack.c.l.b16 %v1015
      %v1312 = vunpack.c.l.b16 %v1016
      %v1313 = vunpack.c.l.b16 %v1017
      %v1314 = vunpack.c.l.b16 %v1018
      %v1315 = vunpack.c.l.b16 %v1019
      %v1316 = vunpack.c.l.b16 %v1020
      %v1317 = vunpack.c.l.b16 %v1021
      %v1318 = vunpack.c.l.b16 %v1022
      %v1319 = vunpack.c.l.b16 %v1023
      %v1320 = vunpack.c.l.b16 %v1024
      %v1321 = vunpack.c.l.b16 %v1025
      %v1322 = vunpack.c.l.b16 %v1026
      %v1323 = vunpack.c.l.b16 %v1027
      %v1324 = vunpack.c.l.b16 %v1028
      %v1325 = vunpack.c.l.b16 %v1029
      %v1326 = vunpack.c.l.b16 %v1030
      %v1327 = vunpack.c.l.b16 %v1031
      %v1328 = vunpack.c.l.b16 %v1032
      %v1329 = vunpack.c.l.b16 %v1033
      %v1330 = vunpack.c.l.b16 %v1034
      %v1331 = vunpack.c.l.b16 %v1035
      %v1332 = vunpack.c.l.b16 %v1036
      %v1333 = vunpack.c.l.b16 %v1037
      %v1334 = vunpack.c.l.b16 %v1038
      %v1335 = vunpack.c.l.b16 %v1039
      %v1336 = vunpack.c.l.b16 %v1040
      %v1337 = vunpack.c.l.b16 %v1041
      %v1338 = vunpack.c.l.b16 %v1042
      %v1339 = vunpack.c.l.b16 %v1043
      %v1340 = vunpack.c.l.b16 %v1044
      %v1341 = vunpack.c.l.b16 %v1045
      %v1342 = vunpack.c.l.b16 %v1046
      %v1343 = vunpack.c.l.b16 %v1047
      %v1344 = vunpack.c.l.b16 %v1048
      %v1345 = vunpack.c.l.b16 %v1049
      %v1346 = vunpack.c.l.b16 %v1050
      %v1347 = vunpack.c.l.b16 %v1051
      %v1348 = vunpack.c.l.b16 %v1052
      %v1349 = vunpack.c.l.b16 %v1053
      %v1350 = vunpack.c.l.b16 %v1054
      %v1351 = vunpack.c.l.b16 %v1055
      %v1352 = vunpack.c.l.b16 %v1056
      %v1353 = vunpack.c.l.b16 %v1057
      %v1354 = vunpack.c.l.b16 %v1058
      %v1355 = vunpack.c.l.b16 %v1059
      %v1356 = vunpack.c.l.b16 %v1060
      %v1357 = vunpack.c.l.b16 %v1061
      %v1358 = vunpack.c.l.b16 %v1062
      %v1359 = vunpack.c.l.b16 %v1063
      %v1360 = vunpack.c.l.b16 %v1064
      %v1361 = vunpack.c.l.b16 %v1065
      %v1362 = vunpack.c.l.b16 %v1066
      %v1363 = vunpack.c.l.b16 %v1067
      %v1364 = vunpack.c.l.b16 %v1068
      %v1365 = vunpack.c.l.b16 %v1069
      %v1366 = vunpack.c.l.b16 %v1070
      %v1367 = vunpack.c.l.b16 %v1071
      %v1368 = vunpack.c.l.b16 %v1072
      %v1369 = vunpack.c.l.b16 %v1073
      %v1370 = vunpack.c.l.b16 %v1074
      %v1371 = vunpack.c.l.b16 %v1075
      %v1372 = vunpack.c.l.b16 %v1076
      %v1373 = vunpack.c.l.b16 %v1077
      %v1374 = vunpack.c.l.b16 %v1078
      %v1375 = vunpack.c.l.b16 %v1079
      %v1376 = vunpack.c.l.b16 %v1080
      %v1377 = vunpack.c.l.b16 %v1081
      %v1378 = vunpack.c.l.b16 %v1082
      %v1379 = vunpack.c.l.b16 %v1083
      %v1380 = vunpack.c.l.b16 %v1084
      %v1381 = vunpack.c.l.b16 %v1085
      %v1382 = vunpack.c.l.b16 %v1086
      %v1383 = vunpack.c.l.b16 %v1087
      %v1384 = vunpack.c.l.b16 %v1088
      %v1385 = vunpack.c.l.b16 %v1089
      %v1386 = vunpack.c.l.b16 %v1090
      %v1387 = vunpack.c.l.b16 %v1091
      %v1388 = vunpack.c.l.b16 %v1092
      %v1389 = vunpack.c.l.b16 %v1093
      %v1390 = vunpack.c.l.b16 %v1094
      %v1391 = vunpack.c.l.b16 %v1095
      %v1392 = vunpack.c.l.b16 %v1096
      %v1393 = vunpack.c.l.b16 %v1097
      %v1394 = vunpack.c.l.b16 %v1098
      %v1395 = vunpack.c.l.b16 %v1099
      %v1396 = vunpack.c.l.b16 %v1100
      %v1397 = vunpack.c.l.b16 %v1101
      %v1398 = vunpack.c.l.b16 %v1102
      %v1399 = vunpack.c.l.b16 %v1103
      %v1400 = vunpack.c.l.b16 %v1104
      %v1401 = vpack.c.b16 %v1258, %v1257
      %v1402 = vpack.c.b16 %v1260, %v1259
      %v1403 = vpack.c.b16 %v1262, %v1261
      %v1404 = vpack.c.b16 %v1264, %v1263
      %v1405 = vpack.c.b16 %v1266, %v1265
      %v1406 = vpack.c.b16 %v1268, %v1267
      %v1407 = vpack.c.b16 %v1270, %v1269
      %v1408 = vpack.c.b16 %v1272, %v1271
      %v1409 = vpack.c.b16 %v1274, %v1273
      %v1410 = vpack.c.b16 %v1276, %v1275
      %v1411 = vpack.c.b16 %v1278, %v1277
      %v1412 = vpack.c.b16 %v1280, %v1279
      %v1413 = vpack.c.b16 %v1282, %v1281
      %v1414 = vpack.c.b16 %v1284, %v1283
      %v1415 = vpack.c.b16 %v1286, %v1285
      %v1416 = vpack.c.b16 %v1288, %v1287
      %v1417 = vpack.c.b16 %v1290, %v1289
      %v1418 = vpack.c.b16 %v1292, %v1291
      %v1419 = vpack.c.b16 %v1294, %v1293
      %v1420 = vpack.c.b16 %v1296, %v1295
      %v1421 = vpack.c.b16 %v1298, %v1297
      %v1422 = vpack.c.b16 %v1300, %v1299
      %v1423 = vpack.c.b16 %v1302, %v1301
      %v1424 = vpack.c.b16 %v1304, %v1303
      %v1425 = vpack.c.b16 %v1306, %v1305
      %v1426 = vpack.c.b16 %v1308, %v1307
      %v1427 = vpack.c.b16 %v1310, %v1309
      %v1428 = vpack.c.b16 %v1312, %v1311
      %v1429 = vpack.c.b16 %v1314, %v1313
      %v1430 = vpack.c.b16 %v1316, %v1315
      %v1431 = vpack.c.b16 %v1318, %v1317
      %v1432 = vpack.c.b16 %v1320, %v1319
      %v1433 = vpack.c.b16 %v1322, %v1321
      %v1434 = vpack.c.b16 %v1324, %v1323
      %v1435 = vpack.c.b16 %v1326, %v1325
      %v1436 = vpack.c.b16 %v1328, %v1327
      %v1437 = vpack.c.b16 %v1330, %v1329
      %v1438 = vpack.c.b16 %v1332, %v1331
      %v1439 = vpack.c.b16 %v1334, %v1333
      %v1440 = vpack.c.b16 %v1336, %v1335
      %v1441 = vpack.c.b16 %v1338, %v1337
      %v1442 = vpack.c.b16 %v1340, %v1339
      %v1443 = vpack.c.b16 %v1342, %v1341
      %v1444 = vpack.c.b16 %v1344, %v1343
      %v1445 = vpack.c.b16 %v1346, %v1345
      %v1446 = vpack.c.b16 %v1348, %v1347
      %v1447 = vpack.c.b16 %v1350, %v1349
      %v1448 = vpack.c.b16 %v1352, %v1351
      %v1449 = vpack.c.b16 %v1354, %v1353
      %v1450 = vpack.c.b16 %v1356, %v1355
      %v1451 = vpack.c.b16 %v1358, %v1357
      %v1452 = vpack.c.b16 %v1360, %v1359
      %v1453 = vpack.c.b16 %v1362, %v1361
      %v1454 = vpack.c.b16 %v1364, %v1363
      %v1455 = vpack.c.b16 %v1366, %v1365
      %v1456 = vpack.c.b16 %v1368, %v1367
      %v1457 = vpack.c.b16 %v1370, %v1369
      %v1458 = vpack.c.b16 %v1372, %v1371
      %v1459 = vpack.c.b16 %v1374, %v1373
      %v1460 = vpack.c.b16 %v1376, %v1375
      %v1461 = vpack.c.b16 %v1378, %v1377
      %v1462 = vpack.c.b16 %v1380, %v1379
      %v1463 = vpack.c.b16 %v1382, %v1381
      %v1464 = vpack.c.b16 %v1384, %v1383
      %v1465 = vpack.c.b16 %v1386, %v1385
      %v1466 = vpack.c.b16 %v1388, %v1387
      %v1467 = vpack.c.b16 %v1390, %v1389
      %v1468 = vpack.c.b16 %v1392, %v1391
      %v1469 = vpack.c.b16 %v1394, %v1393
      %v1470 = vpack.c.b16 %v1396, %v1395
      %v1471 = vpack.c.b16 %v1398, %v1397
      %v1472 = vpack.c.b16 %v1400, %v1399
      %1549 = vst [vmem:[#allocation1] ss:$2 sm:$0xff] %v1109
      %s1550 = scalar_lea.vmem [#allocation1], 1
      %1551 = vst [vmem:[%s1550] ss:$2 sm:$0xff] %v1110
      %s1552 = scalar_lea.vmem [#allocation1], 16
      %1553 = vst [vmem:[%s1552] ss:$2 sm:$0xff] %v1111
      %s1554 = scalar_lea.vmem [#allocation1], 17
      %1555 = vst [vmem:[%s1554] ss:$2 sm:$0xff] %v1112
      %v1556 = vld.sshfl [vmem:[#allocation1] sm:$0xff pattern:$0x75316420]
      %v1557 = vld.sshfl [vmem:[#allocation1 + $0x10] sm:$0xff pattern:$0x75316420]
      %1560 = vmatpush.bf16.msra.mxu0 %v1408
      %1561 = vmatpush.bf16.msra.mxu0 %v1407
      %1562 = vmatpush.bf16.msra.mxu0 %v1406
      %1563 = vmatpush.bf16.msra.mxu0 %v1405
      %1564 = vmatpush.bf16.msra.mxu0 %v1404
      %1565 = vmatpush.bf16.msra.mxu0 %v1403
      %1566 = vmatpush.bf16.msra.mxu0 %v1402
      %1567 = vmatpush.bf16.msra.mxu0 %v1401
      %1568 = vmatmul.bf16.gmra.mxu0 %v855
      %v1569 = vpop.f32.mrf.mxu0
      %v1570 = vadd.f32 %v1556, %v1569
      %v1571 = vpop.f32.mrf.mxu0
      %v1572 = vadd.f32 %v1557, %v1571
      %1573 = vdwg.mxu0
      %1574 = vmatpush.bf16.msra.mxu0 %v1416
      %1575 = vmatpush.bf16.msra.mxu0 %v1415
      %1576 = vmatpush.bf16.msra.mxu0 %v1414
      %1577 = vmatpush.bf16.msra.mxu0 %v1413
      %1578 = vmatpush.bf16.msra.mxu0 %v1412
      %1579 = vmatpush.bf16.msra.mxu0 %v1411
      %1580 = vmatpush.bf16.msra.mxu0 %v1410
      %1581 = vmatpush.bf16.msra.mxu0 %v1409
      %1582 = vmatmul.bf16.gmra.mxu0 %v868
      %v1583 = vpop.f32.mrf.mxu0
      %v1584 = vadd.f32 %v1570, %v1583
      %v1585 = vpop.f32.mrf.mxu0
      %v1586 = vadd.f32 %v1572, %v1585
      %1587 = vdwg.mxu0
      %1588 = vmatpush.bf16.msra.mxu0 %v1424
      %1589 = vmatpush.bf16.msra.mxu0 %v1423
      %1590 = vmatpush.bf16.msra.mxu0 %v1422
      %1591 = vmatpush.bf16.msra.mxu0 %v1421
      %1592 = vmatpush.bf16.msra.mxu0 %v1420
      %1593 = vmatpush.bf16.msra.mxu0 %v1419
      %1594 = vmatpush.bf16.msra.mxu0 %v1418
      %1595 = vmatpush.bf16.msra.mxu0 %v1417
      %1596 = vmatmul.bf16.gmra.mxu0 %v881
      %v1597 = vpop.f32.mrf.mxu0
      %v1598 = vadd.f32 %v1584, %v1597
      %v1599 = vpop.f32.mrf.mxu0
      %v1600 = vadd.f32 %v1586, %v1599
      %1601 = vdwg.mxu0
      %1602 = vmatpush.bf16.msra.mxu0 %v1432
      %1603 = vmatpush.bf16.msra.mxu0 %v1431
      %1604 = vmatpush.bf16.msra.mxu0 %v1430
      %1605 = vmatpush.bf16.msra.mxu0 %v1429
      %1606 = vmatpush.bf16.msra.mxu0 %v1428
      %1607 = vmatpush.bf16.msra.mxu0 %v1427
      %1608 = vmatpush.bf16.msra.mxu0 %v1426
      %1609 = vmatpush.bf16.msra.mxu0 %v1425
      %1610 = vmatmul.bf16.gmra.mxu0 %v894
      %v1611 = vpop.f32.mrf.mxu0
      %v1612 = vadd.f32 %v1598, %v1611
      %v1613 = vpop.f32.mrf.mxu0
      %v1614 = vadd.f32 %v1600, %v1613
      %1615 = vdwg.mxu0
      %1616 = vmatpush.bf16.msra.mxu0 %v1440
      %1617 = vmatpush.bf16.msra.mxu0 %v1439
      %1618 = vmatpush.bf16.msra.mxu0 %v1438
      %1619 = vmatpush.bf16.msra.mxu0 %v1437
      %1620 = vmatpush.bf16.msra.mxu0 %v1436
      %1621 = vmatpush.bf16.msra.mxu0 %v1435
      %1622 = vmatpush.bf16.msra.mxu0 %v1434
      %1623 = vmatpush.bf16.msra.mxu0 %v1433
      %1624 = vmatmul.bf16.gmra.mxu0 %v907
      %v1625 = vpop.f32.mrf.mxu0
      %v1626 = vadd.f32 %v1612, %v1625
      %v1627 = vpop.f32.mrf.mxu0
      %v1628 = vadd.f32 %v1614, %v1627
      %1629 = vdwg.mxu0
      %1630 = vmatpush.bf16.msra.mxu0 %v1448
      %1631 = vmatpush.bf16.msra.mxu0 %v1447
      %1632 = vmatpush.bf16.msra.mxu0 %v1446
      %1633 = vmatpush.bf16.msra.mxu0 %v1445
      %1634 = vmatpush.bf16.msra.mxu0 %v1444
      %1635 = vmatpush.bf16.msra.mxu0 %v1443
      %1636 = vmatpush.bf16.msra.mxu0 %v1442
      %1637 = vmatpush.bf16.msra.mxu0 %v1441
      %1638 = vmatmul.bf16.gmra.mxu0 %v920
      %v1639 = vpop.f32.mrf.mxu0
      %v1640 = vadd.f32 %v1626, %v1639
      %v1641 = vpop.f32.mrf.mxu0
      %v1642 = vadd.f32 %v1628, %v1641
      %1643 = vdwg.mxu0
      %1644 = vmatpush.bf16.msra.mxu0 %v1456
      %1645 = vmatpush.bf16.msra.mxu0 %v1455
      %1646 = vmatpush.bf16.msra.mxu0 %v1454
      %1647 = vmatpush.bf16.msra.mxu0 %v1453
      %1648 = vmatpush.bf16.msra.mxu0 %v1452
      %1649 = vmatpush.bf16.msra.mxu0 %v1451
      %1650 = vmatpush.bf16.msra.mxu0 %v1450
      %1651 = vmatpush.bf16.msra.mxu0 %v1449
      %1652 = vmatmul.bf16.gmra.mxu0 %v933
      %v1653 = vpop.f32.mrf.mxu0
      %v1654 = vadd.f32 %v1640, %v1653
      %v1655 = vpop.f32.mrf.mxu0
      %v1656 = vadd.f32 %v1642, %v1655
      %1657 = vdwg.mxu0
      %1658 = vmatpush.bf16.msra.mxu0 %v1464
      %1659 = vmatpush.bf16.msra.mxu0 %v1463
      %1660 = vmatpush.bf16.msra.mxu0 %v1462
      %1661 = vmatpush.bf16.msra.mxu0 %v1461
      %1662 = vmatpush.bf16.msra.mxu0 %v1460
      %1663 = vmatpush.bf16.msra.mxu0 %v1459
      %1664 = vmatpush.bf16.msra.mxu0 %v1458
      %1665 = vmatpush.bf16.msra.mxu0 %v1457
      %1666 = vmatmul.bf16.gmra.mxu0 %v946
      %v1667 = vpop.f32.mrf.mxu0
      %v1668 = vadd.f32 %v1654, %v1667
      %v1669 = vpop.f32.mrf.mxu0
      %v1670 = vadd.f32 %v1656, %v1669
      %1671 = vdwg.mxu0
      %1672 = vmatpush.bf16.msra.mxu0 %v1472
      %1673 = vmatpush.bf16.msra.mxu0 %v1471
      %1674 = vmatpush.bf16.msra.mxu0 %v1470
      %1675 = vmatpush.bf16.msra.mxu0 %v1469
      %1676 = vmatpush.bf16.msra.mxu0 %v1468
      %1677 = vmatpush.bf16.msra.mxu0 %v1467
      %1678 = vmatpush.bf16.msra.mxu0 %v1466
      %1679 = vmatpush.bf16.msra.mxu0 %v1465
      %1680 = vmatmul.bf16.gmra.mxu0 %v959
      %v1681 = vpop.f32.mrf.mxu0
      %v1682 = vadd.f32 %v1668, %v1681
      %v1683 = vpop.f32.mrf.mxu0
      %v1684 = vadd.f32 %v1670, %v1683
      %1685 = vdwg.mxu0
      %v1688 = vrot.slane %v1682, 4
      %v1689 = vrot.slane %v1684, 4
      %v1692 = vpack.c.bf16 %v1682, %v1682
      %v1693 = vpack.c.bf16 %v1688, %v1688
      %v1694 = vpack.c.bf16 %v1684, %v1684
      %v1695 = vpack.c.bf16 %v1689, %v1689
      %vm1696 = vcmask 517120
      %1697 = vst.msk [vmem:[%s282] sm:$0x3] %vm1696, %v1692
      %1698 = vst.msk [vmem:[%s282 + $0x2] sm:$0x3] %vm1696, %v1693
      %1699 = vst.msk [vmem:[%s282 + $0x4] sm:$0x3] %vm1696, %v1694
      %1700 = vst.msk [vmem:[%s282 + $0x6] sm:$0x3] %vm1696, %v1695
      %s1701 = smul.u32 4, %s21
      %p1702 = scmp.lt.s32.totalorder %s20, 1
      %s1703 = scalar_select %p1702, %s20, 1
      %p1704 = scmp.lt.s32.totalorder %s1701, 3
      %s1705 = scalar_select %p1704, %s1701, 3
      %s1706 = smul.addr %s1703, 4
      %s1707 = sadd.s32 %s1705, %s1706
      %s1708 = smul.addr %s1707, 2
      %s1709 = scalar_lea.vmem %s5, %s1708
      // Predicated region
      $region45: #{_lambda_.20} parent=39 // pred_check
        %p1710 = pneg %p165
      $region46: #{_lambda_.20} parent=39 // pred_check_branch
        %1712 = sbr.rel (%p1710) target = $region48
      $region47: #{_lambda_.20} parent=39 // pred_region
        %s1713 = smul.u32 4, %s21
      $region48: #{_lambda_.20} parent=39 // pred_fallthru
        _
    $region40: #{_lambda_.20} parent=5 // pred_fallthru
      _
    %p1714 = scmp.le.s32.totalorder 2, %s11
    // Predicated region
    $region49: #{_lambda_.20} parent=5 // pred_check
      %p1715 = pneg %p1714
    $region50: #{_lambda_.20} parent=5 // pred_check_branch
      %1717 = sbr.rel (%p1715) target = $region52
    $region51: #{_lambda_.20} parent=5 // pred_region
      %s1718 = ssub.s32 %s11, 2
      // Predicated region
      $region53: #{_lambda_.20} parent=51 // pred_check
        %p1719 = pneg %p171
      $region54: #{_lambda_.20} parent=51 // pred_check_branch
        %1721 = sbr.rel (%p1719) target = $region56
      $region55: #{_lambda_.20} parent=51 // pred_region
        %s1722 = smul.u32 4, %s23
        %p1723 = scmp.lt.s32.totalorder %s22, 1
        %s1724 = scalar_select %p1723, %s22, 1
        %p1725 = scmp.lt.s32.totalorder %s1722, 3
        %s1726 = scalar_select %p1725, %s1722, 3
        %s1727 = smul.addr %s1724, 4
        %s1728 = sadd.s32 %s1726, %s1727
        %s1729 = smul.addr %s1728, 2
        %s1730 = scalar_lea.vmem %s5, %s1729
      $region56: #{_lambda_.20} parent=51 // pred_fallthru
        _
    $region52: #{_lambda_.20} parent=5 // pred_fallthru
      _
  $region6: #{_lambda_.20} parent=0 // loop_footer
    %s15 = sadd.s32 1, %s11
  $region7: #{_lambda_.20} parent=0 // loop_footer_branch
    %10 = sbr.rel target = $region3
  $region8: #{_lambda_.20} parent=0 // loop_exit
    _

// kernel: _lambda_.25
$region0: #{_lambda_.25}
  #allocation0 [shape = 'u32[]', space=smem, size = 0x4, offset = 0x4, fixed_abs, tag = 'smem constant byte address 0x4 - core index']
  #allocation1 [shape = 'u32[72,128]{1,0:T(1,128)}', space=vmem, size = 0x9000, scoped, tag = 'internal scratch']
  #allocation2 [shape = 'bf16[10,10,128]{2,1,0:T(8,128)(2,1)}', space=vmem, size = 0xa000, scoped, tag = 'scratch operand']
  %s0 = inlined_call_operand.vmem [shape: bf16[2,8,8,128], index: 0, kind: input, shape index: {}]
  %s1 = inlined_call_operand.vmem [shape: f32[1,128], index: 1, kind: input, shape index: {}]
  %s2 = inlined_call_operand.vmem [shape: f32[1,128], index: 2, kind: input, shape index: {}]
  %s3 = inlined_call_operand.vmem [shape: bf16[1152,64], index: 3, kind: input, shape index: {}]
  %s4 = inlined_call_operand.vmem [shape: bf16[2,8,8,128], index: 4, kind: input, shape index: {}]
  %s5 = inlined_call_operand.vmem [shape: bf16[128,64], index: 5, kind: input, shape index: {}]
  %s6 = inlined_call_operand.vmem [shape: bf16[2,8,8,64], index: 6, kind: output, shape index: {}]
  %s7 = sld [smem:[#allocation0]]
  $region61: #{_lambda_.25} parent=0
    _
  %s9 = ssub.s32 1, %s7
  %s10 = scalar_select 0, %s9, %s7
  loop: start=0, step=1, limit=6
  $region2: #{_lambda_.25} parent=0 // loop_pre_header
    _
  $region3: #{_lambda_.25} parent=0 // loop_header
    %s12 = sphi 0, %s16
    %p13 = scmp.ge.s32.totalorder %s12, 6
    %s19 = sphi 0, %s31
    %s20 = sphi 0, %s27
    %s21 = sphi 0, %s19
    %s22 = sphi 0, %s20
    %s23 = sphi 0, %s21
    %s24 = sphi 0, %s22
    %s34 = sphi 0, %s36
    %s37 = sphi 0, %s34
    %s38 = sphi 0, %s37
    %s54 = sphi 0, %s38
    %s58 = sphi 0, %s58
    %s60 = sphi 0, %s58
    %s61 = sphi 0, %s60
    %s75 = sphi 0, %s61
    %s79 = sphi 0, %s79
    %s81 = sphi 0, %s79
    %s82 = sphi 0, %s81
    %s96 = sphi 0, %s82
    %s100 = sphi 0, %s100
    %s102 = sphi 0, %s100
    %s103 = sphi 0, %s102
    %s117 = sphi 0, %s103
    %s125 = sphi 0, %s127
    %s128 = sphi 0, %s125
    %s129 = sphi 0, %s128
    %s145 = sphi 0, %s129
    %s149 = sphi 0, %s149
    %s151 = sphi 0, %s149
    %s152 = sphi 0, %s151
    %s166 = sphi 0, %s152
    %s174 = sphi 0, %s176
    %s177 = sphi 0, %s174
    %s178 = sphi 0, %s177
    %s194 = sphi 0, %s178
  $region4: #{_lambda_.25} parent=0 // loop_header_branch
    %15 = sbr.rel (%p13) target = $region8
  $region5: #{_lambda_.25} parent=0 // loop_body
    %s17 = ssub.s32 %s12, 1
    %s18 = ssub.s32 %s12, 2
    %s25 = sadd.s32 1, %s20
    %p26 = scmp.ge.s32.totalorder %s25, 2
    %s27 = scalar_select %p26, 0, %s25
    %s28 = sadd.s32 1, %s19
    %s29 = scalar_select %p26, %s28, %s19
    %p30 = scmp.ge.s32.totalorder %s29, 2
    %s31 = scalar_select %p30, 0, %s29
    %s32 = ssub.s32 %s19, %s31
    %p33 = scmp.eq.s32.totalorder %s32, 0
    %s35 = sadd.s32 %s34, 1
    %s36 = scalar_select %p33, %s34, %s35
    %p39 = pneg %p33
    %p40 = scmp.eq.s32.totalorder %s12, 3
    %p41 = por %p39, %p40
    %p42 = scmp.ne.s32.totalorder %s34, %s37
    %p43 = scmp.eq.s32.totalorder %s12, 0
    %p44 = por %p42, %p43
    %p45 = scmp.ne.s32.totalorder %s34, %s37
    %p46 = scmp.eq.s32.totalorder %s17, 3
    %p47 = por %p45, %p46
    %p48 = scmp.ne.s32.totalorder %s37, %s38
    %p49 = scmp.eq.s32.totalorder %s17, 0
    %p50 = por %p48, %p49
    %p51 = scmp.ne.s32.totalorder %s37, %s38
    %p52 = scmp.eq.s32.totalorder %s18, 3
    %p53 = por %p51, %p52
    %p55 = scmp.ne.s32.totalorder %s38, %s54
    %p56 = scmp.eq.s32.totalorder %s18, 0
    %p57 = por %p55, %p56
    %s59 = sadd.s32 %s58, 1
    %p62 = scmp.eq.s32.totalorder %s12, 3
    %p63 = scmp.ne.s32.totalorder %s58, %s60
    %p64 = scmp.eq.s32.totalorder %s12, 0
    %p65 = por %p63, %p64
    %p66 = scmp.ne.s32.totalorder %s58, %s60
    %p67 = scmp.eq.s32.totalorder %s17, 3
    %p68 = por %p66, %p67
    %p69 = scmp.ne.s32.totalorder %s60, %s61
    %p70 = scmp.eq.s32.totalorder %s17, 0
    %p71 = por %p69, %p70
    %p72 = scmp.ne.s32.totalorder %s60, %s61
    %p73 = scmp.eq.s32.totalorder %s18, 3
    %p74 = por %p72, %p73
    %p76 = scmp.ne.s32.totalorder %s61, %s75
    %p77 = scmp.eq.s32.totalorder %s18, 0
    %p78 = por %p76, %p77
    %s80 = sadd.s32 %s79, 1
    %p83 = scmp.eq.s32.totalorder %s12, 3
    %p84 = scmp.ne.s32.totalorder %s79, %s81
    %p85 = scmp.eq.s32.totalorder %s12, 0
    %p86 = por %p84, %p85
    %p87 = scmp.ne.s32.totalorder %s79, %s81
    %p88 = scmp.eq.s32.totalorder %s17, 3
    %p89 = por %p87, %p88
    %p90 = scmp.ne.s32.totalorder %s81, %s82
    %p91 = scmp.eq.s32.totalorder %s17, 0
    %p92 = por %p90, %p91
    %p93 = scmp.ne.s32.totalorder %s81, %s82
    %p94 = scmp.eq.s32.totalorder %s18, 3
    %p95 = por %p93, %p94
    %p97 = scmp.ne.s32.totalorder %s82, %s96
    %p98 = scmp.eq.s32.totalorder %s18, 0
    %p99 = por %p97, %p98
    %s101 = sadd.s32 %s100, 1
    %p104 = scmp.eq.s32.totalorder %s12, 3
    %p105 = scmp.ne.s32.totalorder %s100, %s102
    %p106 = scmp.eq.s32.totalorder %s12, 0
    %p107 = por %p105, %p106
    %p108 = scmp.ne.s32.totalorder %s100, %s102
    %p109 = scmp.eq.s32.totalorder %s17, 3
    %p110 = por %p108, %p109
    %p111 = scmp.ne.s32.totalorder %s102, %s103
    %p112 = scmp.eq.s32.totalorder %s17, 0
    %p113 = por %p111, %p112
    %p114 = scmp.ne.s32.totalorder %s102, %s103
    %p115 = scmp.eq.s32.totalorder %s18, 3
    %p116 = por %p114, %p115
    %p118 = scmp.ne.s32.totalorder %s103, %s117
    %p119 = scmp.eq.s32.totalorder %s18, 0
    %p120 = por %p118, %p119
    %s121 = ssub.s32 %s19, %s31
    %s122 = ssub.s32 %s20, %s27
    %s123 = sor.u32 %s121, %s122
    %p124 = scmp.eq.s32.totalorder %s123, 0
    %s126 = sadd.s32 %s125, 1
    %s127 = scalar_select %p124, %s125, %s126
    %p130 = pneg %p124
    %p131 = scmp.eq.s32.totalorder %s12, 3
    %p132 = por %p130, %p131
    %p133 = scmp.ne.s32.totalorder %s125, %s128
    %p134 = scmp.eq.s32.totalorder %s12, 0
    %p135 = por %p133, %p134
    %p136 = scmp.ne.s32.totalorder %s125, %s128
    %p137 = scmp.eq.s32.totalorder %s17, 3
    %p138 = por %p136, %p137
    %p139 = scmp.ne.s32.totalorder %s128, %s129
    %p140 = scmp.eq.s32.totalorder %s17, 0
    %p141 = por %p139, %p140
    %p142 = scmp.ne.s32.totalorder %s128, %s129
    %p143 = scmp.eq.s32.totalorder %s18, 3
    %p144 = por %p142, %p143
    %p146 = scmp.ne.s32.totalorder %s129, %s145
    %p147 = scmp.eq.s32.totalorder %s18, 0
    %p148 = por %p146, %p147
    %s150 = sadd.s32 %s149, 1
    %p153 = scmp.eq.s32.totalorder %s12, 3
    %p154 = scmp.ne.s32.totalorder %s149, %s151
    %p155 = scmp.eq.s32.totalorder %s12, 0
    %p156 = por %p154, %p155
    %p157 = scmp.ne.s32.totalorder %s149, %s151
    %p158 = scmp.eq.s32.totalorder %s17, 3
    %p159 = por %p157, %p158
    %p160 = scmp.ne.s32.totalorder %s151, %s152
    %p161 = scmp.eq.s32.totalorder %s17, 0
    %p162 = por %p160, %p161
    %p163 = scmp.ne.s32.totalorder %s151, %s152
    %p164 = scmp.eq.s32.totalorder %s18, 3
    %p165 = por %p163, %p164
    %p167 = scmp.ne.s32.totalorder %s152, %s166
    %p168 = scmp.eq.s32.totalorder %s18, 0
    %p169 = por %p167, %p168
    %s170 = ssub.s32 %s19, %s31
    %s171 = ssub.s32 %s20, %s27
    %s172 = sor.u32 %s170, %s171
    %p173 = scmp.eq.s32.totalorder %s172, 0
    %s175 = sadd.s32 %s174, 1
    %s176 = scalar_select %p173, %s174, %s175
    %p179 = pneg %p173
    %p180 = scmp.eq.s32.totalorder %s12, 3
    %p181 = por %p179, %p180
    %p182 = scmp.ne.s32.totalorder %s174, %s177
    %p183 = scmp.eq.s32.totalorder %s12, 0
    %p184 = por %p182, %p183
    %p185 = scmp.ne.s32.totalorder %s174, %s177
    %p186 = scmp.eq.s32.totalorder %s17, 3
    %p187 = por %p185, %p186
    %p188 = scmp.ne.s32.totalorder %s177, %s178
    %p189 = scmp.eq.s32.totalorder %s17, 0
    %p190 = por %p188, %p189
    %p191 = scmp.ne.s32.totalorder %s177, %s178
    %p192 = scmp.eq.s32.totalorder %s18, 3
    %p193 = por %p191, %p192
    %p195 = scmp.ne.s32.totalorder %s178, %s194
    %p196 = scmp.eq.s32.totalorder %s18, 0
    %p197 = por %p195, %p196
    %p198 = scmp.le.s32.totalorder 1, %s12
    %p199 = scmp.lt.s32.totalorder %s12, 5
    %p200 = pnand %p198, %p199
    %p201 = pneg %p200
    // Predicated region
    $region9: #{_lambda_.25} parent=5 // pred_check
      _
    $region10: #{_lambda_.25} parent=5 // pred_check_branch
      %203 = sbr.rel (%p200) target = $region12
    $region11: #{_lambda_.25} parent=5 // pred_region
      %s204 = ssub.s32 %s12, 1
      // Predicated region
      $region13: #{_lambda_.25} parent=11 // pred_check
        %p205 = pneg %p71
      $region14: #{_lambda_.25} parent=11 // pred_check_branch
        %207 = sbr.rel (%p205) target = $region16
      $region15: #{_lambda_.25} parent=11 // pred_region
        _
      $region16: #{_lambda_.25} parent=11 // pred_fallthru
        _
      // Predicated region
      $region17: #{_lambda_.25} parent=11 // pred_check
        %p208 = pneg %p92
      $region18: #{_lambda_.25} parent=11 // pred_check_branch
        %210 = sbr.rel (%p208) target = $region20
      $region19: #{_lambda_.25} parent=11 // pred_region
        _
      $region20: #{_lambda_.25} parent=11 // pred_fallthru
        _
      // Predicated region
      $region21: #{_lambda_.25} parent=11 // pred_check
        %p211 = pneg %p113
      $region22: #{_lambda_.25} parent=11 // pred_check_branch
        %213 = sbr.rel (%p211) target = $region24
      $region23: #{_lambda_.25} parent=11 // pred_region
        _
      $region24: #{_lambda_.25} parent=11 // pred_fallthru
        _
      // Predicated region
      $region25: #{_lambda_.25} parent=11 // pred_check
        %p214 = pneg %p162
      $region26: #{_lambda_.25} parent=11 // pred_check_branch
        %216 = sbr.rel (%p214) target = $region28
      $region27: #{_lambda_.25} parent=11 // pred_region
        _
      $region28: #{_lambda_.25} parent=11 // pred_fallthru
        _
    $region12: #{_lambda_.25} parent=5 // pred_fallthru
      _
    %p217 = scmp.lt.s32.totalorder %s12, 4
    // Predicated region
    $region29: #{_lambda_.25} parent=5 // pred_check
      %p218 = pneg %p217
    $region30: #{_lambda_.25} parent=5 // pred_check_branch
      %220 = sbr.rel (%p218) target = $region32
    $region31: #{_lambda_.25} parent=5 // pred_region
      // Predicated region
      $region33: #{_lambda_.25} parent=31 // pred_check
        %p221 = pneg %p44
      $region34: #{_lambda_.25} parent=31 // pred_check_branch
        %223 = sbr.rel (%p221) target = $region36
      $region35: #{_lambda_.25} parent=31 // pred_region
        %p224 = scmp.lt.s32.totalorder %s19, 1
        %s225 = scalar_select %p224, %s19, 1
        %s226 = smul.addr %s225, 8
        %s227 = smul.addr %s226, 4
        %s228 = scalar_lea.vmem %s0, %s227
      $region36: #{_lambda_.25} parent=31 // pred_fallthru
        _
      // Predicated region
      $region37: #{_lambda_.25} parent=31 // pred_check
        %p229 = pneg %p135
      $region38: #{_lambda_.25} parent=31 // pred_check_branch
        %231 = sbr.rel (%p229) target = $region40
      $region39: #{_lambda_.25} parent=31 // pred_region
        %s232 = smul.u32 4, %s20
        %p233 = scmp.lt.s32.totalorder %s19, 1
        %s234 = scalar_select %p233, %s19, 1
        %p235 = scmp.lt.s32.totalorder %s232, 7
        %s236 = scalar_select %p235, %s232, 7
        %s237 = smul.addr %s234, 8
        %s238 = sadd.s32 %s236, %s237
        %s239 = smul.addr %s238, 4
        %s240 = scalar_lea.vmem %s4, %s239
        %s241 = smul.u32 4, %s20
      $region40: #{_lambda_.25} parent=31 // pred_fallthru
        _
    $region32: #{_lambda_.25} parent=5 // pred_fallthru
      _
    %p242 = scmp.le.s32.totalorder 1, %s12
    %p243 = scmp.lt.s32.totalorder %s12, 5
    %p244 = pnand %p242, %p243
    %p245 = pneg %p244
    // Predicated region
    $region41: #{_lambda_.25} parent=5 // pred_check
      _
    $region42: #{_lambda_.25} parent=5 // pred_check_branch
      %247 = sbr.rel (%p244) target = $region44
    $region43: #{_lambda_.25} parent=5 // pred_region
      %s248 = ssub.s32 %s12, 1
      %p249 = scmp.lt.s32.totalorder %s21, 1
      %s250 = scalar_select %p249, %s21, 1
      %s251 = smul.addr %s250, 8
      %s252 = smul.addr %s251, 4
      %s253 = scalar_lea.vmem %s0, %s252
      %p254 = pneg %p50
      %p255 = pneg %p47
      %p256 = pneg %p71
      %p257 = pneg %p68
      %p258 = pneg %p92
      %p259 = pneg %p89
      %p260 = pneg %p113
      %p261 = pneg %p110
      %s262 = smul.u32 4, %s22
      %p263 = scmp.lt.s32.totalorder %s21, 1
      %s264 = scalar_select %p263, %s21, 1
      %p265 = scmp.lt.s32.totalorder %s262, 7
      %s266 = scalar_select %p265, %s262, 7
      %s267 = smul.addr %s264, 8
      %s268 = sadd.s32 %s266, %s267
      %s269 = smul.addr %s268, 4
      %s270 = scalar_lea.vmem %s4, %s269
      %p271 = pneg %p141
      %p272 = pneg %p138
      %p273 = pneg %p162
      %p274 = pneg %p159
      %p275 = pneg %p190
      %p276 = pneg %p187
      %s277 = smul.u32 4, %s22
      %p278 = scmp.lt.s32.totalorder %s21, 1
      %s279 = scalar_select %p278, %s21, 1
      %p280 = scmp.lt.s32.totalorder %s277, 7
      %s281 = scalar_select %p280, %s277, 7
      %s282 = smul.addr %s279, 8
      %s283 = sadd.s32 %s281, %s282
      %s284 = smul.addr %s283, 4
      %s285 = scalar_lea.vmem %s6, %s284
      %p286 = scmp.lt.s32.totalorder %s21, 1
      %s287 = scalar_select %p286, %s21, 1
      %s288 = smul.addr %s287, 8
      %s289 = smul.addr %s288, 4
      %s290 = scalar_lea.vmem %s0, %s289
      %s291 = smul.u32 4, %s22
      %p292 = scmp.lt.s32.totalorder %s21, 1
      %s293 = scalar_select %p292, %s21, 1
      %p294 = scmp.lt.s32.totalorder %s291, 7
      %s295 = scalar_select %p294, %s291, 7
      %s296 = smul.addr %s293, 8
      %s297 = sadd.s32 %s295, %s296
      %s298 = smul.addr %s297, 4
      %s299 = scalar_lea.vmem %s4, %s298
      %s300 = smul.u32 4, %s22
      %s301 = smul.u32 4, %s22
      %p302 = scmp.lt.s32.totalorder %s21, 1
      %s303 = scalar_select %p302, %s21, 1
      %p304 = scmp.lt.s32.totalorder %s301, 7
      %s305 = scalar_select %p304, %s301, 7
      %s306 = smul.addr %s303, 8
      %s307 = sadd.s32 %s305, %s306
      %s308 = smul.addr %s307, 4
      %s309 = scalar_lea.vmem %s6, %s308
      %s310 = smul.u32 4, %s22
      %p312 = scmp.eq.s32.totalorder %s22, 0
      // Predicated region
      $region45: #{_lambda_.25} parent=43 // pred_check
        %p313 = pneg %p312
      $region46: #{_lambda_.25} parent=43 // pred_check_branch
        %315 = sbr.rel (%p313) target = $region48
      $region47: #{_lambda_.25} parent=43 // pred_region
        %316 = vst [vmem:[#allocation2] sm:$0xf] 0
        %317 = vst [vmem:[#allocation2 + $0x4] sm:$0x1] 0
        %318 = vst [vmem:[#allocation2 + $0x8] sm:$0xf] 0
        %319 = vst [vmem:[#allocation2 + $0xc] sm:$0x1] 0
        %320 = vst [vmem:[#allocation2 + $0x10] sm:$0xf] 0
        %321 = vst [vmem:[#allocation2 + $0x14] sm:$0x1] 0
        %322 = vst [vmem:[#allocation2 + $0x18] sm:$0xf] 0
        %323 = vst [vmem:[#allocation2 + $0x1c] sm:$0x1] 0
        %324 = vst [vmem:[#allocation2 + $0x20] sm:$0xf] 0
        %325 = vst [vmem:[#allocation2 + $0x24] sm:$0x1] 0
        %326 = vst [vmem:[#allocation2 + $0x28] sm:$0xf] 0
        %327 = vst [vmem:[#allocation2 + $0x2c] sm:$0x1] 0
        %328 = vst [vmem:[#allocation2 + $0x30] sm:$0xf] 0
        %329 = vst [vmem:[#allocation2 + $0x34] sm:$0x1] 0
        %330 = vst [vmem:[#allocation2 + $0x38] sm:$0xf] 0
        %331 = vst [vmem:[#allocation2 + $0x3c] sm:$0x1] 0
        %332 = vst [vmem:[#allocation2 + $0x40] sm:$0xf] 0
        %333 = vst [vmem:[#allocation2 + $0x44] sm:$0x1] 0
        %334 = vst [vmem:[#allocation2 + $0x48] sm:$0xf] 0
        %335 = vst [vmem:[#allocation2 + $0x4c] sm:$0x1] 0
        %v336 = vld [vmem:[%s290] sm:$0xf]
        %v337 = vld [vmem:[%s290 + $0x4] sm:$0xf]
        %v338 = vld [vmem:[%s290 + $0x8] sm:$0xf]
        %v339 = vld [vmem:[%s290 + $0xc] sm:$0xf]
        %v340 = vld [vmem:[%s290 + $0x10] sm:$0xf]
        %v341 = vld [vmem:[%s290 + $0x14] sm:$0xf]
        %v342 = vld [vmem:[%s290 + $0x18] sm:$0xf]
        %v343 = vld [vmem:[%s290 + $0x1c] sm:$0xf]
        %v344 = vunpack.c.l.bf16 %v336
        %v345 = vunpack.c.l.bf16 %v337
        %v346 = vunpack.c.l.bf16 %v338
        %v347 = vunpack.c.l.bf16 %v339
        %v348 = vunpack.c.l.bf16 %v340
        %v349 = vunpack.c.l.bf16 %v341
        %v350 = vunpack.c.l.bf16 %v342
        %v351 = vunpack.c.l.bf16 %v343
        %v352 = vld [vmem:[%s1] sm:$0x1]
        %v354 = vperm.slane %v352, 0
        %v356 = vmul.f32 %v344, %v354
        %v357 = vmul.f32 %v345, %v354
        %v358 = vmul.f32 %v346, %v354
        %v359 = vmul.f32 %v347, %v354
        %v360 = vmul.f32 %v348, %v354
        %v361 = vmul.f32 %v349, %v354
        %v362 = vmul.f32 %v350, %v354
        %v363 = vmul.f32 %v351, %v354
        %v364 = vld [vmem:[%s2] sm:$0x1]
        %v366 = vperm.slane %v364, 0
        %v368 = vadd.f32 %v356, %v366
        %v369 = vadd.f32 %v357, %v366
        %v370 = vadd.f32 %v358, %v366
        %v371 = vadd.f32 %v359, %v366
        %v372 = vadd.f32 %v360, %v366
        %v373 = vadd.f32 %v361, %v366
        %v374 = vadd.f32 %v362, %v366
        %v375 = vadd.f32 %v363, %v366
        %v376 = vmax.f32 %v368, 0.0
        %v377 = vmax.f32 %v369, 0.0
        %v378 = vmax.f32 %v370, 0.0
        %v379 = vmax.f32 %v371, 0.0
        %v380 = vmax.f32 %v372, 0.0
        %v381 = vmax.f32 %v373, 0.0
        %v382 = vmax.f32 %v374, 0.0
        %v383 = vmax.f32 %v375, 0.0
        %v384 = vpack.c.bf16 %v376, %v376
        %v385 = vpack.c.bf16 %v377, %v377
        %v386 = vpack.c.bf16 %v378, %v378
        %v387 = vpack.c.bf16 %v379, %v379
        %v388 = vpack.c.bf16 %v380, %v380
        %v389 = vpack.c.bf16 %v381, %v381
        %v390 = vpack.c.bf16 %v382, %v382
        %v391 = vpack.c.bf16 %v383, %v383
        %v393 = vshrl.u32 %v384, 16
        %v395 = vrot.slane %v393, 7
        %v396 = vshll.u32 %v384, 16
        %v398 = vor.u32 %v395, %v396
        %v399 = vrot.slane %v395, 4
        %v401 = vshrl.u32 %v385, 16
        %v403 = vrot.slane %v401, 7
        %v404 = vshll.u32 %v385, 16
        %v406 = vor.u32 %v403, %v404
        %v407 = vrot.slane %v403, 4
        %v409 = vshrl.u32 %v386, 16
        %v411 = vrot.slane %v409, 7
        %v412 = vshll.u32 %v386, 16
        %v414 = vor.u32 %v411, %v412
        %v415 = vrot.slane %v411, 4
        %v417 = vshrl.u32 %v387, 16
        %v419 = vrot.slane %v417, 7
        %v420 = vshll.u32 %v387, 16
        %v422 = vor.u32 %v419, %v420
        %v423 = vrot.slane %v419, 4
        %v425 = vshrl.u32 %v388, 16
        %v427 = vrot.slane %v425, 7
        %v428 = vshll.u32 %v388, 16
        %v430 = vor.u32 %v427, %v428
        %v431 = vrot.slane %v427, 4
        %v433 = vshrl.u32 %v389, 16
        %v435 = vrot.slane %v433, 7
        %v436 = vshll.u32 %v389, 16
        %v438 = vor.u32 %v435, %v436
        %v439 = vrot.slane %v435, 4
        %v441 = vshrl.u32 %v390, 16
        %v443 = vrot.slane %v441, 7
        %v444 = vshll.u32 %v390, 16
        %v446 = vor.u32 %v443, %v444
        %v447 = vrot.slane %v443, 4
        %v449 = vshrl.u32 %v391, 16
        %v451 = vrot.slane %v449, 7
        %v452 = vshll.u32 %v391, 16
        %v454 = vor.u32 %v451, %v452
        %v455 = vrot.slane %v451, 4
        %s472 = scalar_lea.vmem [#allocation2], 8
        %vm473 = vcmask 1043456
        %vm474 = vsmask.f32 7938
        %vm475 = vmand %vm473, %vm474
        %v476 = vld [vmem:[%s472] sm:$0xf]
        %v477 = vsel %vm475, %v398, %v476
        %478 = vst [vmem:[%s472] sm:$0xf] %v477
        %vm479 = vcmask 1040384
        %vm480 = vsmask.f32 256
        %vm481 = vmand %vm479, %vm480
        %v482 = vld [vmem:[%s472 + $0x4] sm:$0x1]
        %v483 = vsel %vm481, %v399, %v482
        %484 = vst [vmem:[%s472 + $0x4] sm:$0x1] %v483
        %v485 = vld [vmem:[%s472 + $0x8] sm:$0xf]
        %v486 = vsel %vm475, %v406, %v485
        %487 = vst [vmem:[%s472 + $0x8] sm:$0xf] %v486
        %v488 = vld [vmem:[%s472 + $0xc] sm:$0x1]
        %v489 = vsel %vm481, %v407, %v488
        %490 = vst [vmem:[%s472 + $0xc] sm:$0x1] %v489
        %v491 = vld [vmem:[%s472 + $0x10] sm:$0xf]
        %v492 = vsel %vm475, %v414, %v491
        %493 = vst [vmem:[%s472 + $0x10] sm:$0xf] %v492
        %v494 = vld [vmem:[%s472 + $0x14] sm:$0x1]
        %v495 = vsel %vm481, %v415, %v494
        %496 = vst [vmem:[%s472 + $0x14] sm:$0x1] %v495
        %v497 = vld [vmem:[%s472 + $0x18] sm:$0xf]
        %v498 = vsel %vm475, %v422, %v497
        %499 = vst [vmem:[%s472 + $0x18] sm:$0xf] %v498
        %v500 = vld [vmem:[%s472 + $0x1c] sm:$0x1]
        %v501 = vsel %vm481, %v423, %v500
        %502 = vst [vmem:[%s472 + $0x1c] sm:$0x1] %v501
        %v503 = vld [vmem:[%s472 + $0x20] sm:$0xf]
        %v504 = vsel %vm475, %v430, %v503
        %505 = vst [vmem:[%s472 + $0x20] sm:$0xf] %v504
        %v506 = vld [vmem:[%s472 + $0x24] sm:$0x1]
        %v507 = vsel %vm481, %v431, %v506
        %508 = vst [vmem:[%s472 + $0x24] sm:$0x1] %v507
        %v509 = vld [vmem:[%s472 + $0x28] sm:$0xf]
        %v510 = vsel %vm475, %v438, %v509
        %511 = vst [vmem:[%s472 + $0x28] sm:$0xf] %v510
        %v512 = vld [vmem:[%s472 + $0x2c] sm:$0x1]
        %v513 = vsel %vm481, %v439, %v512
        %514 = vst [vmem:[%s472 + $0x2c] sm:$0x1] %v513
        %v515 = vld [vmem:[%s472 + $0x30] sm:$0xf]
        %v516 = vsel %vm475, %v446, %v515
        %517 = vst [vmem:[%s472 + $0x30] sm:$0xf] %v516
        %v518 = vld [vmem:[%s472 + $0x34] sm:$0x1]
        %v519 = vsel %vm481, %v447, %v518
        %520 = vst [vmem:[%s472 + $0x34] sm:$0x1] %v519
        %v521 = vld [vmem:[%s472 + $0x38] sm:$0xf]
        %v522 = vsel %vm475, %v454, %v521
        %523 = vst [vmem:[%s472 + $0x38] sm:$0xf] %v522
        %v524 = vld [vmem:[%s472 + $0x3c] sm:$0x1]
        %v525 = vsel %vm481, %v455, %v524
        %526 = vst [vmem:[%s472 + $0x3c] sm:$0x1] %v525
      $region48: #{_lambda_.25} parent=43 // pred_fallthru
        _
      %s527 = smul.u32 %s22, 4
      %s528 = smul.u32 %s527, 2
      %s529 = smul.addr %s528, 4
      %s530 = scalar_lea.vmem [#allocation2], %s529
      %v531 = vld [vmem:[%s530] sm:$0xf]
      %v532 = vld [vmem:[%s530 + $0x8] sm:$0xf]
      %v533 = vld [vmem:[%s530 + $0x10] sm:$0xf]
      %v534 = vld [vmem:[%s530 + $0x18] sm:$0xf]
      %v535 = vld [vmem:[%s530 + $0x4] sm:$0x1]
      %v536 = vld [vmem:[%s530 + $0xc] sm:$0x1]
      %v537 = vld [vmem:[%s530 + $0x14] sm:$0x1]
      %v538 = vld [vmem:[%s530 + $0x1c] sm:$0x1]
      %vm539 = vsmask.f32 3328
      %vm540 = vsmask.f32 7440
      %vm541 = vmor %vm539, %vm540
      %v543 = vshrl.u32 %v531, 16
      %v545 = vrot.slane %v543, 4
      %v546 = vshll.u32 %v531, 16
      %v548 = vrot.slane %v546, 5
      %v549 = vor.u32 %v545, %v548
      %v550 = vrot.slane %v549, 4
      %v552 = vshll.u32 %v535, 16
      %v554 = vrot.slane %v552, 5
      %v555 = vsel %vm541, %v550, %v554
      %v557 = vshrl.u32 %v532, 16
      %v559 = vrot.slane %v557, 4
      %v560 = vshll.u32 %v532, 16
      %v562 = vrot.slane %v560, 5
      %v563 = vor.u32 %v559, %v562
      %v564 = vrot.slane %v563, 4
      %v566 = vshll.u32 %v536, 16
      %v568 = vrot.slane %v566, 5
      %v569 = vsel %vm541, %v564, %v568
      %v571 = vshrl.u32 %v533, 16
      %v573 = vrot.slane %v571, 4
      %v574 = vshll.u32 %v533, 16
      %v576 = vrot.slane %v574, 5
      %v577 = vor.u32 %v573, %v576
      %v578 = vrot.slane %v577, 4
      %v580 = vshll.u32 %v537, 16
      %v582 = vrot.slane %v580, 5
      %v583 = vsel %vm541, %v578, %v582
      %v585 = vshrl.u32 %v534, 16
      %v587 = vrot.slane %v585, 4
      %v588 = vshll.u32 %v534, 16
      %v590 = vrot.slane %v588, 5
      %v591 = vor.u32 %v587, %v590
      %v592 = vrot.slane %v591, 4
      %v594 = vshll.u32 %v538, 16
      %v596 = vrot.slane %v594, 5
      %v597 = vsel %vm541, %v592, %v596
      %v598 = vld [vmem:[%s530] sm:$0xe]
      %v599 = vld [vmem:[%s530 + $0x8] sm:$0xe]
      %v600 = vld [vmem:[%s530 + $0x10] sm:$0xe]
      %v601 = vld [vmem:[%s530 + $0x18] sm:$0xe]
      %vm610 = vcmask 1042432
      %vm611 = vcmask 1046532
      %vm612 = vmor %vm610, %vm611
      %v613 = vrot.slane %v598, 5
      %v614 = vrot.slane %v613, 4
      %v615 = vrot.slane %v535, 5
      %v616 = vsel %vm612, %v614, %v615
      %v617 = vrot.slane %v599, 5
      %v618 = vrot.slane %v617, 4
      %v619 = vrot.slane %v536, 5
      %v620 = vsel %vm612, %v618, %v619
      %v621 = vrot.slane %v600, 5
      %v622 = vrot.slane %v621, 4
      %v623 = vrot.slane %v537, 5
      %v624 = vsel %vm612, %v622, %v623
      %v625 = vrot.slane %v601, 5
      %v626 = vrot.slane %v625, 4
      %v627 = vrot.slane %v538, 5
      %v628 = vsel %vm612, %v626, %v627
      %s629 = sadd.s32 %s527, 1
      %s630 = smul.u32 %s629, 2
      %s631 = smul.addr %s630, 4
      %s632 = scalar_lea.vmem [#allocation2], %s631
      %v633 = vld [vmem:[%s632] sm:$0xf]
      %v634 = vld [vmem:[%s632 + $0x8] sm:$0xf]
      %v635 = vld [vmem:[%s632 + $0x10] sm:$0xf]
      %v636 = vld [vmem:[%s632 + $0x18] sm:$0xf]
      %v637 = vld [vmem:[%s632 + $0x4] sm:$0x1]
      %v638 = vld [vmem:[%s632 + $0xc] sm:$0x1]
      %v639 = vld [vmem:[%s632 + $0x14] sm:$0x1]
      %v640 = vld [vmem:[%s632 + $0x1c] sm:$0x1]
      %v642 = vshrl.u32 %v633, 16
      %v644 = vrot.slane %v642, 4
      %v645 = vshll.u32 %v633, 16
      %v647 = vrot.slane %v645, 5
      %v648 = vor.u32 %v644, %v647
      %v649 = vrot.slane %v648, 4
      %v651 = vshll.u32 %v637, 16
      %v653 = vrot.slane %v651, 5
      %v654 = vsel %vm541, %v649, %v653
      %v656 = vshrl.u32 %v634, 16
      %v658 = vrot.slane %v656, 4
      %v659 = vshll.u32 %v634, 16
      %v661 = vrot.slane %v659, 5
      %v662 = vor.u32 %v658, %v661
      %v663 = vrot.slane %v662, 4
      %v665 = vshll.u32 %v638, 16
      %v667 = vrot.slane %v665, 5
      %v668 = vsel %vm541, %v663, %v667
      %v670 = vshrl.u32 %v635, 16
      %v672 = vrot.slane %v670, 4
      %v673 = vshll.u32 %v635, 16
      %v675 = vrot.slane %v673, 5
      %v676 = vor.u32 %v672, %v675
      %v677 = vrot.slane %v676, 4
      %v679 = vshll.u32 %v639, 16
      %v681 = vrot.slane %v679, 5
      %v682 = vsel %vm541, %v677, %v681
      %v684 = vshrl.u32 %v636, 16
      %v686 = vrot.slane %v684, 4
      %v687 = vshll.u32 %v636, 16
      %v689 = vrot.slane %v687, 5
      %v690 = vor.u32 %v686, %v689
      %v691 = vrot.slane %v690, 4
      %v693 = vshll.u32 %v640, 16
      %v695 = vrot.slane %v693, 5
      %v696 = vsel %vm541, %v691, %v695
      %v697 = vld [vmem:[%s632] sm:$0xe]
      %v698 = vld [vmem:[%s632 + $0x8] sm:$0xe]
      %v699 = vld [vmem:[%s632 + $0x10] sm:$0xe]
      %v700 = vld [vmem:[%s632 + $0x18] sm:$0xe]
      %v709 = vrot.slane %v697, 5
      %v710 = vrot.slane %v709, 4
      %v711 = vrot.slane %v637, 5
      %v712 = vsel %vm612, %v710, %v711
      %v713 = vrot.slane %v698, 5
      %v714 = vrot.slane %v713, 4
      %v715 = vrot.slane %v638, 5
      %v716 = vsel %vm612, %v714, %v715
      %v717 = vrot.slane %v699, 5
      %v718 = vrot.slane %v717, 4
      %v719 = vrot.slane %v639, 5
      %v720 = vsel %vm612, %v718, %v719
      %v721 = vrot.slane %v700, 5
      %v722 = vrot.slane %v721, 4
      %v723 = vrot.slane %v640, 5
      %v724 = vsel %vm612, %v722, %v723
      %s725 = sadd.s32 %s527, 2
      %s726 = smul.u32 %s725, 2
      %s727 = smul.addr %s726, 4
      %s728 = scalar_lea.vmem [#allocation2], %s727
      %v729 = vld [vmem:[%s728] sm:$0xf]
      %v730 = vld [vmem:[%s728 + $0x8] sm:$0xf]
      %v731 = vld [vmem:[%s728 + $0x10] sm:$0xf]
      %v732 = vld [vmem:[%s728 + $0x18] sm:$0xf]
      %v733 = vld [vmem:[%s728 + $0x4] sm:$0x1]
      %v734 = vld [vmem:[%s728 + $0xc] sm:$0x1]
      %v735 = vld [vmem:[%s728 + $0x14] sm:$0x1]
      %v736 = vld [vmem:[%s728 + $0x1c] sm:$0x1]
      %v738 = vshrl.u32 %v729, 16
      %v740 = vrot.slane %v738, 4
      %v741 = vshll.u32 %v729, 16
      %v743 = vrot.slane %v741, 5
      %v744 = vor.u32 %v740, %v743
      %v745 = vrot.slane %v744, 4
      %v747 = vshll.u32 %v733, 16
      %v749 = vrot.slane %v747, 5
      %v750 = vsel %vm541, %v745, %v749
      %v752 = vshrl.u32 %v730, 16
      %v754 = vrot.slane %v752, 4
      %v755 = vshll.u32 %v730, 16
      %v757 = vrot.slane %v755, 5
      %v758 = vor.u32 %v754, %v757
      %v759 = vrot.slane %v758, 4
      %v761 = vshll.u32 %v734, 16
      %v763 = vrot.slane %v761, 5
      %v764 = vsel %vm541, %v759, %v763
      %v766 = vshrl.u32 %v731, 16
      %v768 = vrot.slane %v766, 4
      %v769 = vshll.u32 %v731, 16
      %v771 = vrot.slane %v769, 5
      %v772 = vor.u32 %v768, %v771
      %v773 = vrot.slane %v772, 4
      %v775 = vshll.u32 %v735, 16
      %v777 = vrot.slane %v775, 5
      %v778 = vsel %vm541, %v773, %v777
      %v780 = vshrl.u32 %v732, 16
      %v782 = vrot.slane %v780, 4
      %v783 = vshll.u32 %v732, 16
      %v785 = vrot.slane %v783, 5
      %v786 = vor.u32 %v782, %v785
      %v787 = vrot.slane %v786, 4
      %v789 = vshll.u32 %v736, 16
      %v791 = vrot.slane %v789, 5
      %v792 = vsel %vm541, %v787, %v791
      %v793 = vld [vmem:[%s728] sm:$0xe]
      %v794 = vld [vmem:[%s728 + $0x8] sm:$0xe]
      %v795 = vld [vmem:[%s728 + $0x10] sm:$0xe]
      %v796 = vld [vmem:[%s728 + $0x18] sm:$0xe]
      %v805 = vrot.slane %v793, 5
      %v806 = vrot.slane %v805, 4
      %v807 = vrot.slane %v733, 5
      %v808 = vsel %vm612, %v806, %v807
      %v809 = vrot.slane %v794, 5
      %v810 = vrot.slane %v809, 4
      %v811 = vrot.slane %v734, 5
      %v812 = vsel %vm612, %v810, %v811
      %v813 = vrot.slane %v795, 5
      %v814 = vrot.slane %v813, 4
      %v815 = vrot.slane %v735, 5
      %v816 = vsel %vm612, %v814, %v815
      %v817 = vrot.slane %v796, 5
      %v818 = vrot.slane %v817, 4
      %v819 = vrot.slane %v736, 5
      %v820 = vsel %vm612, %v818, %v819
      %v825 = vunpack.c.l.b16 %v531
      %v826 = vunpack.c.l.b16 %v532
      %v827 = vunpack.c.l.b16 %v533
      %v828 = vunpack.c.l.b16 %v534
      %v829 = vpack.c.b16 %v826, %v825
      %v830 = vpack.c.b16 %v828, %v827
      %v833 = vunpack.c.l.b16 %v555
      %v834 = vunpack.c.l.b16 %v569
      %v835 = vunpack.c.l.b16 %v583
      %v836 = vunpack.c.l.b16 %v597
      %v837 = vpack.c.b16 %v834, %v833
      %v838 = vpack.c.b16 %v836, %v835
      %v841 = vunpack.c.l.b16 %v616
      %v842 = vunpack.c.l.b16 %v620
      %v843 = vunpack.c.l.b16 %v624
      %v844 = vunpack.c.l.b16 %v628
      %v845 = vpack.c.b16 %v842, %v841
      %v846 = vpack.c.b16 %v844, %v843
      %v853 = vunpack.c.l.b16 %v633
      %v854 = vunpack.c.l.b16 %v634
      %v855 = vunpack.c.l.b16 %v635
      %v856 = vunpack.c.l.b16 %v636
      %v857 = vpack.c.b16 %v854, %v853
      %v858 = vpack.c.b16 %v856, %v855
      %v861 = vunpack.c.l.b16 %v654
      %v862 = vunpack.c.l.b16 %v668
      %v863 = vunpack.c.l.b16 %v682
      %v864 = vunpack.c.l.b16 %v696
      %v865 = vpack.c.b16 %v862, %v861
      %v866 = vpack.c.b16 %v864, %v863
      %v869 = vunpack.c.l.b16 %v712
      %v870 = vunpack.c.l.b16 %v716
      %v871 = vunpack.c.l.b16 %v720
      %v872 = vunpack.c.l.b16 %v724
      %v873 = vpack.c.b16 %v870, %v869
      %v874 = vpack.c.b16 %v872, %v871
      %v881 = vunpack.c.l.b16 %v729
      %v882 = vunpack.c.l.b16 %v730
      %v883 = vunpack.c.l.b16 %v731
      %v884 = vunpack.c.l.b16 %v732
      %v885 = vpack.c.b16 %v882, %v881
      %v886 = vpack.c.b16 %v884, %v883
      %v889 = vunpack.c.l.b16 %v750
      %v890 = vunpack.c.l.b16 %v764
      %v891 = vunpack.c.l.b16 %v778
      %v892 = vunpack.c.l.b16 %v792
      %v893 = vpack.c.b16 %v890, %v889
      %v894 = vpack.c.b16 %v892, %v891
      %v897 = vunpack.c.l.b16 %v808
      %v898 = vunpack.c.l.b16 %v812
      %v899 = vunpack.c.l.b16 %v816
      %v900 = vunpack.c.l.b16 %v820
      %v901 = vpack.c.b16 %v898, %v897
      %v902 = vpack.c.b16 %v900, %v899
      %v905 = vld [vmem:[%s3] sm:$0xf]
      %v906 = vld [vmem:[%s3 + $0x4] sm:$0xf]
      %v907 = vld [vmem:[%s3 + $0x8] sm:$0xf]
      %v908 = vld [vmem:[%s3 + $0xc] sm:$0xf]
      %v909 = vld [vmem:[%s3 + $0x10] sm:$0xf]
      %v910 = vld [vmem:[%s3 + $0x14] sm:$0xf]
      %v911 = vld [vmem:[%s3 + $0x18] sm:$0xf]
      %v912 = vld [vmem:[%s3 + $0x1c] sm:$0xf]
      %v913 = vld [vmem:[%s3 + $0x20] sm:$0xf]
      %v914 = vld [vmem:[%s3 + $0x24] sm:$0xf]
      %v915 = vld [vmem:[%s3 + $0x28] sm:$0xf]
      %v916 = vld [vmem:[%s3 + $0x2c] sm:$0xf]
      %v917 = vld [vmem:[%s3 + $0x30] sm:$0xf]
      %v918 = vld [vmem:[%s3 + $0x34] sm:$0xf]
      %v919 = vld [vmem:[%s3 + $0x38] sm:$0xf]
      %v920 = vld [vmem:[%s3 + $0x3c] sm:$0xf]
      %v921 = vld [vmem:[%s3 + $0x40] sm:$0xf]
      %v922 = vld [vmem:[%s3 + $0x44] sm:$0xf]
      %v923 = vld [vmem:[%s3 + $0x48] sm:$0xf]
      %v924 = vld [vmem:[%s3 + $0x4c] sm:$0xf]
      %v925 = vld [vmem:[%s3 + $0x50] sm:$0xf]
      %v926 = vld [vmem:[%s3 + $0x54] sm:$0xf]
      %v927 = vld [vmem:[%s3 + $0x58] sm:$0xf]
      %v928 = vld [vmem:[%s3 + $0x5c] sm:$0xf]
      %v929 = vld [vmem:[%s3 + $0x60] sm:$0xf]
      %v930 = vld [vmem:[%s3 + $0x64] sm:$0xf]
      %v931 = vld [vmem:[%s3 + $0x68] sm:$0xf]
      %v932 = vld [vmem:[%s3 + $0x6c] sm:$0xf]
      %v933 = vld [vmem:[%s3 + $0x70] sm:$0xf]
      %v934 = vld [vmem:[%s3 + $0x74] sm:$0xf]
      %v935 = vld [vmem:[%s3 + $0x78] sm:$0xf]
      %v936 = vld [vmem:[%s3 + $0x7c] sm:$0xf]
      %v937 = vld [vmem:[%s3 + $0x80] sm:$0xf]
      %v938 = vld [vmem:[%s3 + $0x84] sm:$0xf]
      %v939 = vld [vmem:[%s3 + $0x88] sm:$0xf]
      %v940 = vld [vmem:[%s3 + $0x8c] sm:$0xf]
      %v941 = vld [vmem:[%s3 + $0x90] sm:$0xf]
      %v942 = vld [vmem:[%s3 + $0x94] sm:$0xf]
      %v943 = vld [vmem:[%s3 + $0x98] sm:$0xf]
      %v944 = vld [vmem:[%s3 + $0x9c] sm:$0xf]
      %v945 = vld [vmem:[%s3 + $0xa0] sm:$0xf]
      %v946 = vld [vmem:[%s3 + $0xa4] sm:$0xf]
      %v947 = vld [vmem:[%s3 + $0xa8] sm:$0xf]
      %v948 = vld [vmem:[%s3 + $0xac] sm:$0xf]
      %v949 = vld [vmem:[%s3 + $0xb0] sm:$0xf]
      %v950 = vld [vmem:[%s3 + $0xb4] sm:$0xf]
      %v951 = vld [vmem:[%s3 + $0xb8] sm:$0xf]
      %v952 = vld [vmem:[%s3 + $0xbc] sm:$0xf]
      %v953 = vld [vmem:[%s3 + $0xc0] sm:$0xf]
      %v954 = vld [vmem:[%s3 + $0xc4] sm:$0xf]
      %v955 = vld [vmem:[%s3 + $0xc8] sm:$0xf]
      %v956 = vld [vmem:[%s3 + $0xcc] sm:$0xf]
      %v957 = vld [vmem:[%s3 + $0xd0] sm:$0xf]
      %v958 = vld [vmem:[%s3 + $0xd4] sm:$0xf]
      %v959 = vld [vmem:[%s3 + $0xd8] sm:$0xf]
      %v960 = vld [vmem:[%s3 + $0xdc] sm:$0xf]
      %v961 = vld [vmem:[%s3 + $0xe0] sm:$0xf]
      %v962 = vld [vmem:[%s3 + $0xe4] sm:$0xf]
      %v963 = vld [vmem:[%s3 + $0xe8] sm:$0xf]
      %v964 = vld [vmem:[%s3 + $0xec] sm:$0xf]
      %v965 = vld [vmem:[%s3 + $0xf0] sm:$0xf]
      %v966 = vld [vmem:[%s3 + $0xf4] sm:$0xf]
      %v967 = vld [vmem:[%s3 + $0xf8] sm:$0xf]
      %v968 = vld [vmem:[%s3 + $0xfc] sm:$0xf]
      %v969 = vld [vmem:[%s3 + $0x100] sm:$0xf]
      %v970 = vld [vmem:[%s3 + $0x104] sm:$0xf]
      %v971 = vld [vmem:[%s3 + $0x108] sm:$0xf]
      %v972 = vld [vmem:[%s3 + $0x10c] sm:$0xf]
      %v973 = vld [vmem:[%s3 + $0x110] sm:$0xf]
      %v974 = vld [vmem:[%s3 + $0x114] sm:$0xf]
      %v975 = vld [vmem:[%s3 + $0x118] sm:$0xf]
      %v976 = vld [vmem:[%s3 + $0x11c] sm:$0xf]
      %v977 = vld [vmem:[%s3 + $0x120] sm:$0xf]
      %v978 = vld [vmem:[%s3 + $0x124] sm:$0xf]
      %v979 = vld [vmem:[%s3 + $0x128] sm:$0xf]
      %v980 = vld [vmem:[%s3 + $0x12c] sm:$0xf]
      %v981 = vld [vmem:[%s3 + $0x130] sm:$0xf]
      %v982 = vld [vmem:[%s3 + $0x134] sm:$0xf]
      %v983 = vld [vmem:[%s3 + $0x138] sm:$0xf]
      %v984 = vld [vmem:[%s3 + $0x13c] sm:$0xf]
      %v985 = vld [vmem:[%s3 + $0x140] sm:$0xf]
      %v986 = vld [vmem:[%s3 + $0x144] sm:$0xf]
      %v987 = vld [vmem:[%s3 + $0x148] sm:$0xf]
      %v988 = vld [vmem:[%s3 + $0x14c] sm:$0xf]
      %v989 = vld [vmem:[%s3 + $0x150] sm:$0xf]
      %v990 = vld [vmem:[%s3 + $0x154] sm:$0xf]
      %v991 = vld [vmem:[%s3 + $0x158] sm:$0xf]
      %v992 = vld [vmem:[%s3 + $0x15c] sm:$0xf]
      %v993 = vld [vmem:[%s3 + $0x160] sm:$0xf]
      %v994 = vld [vmem:[%s3 + $0x164] sm:$0xf]
      %v995 = vld [vmem:[%s3 + $0x168] sm:$0xf]
      %v996 = vld [vmem:[%s3 + $0x16c] sm:$0xf]
      %v997 = vld [vmem:[%s3 + $0x170] sm:$0xf]
      %v998 = vld [vmem:[%s3 + $0x174] sm:$0xf]
      %v999 = vld [vmem:[%s3 + $0x178] sm:$0xf]
      %v1000 = vld [vmem:[%s3 + $0x17c] sm:$0xf]
      %v1001 = vld [vmem:[%s3 + $0x180] sm:$0xf]
      %v1002 = vld [vmem:[%s3 + $0x184] sm:$0xf]
      %v1003 = vld [vmem:[%s3 + $0x188] sm:$0xf]
      %v1004 = vld [vmem:[%s3 + $0x18c] sm:$0xf]
      %v1005 = vld [vmem:[%s3 + $0x190] sm:$0xf]
      %v1006 = vld [vmem:[%s3 + $0x194] sm:$0xf]
      %v1007 = vld [vmem:[%s3 + $0x198] sm:$0xf]
      %v1008 = vld [vmem:[%s3 + $0x19c] sm:$0xf]
      %v1009 = vld [vmem:[%s3 + $0x1a0] sm:$0xf]
      %v1010 = vld [vmem:[%s3 + $0x1a4] sm:$0xf]
      %v1011 = vld [vmem:[%s3 + $0x1a8] sm:$0xf]
      %v1012 = vld [vmem:[%s3 + $0x1ac] sm:$0xf]
      %v1013 = vld [vmem:[%s3 + $0x1b0] sm:$0xf]
      %v1014 = vld [vmem:[%s3 + $0x1b4] sm:$0xf]
      %v1015 = vld [vmem:[%s3 + $0x1b8] sm:$0xf]
      %v1016 = vld [vmem:[%s3 + $0x1bc] sm:$0xf]
      %v1017 = vld [vmem:[%s3 + $0x1c0] sm:$0xf]
      %v1018 = vld [vmem:[%s3 + $0x1c4] sm:$0xf]
      %v1019 = vld [vmem:[%s3 + $0x1c8] sm:$0xf]
      %v1020 = vld [vmem:[%s3 + $0x1cc] sm:$0xf]
      %v1021 = vld [vmem:[%s3 + $0x1d0] sm:$0xf]
      %v1022 = vld [vmem:[%s3 + $0x1d4] sm:$0xf]
      %v1023 = vld [vmem:[%s3 + $0x1d8] sm:$0xf]
      %v1024 = vld [vmem:[%s3 + $0x1dc] sm:$0xf]
      %v1025 = vld [vmem:[%s3 + $0x1e0] sm:$0xf]
      %v1026 = vld [vmem:[%s3 + $0x1e4] sm:$0xf]
      %v1027 = vld [vmem:[%s3 + $0x1e8] sm:$0xf]
      %v1028 = vld [vmem:[%s3 + $0x1ec] sm:$0xf]
      %v1029 = vld [vmem:[%s3 + $0x1f0] sm:$0xf]
      %v1030 = vld [vmem:[%s3 + $0x1f4] sm:$0xf]
      %v1031 = vld [vmem:[%s3 + $0x1f8] sm:$0xf]
      %v1032 = vld [vmem:[%s3 + $0x1fc] sm:$0xf]
      %v1033 = vld [vmem:[%s3 + $0x200] sm:$0xf]
      %v1034 = vld [vmem:[%s3 + $0x204] sm:$0xf]
      %v1035 = vld [vmem:[%s3 + $0x208] sm:$0xf]
      %v1036 = vld [vmem:[%s3 + $0x20c] sm:$0xf]
      %v1037 = vld [vmem:[%s3 + $0x210] sm:$0xf]
      %v1038 = vld [vmem:[%s3 + $0x214] sm:$0xf]
      %v1039 = vld [vmem:[%s3 + $0x218] sm:$0xf]
      %v1040 = vld [vmem:[%s3 + $0x21c] sm:$0xf]
      %v1041 = vld [vmem:[%s3 + $0x220] sm:$0xf]
      %v1042 = vld [vmem:[%s3 + $0x224] sm:$0xf]
      %v1043 = vld [vmem:[%s3 + $0x228] sm:$0xf]
      %v1044 = vld [vmem:[%s3 + $0x22c] sm:$0xf]
      %v1045 = vld [vmem:[%s3 + $0x230] sm:$0xf]
      %v1046 = vld [vmem:[%s3 + $0x234] sm:$0xf]
      %v1047 = vld [vmem:[%s3 + $0x238] sm:$0xf]
      %v1048 = vld [vmem:[%s3 + $0x23c] sm:$0xf]
      %v1049 = vld [vmem:[%s299] sm:$0xf]
      %v1050 = vld [vmem:[%s299 + $0x4] sm:$0xf]
      %v1051 = vld [vmem:[%s299 + $0x8] sm:$0xf]
      %v1052 = vld [vmem:[%s299 + $0xc] sm:$0xf]
      %v1053 = vld [vmem:[%s5] sm:$0xf]
      %v1054 = vld [vmem:[%s5 + $0x4] sm:$0xf]
      %v1055 = vld [vmem:[%s5 + $0x8] sm:$0xf]
      %v1056 = vld [vmem:[%s5 + $0xc] sm:$0xf]
      %v1057 = vld [vmem:[%s5 + $0x10] sm:$0xf]
      %v1058 = vld [vmem:[%s5 + $0x14] sm:$0xf]
      %v1059 = vld [vmem:[%s5 + $0x18] sm:$0xf]
      %v1060 = vld [vmem:[%s5 + $0x1c] sm:$0xf]
      %v1061 = vld [vmem:[%s5 + $0x20] sm:$0xf]
      %v1062 = vld [vmem:[%s5 + $0x24] sm:$0xf]
      %v1063 = vld [vmem:[%s5 + $0x28] sm:$0xf]
      %v1064 = vld [vmem:[%s5 + $0x2c] sm:$0xf]
      %v1065 = vld [vmem:[%s5 + $0x30] sm:$0xf]
      %v1066 = vld [vmem:[%s5 + $0x34] sm:$0xf]
      %v1067 = vld [vmem:[%s5 + $0x38] sm:$0xf]
      %v1068 = vld [vmem:[%s5 + $0x3c] sm:$0xf]
      %v1073 = vunpack.c.l.b16 %v1049
      %v1074 = vunpack.c.l.b16 %v1050
      %v1075 = vunpack.c.l.b16 %v1051
      %v1076 = vunpack.c.l.b16 %v1052
      %v1077 = vpack.c.b16 %v1074, %v1073
      %v1078 = vpack.c.b16 %v1076, %v1075
      %v1097 = vunpack.c.l.b16 %v1053
      %v1098 = vunpack.c.l.b16 %v1054
      %v1099 = vunpack.c.l.b16 %v1055
      %v1100 = vunpack.c.l.b16 %v1056
      %v1101 = vunpack.c.l.b16 %v1057
      %v1102 = vunpack.c.l.b16 %v1058
      %v1103 = vunpack.c.l.b16 %v1059
      %v1104 = vunpack.c.l.b16 %v1060
      %v1105 = vunpack.c.l.b16 %v1061
      %v1106 = vunpack.c.l.b16 %v1062
      %v1107 = vunpack.c.l.b16 %v1063
      %v1108 = vunpack.c.l.b16 %v1064
      %v1109 = vunpack.c.l.b16 %v1065
      %v1110 = vunpack.c.l.b16 %v1066
      %v1111 = vunpack.c.l.b16 %v1067
      %v1112 = vunpack.c.l.b16 %v1068
      %v1113 = vpack.c.b16 %v1098, %v1097
      %v1114 = vpack.c.b16 %v1100, %v1099
      %v1115 = vpack.c.b16 %v1102, %v1101
      %v1116 = vpack.c.b16 %v1104, %v1103
      %v1117 = vpack.c.b16 %v1106, %v1105
      %v1118 = vpack.c.b16 %v1108, %v1107
      %v1119 = vpack.c.b16 %v1110, %v1109
      %v1120 = vpack.c.b16 %v1112, %v1111
      %1129 = vmatpush.bf16.msra.mxu0 %v1120
      %1130 = vmatpush.bf16.msra.mxu0 %v1119
      %1131 = vmatpush.bf16.msra.mxu0 %v1118
      %1132 = vmatpush.bf16.msra.mxu0 %v1117
      %1133 = vmatpush.bf16.msra.mxu0 %v1116
      %1134 = vmatpush.bf16.msra.mxu0 %v1115
      %1135 = vmatpush.bf16.msra.mxu0 %v1114
      %1136 = vmatpush.bf16.msra.mxu0 %v1113
      %1137 = vmatmul.bf16.gmra.mxu0 %v1077
      %v1138 = vpop.f32.mrf.mxu0
      %v1139 = vadd.f32 0.0, %v1138
      %v1140 = vpop.f32.mrf.mxu0
      %v1141 = vadd.f32 0.0, %v1140
      %1142 = vmatmul.bf16.gmra.mxu0 %v1078
      %v1143 = vpop.f32.mrf.mxu0
      %v1144 = vadd.f32 0.0, %v1143
      %v1145 = vpop.f32.mrf.mxu0
      %v1146 = vadd.f32 0.0, %v1145
      %1147 = vdwg.mxu0
      %v1292 = vunpack.c.l.b16 %v905
      %v1293 = vunpack.c.l.b16 %v906
      %v1294 = vunpack.c.l.b16 %v907
      %v1295 = vunpack.c.l.b16 %v908
      %v1296 = vunpack.c.l.b16 %v909
      %v1297 = vunpack.c.l.b16 %v910
      %v1298 = vunpack.c.l.b16 %v911
      %v1299 = vunpack.c.l.b16 %v912
      %v1300 = vunpack.c.l.b16 %v913
      %v1301 = vunpack.c.l.b16 %v914
      %v1302 = vunpack.c.l.b16 %v915
      %v1303 = vunpack.c.l.b16 %v916
      %v1304 = vunpack.c.l.b16 %v917
      %v1305 = vunpack.c.l.b16 %v918
      %v1306 = vunpack.c.l.b16 %v919
      %v1307 = vunpack.c.l.b16 %v920
      %v1308 = vunpack.c.l.b16 %v921
      %v1309 = vunpack.c.l.b16 %v922
      %v1310 = vunpack.c.l.b16 %v923
      %v1311 = vunpack.c.l.b16 %v924
      %v1312 = vunpack.c.l.b16 %v925
      %v1313 = vunpack.c.l.b16 %v926
      %v1314 = vunpack.c.l.b16 %v927
      %v1315 = vunpack.c.l.b16 %v928
      %v1316 = vunpack.c.l.b16 %v929
      %v1317 = vunpack.c.l.b16 %v930
      %v1318 = vunpack.c.l.b16 %v931
      %v1319 = vunpack.c.l.b16 %v932
      %v1320 = vunpack.c.l.b16 %v933
      %v1321 = vunpack.c.l.b16 %v934
      %v1322 = vunpack.c.l.b16 %v935
      %v1323 = vunpack.c.l.b16 %v936
      %v1324 = vunpack.c.l.b16 %v937
      %v1325 = vunpack.c.l.b16 %v938
      %v1326 = vunpack.c.l.b16 %v939
      %v1327 = vunpack.c.l.b16 %v940
      %v1328 = vunpack.c.l.b16 %v941
      %v1329 = vunpack.c.l.b16 %v942
      %v1330 = vunpack.c.l.b16 %v943
      %v1331 = vunpack.c.l.b16 %v944
      %v1332 = vunpack.c.l.b16 %v945
      %v1333 = vunpack.c.l.b16 %v946
      %v1334 = vunpack.c.l.b16 %v947
      %v1335 = vunpack.c.l.b16 %v948
      %v1336 = vunpack.c.l.b16 %v949
      %v1337 = vunpack.c.l.b16 %v950
      %v1338 = vunpack.c.l.b16 %v951
      %v1339 = vunpack.c.l.b16 %v952
      %v1340 = vunpack.c.l.b16 %v953
      %v1341 = vunpack.c.l.b16 %v954
      %v1342 = vunpack.c.l.b16 %v955
      %v1343 = vunpack.c.l.b16 %v956
      %v1344 = vunpack.c.l.b16 %v957
      %v1345 = vunpack.c.l.b16 %v958
      %v1346 = vunpack.c.l.b16 %v959
      %v1347 = vunpack.c.l.b16 %v960
      %v1348 = vunpack.c.l.b16 %v961
      %v1349 = vunpack.c.l.b16 %v962
      %v1350 = vunpack.c.l.b16 %v963
      %v1351 = vunpack.c.l.b16 %v964
      %v1352 = vunpack.c.l.b16 %v965
      %v1353 = vunpack.c.l.b16 %v966
      %v1354 = vunpack.c.l.b16 %v967
      %v1355 = vunpack.c.l.b16 %v968
      %v1356 = vunpack.c.l.b16 %v969
      %v1357 = vunpack.c.l.b16 %v970
      %v1358 = vunpack.c.l.b16 %v971
      %v1359 = vunpack.c.l.b16 %v972
      %v1360 = vunpack.c.l.b16 %v973
      %v1361 = vunpack.c.l.b16 %v974
      %v1362 = vunpack.c.l.b16 %v975
      %v1363 = vunpack.c.l.b16 %v976
      %v1364 = vunpack.c.l.b16 %v977
      %v1365 = vunpack.c.l.b16 %v978
      %v1366 = vunpack.c.l.b16 %v979
      %v1367 = vunpack.c.l.b16 %v980
      %v1368 = vunpack.c.l.b16 %v981
      %v1369 = vunpack.c.l.b16 %v982
      %v1370 = vunpack.c.l.b16 %v983
      %v1371 = vunpack.c.l.b16 %v984
      %v1372 = vunpack.c.l.b16 %v985
      %v1373 = vunpack.c.l.b16 %v986
      %v1374 = vunpack.c.l.b16 %v987
      %v1375 = vunpack.c.l.b16 %v988
      %v1376 = vunpack.c.l.b16 %v989
      %v1377 = vunpack.c.l.b16 %v990
      %v1378 = vunpack.c.l.b16 %v991
      %v1379 = vunpack.c.l.b16 %v992
      %v1380 = vunpack.c.l.b16 %v993
      %v1381 = vunpack.c.l.b16 %v994
      %v1382 = vunpack.c.l.b16 %v995
      %v1383 = vunpack.c.l.b16 %v996
      %v1384 = vunpack.c.l.b16 %v997
      %v1385 = vunpack.c.l.b16 %v998
      %v1386 = vunpack.c.l.b16 %v999
      %v1387 = vunpack.c.l.b16 %v1000
      %v1388 = vunpack.c.l.b16 %v1001
      %v1389 = vunpack.c.l.b16 %v1002
      %v1390 = vunpack.c.l.b16 %v1003
      %v1391 = vunpack.c.l.b16 %v1004
      %v1392 = vunpack.c.l.b16 %v1005
      %v1393 = vunpack.c.l.b16 %v1006
      %v1394 = vunpack.c.l.b16 %v1007
      %v1395 = vunpack.c.l.b16 %v1008
      %v1396 = vunpack.c.l.b16 %v1009
      %v1397 = vunpack.c.l.b16 %v1010
      %v1398 = vunpack.c.l.b16 %v1011
      %v1399 = vunpack.c.l.b16 %v1012
      %v1400 = vunpack.c.l.b16 %v1013
      %v1401 = vunpack.c.l.b16 %v1014
      %v1402 = vunpack.c.l.b16 %v1015
      %v1403 = vunpack.c.l.b16 %v1016
      %v1404 = vunpack.c.l.b16 %v1017
      %v1405 = vunpack.c.l.b16 %v1018
      %v1406 = vunpack.c.l.b16 %v1019
      %v1407 = vunpack.c.l.b16 %v1020
      %v1408 = vunpack.c.l.b16 %v1021
      %v1409 = vunpack.c.l.b16 %v1022
      %v1410 = vunpack.c.l.b16 %v1023
      %v1411 = vunpack.c.l.b16 %v1024
      %v1412 = vunpack.c.l.b16 %v1025
      %v1413 = vunpack.c.l.b16 %v1026
      %v1414 = vunpack.c.l.b16 %v1027
      %v1415 = vunpack.c.l.b16 %v1028
      %v1416 = vunpack.c.l.b16 %v1029
      %v1417 = vunpack.c.l.b16 %v1030
      %v1418 = vunpack.c.l.b16 %v1031
      %v1419 = vunpack.c.l.b16 %v1032
      %v1420 = vunpack.c.l.b16 %v1033
      %v1421 = vunpack.c.l.b16 %v1034
      %v1422 = vunpack.c.l.b16 %v1035
      %v1423 = vunpack.c.l.b16 %v1036
      %v1424 = vunpack.c.l.b16 %v1037
      %v1425 = vunpack.c.l.b16 %v1038
      %v1426 = vunpack.c.l.b16 %v1039
      %v1427 = vunpack.c.l.b16 %v1040
      %v1428 = vunpack.c.l.b16 %v1041
      %v1429 = vunpack.c.l.b16 %v1042
      %v1430 = vunpack.c.l.b16 %v1043
      %v1431 = vunpack.c.l.b16 %v1044
      %v1432 = vunpack.c.l.b16 %v1045
      %v1433 = vunpack.c.l.b16 %v1046
      %v1434 = vunpack.c.l.b16 %v1047
      %v1435 = vunpack.c.l.b16 %v1048
      %v1436 = vpack.c.b16 %v1293, %v1292
      %v1437 = vpack.c.b16 %v1295, %v1294
      %v1438 = vpack.c.b16 %v1297, %v1296
      %v1439 = vpack.c.b16 %v1299, %v1298
      %v1440 = vpack.c.b16 %v1301, %v1300
      %v1441 = vpack.c.b16 %v1303, %v1302
      %v1442 = vpack.c.b16 %v1305, %v1304
      %v1443 = vpack.c.b16 %v1307, %v1306
      %v1444 = vpack.c.b16 %v1309, %v1308
      %v1445 = vpack.c.b16 %v1311, %v1310
      %v1446 = vpack.c.b16 %v1313, %v1312
      %v1447 = vpack.c.b16 %v1315, %v1314
      %v1448 = vpack.c.b16 %v1317, %v1316
      %v1449 = vpack.c.b16 %v1319, %v1318
      %v1450 = vpack.c.b16 %v1321, %v1320
      %v1451 = vpack.c.b16 %v1323, %v1322
      %v1452 = vpack.c.b16 %v1325, %v1324
      %v1453 = vpack.c.b16 %v1327, %v1326
      %v1454 = vpack.c.b16 %v1329, %v1328
      %v1455 = vpack.c.b16 %v1331, %v1330
      %v1456 = vpack.c.b16 %v1333, %v1332
      %v1457 = vpack.c.b16 %v1335, %v1334
      %v1458 = vpack.c.b16 %v1337, %v1336
      %v1459 = vpack.c.b16 %v1339, %v1338
      %v1460 = vpack.c.b16 %v1341, %v1340
      %v1461 = vpack.c.b16 %v1343, %v1342
      %v1462 = vpack.c.b16 %v1345, %v1344
      %v1463 = vpack.c.b16 %v1347, %v1346
      %v1464 = vpack.c.b16 %v1349, %v1348
      %v1465 = vpack.c.b16 %v1351, %v1350
      %v1466 = vpack.c.b16 %v1353, %v1352
      %v1467 = vpack.c.b16 %v1355, %v1354
      %v1468 = vpack.c.b16 %v1357, %v1356
      %v1469 = vpack.c.b16 %v1359, %v1358
      %v1470 = vpack.c.b16 %v1361, %v1360
      %v1471 = vpack.c.b16 %v1363, %v1362
      %v1472 = vpack.c.b16 %v1365, %v1364
      %v1473 = vpack.c.b16 %v1367, %v1366
      %v1474 = vpack.c.b16 %v1369, %v1368
      %v1475 = vpack.c.b16 %v1371, %v1370
      %v1476 = vpack.c.b16 %v1373, %v1372
      %v1477 = vpack.c.b16 %v1375, %v1374
      %v1478 = vpack.c.b16 %v1377, %v1376
      %v1479 = vpack.c.b16 %v1379, %v1378
      %v1480 = vpack.c.b16 %v1381, %v1380
      %v1481 = vpack.c.b16 %v1383, %v1382
      %v1482 = vpack.c.b16 %v1385, %v1384
      %v1483 = vpack.c.b16 %v1387, %v1386
      %v1484 = vpack.c.b16 %v1389, %v1388
      %v1485 = vpack.c.b16 %v1391, %v1390
      %v1486 = vpack.c.b16 %v1393, %v1392
      %v1487 = vpack.c.b16 %v1395, %v1394
      %v1488 = vpack.c.b16 %v1397, %v1396
      %v1489 = vpack.c.b16 %v1399, %v1398
      %v1490 = vpack.c.b16 %v1401, %v1400
      %v1491 = vpack.c.b16 %v1403, %v1402
      %v1492 = vpack.c.b16 %v1405, %v1404
      %v1493 = vpack.c.b16 %v1407, %v1406
      %v1494 = vpack.c.b16 %v1409, %v1408
      %v1495 = vpack.c.b16 %v1411, %v1410
      %v1496 = vpack.c.b16 %v1413, %v1412
      %v1497 = vpack.c.b16 %v1415, %v1414
      %v1498 = vpack.c.b16 %v1417, %v1416
      %v1499 = vpack.c.b16 %v1419, %v1418
      %v1500 = vpack.c.b16 %v1421, %v1420
      %v1501 = vpack.c.b16 %v1423, %v1422
      %v1502 = vpack.c.b16 %v1425, %v1424
      %v1503 = vpack.c.b16 %v1427, %v1426
      %v1504 = vpack.c.b16 %v1429, %v1428
      %v1505 = vpack.c.b16 %v1431, %v1430
      %v1506 = vpack.c.b16 %v1433, %v1432
      %v1507 = vpack.c.b16 %v1435, %v1434
      %1580 = vmatpush.bf16.msra.mxu0 %v1443
      %1581 = vmatpush.bf16.msra.mxu0 %v1442
      %1582 = vmatpush.bf16.msra.mxu0 %v1441
      %1583 = vmatpush.bf16.msra.mxu0 %v1440
      %1584 = vmatpush.bf16.msra.mxu0 %v1439
      %1585 = vmatpush.bf16.msra.mxu0 %v1438
      %1586 = vmatpush.bf16.msra.mxu0 %v1437
      %1587 = vmatpush.bf16.msra.mxu0 %v1436
      %1588 = vmatmul.bf16.gmra.mxu0 %v829
      %v1589 = vpop.f32.mrf.mxu0
      %v1590 = vadd.f32 %v1139, %v1589
      %v1591 = vpop.f32.mrf.mxu0
      %v1592 = vadd.f32 %v1141, %v1591
      %1593 = vmatmul.bf16.gmra.mxu0 %v830
      %v1594 = vpop.f32.mrf.mxu0
      %v1595 = vadd.f32 %v1144, %v1594
      %v1596 = vpop.f32.mrf.mxu0
      %v1597 = vadd.f32 %v1146, %v1596
      %1598 = vdwg.mxu0
      %1599 = vmatpush.bf16.msra.mxu0 %v1451
      %1600 = vmatpush.bf16.msra.mxu0 %v1450
      %1601 = vmatpush.bf16.msra.mxu0 %v1449
      %1602 = vmatpush.bf16.msra.mxu0 %v1448
      %1603 = vmatpush.bf16.msra.mxu0 %v1447
      %1604 = vmatpush.bf16.msra.mxu0 %v1446
      %1605 = vmatpush.bf16.msra.mxu0 %v1445
      %1606 = vmatpush.bf16.msra.mxu0 %v1444
      %1607 = vmatmul.bf16.gmra.mxu0 %v837
      %v1608 = vpop.f32.mrf.mxu0
      %v1609 = vadd.f32 %v1590, %v1608
      %v1610 = vpop.f32.mrf.mxu0
      %v1611 = vadd.f32 %v1592, %v1610
      %1612 = vmatmul.bf16.gmra.mxu0 %v838
      %v1613 = vpop.f32.mrf.mxu0
      %v1614 = vadd.f32 %v1595, %v1613
      %v1615 = vpop.f32.mrf.mxu0
      %v1616 = vadd.f32 %v1597, %v1615
      %1617 = vdwg.mxu0
      %1618 = vmatpush.bf16.msra.mxu0 %v1459
      %1619 = vmatpush.bf16.msra.mxu0 %v1458
      %1620 = vmatpush.bf16.msra.mxu0 %v1457
      %1621 = vmatpush.bf16.msra.mxu0 %v1456
      %1622 = vmatpush.bf16.msra.mxu0 %v1455
      %1623 = vmatpush.bf16.msra.mxu0 %v1454
      %1624 = vmatpush.bf16.msra.mxu0 %v1453
      %1625 = vmatpush.bf16.msra.mxu0 %v1452
      %1626 = vmatmul.bf16.gmra.mxu0 %v845
      %v1627 = vpop.f32.mrf.mxu0
      %v1628 = vadd.f32 %v1609, %v1627
      %v1629 = vpop.f32.mrf.mxu0
      %v1630 = vadd.f32 %v1611, %v1629
      %1631 = vmatmul.bf16.gmra.mxu0 %v846
      %v1632 = vpop.f32.mrf.mxu0
      %v1633 = vadd.f32 %v1614, %v1632
      %v1634 = vpop.f32.mrf.mxu0
      %v1635 = vadd.f32 %v1616, %v1634
      %1636 = vdwg.mxu0
      %1637 = vmatpush.bf16.msra.mxu0 %v1467
      %1638 = vmatpush.bf16.msra.mxu0 %v1466
      %1639 = vmatpush.bf16.msra.mxu0 %v1465
      %1640 = vmatpush.bf16.msra.mxu0 %v1464
      %1641 = vmatpush.bf16.msra.mxu0 %v1463
      %1642 = vmatpush.bf16.msra.mxu0 %v1462
      %1643 = vmatpush.bf16.msra.mxu0 %v1461
      %1644 = vmatpush.bf16.msra.mxu0 %v1460
      %1645 = vmatmul.bf16.gmra.mxu0 %v857
      %v1646 = vpop.f32.mrf.mxu0
      %v1647 = vadd.f32 %v1628, %v1646
      %v1648 = vpop.f32.mrf.mxu0
      %v1649 = vadd.f32 %v1630, %v1648
      %1650 = vmatmul.bf16.gmra.mxu0 %v858
      %v1651 = vpop.f32.mrf.mxu0
      %v1652 = vadd.f32 %v1633, %v1651
      %v1653 = vpop.f32.mrf.mxu0
      %v1654 = vadd.f32 %v1635, %v1653
      %1655 = vdwg.mxu0
      %1656 = vmatpush.bf16.msra.mxu0 %v1475
      %1657 = vmatpush.bf16.msra.mxu0 %v1474
      %1658 = vmatpush.bf16.msra.mxu0 %v1473
      %1659 = vmatpush.bf16.msra.mxu0 %v1472
      %1660 = vmatpush.bf16.msra.mxu0 %v1471
      %1661 = vmatpush.bf16.msra.mxu0 %v1470
      %1662 = vmatpush.bf16.msra.mxu0 %v1469
      %1663 = vmatpush.bf16.msra.mxu0 %v1468
      %1664 = vmatmul.bf16.gmra.mxu0 %v865
      %v1665 = vpop.f32.mrf.mxu0
      %v1666 = vadd.f32 %v1647, %v1665
      %v1667 = vpop.f32.mrf.mxu0
      %v1668 = vadd.f32 %v1649, %v1667
      %1669 = vmatmul.bf16.gmra.mxu0 %v866
      %v1670 = vpop.f32.mrf.mxu0
      %v1671 = vadd.f32 %v1652, %v1670
      %v1672 = vpop.f32.mrf.mxu0
      %v1673 = vadd.f32 %v1654, %v1672
      %1674 = vdwg.mxu0
      %1675 = vmatpush.bf16.msra.mxu0 %v1483
      %1676 = vmatpush.bf16.msra.mxu0 %v1482
      %1677 = vmatpush.bf16.msra.mxu0 %v1481
      %1678 = vmatpush.bf16.msra.mxu0 %v1480
      %1679 = vmatpush.bf16.msra.mxu0 %v1479
      %1680 = vmatpush.bf16.msra.mxu0 %v1478
      %1681 = vmatpush.bf16.msra.mxu0 %v1477
      %1682 = vmatpush.bf16.msra.mxu0 %v1476
      %1683 = vmatmul.bf16.gmra.mxu0 %v873
      %v1684 = vpop.f32.mrf.mxu0
      %v1685 = vadd.f32 %v1666, %v1684
      %v1686 = vpop.f32.mrf.mxu0
      %v1687 = vadd.f32 %v1668, %v1686
      %1688 = vmatmul.bf16.gmra.mxu0 %v874
      %v1689 = vpop.f32.mrf.mxu0
      %v1690 = vadd.f32 %v1671, %v1689
      %v1691 = vpop.f32.mrf.mxu0
      %v1692 = vadd.f32 %v1673, %v1691
      %1693 = vdwg.mxu0
      %1694 = vmatpush.bf16.msra.mxu0 %v1491
      %1695 = vmatpush.bf16.msra.mxu0 %v1490
      %1696 = vmatpush.bf16.msra.mxu0 %v1489
      %1697 = vmatpush.bf16.msra.mxu0 %v1488
      %1698 = vmatpush.bf16.msra.mxu0 %v1487
      %1699 = vmatpush.bf16.msra.mxu0 %v1486
      %1700 = vmatpush.bf16.msra.mxu0 %v1485
      %1701 = vmatpush.bf16.msra.mxu0 %v1484
      %1702 = vmatmul.bf16.gmra.mxu0 %v885
      %v1703 = vpop.f32.mrf.mxu0
      %v1704 = vadd.f32 %v1685, %v1703
      %v1705 = vpop.f32.mrf.mxu0
      %v1706 = vadd.f32 %v1687, %v1705
      %1707 = vmatmul.bf16.gmra.mxu0 %v886
      %v1708 = vpop.f32.mrf.mxu0
      %v1709 = vadd.f32 %v1690, %v1708
      %v1710 = vpop.f32.mrf.mxu0
      %v1711 = vadd.f32 %v1692, %v1710
      %1712 = vdwg.mxu0
      %1713 = vmatpush.bf16.msra.mxu0 %v1499
      %1714 = vmatpush.bf16.msra.mxu0 %v1498
      %1715 = vmatpush.bf16.msra.mxu0 %v1497
      %1716 = vmatpush.bf16.msra.mxu0 %v1496
      %1717 = vmatpush.bf16.msra.mxu0 %v1495
      %1718 = vmatpush.bf16.msra.mxu0 %v1494
      %1719 = vmatpush.bf16.msra.mxu0 %v1493
      %1720 = vmatpush.bf16.msra.mxu0 %v1492
      %1721 = vmatmul.bf16.gmra.mxu0 %v893
      %v1722 = vpop.f32.mrf.mxu0
      %v1723 = vadd.f32 %v1704, %v1722
      %v1724 = vpop.f32.mrf.mxu0
      %v1725 = vadd.f32 %v1706, %v1724
      %1726 = vmatmul.bf16.gmra.mxu0 %v894
      %v1727 = vpop.f32.mrf.mxu0
      %v1728 = vadd.f32 %v1709, %v1727
      %v1729 = vpop.f32.mrf.mxu0
      %v1730 = vadd.f32 %v1711, %v1729
      %1731 = vdwg.mxu0
      %1732 = vmatpush.bf16.msra.mxu0 %v1507
      %1733 = vmatpush.bf16.msra.mxu0 %v1506
      %1734 = vmatpush.bf16.msra.mxu0 %v1505
      %1735 = vmatpush.bf16.msra.mxu0 %v1504
      %1736 = vmatpush.bf16.msra.mxu0 %v1503
      %1737 = vmatpush.bf16.msra.mxu0 %v1502
      %1738 = vmatpush.bf16.msra.mxu0 %v1501
      %1739 = vmatpush.bf16.msra.mxu0 %v1500
      %1740 = vmatmul.bf16.gmra.mxu0 %v901
      %v1741 = vpop.f32.mrf.mxu0
      %v1742 = vadd.f32 %v1723, %v1741
      %v1743 = vpop.f32.mrf.mxu0
      %v1744 = vadd.f32 %v1725, %v1743
      %1745 = vmatmul.bf16.gmra.mxu0 %v902
      %v1746 = vpop.f32.mrf.mxu0
      %v1747 = vadd.f32 %v1728, %v1746
      %v1748 = vpop.f32.mrf.mxu0
      %v1749 = vadd.f32 %v1730, %v1748
      %1750 = vdwg.mxu0
      %v1751 = vpack.c.bf16 %v1742, %v1742
      %v1752 = vpack.c.bf16 %v1744, %v1744
      %v1753 = vpack.c.bf16 %v1747, %v1747
      %v1754 = vpack.c.bf16 %v1749, %v1749
      %vm1755 = vcmask 519168
      %1756 = vst.msk [vmem:[%s309] sm:$0xf] %vm1755, %v1751
      %1757 = vst.msk [vmem:[%s309 + $0x4] sm:$0xf] %vm1755, %v1752
      %1758 = vst.msk [vmem:[%s309 + $0x8] sm:$0xf] %vm1755, %v1753
      %1759 = vst.msk [vmem:[%s309 + $0xc] sm:$0xf] %vm1755, %v1754
      %s1760 = smul.u32 4, %s22
      %p1761 = scmp.lt.s32.totalorder %s21, 1
      %s1762 = scalar_select %p1761, %s21, 1
      %p1763 = scmp.lt.s32.totalorder %s1760, 7
      %s1764 = scalar_select %p1763, %s1760, 7
      %s1765 = smul.addr %s1762, 8
      %s1766 = sadd.s32 %s1764, %s1765
      %s1767 = smul.addr %s1766, 4
      %s1768 = scalar_lea.vmem %s6, %s1767
      // Predicated region
      $region49: #{_lambda_.25} parent=43 // pred_check
        %p1769 = pneg %p187
      $region50: #{_lambda_.25} parent=43 // pred_check_branch
        %1771 = sbr.rel (%p1769) target = $region52
      $region51: #{_lambda_.25} parent=43 // pred_region
        %s1772 = smul.u32 4, %s22
      $region52: #{_lambda_.25} parent=43 // pred_fallthru
        _
    $region44: #{_lambda_.25} parent=5 // pred_fallthru
      _
    %p1773 = scmp.le.s32.totalorder 2, %s12
    // Predicated region
    $region53: #{_lambda_.25} parent=5 // pred_check
      %p1774 = pneg %p1773
    $region54: #{_lambda_.25} parent=5 // pred_check_branch
      %1776 = sbr.rel (%p1774) target = $region56
    $region55: #{_lambda_.25} parent=5 // pred_region
      %s1777 = ssub.s32 %s12, 2
      // Predicated region
      $region57: #{_lambda_.25} parent=55 // pred_check
        %p1778 = pneg %p193
      $region58: #{_lambda_.25} parent=55 // pred_check_branch
        %1780 = sbr.rel (%p1778) target = $region60
      $region59: #{_lambda_.25} parent=55 // pred_region
        %s1781 = smul.u32 4, %s24
        %p1782 = scmp.lt.s32.totalorder %s23, 1
        %s1783 = scalar_select %p1782, %s23, 1
        %p1784 = scmp.lt.s32.totalorder %s1781, 7
        %s1785 = scalar_select %p1784, %s1781, 7
        %s1786 = smul.addr %s1783, 8
        %s1787 = sadd.s32 %s1785, %s1786
        %s1788 = smul.addr %s1787, 4
        %s1789 = scalar_lea.vmem %s6, %s1788
      $region60: #{_lambda_.25} parent=55 // pred_fallthru
        _
    $region56: #{_lambda_.25} parent=5 // pred_fallthru
      _
  $region6: #{_lambda_.25} parent=0 // loop_footer
    %s16 = sadd.s32 1, %s12
  $region7: #{_lambda_.25} parent=0 // loop_footer_branch
    %11 = sbr.rel target = $region3
  $region8: #{_lambda_.25} parent=0 // loop_exit
    _

// kernel: _lambda_.24
$region0: #{_lambda_.24}
  #allocation0 [shape = 'u32[]', space=smem, size = 0x4, offset = 0x4, fixed_abs, tag = 'smem constant byte address 0x4 - core index']
  #allocation1 [shape = 'u32[72,128]{1,0:T(1,128)}', space=vmem, size = 0x9000, scoped, tag = 'internal scratch']
  #allocation2 [shape = 'bf16[10,10,256]{2,1,0:T(8,128)(2,1)}', space=vmem, size = 0x14000, scoped, tag = 'scratch operand']
  %s0 = inlined_call_operand.vmem [shape: bf16[2,8,8,256], index: 0, kind: input, shape index: {}]
  %s1 = inlined_call_operand.vmem [shape: f32[1,256], index: 1, kind: input, shape index: {}]
  %s2 = inlined_call_operand.vmem [shape: f32[1,256], index: 2, kind: input, shape index: {}]
  %s3 = inlined_call_operand.vmem [shape: bf16[2304,64], index: 3, kind: input, shape index: {}]
  %s4 = inlined_call_operand.vmem [shape: bf16[2,8,8,64], index: 4, kind: output, shape index: {}]
  %s5 = sld [smem:[#allocation0]]
  $region53: #{_lambda_.24} parent=0
    _
  %s7 = ssub.s32 1, %s5
  %s8 = scalar_select 0, %s7, %s5
  loop: start=0, step=1, limit=6
  $region2: #{_lambda_.24} parent=0 // loop_pre_header
    _
  $region3: #{_lambda_.24} parent=0 // loop_header
    %s10 = sphi 0, %s14
    %p11 = scmp.ge.s32.totalorder %s10, 6
    %s17 = sphi 0, %s29
    %s18 = sphi 0, %s25
    %s19 = sphi 0, %s17
    %s20 = sphi 0, %s18
    %s21 = sphi 0, %s19
    %s22 = sphi 0, %s20
    %s32 = sphi 0, %s34
    %s35 = sphi 0, %s32
    %s36 = sphi 0, %s35
    %s52 = sphi 0, %s36
    %s56 = sphi 0, %s56
    %s58 = sphi 0, %s56
    %s59 = sphi 0, %s58
    %s73 = sphi 0, %s59
    %s77 = sphi 0, %s77
    %s79 = sphi 0, %s77
    %s80 = sphi 0, %s79
    %s94 = sphi 0, %s80
    %s98 = sphi 0, %s98
    %s100 = sphi 0, %s98
    %s101 = sphi 0, %s100
    %s115 = sphi 0, %s101
    %s123 = sphi 0, %s125
    %s126 = sphi 0, %s123
    %s127 = sphi 0, %s126
    %s143 = sphi 0, %s127
  $region4: #{_lambda_.24} parent=0 // loop_header_branch
    %13 = sbr.rel (%p11) target = $region8
  $region5: #{_lambda_.24} parent=0 // loop_body
    %s15 = ssub.s32 %s10, 1
    %s16 = ssub.s32 %s10, 2
    %s23 = sadd.s32 1, %s18
    %p24 = scmp.ge.s32.totalorder %s23, 2
    %s25 = scalar_select %p24, 0, %s23
    %s26 = sadd.s32 1, %s17
    %s27 = scalar_select %p24, %s26, %s17
    %p28 = scmp.ge.s32.totalorder %s27, 2
    %s29 = scalar_select %p28, 0, %s27
    %s30 = ssub.s32 %s17, %s29
    %p31 = scmp.eq.s32.totalorder %s30, 0
    %s33 = sadd.s32 %s32, 1
    %s34 = scalar_select %p31, %s32, %s33
    %p37 = pneg %p31
    %p38 = scmp.eq.s32.totalorder %s10, 3
    %p39 = por %p37, %p38
    %p40 = scmp.ne.s32.totalorder %s32, %s35
    %p41 = scmp.eq.s32.totalorder %s10, 0
    %p42 = por %p40, %p41
    %p43 = scmp.ne.s32.totalorder %s32, %s35
    %p44 = scmp.eq.s32.totalorder %s15, 3
    %p45 = por %p43, %p44
    %p46 = scmp.ne.s32.totalorder %s35, %s36
    %p47 = scmp.eq.s32.totalorder %s15, 0
    %p48 = por %p46, %p47
    %p49 = scmp.ne.s32.totalorder %s35, %s36
    %p50 = scmp.eq.s32.totalorder %s16, 3
    %p51 = por %p49, %p50
    %p53 = scmp.ne.s32.totalorder %s36, %s52
    %p54 = scmp.eq.s32.totalorder %s16, 0
    %p55 = por %p53, %p54
    %s57 = sadd.s32 %s56, 1
    %p60 = scmp.eq.s32.totalorder %s10, 3
    %p61 = scmp.ne.s32.totalorder %s56, %s58
    %p62 = scmp.eq.s32.totalorder %s10, 0
    %p63 = por %p61, %p62
    %p64 = scmp.ne.s32.totalorder %s56, %s58
    %p65 = scmp.eq.s32.totalorder %s15, 3
    %p66 = por %p64, %p65
    %p67 = scmp.ne.s32.totalorder %s58, %s59
    %p68 = scmp.eq.s32.totalorder %s15, 0
    %p69 = por %p67, %p68
    %p70 = scmp.ne.s32.totalorder %s58, %s59
    %p71 = scmp.eq.s32.totalorder %s16, 3
    %p72 = por %p70, %p71
    %p74 = scmp.ne.s32.totalorder %s59, %s73
    %p75 = scmp.eq.s32.totalorder %s16, 0
    %p76 = por %p74, %p75
    %s78 = sadd.s32 %s77, 1
    %p81 = scmp.eq.s32.totalorder %s10, 3
    %p82 = scmp.ne.s32.totalorder %s77, %s79
    %p83 = scmp.eq.s32.totalorder %s10, 0
    %p84 = por %p82, %p83
    %p85 = scmp.ne.s32.totalorder %s77, %s79
    %p86 = scmp.eq.s32.totalorder %s15, 3
    %p87 = por %p85, %p86
    %p88 = scmp.ne.s32.totalorder %s79, %s80
    %p89 = scmp.eq.s32.totalorder %s15, 0
    %p90 = por %p88, %p89
    %p91 = scmp.ne.s32.totalorder %s79, %s80
    %p92 = scmp.eq.s32.totalorder %s16, 3
    %p93 = por %p91, %p92
    %p95 = scmp.ne.s32.totalorder %s80, %s94
    %p96 = scmp.eq.s32.totalorder %s16, 0
    %p97 = por %p95, %p96
    %s99 = sadd.s32 %s98, 1
    %p102 = scmp.eq.s32.totalorder %s10, 3
    %p103 = scmp.ne.s32.totalorder %s98, %s100
    %p104 = scmp.eq.s32.totalorder %s10, 0
    %p105 = por %p103, %p104
    %p106 = scmp.ne.s32.totalorder %s98, %s100
    %p107 = scmp.eq.s32.totalorder %s15, 3
    %p108 = por %p106, %p107
    %p109 = scmp.ne.s32.totalorder %s100, %s101
    %p110 = scmp.eq.s32.totalorder %s15, 0
    %p111 = por %p109, %p110
    %p112 = scmp.ne.s32.totalorder %s100, %s101
    %p113 = scmp.eq.s32.totalorder %s16, 3
    %p114 = por %p112, %p113
    %p116 = scmp.ne.s32.totalorder %s101, %s115
    %p117 = scmp.eq.s32.totalorder %s16, 0
    %p118 = por %p116, %p117
    %s119 = ssub.s32 %s17, %s29
    %s120 = ssub.s32 %s18, %s25
    %s121 = sor.u32 %s119, %s120
    %p122 = scmp.eq.s32.totalorder %s121, 0
    %s124 = sadd.s32 %s123, 1
    %s125 = scalar_select %p122, %s123, %s124
    %p128 = pneg %p122
    %p129 = scmp.eq.s32.totalorder %s10, 3
    %p130 = por %p128, %p129
    %p131 = scmp.ne.s32.totalorder %s123, %s126
    %p132 = scmp.eq.s32.totalorder %s10, 0
    %p133 = por %p131, %p132
    %p134 = scmp.ne.s32.totalorder %s123, %s126
    %p135 = scmp.eq.s32.totalorder %s15, 3
    %p136 = por %p134, %p135
    %p137 = scmp.ne.s32.totalorder %s126, %s127
    %p138 = scmp.eq.s32.totalorder %s15, 0
    %p139 = por %p137, %p138
    %p140 = scmp.ne.s32.totalorder %s126, %s127
    %p141 = scmp.eq.s32.totalorder %s16, 3
    %p142 = por %p140, %p141
    %p144 = scmp.ne.s32.totalorder %s127, %s143
    %p145 = scmp.eq.s32.totalorder %s16, 0
    %p146 = por %p144, %p145
    %p147 = scmp.le.s32.totalorder 1, %s10
    %p148 = scmp.lt.s32.totalorder %s10, 5
    %p149 = pnand %p147, %p148
    %p150 = pneg %p149
    // Predicated region
    $region9: #{_lambda_.24} parent=5 // pred_check
      _
    $region10: #{_lambda_.24} parent=5 // pred_check_branch
      %152 = sbr.rel (%p149) target = $region12
    $region11: #{_lambda_.24} parent=5 // pred_region
      %s153 = ssub.s32 %s10, 1
      // Predicated region
      $region13: #{_lambda_.24} parent=11 // pred_check
        %p154 = pneg %p69
      $region14: #{_lambda_.24} parent=11 // pred_check_branch
        %156 = sbr.rel (%p154) target = $region16
      $region15: #{_lambda_.24} parent=11 // pred_region
        _
      $region16: #{_lambda_.24} parent=11 // pred_fallthru
        _
      // Predicated region
      $region17: #{_lambda_.24} parent=11 // pred_check
        %p157 = pneg %p90
      $region18: #{_lambda_.24} parent=11 // pred_check_branch
        %159 = sbr.rel (%p157) target = $region20
      $region19: #{_lambda_.24} parent=11 // pred_region
        _
      $region20: #{_lambda_.24} parent=11 // pred_fallthru
        _
      // Predicated region
      $region21: #{_lambda_.24} parent=11 // pred_check
        %p160 = pneg %p111
      $region22: #{_lambda_.24} parent=11 // pred_check_branch
        %162 = sbr.rel (%p160) target = $region24
      $region23: #{_lambda_.24} parent=11 // pred_region
        _
      $region24: #{_lambda_.24} parent=11 // pred_fallthru
        _
    $region12: #{_lambda_.24} parent=5 // pred_fallthru
      _
    %p163 = scmp.lt.s32.totalorder %s10, 4
    // Predicated region
    $region25: #{_lambda_.24} parent=5 // pred_check
      %p164 = pneg %p163
    $region26: #{_lambda_.24} parent=5 // pred_check_branch
      %166 = sbr.rel (%p164) target = $region28
    $region27: #{_lambda_.24} parent=5 // pred_region
      // Predicated region
      $region29: #{_lambda_.24} parent=27 // pred_check
        %p167 = pneg %p42
      $region30: #{_lambda_.24} parent=27 // pred_check_branch
        %169 = sbr.rel (%p167) target = $region32
      $region31: #{_lambda_.24} parent=27 // pred_region
        %p170 = scmp.lt.s32.totalorder %s17, 1
        %s171 = scalar_select %p170, %s17, 1
        %s172 = smul.addr %s171, 16
        %s173 = smul.addr %s172, 4
        %s174 = scalar_lea.vmem %s0, %s173
      $region32: #{_lambda_.24} parent=27 // pred_fallthru
        _
    $region28: #{_lambda_.24} parent=5 // pred_fallthru
      _
    %p175 = scmp.le.s32.totalorder 1, %s10
    %p176 = scmp.lt.s32.totalorder %s10, 5
    %p177 = pnand %p175, %p176
    %p178 = pneg %p177
    // Predicated region
    $region33: #{_lambda_.24} parent=5 // pred_check
      _
    $region34: #{_lambda_.24} parent=5 // pred_check_branch
      %180 = sbr.rel (%p177) target = $region36
    $region35: #{_lambda_.24} parent=5 // pred_region
      %s181 = ssub.s32 %s10, 1
      %p182 = scmp.lt.s32.totalorder %s19, 1
      %s183 = scalar_select %p182, %s19, 1
      %s184 = smul.addr %s183, 16
      %s185 = smul.addr %s184, 4
      %s186 = scalar_lea.vmem %s0, %s185
      %p187 = pneg %p48
      %p188 = pneg %p45
      %p189 = pneg %p69
      %p190 = pneg %p66
      %p191 = pneg %p90
      %p192 = pneg %p87
      %p193 = pneg %p111
      %p194 = pneg %p108
      %p195 = pneg %p139
      %p196 = pneg %p136
      %s197 = smul.u32 4, %s20
      %p198 = scmp.lt.s32.totalorder %s19, 1
      %s199 = scalar_select %p198, %s19, 1
      %p200 = scmp.lt.s32.totalorder %s197, 7
      %s201 = scalar_select %p200, %s197, 7
      %s202 = smul.addr %s199, 8
      %s203 = sadd.s32 %s201, %s202
      %s204 = smul.addr %s203, 4
      %s205 = scalar_lea.vmem %s4, %s204
      %p206 = scmp.lt.s32.totalorder %s19, 1
      %s207 = scalar_select %p206, %s19, 1
      %s208 = smul.addr %s207, 16
      %s209 = smul.addr %s208, 4
      %s210 = scalar_lea.vmem %s0, %s209
      %s211 = smul.u32 4, %s20
      %p212 = scmp.lt.s32.totalorder %s19, 1
      %s213 = scalar_select %p212, %s19, 1
      %p214 = scmp.lt.s32.totalorder %s211, 7
      %s215 = scalar_select %p214, %s211, 7
      %s216 = smul.addr %s213, 8
      %s217 = sadd.s32 %s215, %s216
      %s218 = smul.addr %s217, 4
      %s219 = scalar_lea.vmem %s4, %s218
      %s220 = smul.u32 4, %s20
      %p222 = scmp.eq.s32.totalorder %s20, 0
      // Predicated region
      $region37: #{_lambda_.24} parent=35 // pred_check
        %p223 = pneg %p222
      $region38: #{_lambda_.24} parent=35 // pred_check_branch
        %225 = sbr.rel (%p223) target = $region40
      $region39: #{_lambda_.24} parent=35 // pred_region
        %226 = vst [vmem:[#allocation2] sm:$0xff] 0
        %227 = vst [vmem:[#allocation2 + $0x8] sm:$0x11] 0
        %228 = vst [vmem:[#allocation2 + $0x10] sm:$0xff] 0
        %229 = vst [vmem:[#allocation2 + $0x18] sm:$0x11] 0
        %230 = vst [vmem:[#allocation2 + $0x20] sm:$0xff] 0
        %231 = vst [vmem:[#allocation2 + $0x28] sm:$0x11] 0
        %232 = vst [vmem:[#allocation2 + $0x30] sm:$0xff] 0
        %233 = vst [vmem:[#allocation2 + $0x38] sm:$0x11] 0
        %234 = vst [vmem:[#allocation2 + $0x40] sm:$0xff] 0
        %235 = vst [vmem:[#allocation2 + $0x48] sm:$0x11] 0
        %236 = vst [vmem:[#allocation2 + $0x50] sm:$0xff] 0
        %237 = vst [vmem:[#allocation2 + $0x58] sm:$0x11] 0
        %238 = vst [vmem:[#allocation2 + $0x60] sm:$0xff] 0
        %239 = vst [vmem:[#allocation2 + $0x68] sm:$0x11] 0
        %240 = vst [vmem:[#allocation2 + $0x70] sm:$0xff] 0
        %241 = vst [vmem:[#allocation2 + $0x78] sm:$0x11] 0
        %242 = vst [vmem:[#allocation2 + $0x80] sm:$0xff] 0
        %243 = vst [vmem:[#allocation2 + $0x88] sm:$0x11] 0
        %244 = vst [vmem:[#allocation2 + $0x90] sm:$0xff] 0
        %245 = vst [vmem:[#allocation2 + $0x98] sm:$0x11] 0
        %v246 = vld [vmem:[%s210] sm:$0xff]
        %v247 = vld [vmem:[%s210 + $0x8] sm:$0xff]
        %v248 = vld [vmem:[%s210 + $0x10] sm:$0xff]
        %v249 = vld [vmem:[%s210 + $0x18] sm:$0xff]
        %v250 = vld [vmem:[%s210 + $0x20] sm:$0xff]
        %v251 = vld [vmem:[%s210 + $0x28] sm:$0xff]
        %v252 = vld [vmem:[%s210 + $0x30] sm:$0xff]
        %v253 = vld [vmem:[%s210 + $0x38] sm:$0xff]
        %v254 = vunpack.c.l.bf16 %v246
        %v255 = vunpack.c.h.bf16 %v246
        %v256 = vunpack.c.l.bf16 %v247
        %v257 = vunpack.c.h.bf16 %v247
        %v258 = vunpack.c.l.bf16 %v248
        %v259 = vunpack.c.h.bf16 %v248
        %v260 = vunpack.c.l.bf16 %v249
        %v261 = vunpack.c.h.bf16 %v249
        %v262 = vunpack.c.l.bf16 %v250
        %v263 = vunpack.c.h.bf16 %v250
        %v264 = vunpack.c.l.bf16 %v251
        %v265 = vunpack.c.h.bf16 %v251
        %v266 = vunpack.c.l.bf16 %v252
        %v267 = vunpack.c.h.bf16 %v252
        %v268 = vunpack.c.l.bf16 %v253
        %v269 = vunpack.c.h.bf16 %v253
        %v270 = vld [vmem:[%s1] sm:$0x3]
        %v272 = vperm.slane %v270, 0
        %v273 = vperm.slane %v270, 1
        %v276 = vmul.f32 %v254, %v272
        %v277 = vmul.f32 %v255, %v273
        %v278 = vmul.f32 %v256, %v272
        %v279 = vmul.f32 %v257, %v273
        %v280 = vmul.f32 %v258, %v272
        %v281 = vmul.f32 %v259, %v273
        %v282 = vmul.f32 %v260, %v272
        %v283 = vmul.f32 %v261, %v273
        %v284 = vmul.f32 %v262, %v272
        %v285 = vmul.f32 %v263, %v273
        %v286 = vmul.f32 %v264, %v272
        %v287 = vmul.f32 %v265, %v273
        %v288 = vmul.f32 %v266, %v272
        %v289 = vmul.f32 %v267, %v273
        %v290 = vmul.f32 %v268, %v272
        %v291 = vmul.f32 %v269, %v273
        %v292 = vld [vmem:[%s2] sm:$0x3]
        %v294 = vperm.slane %v292, 0
        %v295 = vperm.slane %v292, 1
        %v298 = vadd.f32 %v276, %v294
        %v299 = vadd.f32 %v277, %v295
        %v300 = vadd.f32 %v278, %v294
        %v301 = vadd.f32 %v279, %v295
        %v302 = vadd.f32 %v280, %v294
        %v303 = vadd.f32 %v281, %v295
        %v304 = vadd.f32 %v282, %v294
        %v305 = vadd.f32 %v283, %v295
        %v306 = vadd.f32 %v284, %v294
        %v307 = vadd.f32 %v285, %v295
        %v308 = vadd.f32 %v286, %v294
        %v309 = vadd.f32 %v287, %v295
        %v310 = vadd.f32 %v288, %v294
        %v311 = vadd.f32 %v289, %v295
        %v312 = vadd.f32 %v290, %v294
        %v313 = vadd.f32 %v291, %v295
        %v314 = vmax.f32 %v298, 0.0
        %v315 = vmax.f32 %v299, 0.0
        %v316 = vmax.f32 %v300, 0.0
        %v317 = vmax.f32 %v301, 0.0
        %v318 = vmax.f32 %v302, 0.0
        %v319 = vmax.f32 %v303, 0.0
        %v320 = vmax.f32 %v304, 0.0
        %v321 = vmax.f32 %v305, 0.0
        %v322 = vmax.f32 %v306, 0.0
        %v323 = vmax.f32 %v307, 0.0
        %v324 = vmax.f32 %v308, 0.0
        %v325 = vmax.f32 %v309, 0.0
        %v326 = vmax.f32 %v310, 0.0
        %v327 = vmax.f32 %v311, 0.0
        %v328 = vmax.f32 %v312, 0.0
        %v329 = vmax.f32 %v313, 0.0
        %v330 = vpack.c.bf16 %v315, %v314
        %v331 = vpack.c.bf16 %v317, %v316
        %v332 = vpack.c.bf16 %v319, %v318
        %v333 = vpack.c.bf16 %v321, %v320
        %v334 = vpack.c.bf16 %v323, %v322
        %v335 = vpack.c.bf16 %v325, %v324
        %v336 = vpack.c.bf16 %v327, %v326
        %v337 = vpack.c.bf16 %v329, %v328
        %v339 = vshrl.u32 %v330, 16
        %v341 = vrot.slane %v339, 7
        %v342 = vshll.u32 %v330, 16
        %v344 = vor.u32 %v341, %v342
        %v345 = vrot.slane %v341, 4
        %v347 = vshrl.u32 %v331, 16
        %v349 = vrot.slane %v347, 7
        %v350 = vshll.u32 %v331, 16
        %v352 = vor.u32 %v349, %v350
        %v353 = vrot.slane %v349, 4
        %v355 = vshrl.u32 %v332, 16
        %v357 = vrot.slane %v355, 7
        %v358 = vshll.u32 %v332, 16
        %v360 = vor.u32 %v357, %v358
        %v361 = vrot.slane %v357, 4
        %v363 = vshrl.u32 %v333, 16
        %v365 = vrot.slane %v363, 7
        %v366 = vshll.u32 %v333, 16
        %v368 = vor.u32 %v365, %v366
        %v369 = vrot.slane %v365, 4
        %v371 = vshrl.u32 %v334, 16
        %v373 = vrot.slane %v371, 7
        %v374 = vshll.u32 %v334, 16
        %v376 = vor.u32 %v373, %v374
        %v377 = vrot.slane %v373, 4
        %v379 = vshrl.u32 %v335, 16
        %v381 = vrot.slane %v379, 7
        %v382 = vshll.u32 %v335, 16
        %v384 = vor.u32 %v381, %v382
        %v385 = vrot.slane %v381, 4
        %v387 = vshrl.u32 %v336, 16
        %v389 = vrot.slane %v387, 7
        %v390 = vshll.u32 %v336, 16
        %v392 = vor.u32 %v389, %v390
        %v393 = vrot.slane %v389, 4
        %v395 = vshrl.u32 %v337, 16
        %v397 = vrot.slane %v395, 7
        %v398 = vshll.u32 %v337, 16
        %v400 = vor.u32 %v397, %v398
        %v401 = vrot.slane %v397, 4
        %s418 = scalar_lea.vmem [#allocation2], 16
        %vm419 = vcmask 1043456
        %vm420 = vsmask.f32 7938
        %vm421 = vmand %vm419, %vm420
        %vm422 = vcmask 1047556
        %vm423 = vsmask.f32 7954
        %vm424 = vmand %vm422, %vm423
        %vm425 = vmor %vm424, %vm421
        %v426 = vld [vmem:[%s418] sm:$0xff]
        %v427 = vsel %vm425, %v344, %v426
        %428 = vst [vmem:[%s418] sm:$0xff] %v427
        %vm429 = vcmask 1040384
        %vm430 = vsmask.f32 256
        %vm431 = vmand %vm429, %vm430
        %vm432 = vcmask 1044484
        %vm433 = vsmask.f32 4352
        %vm434 = vmand %vm432, %vm433
        %vm435 = vmor %vm434, %vm431
        %v436 = vld [vmem:[%s418 + $0x8] sm:$0x11]
        %v437 = vsel %vm435, %v345, %v436
        %438 = vst [vmem:[%s418 + $0x8] sm:$0x11] %v437
        %v439 = vld [vmem:[%s418 + $0x10] sm:$0xff]
        %v440 = vsel %vm425, %v352, %v439
        %441 = vst [vmem:[%s418 + $0x10] sm:$0xff] %v440
        %v442 = vld [vmem:[%s418 + $0x18] sm:$0x11]
        %v443 = vsel %vm435, %v353, %v442
        %444 = vst [vmem:[%s418 + $0x18] sm:$0x11] %v443
        %v445 = vld [vmem:[%s418 + $0x20] sm:$0xff]
        %v446 = vsel %vm425, %v360, %v445
        %447 = vst [vmem:[%s418 + $0x20] sm:$0xff] %v446
        %v448 = vld [vmem:[%s418 + $0x28] sm:$0x11]
        %v449 = vsel %vm435, %v361, %v448
        %450 = vst [vmem:[%s418 + $0x28] sm:$0x11] %v449
        %v451 = vld [vmem:[%s418 + $0x30] sm:$0xff]
        %v452 = vsel %vm425, %v368, %v451
        %453 = vst [vmem:[%s418 + $0x30] sm:$0xff] %v452
        %v454 = vld [vmem:[%s418 + $0x38] sm:$0x11]
        %v455 = vsel %vm435, %v369, %v454
        %456 = vst [vmem:[%s418 + $0x38] sm:$0x11] %v455
        %v457 = vld [vmem:[%s418 + $0x40] sm:$0xff]
        %v458 = vsel %vm425, %v376, %v457
        %459 = vst [vmem:[%s418 + $0x40] sm:$0xff] %v458
        %v460 = vld [vmem:[%s418 + $0x48] sm:$0x11]
        %v461 = vsel %vm435, %v377, %v460
        %462 = vst [vmem:[%s418 + $0x48] sm:$0x11] %v461
        %v463 = vld [vmem:[%s418 + $0x50] sm:$0xff]
        %v464 = vsel %vm425, %v384, %v463
        %465 = vst [vmem:[%s418 + $0x50] sm:$0xff] %v464
        %v466 = vld [vmem:[%s418 + $0x58] sm:$0x11]
        %v467 = vsel %vm435, %v385, %v466
        %468 = vst [vmem:[%s418 + $0x58] sm:$0x11] %v467
        %v469 = vld [vmem:[%s418 + $0x60] sm:$0xff]
        %v470 = vsel %vm425, %v392, %v469
        %471 = vst [vmem:[%s418 + $0x60] sm:$0xff] %v470
        %v472 = vld [vmem:[%s418 + $0x68] sm:$0x11]
        %v473 = vsel %vm435, %v393, %v472
        %474 = vst [vmem:[%s418 + $0x68] sm:$0x11] %v473
        %v475 = vld [vmem:[%s418 + $0x70] sm:$0xff]
        %v476 = vsel %vm425, %v400, %v475
        %477 = vst [vmem:[%s418 + $0x70] sm:$0xff] %v476
        %v478 = vld [vmem:[%s418 + $0x78] sm:$0x11]
        %v479 = vsel %vm435, %v401, %v478
        %480 = vst [vmem:[%s418 + $0x78] sm:$0x11] %v479
      $region40: #{_lambda_.24} parent=35 // pred_fallthru
        _
      %s481 = smul.u32 %s20, 4
      %s482 = smul.u32 %s481, 4
      %s483 = smul.addr %s482, 4
      %s484 = scalar_lea.vmem [#allocation2], %s483
      %v485 = vld [vmem:[%s484] sm:$0xff]
      %v486 = vld [vmem:[%s484 + $0x10] sm:$0xff]
      %v487 = vld [vmem:[%s484 + $0x20] sm:$0xff]
      %v488 = vld [vmem:[%s484 + $0x30] sm:$0xff]
      %v489 = vld [vmem:[%s484 + $0x8] sm:$0x11]
      %v490 = vld [vmem:[%s484 + $0x18] sm:$0x11]
      %v491 = vld [vmem:[%s484 + $0x28] sm:$0x11]
      %v492 = vld [vmem:[%s484 + $0x38] sm:$0x11]
      %vm493 = vsmask.f32 3328
      %vm494 = vsmask.f32 7440
      %vm495 = vmor %vm493, %vm494
      %v497 = vshrl.u32 %v485, 16
      %v499 = vrot.slane %v497, 4
      %v500 = vshll.u32 %v485, 16
      %v502 = vrot.slane %v500, 5
      %v503 = vor.u32 %v499, %v502
      %v504 = vrot.slane %v503, 4
      %v506 = vshll.u32 %v489, 16
      %v508 = vrot.slane %v506, 5
      %v509 = vsel %vm495, %v504, %v508
      %v511 = vshrl.u32 %v486, 16
      %v513 = vrot.slane %v511, 4
      %v514 = vshll.u32 %v486, 16
      %v516 = vrot.slane %v514, 5
      %v517 = vor.u32 %v513, %v516
      %v518 = vrot.slane %v517, 4
      %v520 = vshll.u32 %v490, 16
      %v522 = vrot.slane %v520, 5
      %v523 = vsel %vm495, %v518, %v522
      %v525 = vshrl.u32 %v487, 16
      %v527 = vrot.slane %v525, 4
      %v528 = vshll.u32 %v487, 16
      %v530 = vrot.slane %v528, 5
      %v531 = vor.u32 %v527, %v530
      %v532 = vrot.slane %v531, 4
      %v534 = vshll.u32 %v491, 16
      %v536 = vrot.slane %v534, 5
      %v537 = vsel %vm495, %v532, %v536
      %v539 = vshrl.u32 %v488, 16
      %v541 = vrot.slane %v539, 4
      %v542 = vshll.u32 %v488, 16
      %v544 = vrot.slane %v542, 5
      %v545 = vor.u32 %v541, %v544
      %v546 = vrot.slane %v545, 4
      %v548 = vshll.u32 %v492, 16
      %v550 = vrot.slane %v548, 5
      %v551 = vsel %vm495, %v546, %v550
      %v552 = vld [vmem:[%s484] sm:$0xee]
      %v553 = vld [vmem:[%s484 + $0x10] sm:$0xee]
      %v554 = vld [vmem:[%s484 + $0x20] sm:$0xee]
      %v555 = vld [vmem:[%s484 + $0x30] sm:$0xee]
      %vm564 = vcmask 1042432
      %vm565 = vcmask 1046532
      %vm566 = vmor %vm564, %vm565
      %v567 = vrot.slane %v552, 5
      %v568 = vrot.slane %v567, 4
      %v569 = vrot.slane %v489, 5
      %v570 = vsel %vm566, %v568, %v569
      %v571 = vrot.slane %v553, 5
      %v572 = vrot.slane %v571, 4
      %v573 = vrot.slane %v490, 5
      %v574 = vsel %vm566, %v572, %v573
      %v575 = vrot.slane %v554, 5
      %v576 = vrot.slane %v575, 4
      %v577 = vrot.slane %v491, 5
      %v578 = vsel %vm566, %v576, %v577
      %v579 = vrot.slane %v555, 5
      %v580 = vrot.slane %v579, 4
      %v581 = vrot.slane %v492, 5
      %v582 = vsel %vm566, %v580, %v581
      %s583 = sadd.s32 %s481, 1
      %s584 = smul.u32 %s583, 4
      %s585 = smul.addr %s584, 4
      %s586 = scalar_lea.vmem [#allocation2], %s585
      %v587 = vld [vmem:[%s586] sm:$0xff]
      %v588 = vld [vmem:[%s586 + $0x10] sm:$0xff]
      %v589 = vld [vmem:[%s586 + $0x20] sm:$0xff]
      %v590 = vld [vmem:[%s586 + $0x30] sm:$0xff]
      %v591 = vld [vmem:[%s586 + $0x8] sm:$0x11]
      %v592 = vld [vmem:[%s586 + $0x18] sm:$0x11]
      %v593 = vld [vmem:[%s586 + $0x28] sm:$0x11]
      %v594 = vld [vmem:[%s586 + $0x38] sm:$0x11]
      %v596 = vshrl.u32 %v587, 16
      %v598 = vrot.slane %v596, 4
      %v599 = vshll.u32 %v587, 16
      %v601 = vrot.slane %v599, 5
      %v602 = vor.u32 %v598, %v601
      %v603 = vrot.slane %v602, 4
      %v605 = vshll.u32 %v591, 16
      %v607 = vrot.slane %v605, 5
      %v608 = vsel %vm495, %v603, %v607
      %v610 = vshrl.u32 %v588, 16
      %v612 = vrot.slane %v610, 4
      %v613 = vshll.u32 %v588, 16
      %v615 = vrot.slane %v613, 5
      %v616 = vor.u32 %v612, %v615
      %v617 = vrot.slane %v616, 4
      %v619 = vshll.u32 %v592, 16
      %v621 = vrot.slane %v619, 5
      %v622 = vsel %vm495, %v617, %v621
      %v624 = vshrl.u32 %v589, 16
      %v626 = vrot.slane %v624, 4
      %v627 = vshll.u32 %v589, 16
      %v629 = vrot.slane %v627, 5
      %v630 = vor.u32 %v626, %v629
      %v631 = vrot.slane %v630, 4
      %v633 = vshll.u32 %v593, 16
      %v635 = vrot.slane %v633, 5
      %v636 = vsel %vm495, %v631, %v635
      %v638 = vshrl.u32 %v590, 16
      %v640 = vrot.slane %v638, 4
      %v641 = vshll.u32 %v590, 16
      %v643 = vrot.slane %v641, 5
      %v644 = vor.u32 %v640, %v643
      %v645 = vrot.slane %v644, 4
      %v647 = vshll.u32 %v594, 16
      %v649 = vrot.slane %v647, 5
      %v650 = vsel %vm495, %v645, %v649
      %v651 = vld [vmem:[%s586] sm:$0xee]
      %v652 = vld [vmem:[%s586 + $0x10] sm:$0xee]
      %v653 = vld [vmem:[%s586 + $0x20] sm:$0xee]
      %v654 = vld [vmem:[%s586 + $0x30] sm:$0xee]
      %v663 = vrot.slane %v651, 5
      %v664 = vrot.slane %v663, 4
      %v665 = vrot.slane %v591, 5
      %v666 = vsel %vm566, %v664, %v665
      %v667 = vrot.slane %v652, 5
      %v668 = vrot.slane %v667, 4
      %v669 = vrot.slane %v592, 5
      %v670 = vsel %vm566, %v668, %v669
      %v671 = vrot.slane %v653, 5
      %v672 = vrot.slane %v671, 4
      %v673 = vrot.slane %v593, 5
      %v674 = vsel %vm566, %v672, %v673
      %v675 = vrot.slane %v654, 5
      %v676 = vrot.slane %v675, 4
      %v677 = vrot.slane %v594, 5
      %v678 = vsel %vm566, %v676, %v677
      %s679 = sadd.s32 %s481, 2
      %s680 = smul.u32 %s679, 4
      %s681 = smul.addr %s680, 4
      %s682 = scalar_lea.vmem [#allocation2], %s681
      %v683 = vld [vmem:[%s682] sm:$0xff]
      %v684 = vld [vmem:[%s682 + $0x10] sm:$0xff]
      %v685 = vld [vmem:[%s682 + $0x20] sm:$0xff]
      %v686 = vld [vmem:[%s682 + $0x30] sm:$0xff]
      %v687 = vld [vmem:[%s682 + $0x8] sm:$0x11]
      %v688 = vld [vmem:[%s682 + $0x18] sm:$0x11]
      %v689 = vld [vmem:[%s682 + $0x28] sm:$0x11]
      %v690 = vld [vmem:[%s682 + $0x38] sm:$0x11]
      %v692 = vshrl.u32 %v683, 16
      %v694 = vrot.slane %v692, 4
      %v695 = vshll.u32 %v683, 16
      %v697 = vrot.slane %v695, 5
      %v698 = vor.u32 %v694, %v697
      %v699 = vrot.slane %v698, 4
      %v701 = vshll.u32 %v687, 16
      %v703 = vrot.slane %v701, 5
      %v704 = vsel %vm495, %v699, %v703
      %v706 = vshrl.u32 %v684, 16
      %v708 = vrot.slane %v706, 4
      %v709 = vshll.u32 %v684, 16
      %v711 = vrot.slane %v709, 5
      %v712 = vor.u32 %v708, %v711
      %v713 = vrot.slane %v712, 4
      %v715 = vshll.u32 %v688, 16
      %v717 = vrot.slane %v715, 5
      %v718 = vsel %vm495, %v713, %v717
      %v720 = vshrl.u32 %v685, 16
      %v722 = vrot.slane %v720, 4
      %v723 = vshll.u32 %v685, 16
      %v725 = vrot.slane %v723, 5
      %v726 = vor.u32 %v722, %v725
      %v727 = vrot.slane %v726, 4
      %v729 = vshll.u32 %v689, 16
      %v731 = vrot.slane %v729, 5
      %v732 = vsel %vm495, %v727, %v731
      %v734 = vshrl.u32 %v686, 16
      %v736 = vrot.slane %v734, 4
      %v737 = vshll.u32 %v686, 16
      %v739 = vrot.slane %v737, 5
      %v740 = vor.u32 %v736, %v739
      %v741 = vrot.slane %v740, 4
      %v743 = vshll.u32 %v690, 16
      %v745 = vrot.slane %v743, 5
      %v746 = vsel %vm495, %v741, %v745
      %v747 = vld [vmem:[%s682] sm:$0xee]
      %v748 = vld [vmem:[%s682 + $0x10] sm:$0xee]
      %v749 = vld [vmem:[%s682 + $0x20] sm:$0xee]
      %v750 = vld [vmem:[%s682 + $0x30] sm:$0xee]
      %v759 = vrot.slane %v747, 5
      %v760 = vrot.slane %v759, 4
      %v761 = vrot.slane %v687, 5
      %v762 = vsel %vm566, %v760, %v761
      %v763 = vrot.slane %v748, 5
      %v764 = vrot.slane %v763, 4
      %v765 = vrot.slane %v688, 5
      %v766 = vsel %vm566, %v764, %v765
      %v767 = vrot.slane %v749, 5
      %v768 = vrot.slane %v767, 4
      %v769 = vrot.slane %v689, 5
      %v770 = vsel %vm566, %v768, %v769
      %v771 = vrot.slane %v750, 5
      %v772 = vrot.slane %v771, 4
      %v773 = vrot.slane %v690, 5
      %v774 = vsel %vm566, %v772, %v773
      %v779 = vunpack.c.l.b16 %v485
      %v780 = vunpack.c.h.b16 %v485
      %v781 = vunpack.c.l.b16 %v486
      %v782 = vunpack.c.h.b16 %v486
      %v783 = vunpack.c.l.b16 %v487
      %v784 = vunpack.c.h.b16 %v487
      %v785 = vunpack.c.l.b16 %v488
      %v786 = vunpack.c.h.b16 %v488
      %v787 = vpack.c.b16 %v781, %v779
      %v788 = vpack.c.b16 %v782, %v780
      %v789 = vpack.c.b16 %v785, %v783
      %v790 = vpack.c.b16 %v786, %v784
      %v795 = vunpack.c.l.b16 %v509
      %v796 = vunpack.c.h.b16 %v509
      %v797 = vunpack.c.l.b16 %v523
      %v798 = vunpack.c.h.b16 %v523
      %v799 = vunpack.c.l.b16 %v537
      %v800 = vunpack.c.h.b16 %v537
      %v801 = vunpack.c.l.b16 %v551
      %v802 = vunpack.c.h.b16 %v551
      %v803 = vpack.c.b16 %v797, %v795
      %v804 = vpack.c.b16 %v798, %v796
      %v805 = vpack.c.b16 %v801, %v799
      %v806 = vpack.c.b16 %v802, %v800
      %v811 = vunpack.c.l.b16 %v570
      %v812 = vunpack.c.h.b16 %v570
      %v813 = vunpack.c.l.b16 %v574
      %v814 = vunpack.c.h.b16 %v574
      %v815 = vunpack.c.l.b16 %v578
      %v816 = vunpack.c.h.b16 %v578
      %v817 = vunpack.c.l.b16 %v582
      %v818 = vunpack.c.h.b16 %v582
      %v819 = vpack.c.b16 %v813, %v811
      %v820 = vpack.c.b16 %v814, %v812
      %v821 = vpack.c.b16 %v817, %v815
      %v822 = vpack.c.b16 %v818, %v816
      %v831 = vunpack.c.l.b16 %v587
      %v832 = vunpack.c.h.b16 %v587
      %v833 = vunpack.c.l.b16 %v588
      %v834 = vunpack.c.h.b16 %v588
      %v835 = vunpack.c.l.b16 %v589
      %v836 = vunpack.c.h.b16 %v589
      %v837 = vunpack.c.l.b16 %v590
      %v838 = vunpack.c.h.b16 %v590
      %v839 = vpack.c.b16 %v833, %v831
      %v840 = vpack.c.b16 %v834, %v832
      %v841 = vpack.c.b16 %v837, %v835
      %v842 = vpack.c.b16 %v838, %v836
      %v847 = vunpack.c.l.b16 %v608
      %v848 = vunpack.c.h.b16 %v608
      %v849 = vunpack.c.l.b16 %v622
      %v850 = vunpack.c.h.b16 %v622
      %v851 = vunpack.c.l.b16 %v636
      %v852 = vunpack.c.h.b16 %v636
      %v853 = vunpack.c.l.b16 %v650
      %v854 = vunpack.c.h.b16 %v650
      %v855 = vpack.c.b16 %v849, %v847
      %v856 = vpack.c.b16 %v850, %v848
      %v857 = vpack.c.b16 %v853, %v851
      %v858 = vpack.c.b16 %v854, %v852
      %v863 = vunpack.c.l.b16 %v666
      %v864 = vunpack.c.h.b16 %v666
      %v865 = vunpack.c.l.b16 %v670
      %v866 = vunpack.c.h.b16 %v670
      %v867 = vunpack.c.l.b16 %v674
      %v868 = vunpack.c.h.b16 %v674
      %v869 = vunpack.c.l.b16 %v678
      %v870 = vunpack.c.h.b16 %v678
      %v871 = vpack.c.b16 %v865, %v863
      %v872 = vpack.c.b16 %v866, %v864
      %v873 = vpack.c.b16 %v869, %v867
      %v874 = vpack.c.b16 %v870, %v868
      %v883 = vunpack.c.l.b16 %v683
      %v884 = vunpack.c.h.b16 %v683
      %v885 = vunpack.c.l.b16 %v684
      %v886 = vunpack.c.h.b16 %v684
      %v887 = vunpack.c.l.b16 %v685
      %v888 = vunpack.c.h.b16 %v685
      %v889 = vunpack.c.l.b16 %v686
      %v890 = vunpack.c.h.b16 %v686
      %v891 = vpack.c.b16 %v885, %v883
      %v892 = vpack.c.b16 %v886, %v884
      %v893 = vpack.c.b16 %v889, %v887
      %v894 = vpack.c.b16 %v890, %v888
      %v899 = vunpack.c.l.b16 %v704
      %v900 = vunpack.c.h.b16 %v704
      %v901 = vunpack.c.l.b16 %v718
      %v902 = vunpack.c.h.b16 %v718
      %v903 = vunpack.c.l.b16 %v732
      %v904 = vunpack.c.h.b16 %v732
      %v905 = vunpack.c.l.b16 %v746
      %v906 = vunpack.c.h.b16 %v746
      %v907 = vpack.c.b16 %v901, %v899
      %v908 = vpack.c.b16 %v902, %v900
      %v909 = vpack.c.b16 %v905, %v903
      %v910 = vpack.c.b16 %v906, %v904
      %v915 = vunpack.c.l.b16 %v762
      %v916 = vunpack.c.h.b16 %v762
      %v917 = vunpack.c.l.b16 %v766
      %v918 = vunpack.c.h.b16 %v766
      %v919 = vunpack.c.l.b16 %v770
      %v920 = vunpack.c.h.b16 %v770
      %v921 = vunpack.c.l.b16 %v774
      %v922 = vunpack.c.h.b16 %v774
      %v923 = vpack.c.b16 %v917, %v915
      %v924 = vpack.c.b16 %v918, %v916
      %v925 = vpack.c.b16 %v921, %v919
      %v926 = vpack.c.b16 %v922, %v920
      %v931 = vld [vmem:[%s3] sm:$0xf]
      %v932 = vld [vmem:[%s3 + $0x4] sm:$0xf]
      %v933 = vld [vmem:[%s3 + $0x8] sm:$0xf]
      %v934 = vld [vmem:[%s3 + $0xc] sm:$0xf]
      %v935 = vld [vmem:[%s3 + $0x10] sm:$0xf]
      %v936 = vld [vmem:[%s3 + $0x14] sm:$0xf]
      %v937 = vld [vmem:[%s3 + $0x18] sm:$0xf]
      %v938 = vld [vmem:[%s3 + $0x1c] sm:$0xf]
      %v939 = vld [vmem:[%s3 + $0x20] sm:$0xf]
      %v940 = vld [vmem:[%s3 + $0x24] sm:$0xf]
      %v941 = vld [vmem:[%s3 + $0x28] sm:$0xf]
      %v942 = vld [vmem:[%s3 + $0x2c] sm:$0xf]
      %v943 = vld [vmem:[%s3 + $0x30] sm:$0xf]
      %v944 = vld [vmem:[%s3 + $0x34] sm:$0xf]
      %v945 = vld [vmem:[%s3 + $0x38] sm:$0xf]
      %v946 = vld [vmem:[%s3 + $0x3c] sm:$0xf]
      %v947 = vld [vmem:[%s3 + $0x40] sm:$0xf]
      %v948 = vld [vmem:[%s3 + $0x44] sm:$0xf]
      %v949 = vld [vmem:[%s3 + $0x48] sm:$0xf]
      %v950 = vld [vmem:[%s3 + $0x4c] sm:$0xf]
      %v951 = vld [vmem:[%s3 + $0x50] sm:$0xf]
      %v952 = vld [vmem:[%s3 + $0x54] sm:$0xf]
      %v953 = vld [vmem:[%s3 + $0x58] sm:$0xf]
      %v954 = vld [vmem:[%s3 + $0x5c] sm:$0xf]
      %v955 = vld [vmem:[%s3 + $0x60] sm:$0xf]
      %v956 = vld [vmem:[%s3 + $0x64] sm:$0xf]
      %v957 = vld [vmem:[%s3 + $0x68] sm:$0xf]
      %v958 = vld [vmem:[%s3 + $0x6c] sm:$0xf]
      %v959 = vld [vmem:[%s3 + $0x70] sm:$0xf]
      %v960 = vld [vmem:[%s3 + $0x74] sm:$0xf]
      %v961 = vld [vmem:[%s3 + $0x78] sm:$0xf]
      %v962 = vld [vmem:[%s3 + $0x7c] sm:$0xf]
      %v963 = vld [vmem:[%s3 + $0x80] sm:$0xf]
      %v964 = vld [vmem:[%s3 + $0x84] sm:$0xf]
      %v965 = vld [vmem:[%s3 + $0x88] sm:$0xf]
      %v966 = vld [vmem:[%s3 + $0x8c] sm:$0xf]
      %v967 = vld [vmem:[%s3 + $0x90] sm:$0xf]
      %v968 = vld [vmem:[%s3 + $0x94] sm:$0xf]
      %v969 = vld [vmem:[%s3 + $0x98] sm:$0xf]
      %v970 = vld [vmem:[%s3 + $0x9c] sm:$0xf]
      %v971 = vld [vmem:[%s3 + $0xa0] sm:$0xf]
      %v972 = vld [vmem:[%s3 + $0xa4] sm:$0xf]
      %v973 = vld [vmem:[%s3 + $0xa8] sm:$0xf]
      %v974 = vld [vmem:[%s3 + $0xac] sm:$0xf]
      %v975 = vld [vmem:[%s3 + $0xb0] sm:$0xf]
      %v976 = vld [vmem:[%s3 + $0xb4] sm:$0xf]
      %v977 = vld [vmem:[%s3 + $0xb8] sm:$0xf]
      %v978 = vld [vmem:[%s3 + $0xbc] sm:$0xf]
      %v979 = vld [vmem:[%s3 + $0xc0] sm:$0xf]
      %v980 = vld [vmem:[%s3 + $0xc4] sm:$0xf]
      %v981 = vld [vmem:[%s3 + $0xc8] sm:$0xf]
      %v982 = vld [vmem:[%s3 + $0xcc] sm:$0xf]
      %v983 = vld [vmem:[%s3 + $0xd0] sm:$0xf]
      %v984 = vld [vmem:[%s3 + $0xd4] sm:$0xf]
      %v985 = vld [vmem:[%s3 + $0xd8] sm:$0xf]
      %v986 = vld [vmem:[%s3 + $0xdc] sm:$0xf]
      %v987 = vld [vmem:[%s3 + $0xe0] sm:$0xf]
      %v988 = vld [vmem:[%s3 + $0xe4] sm:$0xf]
      %v989 = vld [vmem:[%s3 + $0xe8] sm:$0xf]
      %v990 = vld [vmem:[%s3 + $0xec] sm:$0xf]
      %v991 = vld [vmem:[%s3 + $0xf0] sm:$0xf]
      %v992 = vld [vmem:[%s3 + $0xf4] sm:$0xf]
      %v993 = vld [vmem:[%s3 + $0xf8] sm:$0xf]
      %v994 = vld [vmem:[%s3 + $0xfc] sm:$0xf]
      %v995 = vld [vmem:[%s3 + $0x100] sm:$0xf]
      %v996 = vld [vmem:[%s3 + $0x104] sm:$0xf]
      %v997 = vld [vmem:[%s3 + $0x108] sm:$0xf]
      %v998 = vld [vmem:[%s3 + $0x10c] sm:$0xf]
      %v999 = vld [vmem:[%s3 + $0x110] sm:$0xf]
      %v1000 = vld [vmem:[%s3 + $0x114] sm:$0xf]
      %v1001 = vld [vmem:[%s3 + $0x118] sm:$0xf]
      %v1002 = vld [vmem:[%s3 + $0x11c] sm:$0xf]
      %v1003 = vld [vmem:[%s3 + $0x120] sm:$0xf]
      %v1004 = vld [vmem:[%s3 + $0x124] sm:$0xf]
      %v1005 = vld [vmem:[%s3 + $0x128] sm:$0xf]
      %v1006 = vld [vmem:[%s3 + $0x12c] sm:$0xf]
      %v1007 = vld [vmem:[%s3 + $0x130] sm:$0xf]
      %v1008 = vld [vmem:[%s3 + $0x134] sm:$0xf]
      %v1009 = vld [vmem:[%s3 + $0x138] sm:$0xf]
      %v1010 = vld [vmem:[%s3 + $0x13c] sm:$0xf]
      %v1011 = vld [vmem:[%s3 + $0x140] sm:$0xf]
      %v1012 = vld [vmem:[%s3 + $0x144] sm:$0xf]
      %v1013 = vld [vmem:[%s3 + $0x148] sm:$0xf]
      %v1014 = vld [vmem:[%s3 + $0x14c] sm:$0xf]
      %v1015 = vld [vmem:[%s3 + $0x150] sm:$0xf]
      %v1016 = vld [vmem:[%s3 + $0x154] sm:$0xf]
      %v1017 = vld [vmem:[%s3 + $0x158] sm:$0xf]
      %v1018 = vld [vmem:[%s3 + $0x15c] sm:$0xf]
      %v1019 = vld [vmem:[%s3 + $0x160] sm:$0xf]
      %v1020 = vld [vmem:[%s3 + $0x164] sm:$0xf]
      %v1021 = vld [vmem:[%s3 + $0x168] sm:$0xf]
      %v1022 = vld [vmem:[%s3 + $0x16c] sm:$0xf]
      %v1023 = vld [vmem:[%s3 + $0x170] sm:$0xf]
      %v1024 = vld [vmem:[%s3 + $0x174] sm:$0xf]
      %v1025 = vld [vmem:[%s3 + $0x178] sm:$0xf]
      %v1026 = vld [vmem:[%s3 + $0x17c] sm:$0xf]
      %v1027 = vld [vmem:[%s3 + $0x180] sm:$0xf]
      %v1028 = vld [vmem:[%s3 + $0x184] sm:$0xf]
      %v1029 = vld [vmem:[%s3 + $0x188] sm:$0xf]
      %v1030 = vld [vmem:[%s3 + $0x18c] sm:$0xf]
      %v1031 = vld [vmem:[%s3 + $0x190] sm:$0xf]
      %v1032 = vld [vmem:[%s3 + $0x194] sm:$0xf]
      %v1033 = vld [vmem:[%s3 + $0x198] sm:$0xf]
      %v1034 = vld [vmem:[%s3 + $0x19c] sm:$0xf]
      %v1035 = vld [vmem:[%s3 + $0x1a0] sm:$0xf]
      %v1036 = vld [vmem:[%s3 + $0x1a4] sm:$0xf]
      %v1037 = vld [vmem:[%s3 + $0x1a8] sm:$0xf]
      %v1038 = vld [vmem:[%s3 + $0x1ac] sm:$0xf]
      %v1039 = vld [vmem:[%s3 + $0x1b0] sm:$0xf]
      %v1040 = vld [vmem:[%s3 + $0x1b4] sm:$0xf]
      %v1041 = vld [vmem:[%s3 + $0x1b8] sm:$0xf]
      %v1042 = vld [vmem:[%s3 + $0x1bc] sm:$0xf]
      %v1043 = vld [vmem:[%s3 + $0x1c0] sm:$0xf]
      %v1044 = vld [vmem:[%s3 + $0x1c4] sm:$0xf]
      %v1045 = vld [vmem:[%s3 + $0x1c8] sm:$0xf]
      %v1046 = vld [vmem:[%s3 + $0x1cc] sm:$0xf]
      %v1047 = vld [vmem:[%s3 + $0x1d0] sm:$0xf]
      %v1048 = vld [vmem:[%s3 + $0x1d4] sm:$0xf]
      %v1049 = vld [vmem:[%s3 + $0x1d8] sm:$0xf]
      %v1050 = vld [vmem:[%s3 + $0x1dc] sm:$0xf]
      %v1051 = vld [vmem:[%s3 + $0x1e0] sm:$0xf]
      %v1052 = vld [vmem:[%s3 + $0x1e4] sm:$0xf]
      %v1053 = vld [vmem:[%s3 + $0x1e8] sm:$0xf]
      %v1054 = vld [vmem:[%s3 + $0x1ec] sm:$0xf]
      %v1055 = vld [vmem:[%s3 + $0x1f0] sm:$0xf]
      %v1056 = vld [vmem:[%s3 + $0x1f4] sm:$0xf]
      %v1057 = vld [vmem:[%s3 + $0x1f8] sm:$0xf]
      %v1058 = vld [vmem:[%s3 + $0x1fc] sm:$0xf]
      %v1059 = vld [vmem:[%s3 + $0x200] sm:$0xf]
      %v1060 = vld [vmem:[%s3 + $0x204] sm:$0xf]
      %v1061 = vld [vmem:[%s3 + $0x208] sm:$0xf]
      %v1062 = vld [vmem:[%s3 + $0x20c] sm:$0xf]
      %v1063 = vld [vmem:[%s3 + $0x210] sm:$0xf]
      %v1064 = vld [vmem:[%s3 + $0x214] sm:$0xf]
      %v1065 = vld [vmem:[%s3 + $0x218] sm:$0xf]
      %v1066 = vld [vmem:[%s3 + $0x21c] sm:$0xf]
      %v1067 = vld [vmem:[%s3 + $0x220] sm:$0xf]
      %v1068 = vld [vmem:[%s3 + $0x224] sm:$0xf]
      %v1069 = vld [vmem:[%s3 + $0x228] sm:$0xf]
      %v1070 = vld [vmem:[%s3 + $0x22c] sm:$0xf]
      %v1071 = vld [vmem:[%s3 + $0x230] sm:$0xf]
      %v1072 = vld [vmem:[%s3 + $0x234] sm:$0xf]
      %v1073 = vld [vmem:[%s3 + $0x238] sm:$0xf]
      %v1074 = vld [vmem:[%s3 + $0x23c] sm:$0xf]
      %v1075 = vld [vmem:[%s3 + $0x240] sm:$0xf]
      %v1076 = vld [vmem:[%s3 + $0x244] sm:$0xf]
      %v1077 = vld [vmem:[%s3 + $0x248] sm:$0xf]
      %v1078 = vld [vmem:[%s3 + $0x24c] sm:$0xf]
      %v1079 = vld [vmem:[%s3 + $0x250] sm:$0xf]
      %v1080 = vld [vmem:[%s3 + $0x254] sm:$0xf]
      %v1081 = vld [vmem:[%s3 + $0x258] sm:$0xf]
      %v1082 = vld [vmem:[%s3 + $0x25c] sm:$0xf]
      %v1083 = vld [vmem:[%s3 + $0x260] sm:$0xf]
      %v1084 = vld [vmem:[%s3 + $0x264] sm:$0xf]
      %v1085 = vld [vmem:[%s3 + $0x268] sm:$0xf]
      %v1086 = vld [vmem:[%s3 + $0x26c] sm:$0xf]
      %v1087 = vld [vmem:[%s3 + $0x270] sm:$0xf]
      %v1088 = vld [vmem:[%s3 + $0x274] sm:$0xf]
      %v1089 = vld [vmem:[%s3 + $0x278] sm:$0xf]
      %v1090 = vld [vmem:[%s3 + $0x27c] sm:$0xf]
      %v1091 = vld [vmem:[%s3 + $0x280] sm:$0xf]
      %v1092 = vld [vmem:[%s3 + $0x284] sm:$0xf]
      %v1093 = vld [vmem:[%s3 + $0x288] sm:$0xf]
      %v1094 = vld [vmem:[%s3 + $0x28c] sm:$0xf]
      %v1095 = vld [vmem:[%s3 + $0x290] sm:$0xf]
      %v1096 = vld [vmem:[%s3 + $0x294] sm:$0xf]
      %v1097 = vld [vmem:[%s3 + $0x298] sm:$0xf]
      %v1098 = vld [vmem:[%s3 + $0x29c] sm:$0xf]
      %v1099 = vld [vmem:[%s3 + $0x2a0] sm:$0xf]
      %v1100 = vld [vmem:[%s3 + $0x2a4] sm:$0xf]
      %v1101 = vld [vmem:[%s3 + $0x2a8] sm:$0xf]
      %v1102 = vld [vmem:[%s3 + $0x2ac] sm:$0xf]
      %v1103 = vld [vmem:[%s3 + $0x2b0] sm:$0xf]
      %v1104 = vld [vmem:[%s3 + $0x2b4] sm:$0xf]
      %v1105 = vld [vmem:[%s3 + $0x2b8] sm:$0xf]
      %v1106 = vld [vmem:[%s3 + $0x2bc] sm:$0xf]
      %v1107 = vld [vmem:[%s3 + $0x2c0] sm:$0xf]
      %v1108 = vld [vmem:[%s3 + $0x2c4] sm:$0xf]
      %v1109 = vld [vmem:[%s3 + $0x2c8] sm:$0xf]
      %v1110 = vld [vmem:[%s3 + $0x2cc] sm:$0xf]
      %v1111 = vld [vmem:[%s3 + $0x2d0] sm:$0xf]
      %v1112 = vld [vmem:[%s3 + $0x2d4] sm:$0xf]
      %v1113 = vld [vmem:[%s3 + $0x2d8] sm:$0xf]
      %v1114 = vld [vmem:[%s3 + $0x2dc] sm:$0xf]
      %v1115 = vld [vmem:[%s3 + $0x2e0] sm:$0xf]
      %v1116 = vld [vmem:[%s3 + $0x2e4] sm:$0xf]
      %v1117 = vld [vmem:[%s3 + $0x2e8] sm:$0xf]
      %v1118 = vld [vmem:[%s3 + $0x2ec] sm:$0xf]
      %v1119 = vld [vmem:[%s3 + $0x2f0] sm:$0xf]
      %v1120 = vld [vmem:[%s3 + $0x2f4] sm:$0xf]
      %v1121 = vld [vmem:[%s3 + $0x2f8] sm:$0xf]
      %v1122 = vld [vmem:[%s3 + $0x2fc] sm:$0xf]
      %v1123 = vld [vmem:[%s3 + $0x300] sm:$0xf]
      %v1124 = vld [vmem:[%s3 + $0x304] sm:$0xf]
      %v1125 = vld [vmem:[%s3 + $0x308] sm:$0xf]
      %v1126 = vld [vmem:[%s3 + $0x30c] sm:$0xf]
      %v1127 = vld [vmem:[%s3 + $0x310] sm:$0xf]
      %v1128 = vld [vmem:[%s3 + $0x314] sm:$0xf]
      %v1129 = vld [vmem:[%s3 + $0x318] sm:$0xf]
      %v1130 = vld [vmem:[%s3 + $0x31c] sm:$0xf]
      %v1131 = vld [vmem:[%s3 + $0x320] sm:$0xf]
      %v1132 = vld [vmem:[%s3 + $0x324] sm:$0xf]
      %v1133 = vld [vmem:[%s3 + $0x328] sm:$0xf]
      %v1134 = vld [vmem:[%s3 + $0x32c] sm:$0xf]
      %v1135 = vld [vmem:[%s3 + $0x330] sm:$0xf]
      %v1136 = vld [vmem:[%s3 + $0x334] sm:$0xf]
      %v1137 = vld [vmem:[%s3 + $0x338] sm:$0xf]
      %v1138 = vld [vmem:[%s3 + $0x33c] sm:$0xf]
      %v1139 = vld [vmem:[%s3 + $0x340] sm:$0xf]
      %v1140 = vld [vmem:[%s3 + $0x344] sm:$0xf]
      %v1141 = vld [vmem:[%s3 + $0x348] sm:$0xf]
      %v1142 = vld [vmem:[%s3 + $0x34c] sm:$0xf]
      %v1143 = vld [vmem:[%s3 + $0x350] sm:$0xf]
      %v1144 = vld [vmem:[%s3 + $0x354] sm:$0xf]
      %v1145 = vld [vmem:[%s3 + $0x358] sm:$0xf]
      %v1146 = vld [vmem:[%s3 + $0x35c] sm:$0xf]
      %v1147 = vld [vmem:[%s3 + $0x360] sm:$0xf]
      %v1148 = vld [vmem:[%s3 + $0x364] sm:$0xf]
      %v1149 = vld [vmem:[%s3 + $0x368] sm:$0xf]
      %v1150 = vld [vmem:[%s3 + $0x36c] sm:$0xf]
      %v1151 = vld [vmem:[%s3 + $0x370] sm:$0xf]
      %v1152 = vld [vmem:[%s3 + $0x374] sm:$0xf]
      %v1153 = vld [vmem:[%s3 + $0x378] sm:$0xf]
      %v1154 = vld [vmem:[%s3 + $0x37c] sm:$0xf]
      %v1155 = vld [vmem:[%s3 + $0x380] sm:$0xf]
      %v1156 = vld [vmem:[%s3 + $0x384] sm:$0xf]
      %v1157 = vld [vmem:[%s3 + $0x388] sm:$0xf]
      %v1158 = vld [vmem:[%s3 + $0x38c] sm:$0xf]
      %v1159 = vld [vmem:[%s3 + $0x390] sm:$0xf]
      %v1160 = vld [vmem:[%s3 + $0x394] sm:$0xf]
      %v1161 = vld [vmem:[%s3 + $0x398] sm:$0xf]
      %v1162 = vld [vmem:[%s3 + $0x39c] sm:$0xf]
      %v1163 = vld [vmem:[%s3 + $0x3a0] sm:$0xf]
      %v1164 = vld [vmem:[%s3 + $0x3a4] sm:$0xf]
      %v1165 = vld [vmem:[%s3 + $0x3a8] sm:$0xf]
      %v1166 = vld [vmem:[%s3 + $0x3ac] sm:$0xf]
      %v1167 = vld [vmem:[%s3 + $0x3b0] sm:$0xf]
      %v1168 = vld [vmem:[%s3 + $0x3b4] sm:$0xf]
      %v1169 = vld [vmem:[%s3 + $0x3b8] sm:$0xf]
      %v1170 = vld [vmem:[%s3 + $0x3bc] sm:$0xf]
      %v1171 = vld [vmem:[%s3 + $0x3c0] sm:$0xf]
      %v1172 = vld [vmem:[%s3 + $0x3c4] sm:$0xf]
      %v1173 = vld [vmem:[%s3 + $0x3c8] sm:$0xf]
      %v1174 = vld [vmem:[%s3 + $0x3cc] sm:$0xf]
      %v1175 = vld [vmem:[%s3 + $0x3d0] sm:$0xf]
      %v1176 = vld [vmem:[%s3 + $0x3d4] sm:$0xf]
      %v1177 = vld [vmem:[%s3 + $0x3d8] sm:$0xf]
      %v1178 = vld [vmem:[%s3 + $0x3dc] sm:$0xf]
      %v1179 = vld [vmem:[%s3 + $0x3e0] sm:$0xf]
      %v1180 = vld [vmem:[%s3 + $0x3e4] sm:$0xf]
      %v1181 = vld [vmem:[%s3 + $0x3e8] sm:$0xf]
      %v1182 = vld [vmem:[%s3 + $0x3ec] sm:$0xf]
      %v1183 = vld [vmem:[%s3 + $0x3f0] sm:$0xf]
      %v1184 = vld [vmem:[%s3 + $0x3f4] sm:$0xf]
      %v1185 = vld [vmem:[%s3 + $0x3f8] sm:$0xf]
      %v1186 = vld [vmem:[%s3 + $0x3fc] sm:$0xf]
      %v1187 = vld [vmem:[%s3 + $0x400] sm:$0xf]
      %v1188 = vld [vmem:[%s3 + $0x404] sm:$0xf]
      %v1189 = vld [vmem:[%s3 + $0x408] sm:$0xf]
      %v1190 = vld [vmem:[%s3 + $0x40c] sm:$0xf]
      %v1191 = vld [vmem:[%s3 + $0x410] sm:$0xf]
      %v1192 = vld [vmem:[%s3 + $0x414] sm:$0xf]
      %v1193 = vld [vmem:[%s3 + $0x418] sm:$0xf]
      %v1194 = vld [vmem:[%s3 + $0x41c] sm:$0xf]
      %v1195 = vld [vmem:[%s3 + $0x420] sm:$0xf]
      %v1196 = vld [vmem:[%s3 + $0x424] sm:$0xf]
      %v1197 = vld [vmem:[%s3 + $0x428] sm:$0xf]
      %v1198 = vld [vmem:[%s3 + $0x42c] sm:$0xf]
      %v1199 = vld [vmem:[%s3 + $0x430] sm:$0xf]
      %v1200 = vld [vmem:[%s3 + $0x434] sm:$0xf]
      %v1201 = vld [vmem:[%s3 + $0x438] sm:$0xf]
      %v1202 = vld [vmem:[%s3 + $0x43c] sm:$0xf]
      %v1203 = vld [vmem:[%s3 + $0x440] sm:$0xf]
      %v1204 = vld [vmem:[%s3 + $0x444] sm:$0xf]
      %v1205 = vld [vmem:[%s3 + $0x448] sm:$0xf]
      %v1206 = vld [vmem:[%s3 + $0x44c] sm:$0xf]
      %v1207 = vld [vmem:[%s3 + $0x450] sm:$0xf]
      %v1208 = vld [vmem:[%s3 + $0x454] sm:$0xf]
      %v1209 = vld [vmem:[%s3 + $0x458] sm:$0xf]
      %v1210 = vld [vmem:[%s3 + $0x45c] sm:$0xf]
      %v1211 = vld [vmem:[%s3 + $0x460] sm:$0xf]
      %v1212 = vld [vmem:[%s3 + $0x464] sm:$0xf]
      %v1213 = vld [vmem:[%s3 + $0x468] sm:$0xf]
      %v1214 = vld [vmem:[%s3 + $0x46c] sm:$0xf]
      %v1215 = vld [vmem:[%s3 + $0x470] sm:$0xf]
      %v1216 = vld [vmem:[%s3 + $0x474] sm:$0xf]
      %v1217 = vld [vmem:[%s3 + $0x478] sm:$0xf]
      %v1218 = vld [vmem:[%s3 + $0x47c] sm:$0xf]
      %v1507 = vunpack.c.l.b16 %v931
      %v1508 = vunpack.c.l.b16 %v932
      %v1509 = vunpack.c.l.b16 %v933
      %v1510 = vunpack.c.l.b16 %v934
      %v1511 = vunpack.c.l.b16 %v935
      %v1512 = vunpack.c.l.b16 %v936
      %v1513 = vunpack.c.l.b16 %v937
      %v1514 = vunpack.c.l.b16 %v938
      %v1515 = vunpack.c.l.b16 %v939
      %v1516 = vunpack.c.l.b16 %v940
      %v1517 = vunpack.c.l.b16 %v941
      %v1518 = vunpack.c.l.b16 %v942
      %v1519 = vunpack.c.l.b16 %v943
      %v1520 = vunpack.c.l.b16 %v944
      %v1521 = vunpack.c.l.b16 %v945
      %v1522 = vunpack.c.l.b16 %v946
      %v1523 = vunpack.c.l.b16 %v947
      %v1524 = vunpack.c.l.b16 %v948
      %v1525 = vunpack.c.l.b16 %v949
      %v1526 = vunpack.c.l.b16 %v950
      %v1527 = vunpack.c.l.b16 %v951
      %v1528 = vunpack.c.l.b16 %v952
      %v1529 = vunpack.c.l.b16 %v953
      %v1530 = vunpack.c.l.b16 %v954
      %v1531 = vunpack.c.l.b16 %v955
      %v1532 = vunpack.c.l.b16 %v956
      %v1533 = vunpack.c.l.b16 %v957
      %v1534 = vunpack.c.l.b16 %v958
      %v1535 = vunpack.c.l.b16 %v959
      %v1536 = vunpack.c.l.b16 %v960
      %v1537 = vunpack.c.l.b16 %v961
      %v1538 = vunpack.c.l.b16 %v962
      %v1539 = vunpack.c.l.b16 %v963
      %v1540 = vunpack.c.l.b16 %v964
      %v1541 = vunpack.c.l.b16 %v965
      %v1542 = vunpack.c.l.b16 %v966
      %v1543 = vunpack.c.l.b16 %v967
      %v1544 = vunpack.c.l.b16 %v968
      %v1545 = vunpack.c.l.b16 %v969
      %v1546 = vunpack.c.l.b16 %v970
      %v1547 = vunpack.c.l.b16 %v971
      %v1548 = vunpack.c.l.b16 %v972
      %v1549 = vunpack.c.l.b16 %v973
      %v1550 = vunpack.c.l.b16 %v974
      %v1551 = vunpack.c.l.b16 %v975
      %v1552 = vunpack.c.l.b16 %v976
      %v1553 = vunpack.c.l.b16 %v977
      %v1554 = vunpack.c.l.b16 %v978
      %v1555 = vunpack.c.l.b16 %v979
      %v1556 = vunpack.c.l.b16 %v980
      %v1557 = vunpack.c.l.b16 %v981
      %v1558 = vunpack.c.l.b16 %v982
      %v1559 = vunpack.c.l.b16 %v983
      %v1560 = vunpack.c.l.b16 %v984
      %v1561 = vunpack.c.l.b16 %v985
      %v1562 = vunpack.c.l.b16 %v986
      %v1563 = vunpack.c.l.b16 %v987
      %v1564 = vunpack.c.l.b16 %v988
      %v1565 = vunpack.c.l.b16 %v989
      %v1566 = vunpack.c.l.b16 %v990
      %v1567 = vunpack.c.l.b16 %v991
      %v1568 = vunpack.c.l.b16 %v992
      %v1569 = vunpack.c.l.b16 %v993
      %v1570 = vunpack.c.l.b16 %v994
      %v1571 = vunpack.c.l.b16 %v995
      %v1572 = vunpack.c.l.b16 %v996
      %v1573 = vunpack.c.l.b16 %v997
      %v1574 = vunpack.c.l.b16 %v998
      %v1575 = vunpack.c.l.b16 %v999
      %v1576 = vunpack.c.l.b16 %v1000
      %v1577 = vunpack.c.l.b16 %v1001
      %v1578 = vunpack.c.l.b16 %v1002
      %v1579 = vunpack.c.l.b16 %v1003
      %v1580 = vunpack.c.l.b16 %v1004
      %v1581 = vunpack.c.l.b16 %v1005
      %v1582 = vunpack.c.l.b16 %v1006
      %v1583 = vunpack.c.l.b16 %v1007
      %v1584 = vunpack.c.l.b16 %v1008
      %v1585 = vunpack.c.l.b16 %v1009
      %v1586 = vunpack.c.l.b16 %v1010
      %v1587 = vunpack.c.l.b16 %v1011
      %v1588 = vunpack.c.l.b16 %v1012
      %v1589 = vunpack.c.l.b16 %v1013
      %v1590 = vunpack.c.l.b16 %v1014
      %v1591 = vunpack.c.l.b16 %v1015
      %v1592 = vunpack.c.l.b16 %v1016
      %v1593 = vunpack.c.l.b16 %v1017
      %v1594 = vunpack.c.l.b16 %v1018
      %v1595 = vunpack.c.l.b16 %v1019
      %v1596 = vunpack.c.l.b16 %v1020
      %v1597 = vunpack.c.l.b16 %v1021
      %v1598 = vunpack.c.l.b16 %v1022
      %v1599 = vunpack.c.l.b16 %v1023
      %v1600 = vunpack.c.l.b16 %v1024
      %v1601 = vunpack.c.l.b16 %v1025
      %v1602 = vunpack.c.l.b16 %v1026
      %v1603 = vunpack.c.l.b16 %v1027
      %v1604 = vunpack.c.l.b16 %v1028
      %v1605 = vunpack.c.l.b16 %v1029
      %v1606 = vunpack.c.l.b16 %v1030
      %v1607 = vunpack.c.l.b16 %v1031
      %v1608 = vunpack.c.l.b16 %v1032
      %v1609 = vunpack.c.l.b16 %v1033
      %v1610 = vunpack.c.l.b16 %v1034
      %v1611 = vunpack.c.l.b16 %v1035
      %v1612 = vunpack.c.l.b16 %v1036
      %v1613 = vunpack.c.l.b16 %v1037
      %v1614 = vunpack.c.l.b16 %v1038
      %v1615 = vunpack.c.l.b16 %v1039
      %v1616 = vunpack.c.l.b16 %v1040
      %v1617 = vunpack.c.l.b16 %v1041
      %v1618 = vunpack.c.l.b16 %v1042
      %v1619 = vunpack.c.l.b16 %v1043
      %v1620 = vunpack.c.l.b16 %v1044
      %v1621 = vunpack.c.l.b16 %v1045
      %v1622 = vunpack.c.l.b16 %v1046
      %v1623 = vunpack.c.l.b16 %v1047
      %v1624 = vunpack.c.l.b16 %v1048
      %v1625 = vunpack.c.l.b16 %v1049
      %v1626 = vunpack.c.l.b16 %v1050
      %v1627 = vunpack.c.l.b16 %v1051
      %v1628 = vunpack.c.l.b16 %v1052
      %v1629 = vunpack.c.l.b16 %v1053
      %v1630 = vunpack.c.l.b16 %v1054
      %v1631 = vunpack.c.l.b16 %v1055
      %v1632 = vunpack.c.l.b16 %v1056
      %v1633 = vunpack.c.l.b16 %v1057
      %v1634 = vunpack.c.l.b16 %v1058
      %v1635 = vunpack.c.l.b16 %v1059
      %v1636 = vunpack.c.l.b16 %v1060
      %v1637 = vunpack.c.l.b16 %v1061
      %v1638 = vunpack.c.l.b16 %v1062
      %v1639 = vunpack.c.l.b16 %v1063
      %v1640 = vunpack.c.l.b16 %v1064
      %v1641 = vunpack.c.l.b16 %v1065
      %v1642 = vunpack.c.l.b16 %v1066
      %v1643 = vunpack.c.l.b16 %v1067
      %v1644 = vunpack.c.l.b16 %v1068
      %v1645 = vunpack.c.l.b16 %v1069
      %v1646 = vunpack.c.l.b16 %v1070
      %v1647 = vunpack.c.l.b16 %v1071
      %v1648 = vunpack.c.l.b16 %v1072
      %v1649 = vunpack.c.l.b16 %v1073
      %v1650 = vunpack.c.l.b16 %v1074
      %v1651 = vunpack.c.l.b16 %v1075
      %v1652 = vunpack.c.l.b16 %v1076
      %v1653 = vunpack.c.l.b16 %v1077
      %v1654 = vunpack.c.l.b16 %v1078
      %v1655 = vunpack.c.l.b16 %v1079
      %v1656 = vunpack.c.l.b16 %v1080
      %v1657 = vunpack.c.l.b16 %v1081
      %v1658 = vunpack.c.l.b16 %v1082
      %v1659 = vunpack.c.l.b16 %v1083
      %v1660 = vunpack.c.l.b16 %v1084
      %v1661 = vunpack.c.l.b16 %v1085
      %v1662 = vunpack.c.l.b16 %v1086
      %v1663 = vunpack.c.l.b16 %v1087
      %v1664 = vunpack.c.l.b16 %v1088
      %v1665 = vunpack.c.l.b16 %v1089
      %v1666 = vunpack.c.l.b16 %v1090
      %v1667 = vunpack.c.l.b16 %v1091
      %v1668 = vunpack.c.l.b16 %v1092
      %v1669 = vunpack.c.l.b16 %v1093
      %v1670 = vunpack.c.l.b16 %v1094
      %v1671 = vunpack.c.l.b16 %v1095
      %v1672 = vunpack.c.l.b16 %v1096
      %v1673 = vunpack.c.l.b16 %v1097
      %v1674 = vunpack.c.l.b16 %v1098
      %v1675 = vunpack.c.l.b16 %v1099
      %v1676 = vunpack.c.l.b16 %v1100
      %v1677 = vunpack.c.l.b16 %v1101
      %v1678 = vunpack.c.l.b16 %v1102
      %v1679 = vunpack.c.l.b16 %v1103
      %v1680 = vunpack.c.l.b16 %v1104
      %v1681 = vunpack.c.l.b16 %v1105
      %v1682 = vunpack.c.l.b16 %v1106
      %v1683 = vunpack.c.l.b16 %v1107
      %v1684 = vunpack.c.l.b16 %v1108
      %v1685 = vunpack.c.l.b16 %v1109
      %v1686 = vunpack.c.l.b16 %v1110
      %v1687 = vunpack.c.l.b16 %v1111
      %v1688 = vunpack.c.l.b16 %v1112
      %v1689 = vunpack.c.l.b16 %v1113
      %v1690 = vunpack.c.l.b16 %v1114
      %v1691 = vunpack.c.l.b16 %v1115
      %v1692 = vunpack.c.l.b16 %v1116
      %v1693 = vunpack.c.l.b16 %v1117
      %v1694 = vunpack.c.l.b16 %v1118
      %v1695 = vunpack.c.l.b16 %v1119
      %v1696 = vunpack.c.l.b16 %v1120
      %v1697 = vunpack.c.l.b16 %v1121
      %v1698 = vunpack.c.l.b16 %v1122
      %v1699 = vunpack.c.l.b16 %v1123
      %v1700 = vunpack.c.l.b16 %v1124
      %v1701 = vunpack.c.l.b16 %v1125
      %v1702 = vunpack.c.l.b16 %v1126
      %v1703 = vunpack.c.l.b16 %v1127
      %v1704 = vunpack.c.l.b16 %v1128
      %v1705 = vunpack.c.l.b16 %v1129
      %v1706 = vunpack.c.l.b16 %v1130
      %v1707 = vunpack.c.l.b16 %v1131
      %v1708 = vunpack.c.l.b16 %v1132
      %v1709 = vunpack.c.l.b16 %v1133
      %v1710 = vunpack.c.l.b16 %v1134
      %v1711 = vunpack.c.l.b16 %v1135
      %v1712 = vunpack.c.l.b16 %v1136
      %v1713 = vunpack.c.l.b16 %v1137
      %v1714 = vunpack.c.l.b16 %v1138
      %v1715 = vunpack.c.l.b16 %v1139
      %v1716 = vunpack.c.l.b16 %v1140
      %v1717 = vunpack.c.l.b16 %v1141
      %v1718 = vunpack.c.l.b16 %v1142
      %v1719 = vunpack.c.l.b16 %v1143
      %v1720 = vunpack.c.l.b16 %v1144
      %v1721 = vunpack.c.l.b16 %v1145
      %v1722 = vunpack.c.l.b16 %v1146
      %v1723 = vunpack.c.l.b16 %v1147
      %v1724 = vunpack.c.l.b16 %v1148
      %v1725 = vunpack.c.l.b16 %v1149
      %v1726 = vunpack.c.l.b16 %v1150
      %v1727 = vunpack.c.l.b16 %v1151
      %v1728 = vunpack.c.l.b16 %v1152
      %v1729 = vunpack.c.l.b16 %v1153
      %v1730 = vunpack.c.l.b16 %v1154
      %v1731 = vunpack.c.l.b16 %v1155
      %v1732 = vunpack.c.l.b16 %v1156
      %v1733 = vunpack.c.l.b16 %v1157
      %v1734 = vunpack.c.l.b16 %v1158
      %v1735 = vunpack.c.l.b16 %v1159
      %v1736 = vunpack.c.l.b16 %v1160
      %v1737 = vunpack.c.l.b16 %v1161
      %v1738 = vunpack.c.l.b16 %v1162
      %v1739 = vunpack.c.l.b16 %v1163
      %v1740 = vunpack.c.l.b16 %v1164
      %v1741 = vunpack.c.l.b16 %v1165
      %v1742 = vunpack.c.l.b16 %v1166
      %v1743 = vunpack.c.l.b16 %v1167
      %v1744 = vunpack.c.l.b16 %v1168
      %v1745 = vunpack.c.l.b16 %v1169
      %v1746 = vunpack.c.l.b16 %v1170
      %v1747 = vunpack.c.l.b16 %v1171
      %v1748 = vunpack.c.l.b16 %v1172
      %v1749 = vunpack.c.l.b16 %v1173
      %v1750 = vunpack.c.l.b16 %v1174
      %v1751 = vunpack.c.l.b16 %v1175
      %v1752 = vunpack.c.l.b16 %v1176
      %v1753 = vunpack.c.l.b16 %v1177
      %v1754 = vunpack.c.l.b16 %v1178
      %v1755 = vunpack.c.l.b16 %v1179
      %v1756 = vunpack.c.l.b16 %v1180
      %v1757 = vunpack.c.l.b16 %v1181
      %v1758 = vunpack.c.l.b16 %v1182
      %v1759 = vunpack.c.l.b16 %v1183
      %v1760 = vunpack.c.l.b16 %v1184
      %v1761 = vunpack.c.l.b16 %v1185
      %v1762 = vunpack.c.l.b16 %v1186
      %v1763 = vunpack.c.l.b16 %v1187
      %v1764 = vunpack.c.l.b16 %v1188
      %v1765 = vunpack.c.l.b16 %v1189
      %v1766 = vunpack.c.l.b16 %v1190
      %v1767 = vunpack.c.l.b16 %v1191
      %v1768 = vunpack.c.l.b16 %v1192
      %v1769 = vunpack.c.l.b16 %v1193
      %v1770 = vunpack.c.l.b16 %v1194
      %v1771 = vunpack.c.l.b16 %v1195
      %v1772 = vunpack.c.l.b16 %v1196
      %v1773 = vunpack.c.l.b16 %v1197
      %v1774 = vunpack.c.l.b16 %v1198
      %v1775 = vunpack.c.l.b16 %v1199
      %v1776 = vunpack.c.l.b16 %v1200
      %v1777 = vunpack.c.l.b16 %v1201
      %v1778 = vunpack.c.l.b16 %v1202
      %v1779 = vunpack.c.l.b16 %v1203
      %v1780 = vunpack.c.l.b16 %v1204
      %v1781 = vunpack.c.l.b16 %v1205
      %v1782 = vunpack.c.l.b16 %v1206
      %v1783 = vunpack.c.l.b16 %v1207
      %v1784 = vunpack.c.l.b16 %v1208
      %v1785 = vunpack.c.l.b16 %v1209
      %v1786 = vunpack.c.l.b16 %v1210
      %v1787 = vunpack.c.l.b16 %v1211
      %v1788 = vunpack.c.l.b16 %v1212
      %v1789 = vunpack.c.l.b16 %v1213
      %v1790 = vunpack.c.l.b16 %v1214
      %v1791 = vunpack.c.l.b16 %v1215
      %v1792 = vunpack.c.l.b16 %v1216
      %v1793 = vunpack.c.l.b16 %v1217
      %v1794 = vunpack.c.l.b16 %v1218
      %v1795 = vpack.c.b16 %v1508, %v1507
      %v1796 = vpack.c.b16 %v1510, %v1509
      %v1797 = vpack.c.b16 %v1512, %v1511
      %v1798 = vpack.c.b16 %v1514, %v1513
      %v1799 = vpack.c.b16 %v1516, %v1515
      %v1800 = vpack.c.b16 %v1518, %v1517
      %v1801 = vpack.c.b16 %v1520, %v1519
      %v1802 = vpack.c.b16 %v1522, %v1521
      %v1803 = vpack.c.b16 %v1524, %v1523
      %v1804 = vpack.c.b16 %v1526, %v1525
      %v1805 = vpack.c.b16 %v1528, %v1527
      %v1806 = vpack.c.b16 %v1530, %v1529
      %v1807 = vpack.c.b16 %v1532, %v1531
      %v1808 = vpack.c.b16 %v1534, %v1533
      %v1809 = vpack.c.b16 %v1536, %v1535
      %v1810 = vpack.c.b16 %v1538, %v1537
      %v1811 = vpack.c.b16 %v1540, %v1539
      %v1812 = vpack.c.b16 %v1542, %v1541
      %v1813 = vpack.c.b16 %v1544, %v1543
      %v1814 = vpack.c.b16 %v1546, %v1545
      %v1815 = vpack.c.b16 %v1548, %v1547
      %v1816 = vpack.c.b16 %v1550, %v1549
      %v1817 = vpack.c.b16 %v1552, %v1551
      %v1818 = vpack.c.b16 %v1554, %v1553
      %v1819 = vpack.c.b16 %v1556, %v1555
      %v1820 = vpack.c.b16 %v1558, %v1557
      %v1821 = vpack.c.b16 %v1560, %v1559
      %v1822 = vpack.c.b16 %v1562, %v1561
      %v1823 = vpack.c.b16 %v1564, %v1563
      %v1824 = vpack.c.b16 %v1566, %v1565
      %v1825 = vpack.c.b16 %v1568, %v1567
      %v1826 = vpack.c.b16 %v1570, %v1569
      %v1827 = vpack.c.b16 %v1572, %v1571
      %v1828 = vpack.c.b16 %v1574, %v1573
      %v1829 = vpack.c.b16 %v1576, %v1575
      %v1830 = vpack.c.b16 %v1578, %v1577
      %v1831 = vpack.c.b16 %v1580, %v1579
      %v1832 = vpack.c.b16 %v1582, %v1581
      %v1833 = vpack.c.b16 %v1584, %v1583
      %v1834 = vpack.c.b16 %v1586, %v1585
      %v1835 = vpack.c.b16 %v1588, %v1587
      %v1836 = vpack.c.b16 %v1590, %v1589
      %v1837 = vpack.c.b16 %v1592, %v1591
      %v1838 = vpack.c.b16 %v1594, %v1593
      %v1839 = vpack.c.b16 %v1596, %v1595
      %v1840 = vpack.c.b16 %v1598, %v1597
      %v1841 = vpack.c.b16 %v1600, %v1599
      %v1842 = vpack.c.b16 %v1602, %v1601
      %v1843 = vpack.c.b16 %v1604, %v1603
      %v1844 = vpack.c.b16 %v1606, %v1605
      %v1845 = vpack.c.b16 %v1608, %v1607
      %v1846 = vpack.c.b16 %v1610, %v1609
      %v1847 = vpack.c.b16 %v1612, %v1611
      %v1848 = vpack.c.b16 %v1614, %v1613
      %v1849 = vpack.c.b16 %v1616, %v1615
      %v1850 = vpack.c.b16 %v1618, %v1617
      %v1851 = vpack.c.b16 %v1620, %v1619
      %v1852 = vpack.c.b16 %v1622, %v1621
      %v1853 = vpack.c.b16 %v1624, %v1623
      %v1854 = vpack.c.b16 %v1626, %v1625
      %v1855 = vpack.c.b16 %v1628, %v1627
      %v1856 = vpack.c.b16 %v1630, %v1629
      %v1857 = vpack.c.b16 %v1632, %v1631
      %v1858 = vpack.c.b16 %v1634, %v1633
      %v1859 = vpack.c.b16 %v1636, %v1635
      %v1860 = vpack.c.b16 %v1638, %v1637
      %v1861 = vpack.c.b16 %v1640, %v1639
      %v1862 = vpack.c.b16 %v1642, %v1641
      %v1863 = vpack.c.b16 %v1644, %v1643
      %v1864 = vpack.c.b16 %v1646, %v1645
      %v1865 = vpack.c.b16 %v1648, %v1647
      %v1866 = vpack.c.b16 %v1650, %v1649
      %v1867 = vpack.c.b16 %v1652, %v1651
      %v1868 = vpack.c.b16 %v1654, %v1653
      %v1869 = vpack.c.b16 %v1656, %v1655
      %v1870 = vpack.c.b16 %v1658, %v1657
      %v1871 = vpack.c.b16 %v1660, %v1659
      %v1872 = vpack.c.b16 %v1662, %v1661
      %v1873 = vpack.c.b16 %v1664, %v1663
      %v1874 = vpack.c.b16 %v1666, %v1665
      %v1875 = vpack.c.b16 %v1668, %v1667
      %v1876 = vpack.c.b16 %v1670, %v1669
      %v1877 = vpack.c.b16 %v1672, %v1671
      %v1878 = vpack.c.b16 %v1674, %v1673
      %v1879 = vpack.c.b16 %v1676, %v1675
      %v1880 = vpack.c.b16 %v1678, %v1677
      %v1881 = vpack.c.b16 %v1680, %v1679
      %v1882 = vpack.c.b16 %v1682, %v1681
      %v1883 = vpack.c.b16 %v1684, %v1683
      %v1884 = vpack.c.b16 %v1686, %v1685
      %v1885 = vpack.c.b16 %v1688, %v1687
      %v1886 = vpack.c.b16 %v1690, %v1689
      %v1887 = vpack.c.b16 %v1692, %v1691
      %v1888 = vpack.c.b16 %v1694, %v1693
      %v1889 = vpack.c.b16 %v1696, %v1695
      %v1890 = vpack.c.b16 %v1698, %v1697
      %v1891 = vpack.c.b16 %v1700, %v1699
      %v1892 = vpack.c.b16 %v1702, %v1701
      %v1893 = vpack.c.b16 %v1704, %v1703
      %v1894 = vpack.c.b16 %v1706, %v1705
      %v1895 = vpack.c.b16 %v1708, %v1707
      %v1896 = vpack.c.b16 %v1710, %v1709
      %v1897 = vpack.c.b16 %v1712, %v1711
      %v1898 = vpack.c.b16 %v1714, %v1713
      %v1899 = vpack.c.b16 %v1716, %v1715
      %v1900 = vpack.c.b16 %v1718, %v1717
      %v1901 = vpack.c.b16 %v1720, %v1719
      %v1902 = vpack.c.b16 %v1722, %v1721
      %v1903 = vpack.c.b16 %v1724, %v1723
      %v1904 = vpack.c.b16 %v1726, %v1725
      %v1905 = vpack.c.b16 %v1728, %v1727
      %v1906 = vpack.c.b16 %v1730, %v1729
      %v1907 = vpack.c.b16 %v1732, %v1731
      %v1908 = vpack.c.b16 %v1734, %v1733
      %v1909 = vpack.c.b16 %v1736, %v1735
      %v1910 = vpack.c.b16 %v1738, %v1737
      %v1911 = vpack.c.b16 %v1740, %v1739
      %v1912 = vpack.c.b16 %v1742, %v1741
      %v1913 = vpack.c.b16 %v1744, %v1743
      %v1914 = vpack.c.b16 %v1746, %v1745
      %v1915 = vpack.c.b16 %v1748, %v1747
      %v1916 = vpack.c.b16 %v1750, %v1749
      %v1917 = vpack.c.b16 %v1752, %v1751
      %v1918 = vpack.c.b16 %v1754, %v1753
      %v1919 = vpack.c.b16 %v1756, %v1755
      %v1920 = vpack.c.b16 %v1758, %v1757
      %v1921 = vpack.c.b16 %v1760, %v1759
      %v1922 = vpack.c.b16 %v1762, %v1761
      %v1923 = vpack.c.b16 %v1764, %v1763
      %v1924 = vpack.c.b16 %v1766, %v1765
      %v1925 = vpack.c.b16 %v1768, %v1767
      %v1926 = vpack.c.b16 %v1770, %v1769
      %v1927 = vpack.c.b16 %v1772, %v1771
      %v1928 = vpack.c.b16 %v1774, %v1773
      %v1929 = vpack.c.b16 %v1776, %v1775
      %v1930 = vpack.c.b16 %v1778, %v1777
      %v1931 = vpack.c.b16 %v1780, %v1779
      %v1932 = vpack.c.b16 %v1782, %v1781
      %v1933 = vpack.c.b16 %v1784, %v1783
      %v1934 = vpack.c.b16 %v1786, %v1785
      %v1935 = vpack.c.b16 %v1788, %v1787
      %v1936 = vpack.c.b16 %v1790, %v1789
      %v1937 = vpack.c.b16 %v1792, %v1791
      %v1938 = vpack.c.b16 %v1794, %v1793
      %2083 = vmatpush.bf16.msra.mxu0 %v1802
      %2084 = vmatpush.bf16.msra.mxu0 %v1801
      %2085 = vmatpush.bf16.msra.mxu0 %v1800
      %2086 = vmatpush.bf16.msra.mxu0 %v1799
      %2087 = vmatpush.bf16.msra.mxu0 %v1798
      %2088 = vmatpush.bf16.msra.mxu0 %v1797
      %2089 = vmatpush.bf16.msra.mxu0 %v1796
      %2090 = vmatpush.bf16.msra.mxu0 %v1795
      %2091 = vmatmul.bf16.gmra.mxu0 %v787
      %v2092 = vpop.f32.mrf.mxu0
      %v2093 = vadd.f32 0.0, %v2092
      %v2094 = vpop.f32.mrf.mxu0
      %v2095 = vadd.f32 0.0, %v2094
      %2096 = vmatmul.bf16.gmra.mxu0 %v789
      %v2097 = vpop.f32.mrf.mxu0
      %v2098 = vadd.f32 0.0, %v2097
      %v2099 = vpop.f32.mrf.mxu0
      %v2100 = vadd.f32 0.0, %v2099
      %2101 = vdwg.mxu0
      %2102 = vmatpush.bf16.msra.mxu0 %v1810
      %2103 = vmatpush.bf16.msra.mxu0 %v1809
      %2104 = vmatpush.bf16.msra.mxu0 %v1808
      %2105 = vmatpush.bf16.msra.mxu0 %v1807
      %2106 = vmatpush.bf16.msra.mxu0 %v1806
      %2107 = vmatpush.bf16.msra.mxu0 %v1805
      %2108 = vmatpush.bf16.msra.mxu0 %v1804
      %2109 = vmatpush.bf16.msra.mxu0 %v1803
      %2110 = vmatmul.bf16.gmra.mxu0 %v788
      %v2111 = vpop.f32.mrf.mxu0
      %v2112 = vadd.f32 %v2093, %v2111
      %v2113 = vpop.f32.mrf.mxu0
      %v2114 = vadd.f32 %v2095, %v2113
      %2115 = vmatmul.bf16.gmra.mxu0 %v790
      %v2116 = vpop.f32.mrf.mxu0
      %v2117 = vadd.f32 %v2098, %v2116
      %v2118 = vpop.f32.mrf.mxu0
      %v2119 = vadd.f32 %v2100, %v2118
      %2120 = vdwg.mxu0
      %2121 = vmatpush.bf16.msra.mxu0 %v1818
      %2122 = vmatpush.bf16.msra.mxu0 %v1817
      %2123 = vmatpush.bf16.msra.mxu0 %v1816
      %2124 = vmatpush.bf16.msra.mxu0 %v1815
      %2125 = vmatpush.bf16.msra.mxu0 %v1814
      %2126 = vmatpush.bf16.msra.mxu0 %v1813
      %2127 = vmatpush.bf16.msra.mxu0 %v1812
      %2128 = vmatpush.bf16.msra.mxu0 %v1811
      %2129 = vmatmul.bf16.gmra.mxu0 %v803
      %v2130 = vpop.f32.mrf.mxu0
      %v2131 = vadd.f32 %v2112, %v2130
      %v2132 = vpop.f32.mrf.mxu0
      %v2133 = vadd.f32 %v2114, %v2132
      %2134 = vmatmul.bf16.gmra.mxu0 %v805
      %v2135 = vpop.f32.mrf.mxu0
      %v2136 = vadd.f32 %v2117, %v2135
      %v2137 = vpop.f32.mrf.mxu0
      %v2138 = vadd.f32 %v2119, %v2137
      %2139 = vdwg.mxu0
      %2140 = vmatpush.bf16.msra.mxu0 %v1826
      %2141 = vmatpush.bf16.msra.mxu0 %v1825
      %2142 = vmatpush.bf16.msra.mxu0 %v1824
      %2143 = vmatpush.bf16.msra.mxu0 %v1823
      %2144 = vmatpush.bf16.msra.mxu0 %v1822
      %2145 = vmatpush.bf16.msra.mxu0 %v1821
      %2146 = vmatpush.bf16.msra.mxu0 %v1820
      %2147 = vmatpush.bf16.msra.mxu0 %v1819
      %2148 = vmatmul.bf16.gmra.mxu0 %v804
      %v2149 = vpop.f32.mrf.mxu0
      %v2150 = vadd.f32 %v2131, %v2149
      %v2151 = vpop.f32.mrf.mxu0
      %v2152 = vadd.f32 %v2133, %v2151
      %2153 = vmatmul.bf16.gmra.mxu0 %v806
      %v2154 = vpop.f32.mrf.mxu0
      %v2155 = vadd.f32 %v2136, %v2154
      %v2156 = vpop.f32.mrf.mxu0
      %v2157 = vadd.f32 %v2138, %v2156
      %2158 = vdwg.mxu0
      %2159 = vmatpush.bf16.msra.mxu0 %v1834
      %2160 = vmatpush.bf16.msra.mxu0 %v1833
      %2161 = vmatpush.bf16.msra.mxu0 %v1832
      %2162 = vmatpush.bf16.msra.mxu0 %v1831
      %2163 = vmatpush.bf16.msra.mxu0 %v1830
      %2164 = vmatpush.bf16.msra.mxu0 %v1829
      %2165 = vmatpush.bf16.msra.mxu0 %v1828
      %2166 = vmatpush.bf16.msra.mxu0 %v1827
      %2167 = vmatmul.bf16.gmra.mxu0 %v819
      %v2168 = vpop.f32.mrf.mxu0
      %v2169 = vadd.f32 %v2150, %v2168
      %v2170 = vpop.f32.mrf.mxu0
      %v2171 = vadd.f32 %v2152, %v2170
      %2172 = vmatmul.bf16.gmra.mxu0 %v821
      %v2173 = vpop.f32.mrf.mxu0
      %v2174 = vadd.f32 %v2155, %v2173
      %v2175 = vpop.f32.mrf.mxu0
      %v2176 = vadd.f32 %v2157, %v2175
      %2177 = vdwg.mxu0
      %2178 = vmatpush.bf16.msra.mxu0 %v1842
      %2179 = vmatpush.bf16.msra.mxu0 %v1841
      %2180 = vmatpush.bf16.msra.mxu0 %v1840
      %2181 = vmatpush.bf16.msra.mxu0 %v1839
      %2182 = vmatpush.bf16.msra.mxu0 %v1838
      %2183 = vmatpush.bf16.msra.mxu0 %v1837
      %2184 = vmatpush.bf16.msra.mxu0 %v1836
      %2185 = vmatpush.bf16.msra.mxu0 %v1835
      %2186 = vmatmul.bf16.gmra.mxu0 %v820
      %v2187 = vpop.f32.mrf.mxu0
      %v2188 = vadd.f32 %v2169, %v2187
      %v2189 = vpop.f32.mrf.mxu0
      %v2190 = vadd.f32 %v2171, %v2189
      %2191 = vmatmul.bf16.gmra.mxu0 %v822
      %v2192 = vpop.f32.mrf.mxu0
      %v2193 = vadd.f32 %v2174, %v2192
      %v2194 = vpop.f32.mrf.mxu0
      %v2195 = vadd.f32 %v2176, %v2194
      %2196 = vdwg.mxu0
      %2197 = vmatpush.bf16.msra.mxu0 %v1850
      %2198 = vmatpush.bf16.msra.mxu0 %v1849
      %2199 = vmatpush.bf16.msra.mxu0 %v1848
      %2200 = vmatpush.bf16.msra.mxu0 %v1847
      %2201 = vmatpush.bf16.msra.mxu0 %v1846
      %2202 = vmatpush.bf16.msra.mxu0 %v1845
      %2203 = vmatpush.bf16.msra.mxu0 %v1844
      %2204 = vmatpush.bf16.msra.mxu0 %v1843
      %2205 = vmatmul.bf16.gmra.mxu0 %v839
      %v2206 = vpop.f32.mrf.mxu0
      %v2207 = vadd.f32 %v2188, %v2206
      %v2208 = vpop.f32.mrf.mxu0
      %v2209 = vadd.f32 %v2190, %v2208
      %2210 = vmatmul.bf16.gmra.mxu0 %v841
      %v2211 = vpop.f32.mrf.mxu0
      %v2212 = vadd.f32 %v2193, %v2211
      %v2213 = vpop.f32.mrf.mxu0
      %v2214 = vadd.f32 %v2195, %v2213
      %2215 = vdwg.mxu0
      %2216 = vmatpush.bf16.msra.mxu0 %v1858
      %2217 = vmatpush.bf16.msra.mxu0 %v1857
      %2218 = vmatpush.bf16.msra.mxu0 %v1856
      %2219 = vmatpush.bf16.msra.mxu0 %v1855
      %2220 = vmatpush.bf16.msra.mxu0 %v1854
      %2221 = vmatpush.bf16.msra.mxu0 %v1853
      %2222 = vmatpush.bf16.msra.mxu0 %v1852
      %2223 = vmatpush.bf16.msra.mxu0 %v1851
      %2224 = vmatmul.bf16.gmra.mxu0 %v840
      %v2225 = vpop.f32.mrf.mxu0
      %v2226 = vadd.f32 %v2207, %v2225
      %v2227 = vpop.f32.mrf.mxu0
      %v2228 = vadd.f32 %v2209, %v2227
      %2229 = vmatmul.bf16.gmra.mxu0 %v842
      %v2230 = vpop.f32.mrf.mxu0
      %v2231 = vadd.f32 %v2212, %v2230
      %v2232 = vpop.f32.mrf.mxu0
      %v2233 = vadd.f32 %v2214, %v2232
      %2234 = vdwg.mxu0
      %2235 = vmatpush.bf16.msra.mxu0 %v1866
      %2236 = vmatpush.bf16.msra.mxu0 %v1865
      %2237 = vmatpush.bf16.msra.mxu0 %v1864
      %2238 = vmatpush.bf16.msra.mxu0 %v1863
      %2239 = vmatpush.bf16.msra.mxu0 %v1862
      %2240 = vmatpush.bf16.msra.mxu0 %v1861
      %2241 = vmatpush.bf16.msra.mxu0 %v1860
      %2242 = vmatpush.bf16.msra.mxu0 %v1859
      %2243 = vmatmul.bf16.gmra.mxu0 %v855
      %v2244 = vpop.f32.mrf.mxu0
      %v2245 = vadd.f32 %v2226, %v2244
      %v2246 = vpop.f32.mrf.mxu0
      %v2247 = vadd.f32 %v2228, %v2246
      %2248 = vmatmul.bf16.gmra.mxu0 %v857
      %v2249 = vpop.f32.mrf.mxu0
      %v2250 = vadd.f32 %v2231, %v2249
      %v2251 = vpop.f32.mrf.mxu0
      %v2252 = vadd.f32 %v2233, %v2251
      %2253 = vdwg.mxu0
      %2254 = vmatpush.bf16.msra.mxu0 %v1874
      %2255 = vmatpush.bf16.msra.mxu0 %v1873
      %2256 = vmatpush.bf16.msra.mxu0 %v1872
      %2257 = vmatpush.bf16.msra.mxu0 %v1871
      %2258 = vmatpush.bf16.msra.mxu0 %v1870
      %2259 = vmatpush.bf16.msra.mxu0 %v1869
      %2260 = vmatpush.bf16.msra.mxu0 %v1868
      %2261 = vmatpush.bf16.msra.mxu0 %v1867
      %2262 = vmatmul.bf16.gmra.mxu0 %v856
      %v2263 = vpop.f32.mrf.mxu0
      %v2264 = vadd.f32 %v2245, %v2263
      %v2265 = vpop.f32.mrf.mxu0
      %v2266 = vadd.f32 %v2247, %v2265
      %2267 = vmatmul.bf16.gmra.mxu0 %v858
      %v2268 = vpop.f32.mrf.mxu0
      %v2269 = vadd.f32 %v2250, %v2268
      %v2270 = vpop.f32.mrf.mxu0
      %v2271 = vadd.f32 %v2252, %v2270
      %2272 = vdwg.mxu0
      %2273 = vmatpush.bf16.msra.mxu0 %v1882
      %2274 = vmatpush.bf16.msra.mxu0 %v1881
      %2275 = vmatpush.bf16.msra.mxu0 %v1880
      %2276 = vmatpush.bf16.msra.mxu0 %v1879
      %2277 = vmatpush.bf16.msra.mxu0 %v1878
      %2278 = vmatpush.bf16.msra.mxu0 %v1877
      %2279 = vmatpush.bf16.msra.mxu0 %v1876
      %2280 = vmatpush.bf16.msra.mxu0 %v1875
      %2281 = vmatmul.bf16.gmra.mxu0 %v871
      %v2282 = vpop.f32.mrf.mxu0
      %v2283 = vadd.f32 %v2264, %v2282
      %v2284 = vpop.f32.mrf.mxu0
      %v2285 = vadd.f32 %v2266, %v2284
      %2286 = vmatmul.bf16.gmra.mxu0 %v873
      %v2287 = vpop.f32.mrf.mxu0
      %v2288 = vadd.f32 %v2269, %v2287
      %v2289 = vpop.f32.mrf.mxu0
      %v2290 = vadd.f32 %v2271, %v2289
      %2291 = vdwg.mxu0
      %2292 = vmatpush.bf16.msra.mxu0 %v1890
      %2293 = vmatpush.bf16.msra.mxu0 %v1889
      %2294 = vmatpush.bf16.msra.mxu0 %v1888
      %2295 = vmatpush.bf16.msra.mxu0 %v1887
      %2296 = vmatpush.bf16.msra.mxu0 %v1886
      %2297 = vmatpush.bf16.msra.mxu0 %v1885
      %2298 = vmatpush.bf16.msra.mxu0 %v1884
      %2299 = vmatpush.bf16.msra.mxu0 %v1883
      %2300 = vmatmul.bf16.gmra.mxu0 %v872
      %v2301 = vpop.f32.mrf.mxu0
      %v2302 = vadd.f32 %v2283, %v2301
      %v2303 = vpop.f32.mrf.mxu0
      %v2304 = vadd.f32 %v2285, %v2303
      %2305 = vmatmul.bf16.gmra.mxu0 %v874
      %v2306 = vpop.f32.mrf.mxu0
      %v2307 = vadd.f32 %v2288, %v2306
      %v2308 = vpop.f32.mrf.mxu0
      %v2309 = vadd.f32 %v2290, %v2308
      %2310 = vdwg.mxu0
      %2311 = vmatpush.bf16.msra.mxu0 %v1898
      %2312 = vmatpush.bf16.msra.mxu0 %v1897
      %2313 = vmatpush.bf16.msra.mxu0 %v1896
      %2314 = vmatpush.bf16.msra.mxu0 %v1895
      %2315 = vmatpush.bf16.msra.mxu0 %v1894
      %2316 = vmatpush.bf16.msra.mxu0 %v1893
      %2317 = vmatpush.bf16.msra.mxu0 %v1892
      %2318 = vmatpush.bf16.msra.mxu0 %v1891
      %2319 = vmatmul.bf16.gmra.mxu0 %v891
      %v2320 = vpop.f32.mrf.mxu0
      %v2321 = vadd.f32 %v2302, %v2320
      %v2322 = vpop.f32.mrf.mxu0
      %v2323 = vadd.f32 %v2304, %v2322
      %2324 = vmatmul.bf16.gmra.mxu0 %v893
      %v2325 = vpop.f32.mrf.mxu0
      %v2326 = vadd.f32 %v2307, %v2325
      %v2327 = vpop.f32.mrf.mxu0
      %v2328 = vadd.f32 %v2309, %v2327
      %2329 = vdwg.mxu0
      %2330 = vmatpush.bf16.msra.mxu0 %v1906
      %2331 = vmatpush.bf16.msra.mxu0 %v1905
      %2332 = vmatpush.bf16.msra.mxu0 %v1904
      %2333 = vmatpush.bf16.msra.mxu0 %v1903
      %2334 = vmatpush.bf16.msra.mxu0 %v1902
      %2335 = vmatpush.bf16.msra.mxu0 %v1901
      %2336 = vmatpush.bf16.msra.mxu0 %v1900
      %2337 = vmatpush.bf16.msra.mxu0 %v1899
      %2338 = vmatmul.bf16.gmra.mxu0 %v892
      %v2339 = vpop.f32.mrf.mxu0
      %v2340 = vadd.f32 %v2321, %v2339
      %v2341 = vpop.f32.mrf.mxu0
      %v2342 = vadd.f32 %v2323, %v2341
      %2343 = vmatmul.bf16.gmra.mxu0 %v894
      %v2344 = vpop.f32.mrf.mxu0
      %v2345 = vadd.f32 %v2326, %v2344
      %v2346 = vpop.f32.mrf.mxu0
      %v2347 = vadd.f32 %v2328, %v2346
      %2348 = vdwg.mxu0
      %2349 = vmatpush.bf16.msra.mxu0 %v1914
      %2350 = vmatpush.bf16.msra.mxu0 %v1913
      %2351 = vmatpush.bf16.msra.mxu0 %v1912
      %2352 = vmatpush.bf16.msra.mxu0 %v1911
      %2353 = vmatpush.bf16.msra.mxu0 %v1910
      %2354 = vmatpush.bf16.msra.mxu0 %v1909
      %2355 = vmatpush.bf16.msra.mxu0 %v1908
      %2356 = vmatpush.bf16.msra.mxu0 %v1907
      %2357 = vmatmul.bf16.gmra.mxu0 %v907
      %v2358 = vpop.f32.mrf.mxu0
      %v2359 = vadd.f32 %v2340, %v2358
      %v2360 = vpop.f32.mrf.mxu0
      %v2361 = vadd.f32 %v2342, %v2360
      %2362 = vmatmul.bf16.gmra.mxu0 %v909
      %v2363 = vpop.f32.mrf.mxu0
      %v2364 = vadd.f32 %v2345, %v2363
      %v2365 = vpop.f32.mrf.mxu0
      %v2366 = vadd.f32 %v2347, %v2365
      %2367 = vdwg.mxu0
      %2368 = vmatpush.bf16.msra.mxu0 %v1922
      %2369 = vmatpush.bf16.msra.mxu0 %v1921
      %2370 = vmatpush.bf16.msra.mxu0 %v1920
      %2371 = vmatpush.bf16.msra.mxu0 %v1919
      %2372 = vmatpush.bf16.msra.mxu0 %v1918
      %2373 = vmatpush.bf16.msra.mxu0 %v1917
      %2374 = vmatpush.bf16.msra.mxu0 %v1916
      %2375 = vmatpush.bf16.msra.mxu0 %v1915
      %2376 = vmatmul.bf16.gmra.mxu0 %v908
      %v2377 = vpop.f32.mrf.mxu0
      %v2378 = vadd.f32 %v2359, %v2377
      %v2379 = vpop.f32.mrf.mxu0
      %v2380 = vadd.f32 %v2361, %v2379
      %2381 = vmatmul.bf16.gmra.mxu0 %v910
      %v2382 = vpop.f32.mrf.mxu0
      %v2383 = vadd.f32 %v2364, %v2382
      %v2384 = vpop.f32.mrf.mxu0
      %v2385 = vadd.f32 %v2366, %v2384
      %2386 = vdwg.mxu0
      %2387 = vmatpush.bf16.msra.mxu0 %v1930
      %2388 = vmatpush.bf16.msra.mxu0 %v1929
      %2389 = vmatpush.bf16.msra.mxu0 %v1928
      %2390 = vmatpush.bf16.msra.mxu0 %v1927
      %2391 = vmatpush.bf16.msra.mxu0 %v1926
      %2392 = vmatpush.bf16.msra.mxu0 %v1925
      %2393 = vmatpush.bf16.msra.mxu0 %v1924
      %2394 = vmatpush.bf16.msra.mxu0 %v1923
      %2395 = vmatmul.bf16.gmra.mxu0 %v923
      %v2396 = vpop.f32.mrf.mxu0
      %v2397 = vadd.f32 %v2378, %v2396
      %v2398 = vpop.f32.mrf.mxu0
      %v2399 = vadd.f32 %v2380, %v2398
      %2400 = vmatmul.bf16.gmra.mxu0 %v925
      %v2401 = vpop.f32.mrf.mxu0
      %v2402 = vadd.f32 %v2383, %v2401
      %v2403 = vpop.f32.mrf.mxu0
      %v2404 = vadd.f32 %v2385, %v2403
      %2405 = vdwg.mxu0
      %2406 = vmatpush.bf16.msra.mxu0 %v1938
      %2407 = vmatpush.bf16.msra.mxu0 %v1937
      %2408 = vmatpush.bf16.msra.mxu0 %v1936
      %2409 = vmatpush.bf16.msra.mxu0 %v1935
      %2410 = vmatpush.bf16.msra.mxu0 %v1934
      %2411 = vmatpush.bf16.msra.mxu0 %v1933
      %2412 = vmatpush.bf16.msra.mxu0 %v1932
      %2413 = vmatpush.bf16.msra.mxu0 %v1931
      %2414 = vmatmul.bf16.gmra.mxu0 %v924
      %v2415 = vpop.f32.mrf.mxu0
      %v2416 = vadd.f32 %v2397, %v2415
      %v2417 = vpop.f32.mrf.mxu0
      %v2418 = vadd.f32 %v2399, %v2417
      %2419 = vmatmul.bf16.gmra.mxu0 %v926
      %v2420 = vpop.f32.mrf.mxu0
      %v2421 = vadd.f32 %v2402, %v2420
      %v2422 = vpop.f32.mrf.mxu0
      %v2423 = vadd.f32 %v2404, %v2422
      %2424 = vdwg.mxu0
      %v2425 = vpack.c.bf16 %v2416, %v2416
      %v2426 = vpack.c.bf16 %v2418, %v2418
      %v2427 = vpack.c.bf16 %v2421, %v2421
      %v2428 = vpack.c.bf16 %v2423, %v2423
      %vm2429 = vcmask 519168
      %2430 = vst.msk [vmem:[%s219] sm:$0xf] %vm2429, %v2425
      %2431 = vst.msk [vmem:[%s219 + $0x4] sm:$0xf] %vm2429, %v2426
      %2432 = vst.msk [vmem:[%s219 + $0x8] sm:$0xf] %vm2429, %v2427
      %2433 = vst.msk [vmem:[%s219 + $0xc] sm:$0xf] %vm2429, %v2428
      %s2434 = smul.u32 4, %s20
      %p2435 = scmp.lt.s32.totalorder %s19, 1
      %s2436 = scalar_select %p2435, %s19, 1
      %p2437 = scmp.lt.s32.totalorder %s2434, 7
      %s2438 = scalar_select %p2437, %s2434, 7
      %s2439 = smul.addr %s2436, 8
      %s2440 = sadd.s32 %s2438, %s2439
      %s2441 = smul.addr %s2440, 4
      %s2442 = scalar_lea.vmem %s4, %s2441
      // Predicated region
      $region41: #{_lambda_.24} parent=35 // pred_check
        %p2443 = pneg %p136
      $region42: #{_lambda_.24} parent=35 // pred_check_branch
        %2445 = sbr.rel (%p2443) target = $region44
      $region43: #{_lambda_.24} parent=35 // pred_region
        %s2446 = smul.u32 4, %s20
      $region44: #{_lambda_.24} parent=35 // pred_fallthru
        _
    $region36: #{_lambda_.24} parent=5 // pred_fallthru
      _
    %p2447 = scmp.le.s32.totalorder 2, %s10
    // Predicated region
    $region45: #{_lambda_.24} parent=5 // pred_check
      %p2448 = pneg %p2447
    $region46: #{_lambda_.24} parent=5 // pred_check_branch
      %2450 = sbr.rel (%p2448) target = $region48
    $region47: #{_lambda_.24} parent=5 // pred_region
      %s2451 = ssub.s32 %s10, 2
      // Predicated region
      $region49: #{_lambda_.24} parent=47 // pred_check
        %p2452 = pneg %p142
      $region50: #{_lambda_.24} parent=47 // pred_check_branch
        %2454 = sbr.rel (%p2452) target = $region52
      $region51: #{_lambda_.24} parent=47 // pred_region
        %s2455 = smul.u32 4, %s22
        %p2456 = scmp.lt.s32.totalorder %s21, 1
        %s2457 = scalar_select %p2456, %s21, 1
        %p2458 = scmp.lt.s32.totalorder %s2455, 7
        %s2459 = scalar_select %p2458, %s2455, 7
        %s2460 = smul.addr %s2457, 8
        %s2461 = sadd.s32 %s2459, %s2460
        %s2462 = smul.addr %s2461, 4
        %s2463 = scalar_lea.vmem %s4, %s2462
      $region52: #{_lambda_.24} parent=47 // pred_fallthru
        _
    $region48: #{_lambda_.24} parent=5 // pred_fallthru
      _
  $region6: #{_lambda_.24} parent=0 // loop_footer
    %s14 = sadd.s32 1, %s10
  $region7: #{_lambda_.24} parent=0 // loop_footer_branch
    %9 = sbr.rel target = $region3
  $region8: #{_lambda_.24} parent=0 // loop_exit
    _

</llo_original>
